<compile_context>
chip_gen: v5e
topology: v5e:2x2
jax: 0.10.0
libtpu: 0.0.40
codegen_flags: <defaults>
</compile_context>

<pallas_src>
import numpy as np

import jax
import jax.numpy as jnp
from jax.experimental import pallas as pl
from jax.experimental.pallas import tpu as pltpu

INPUT_MEAN = jnp.array([0.2788, 0.2657, 0.2629], jnp.float32)
INPUT_STD = jnp.array([0.2064, 0.1944, 0.2252], jnp.float32)

_NCP = 128  # lane-dense padding of the head output / weights


# ---------------------------------------------------------------------------
# Selection matrices (built once at trace time; become kernel constants)
# ---------------------------------------------------------------------------
def _pool_pad_matrix(h, w):
    """S @ pooled picks the stride-2 pooled rows of an (h, w) conv output and
    scatters them into the next layer's zero-padded flattened layout."""
    wp = w + 2
    lq = h * wp - w - 5
    ho, wo = h // 2, w // 2
    wpn = wo + 2
    m = np.zeros(((ho + 2) * wpn, lq), np.float32)
    for io in range(ho):
        for jo in range(wo):
            m[(io + 1) * wpn + (jo + 1), 2 * io * wp + 2 * jo] = 1.0
    return jnp.asarray(m, jnp.bfloat16)


def _pool_mean_matrix(h, w):
    """Mean-weighted selection: global average pool over the pooled positions."""
    wp = w + 2
    lq = h * wp - w - 5
    ho, wo = h // 2, w // 2
    m = np.zeros((1, lq), np.float32)
    for io in range(ho):
        for jo in range(wo):
            m[0, 2 * io * wp + 2 * jo] = 1.0 / (ho * wo)
    return jnp.asarray(m, jnp.bfloat16)


# ---------------------------------------------------------------------------
# The fused whole-network kernel
# ---------------------------------------------------------------------------
def _make_kernel(H, W):
    hws = [(H, W), (H // 2, W // 2), (H // 4, W // 4), (H // 8, W // 8)]
    final_hw = (hws[3][0] // 2) * (hws[3][1] // 2)

    def kernel(x_ref,
               w1_ref, s1_ref, b1_ref, sel1_ref,
               w2_ref, s2_ref, b2_ref, sel2_ref,
               w3_ref, s3_ref, b3_ref, sel3_ref,
               w4_ref, s4_ref, b4_ref, sel4_ref,
               wh_ref, bh_ref,
               out_ref,
               a2_ref, a3_ref, a4_ref,
               y1_ref, y2_ref, y3_ref, y4_ref):
        bf16 = jnp.bfloat16

        def conv_bn_relu_pool(load_patch, w_ref, s_ref, b_ref, y_ref, h, w):
            """3x3 conv (9 tap matmuls, bf16 MXU, f32 acc) + folded BN + ReLU
            + 2x2 max pool on the flattened padded layout [(h+2)*(w+2), Cin]."""
            wp = w + 2
            L = h * wp - 2            # conv-output rows (incl. junk columns)
            lq = L - (w + 3)          # rows after the 2x2-window max
            cout = w_ref.shape[2]
            acc = jnp.zeros((L, cout), jnp.float32)
            for t in range(9):        # taps: dy = t // 3, dx = t % 3
                off = (t // 3) * wp + (t % 3)
                acc = acc + jnp.dot(load_patch(off, L), w_ref[t],
                                    preferred_element_type=jnp.float32)
            y_ref[...] = jnp.maximum(acc * s_ref[...] + b_ref[...], 0.0)
            # max over the 4 window taps; stride-2 row selection is deferred
            # to the (linear) selection matmul that follows.
            return jnp.maximum(
                jnp.maximum(y_ref[0:lq, :], y_ref[1:lq + 1, :]),
                jnp.maximum(y_ref[wp:wp + lq, :], y_ref[wp + 1:wp + 1 + lq, :]),
            )

        def sel_dot(sel_ref, pooled):
            return jnp.dot(sel_ref[...], pooled.astype(bf16),
                           preferred_element_type=jnp.float32)

        p1 = conv_bn_relu_pool(lambda o, n: x_ref[0, o:o + n, :].astype(bf16),
                               w1_ref, s1_ref, b1_ref, y1_ref, *hws[0])
        a2_ref[...] = sel_dot(sel1_ref, p1)

        p2 = conv_bn_relu_pool(lambda o, n: a2_ref[o:o + n, :].astype(bf16),
                               w2_ref, s2_ref, b2_ref, y2_ref, *hws[1])
        a3_ref[...] = sel_dot(sel2_ref, p2)

        p3 = conv_bn_relu_pool(lambda o, n: a3_ref[o:o + n, :].astype(bf16),
                               w3_ref, s3_ref, b3_ref, y3_ref, *hws[2])
        a4_ref[...] = sel_dot(sel3_ref, p3)

        p4 = conv_bn_relu_pool(lambda o, n: a4_ref[o:o + n, :].astype(bf16),
                               w4_ref, s4_ref, b4_ref, y4_ref, *hws[3])

        # Head: global average pool (linear) then 1x1 conv == single matmul.
        if final_hw == 1:
            gap = p4                       # single pooled position == its mean
        else:
            gap = sel_dot(sel4_ref, p4)    # mean-weighted selection
        logits = jnp.dot(gap.astype(bf16), wh_ref[...],
                         preferred_element_type=jnp.float32) + bh_ref[...]
        out_ref[0] = logits

    return kernel


# ---------------------------------------------------------------------------
# Wrapper
# ---------------------------------------------------------------------------
def classifier_forward(x_nchw, params):
    blocks, (wh, bh) = params
    B, C, H, W = x_nchw.shape
    assert H % 16 == 0 and W % 16 == 0, "spatial dims must be multiples of 16"
    num_classes = wh.shape[1]

    # plain-JAX prologue: NCHW->NHWC, normalize, one-time zero pad + flatten.
    x = jnp.transpose(x_nchw, (0, 2, 3, 1)).astype(jnp.float32)
    z = (x - INPUT_MEAN) / INPUT_STD
    zp = jnp.pad(z, ((0, 0), (1, 1), (1, 1), (0, 0)))
    a1 = zp.reshape(B, (H + 2) * (W + 2), C)

    hws = [(H, W), (H // 2, W // 2), (H // 4, W // 4), (H // 8, W // 8)]
    sels = [_pool_pad_matrix(*hws[0]), _pool_pad_matrix(*hws[1]),
            _pool_pad_matrix(*hws[2]), _pool_mean_matrix(*hws[3])]

    inputs = [a1]
    in_specs = [pl.BlockSpec((1, a1.shape[1], C), lambda i: (i, 0, 0))]
    for li, (w_hwio, scale, bias) in enumerate(blocks):
        cin, cout = w_hwio.shape[2], w_hwio.shape[3]
        inputs += [
            w_hwio.reshape(9, cin, cout).astype(jnp.bfloat16),  # (tap, Cin, Cout)
            scale.reshape(1, cout).astype(jnp.float32),
            bias.reshape(1, cout).astype(jnp.float32),
            sels[li],
        ]
        in_specs += [
            pl.BlockSpec((9, cin, cout), lambda i: (0, 0, 0)),
            pl.BlockSpec((1, cout), lambda i: (0, 0)),
            pl.BlockSpec((1, cout), lambda i: (0, 0)),
            pl.BlockSpec(sels[li].shape, lambda i: (0, 0)),
        ]

    # lane-dense head: pad num_classes -> 128 lanes (sliced back below).
    wh_pad = jnp.zeros((wh.shape[0], _NCP), jnp.float32).at[:, :num_classes].set(wh)
    bh_pad = jnp.zeros((1, _NCP), jnp.float32).at[0, :num_classes].set(bh)
    inputs += [wh_pad.astype(jnp.bfloat16), bh_pad]
    in_specs += [
        pl.BlockSpec((wh.shape[0], _NCP), lambda i: (0, 0)),
        pl.BlockSpec((1, _NCP), lambda i: (0, 0)),
    ]

    couts = [blk[0].shape[3] for blk in blocks]
    scratch_shapes = (
        # padded flattened inputs of layers 2..4
        [pltpu.VMEM(((hws[li][0] // 2 + 2) * (hws[li][1] // 2 + 2), couts[li]),
                    jnp.float32) for li in range(3)]
        # conv+BN+ReLU outputs of layers 1..4 (pre-pool)
        + [pltpu.VMEM((hws[li][0] * (hws[li][1] + 2) - 2, couts[li]),
                      jnp.float32) for li in range(4)]
    )

    out = pl.pallas_call(
        _make_kernel(H, W),
        out_shape=jax.ShapeDtypeStruct((B, 1, _NCP), jnp.float32),
        grid=(B,),
        in_specs=in_specs,
        out_specs=pl.BlockSpec((1, 1, _NCP), lambda i: (i, 0, 0)),
        scratch_shapes=scratch_shapes,
        compiler_params=pltpu.CompilerParams(
            dimension_semantics=("parallel",)),
    )(*inputs)
    return out[:, 0, :num_classes]


# ---------------------------------------------------------------------------
# Parameters & reference
# ---------------------------------------------------------------------------
def init_params(key, in_channels=3, num_classes=6):
    """Deterministic synthetic parameters (BN folded into scale/bias)."""
    chans = [in_channels, 64, 128, 256, 512]
    blocks = []
    for li in range(4):
        cin, cout = chans[li], chans[li + 1]
        key, k1, k2, k3, k4, k5, k6 = jax.random.split(key, 7)
        w = jax.random.normal(k1, (3, 3, cin, cout), jnp.float32) / jnp.sqrt(9.0 * cin)
        b = 0.01 * jax.random.normal(k2, (cout,), jnp.float32)
        gamma = 1.0 + 0.1 * jax.random.normal(k3, (cout,), jnp.float32)
        beta = 0.1 * jax.random.normal(k4, (cout,), jnp.float32)
        rmean = 0.1 * jax.random.normal(k5, (cout,), jnp.float32)
        rvar = jnp.abs(1.0 + 0.1 * jax.random.normal(k6, (cout,), jnp.float32))
        scale = gamma / jnp.sqrt(rvar + 1e-5)
        bias = beta + (b - rmean) * scale
        blocks.append((w, scale, bias))
    key, k1, k2 = jax.random.split(key, 3)
    wh = jax.random.normal(k1, (512, num_classes), jnp.float32) / jnp.sqrt(512.0)
    bh = 0.01 * jax.random.normal(k2, (num_classes,), jnp.float32)
    return blocks, (wh, bh)


def _q(x):
    """bf16 quantization matching the kernel's MXU operand casts."""
    return x.astype(jnp.bfloat16).astype(jnp.float32)


def reference_forward(x_nchw, params):
    """Pure JAX/XLA reference (same bf16 operand rounding as the kernel)."""
    blocks, (wh, bh) = params
    x = jnp.transpose(x_nchw, (0, 2, 3, 1)).astype(jnp.float32)
    y = _q((x - INPUT_MEAN) / INPUT_STD)
    for (w, scale, bias) in blocks:
        y = jax.lax.conv_general_dilated(
            y, _q(w), (1, 1), "SAME",
            dimension_numbers=("NHWC", "HWIO", "NHWC"),
            precision=jax.lax.Precision.HIGHEST)
        y = _q(jnp.maximum(y * scale + bias, 0.0))
        y = jax.lax.reduce_window(y, -jnp.inf, jax.lax.max,
                                  (1, 2, 2, 1), (1, 2, 2, 1), "VALID")
    g = _q(y.mean(axis=(1, 2)))
    return jnp.dot(g, _q(wh), precision=jax.lax.Precision.HIGHEST) + bh


if __name__ == "__main__":
    key = jax.random.PRNGKey(0)
    kparam, kx = jax.random.split(key)
    params = init_params(kparam, in_channels=3, num_classes=6)

    # small input consistent with the module: (b=2, 3, 16, 16), vals in [0, 1]
    x = jax.random.uniform(kx, (2, 3, 16, 16), jnp.float32)

    logits = jax.block_until_ready(jax.jit(classifier_forward)(x, params))
    assert logits.shape == (2, 6), logits.shape

    ref = jax.block_until_ready(jax.jit(reference_forward)(x, params))
    assert jnp.allclose(logits, ref, rtol=2e-2, atol=2e-2), (logits, ref)

    print("KERNEL_OK")
</pallas_src>

<mosaic_0001>
module attributes {stable_mosaic.version = 11 : i64} {
  func.func @kernel(%arg0: i32, %arg1: memref<1x324x3xf32, #tpu.memory_space<vmem>>, %arg2: memref<9x3x64xbf16, #tpu.memory_space<vmem>>, %arg3: memref<1x64xf32, #tpu.memory_space<vmem>>, %arg4: memref<1x64xf32, #tpu.memory_space<vmem>>, %arg5: memref<100x267xbf16, #tpu.memory_space<vmem>>, %arg6: memref<9x64x128xbf16, #tpu.memory_space<vmem>>, %arg7: memref<1x128xf32, #tpu.memory_space<vmem>>, %arg8: memref<1x128xf32, #tpu.memory_space<vmem>>, %arg9: memref<36x67xbf16, #tpu.memory_space<vmem>>, %arg10: memref<9x128x256xbf16, #tpu.memory_space<vmem>>, %arg11: memref<1x256xf32, #tpu.memory_space<vmem>>, %arg12: memref<1x256xf32, #tpu.memory_space<vmem>>, %arg13: memref<16x15xbf16, #tpu.memory_space<vmem>>, %arg14: memref<9x256x512xbf16, #tpu.memory_space<vmem>>, %arg15: memref<1x512xf32, #tpu.memory_space<vmem>>, %arg16: memref<1x512xf32, #tpu.memory_space<vmem>>, %arg17: memref<1x1xbf16, #tpu.memory_space<vmem>>, %arg18: memref<512x128xbf16, #tpu.memory_space<vmem>>, %arg19: memref<1x128xf32, #tpu.memory_space<vmem>>, %arg20: memref<1x1x128xf32, #tpu.memory_space<vmem>>, %arg21: memref<100x64xf32, #tpu.memory_space<vmem>>, %arg22: memref<36x128xf32, #tpu.memory_space<vmem>>, %arg23: memref<16x256xf32, #tpu.memory_space<vmem>>, %arg24: memref<286x64xf32, #tpu.memory_space<vmem>>, %arg25: memref<78x128xf32, #tpu.memory_space<vmem>>, %arg26: memref<22x256xf32, #tpu.memory_space<vmem>>, %arg27: memref<6x512xf32, #tpu.memory_space<vmem>>) attributes {dimension_semantics = [#tpu.dimension_semantics<parallel>], iteration_bounds = array<i64: 2>, scalar_prefetch = 0 : i64, scratch_operands = 7 : i64, tpu.core_type = #tpu.core_type<tc>, window_params = [{transform_indices = @transform_0, window_bounds = array<i64: 1, 324, 3>}, {pipeline_mode = #tpu.pipeline_mode<synchronous>, transform_indices = @transform_1, window_bounds = array<i64: 9, 3, 64>}, {pipeline_mode = #tpu.pipeline_mode<synchronous>, transform_indices = @transform_2, window_bounds = array<i64: 1, 64>}, {pipeline_mode = #tpu.pipeline_mode<synchronous>, transform_indices = @transform_3, window_bounds = array<i64: 1, 64>}, {pipeline_mode = #tpu.pipeline_mode<synchronous>, transform_indices = @transform_4, window_bounds = array<i64: 100, 267>}, {pipeline_mode = #tpu.pipeline_mode<synchronous>, transform_indices = @transform_5, window_bounds = array<i64: 9, 64, 128>}, {pipeline_mode = #tpu.pipeline_mode<synchronous>, transform_indices = @transform_6, window_bounds = array<i64: 1, 128>}, {pipeline_mode = #tpu.pipeline_mode<synchronous>, transform_indices = @transform_7, window_bounds = array<i64: 1, 128>}, {pipeline_mode = #tpu.pipeline_mode<synchronous>, transform_indices = @transform_8, window_bounds = array<i64: 36, 67>}, {pipeline_mode = #tpu.pipeline_mode<synchronous>, transform_indices = @transform_9, window_bounds = array<i64: 9, 128, 256>}, {pipeline_mode = #tpu.pipeline_mode<synchronous>, transform_indices = @transform_10, window_bounds = array<i64: 1, 256>}, {pipeline_mode = #tpu.pipeline_mode<synchronous>, transform_indices = @transform_11, window_bounds = array<i64: 1, 256>}, {pipeline_mode = #tpu.pipeline_mode<synchronous>, transform_indices = @transform_12, window_bounds = array<i64: 16, 15>}, {pipeline_mode = #tpu.pipeline_mode<synchronous>, transform_indices = @transform_13, window_bounds = array<i64: 9, 256, 512>}, {pipeline_mode = #tpu.pipeline_mode<synchronous>, transform_indices = @transform_14, window_bounds = array<i64: 1, 512>}, {pipeline_mode = #tpu.pipeline_mode<synchronous>, transform_indices = @transform_15, window_bounds = array<i64: 1, 512>}, {pipeline_mode = #tpu.pipeline_mode<synchronous>, transform_indices = @transform_16, window_bounds = array<i64: 1, 1>}, {pipeline_mode = #tpu.pipeline_mode<synchronous>, transform_indices = @transform_17, window_bounds = array<i64: 512, 128>}, {pipeline_mode = #tpu.pipeline_mode<synchronous>, transform_indices = @transform_18, window_bounds = array<i64: 1, 128>}, {transform_indices = @transform_19, window_bounds = array<i64: 1, 1, 128>}]} {
    %cst = arith.constant 0.000000e+00 : f32
    %0 = vector.broadcast %cst : f32 to vector<286x64xf32>
    %c0 = arith.constant 0 : index
    %c0_0 = arith.constant 0 : index
    %c0_1 = arith.constant 0 : index
    %1 = vector.load %arg1[%c0, %c0_0, %c0_1] : memref<1x324x3xf32, #tpu.memory_space<vmem>>, vector<1x286x3xf32>
    %2 = vector.shape_cast %1 : vector<1x286x3xf32> to vector<286x3xf32>
    %3 = arith.truncf %2 : vector<286x3xf32> to vector<286x3xbf16>
    %c0_2 = arith.constant 0 : index
    %c0_3 = arith.constant 0 : index
    %c0_4 = arith.constant 0 : index
    %4 = vector.load %arg2[%c0_2, %c0_3, %c0_4] : memref<9x3x64xbf16, #tpu.memory_space<vmem>>, vector<1x3x64xbf16>
    %5 = vector.shape_cast %4 : vector<1x3x64xbf16> to vector<3x64xbf16>
    %cst_5 = arith.constant dense<0.000000e+00> : vector<286x64xf32>
    %6 = tpu.matmul %3, %5, %cst_5 {dimension_numbers = #tpu.dot_dimension_numbers<[1], [0], [0], [1], [0, 0, 1, 1], [], []>} : vector<286x3xbf16>, vector<3x64xbf16>, vector<286x64xf32> -> vector<286x64xf32>
    %7 = arith.addf %0, %6 : vector<286x64xf32>
    %c0_6 = arith.constant 0 : index
    %c1 = arith.constant 1 : index
    %c0_7 = arith.constant 0 : index
    %8 = vector.load %arg1[%c0_6, %c1, %c0_7] : memref<1x324x3xf32, #tpu.memory_space<vmem>>, vector<1x286x3xf32>
    %9 = vector.shape_cast %8 : vector<1x286x3xf32> to vector<286x3xf32>
    %10 = arith.truncf %9 : vector<286x3xf32> to vector<286x3xbf16>
    %c1_8 = arith.constant 1 : index
    %c0_9 = arith.constant 0 : index
    %c0_10 = arith.constant 0 : index
    %11 = vector.load %arg2[%c1_8, %c0_9, %c0_10] : memref<9x3x64xbf16, #tpu.memory_space<vmem>>, vector<1x3x64xbf16>
    %12 = vector.shape_cast %11 : vector<1x3x64xbf16> to vector<3x64xbf16>
    %cst_11 = arith.constant dense<0.000000e+00> : vector<286x64xf32>
    %13 = tpu.matmul %10, %12, %cst_11 {dimension_numbers = #tpu.dot_dimension_numbers<[1], [0], [0], [1], [0, 0, 1, 1], [], []>} : vector<286x3xbf16>, vector<3x64xbf16>, vector<286x64xf32> -> vector<286x64xf32>
    %14 = arith.addf %7, %13 : vector<286x64xf32>
    %c0_12 = arith.constant 0 : index
    %c2 = arith.constant 2 : index
    %c0_13 = arith.constant 0 : index
    %15 = vector.load %arg1[%c0_12, %c2, %c0_13] : memref<1x324x3xf32, #tpu.memory_space<vmem>>, vector<1x286x3xf32>
    %16 = vector.shape_cast %15 : vector<1x286x3xf32> to vector<286x3xf32>
    %17 = arith.truncf %16 : vector<286x3xf32> to vector<286x3xbf16>
    %c2_14 = arith.constant 2 : index
    %c0_15 = arith.constant 0 : index
    %c0_16 = arith.constant 0 : index
    %18 = vector.load %arg2[%c2_14, %c0_15, %c0_16] : memref<9x3x64xbf16, #tpu.memory_space<vmem>>, vector<1x3x64xbf16>
    %19 = vector.shape_cast %18 : vector<1x3x64xbf16> to vector<3x64xbf16>
    %cst_17 = arith.constant dense<0.000000e+00> : vector<286x64xf32>
    %20 = tpu.matmul %17, %19, %cst_17 {dimension_numbers = #tpu.dot_dimension_numbers<[1], [0], [0], [1], [0, 0, 1, 1], [], []>} : vector<286x3xbf16>, vector<3x64xbf16>, vector<286x64xf32> -> vector<286x64xf32>
    %21 = arith.addf %14, %20 : vector<286x64xf32>
    %c0_18 = arith.constant 0 : index
    %c18 = arith.constant 18 : index
    %c0_19 = arith.constant 0 : index
    %22 = vector.load %arg1[%c0_18, %c18, %c0_19] : memref<1x324x3xf32, #tpu.memory_space<vmem>>, vector<1x286x3xf32>
    %23 = vector.shape_cast %22 : vector<1x286x3xf32> to vector<286x3xf32>
    %24 = arith.truncf %23 : vector<286x3xf32> to vector<286x3xbf16>
    %c3 = arith.constant 3 : index
    %c0_20 = arith.constant 0 : index
    %c0_21 = arith.constant 0 : index
    %25 = vector.load %arg2[%c3, %c0_20, %c0_21] : memref<9x3x64xbf16, #tpu.memory_space<vmem>>, vector<1x3x64xbf16>
    %26 = vector.shape_cast %25 : vector<1x3x64xbf16> to vector<3x64xbf16>
    %cst_22 = arith.constant dense<0.000000e+00> : vector<286x64xf32>
    %27 = tpu.matmul %24, %26, %cst_22 {dimension_numbers = #tpu.dot_dimension_numbers<[1], [0], [0], [1], [0, 0, 1, 1], [], []>} : vector<286x3xbf16>, vector<3x64xbf16>, vector<286x64xf32> -> vector<286x64xf32>
    %28 = arith.addf %21, %27 : vector<286x64xf32>
    %c0_23 = arith.constant 0 : index
    %c19 = arith.constant 19 : index
    %c0_24 = arith.constant 0 : index
    %29 = vector.load %arg1[%c0_23, %c19, %c0_24] : memref<1x324x3xf32, #tpu.memory_space<vmem>>, vector<1x286x3xf32>
    %30 = vector.shape_cast %29 : vector<1x286x3xf32> to vector<286x3xf32>
    %31 = arith.truncf %30 : vector<286x3xf32> to vector<286x3xbf16>
    %c4 = arith.constant 4 : index
    %c0_25 = arith.constant 0 : index
    %c0_26 = arith.constant 0 : index
    %32 = vector.load %arg2[%c4, %c0_25, %c0_26] : memref<9x3x64xbf16, #tpu.memory_space<vmem>>, vector<1x3x64xbf16>
    %33 = vector.shape_cast %32 : vector<1x3x64xbf16> to vector<3x64xbf16>
    %cst_27 = arith.constant dense<0.000000e+00> : vector<286x64xf32>
    %34 = tpu.matmul %31, %33, %cst_27 {dimension_numbers = #tpu.dot_dimension_numbers<[1], [0], [0], [1], [0, 0, 1, 1], [], []>} : vector<286x3xbf16>, vector<3x64xbf16>, vector<286x64xf32> -> vector<286x64xf32>
    %35 = arith.addf %28, %34 : vector<286x64xf32>
    %c0_28 = arith.constant 0 : index
    %c20 = arith.constant 20 : index
    %c0_29 = arith.constant 0 : index
    %36 = vector.load %arg1[%c0_28, %c20, %c0_29] : memref<1x324x3xf32, #tpu.memory_space<vmem>>, vector<1x286x3xf32>
    %37 = vector.shape_cast %36 : vector<1x286x3xf32> to vector<286x3xf32>
    %38 = arith.truncf %37 : vector<286x3xf32> to vector<286x3xbf16>
    %c5 = arith.constant 5 : index
    %c0_30 = arith.constant 0 : index
    %c0_31 = arith.constant 0 : index
    %39 = vector.load %arg2[%c5, %c0_30, %c0_31] : memref<9x3x64xbf16, #tpu.memory_space<vmem>>, vector<1x3x64xbf16>
    %40 = vector.shape_cast %39 : vector<1x3x64xbf16> to vector<3x64xbf16>
    %cst_32 = arith.constant dense<0.000000e+00> : vector<286x64xf32>
    %41 = tpu.matmul %38, %40, %cst_32 {dimension_numbers = #tpu.dot_dimension_numbers<[1], [0], [0], [1], [0, 0, 1, 1], [], []>} : vector<286x3xbf16>, vector<3x64xbf16>, vector<286x64xf32> -> vector<286x64xf32>
    %42 = arith.addf %35, %41 : vector<286x64xf32>
    %c0_33 = arith.constant 0 : index
    %c36 = arith.constant 36 : index
    %c0_34 = arith.constant 0 : index
    %43 = vector.load %arg1[%c0_33, %c36, %c0_34] : memref<1x324x3xf32, #tpu.memory_space<vmem>>, vector<1x286x3xf32>
    %44 = vector.shape_cast %43 : vector<1x286x3xf32> to vector<286x3xf32>
    %45 = arith.truncf %44 : vector<286x3xf32> to vector<286x3xbf16>
    %c6 = arith.constant 6 : index
    %c0_35 = arith.constant 0 : index
    %c0_36 = arith.constant 0 : index
    %46 = vector.load %arg2[%c6, %c0_35, %c0_36] : memref<9x3x64xbf16, #tpu.memory_space<vmem>>, vector<1x3x64xbf16>
    %47 = vector.shape_cast %46 : vector<1x3x64xbf16> to vector<3x64xbf16>
    %cst_37 = arith.constant dense<0.000000e+00> : vector<286x64xf32>
    %48 = tpu.matmul %45, %47, %cst_37 {dimension_numbers = #tpu.dot_dimension_numbers<[1], [0], [0], [1], [0, 0, 1, 1], [], []>} : vector<286x3xbf16>, vector<3x64xbf16>, vector<286x64xf32> -> vector<286x64xf32>
    %49 = arith.addf %42, %48 : vector<286x64xf32>
    %c0_38 = arith.constant 0 : index
    %c37 = arith.constant 37 : index
    %c0_39 = arith.constant 0 : index
    %50 = vector.load %arg1[%c0_38, %c37, %c0_39] : memref<1x324x3xf32, #tpu.memory_space<vmem>>, vector<1x286x3xf32>
    %51 = vector.shape_cast %50 : vector<1x286x3xf32> to vector<286x3xf32>
    %52 = arith.truncf %51 : vector<286x3xf32> to vector<286x3xbf16>
    %c7 = arith.constant 7 : index
    %c0_40 = arith.constant 0 : index
    %c0_41 = arith.constant 0 : index
    %53 = vector.load %arg2[%c7, %c0_40, %c0_41] : memref<9x3x64xbf16, #tpu.memory_space<vmem>>, vector<1x3x64xbf16>
    %54 = vector.shape_cast %53 : vector<1x3x64xbf16> to vector<3x64xbf16>
    %cst_42 = arith.constant dense<0.000000e+00> : vector<286x64xf32>
    %55 = tpu.matmul %52, %54, %cst_42 {dimension_numbers = #tpu.dot_dimension_numbers<[1], [0], [0], [1], [0, 0, 1, 1], [], []>} : vector<286x3xbf16>, vector<3x64xbf16>, vector<286x64xf32> -> vector<286x64xf32>
    %56 = arith.addf %49, %55 : vector<286x64xf32>
    %c0_43 = arith.constant 0 : index
    %c38 = arith.constant 38 : index
    %c0_44 = arith.constant 0 : index
    %57 = vector.load %arg1[%c0_43, %c38, %c0_44] : memref<1x324x3xf32, #tpu.memory_space<vmem>>, vector<1x286x3xf32>
    %58 = vector.shape_cast %57 : vector<1x286x3xf32> to vector<286x3xf32>
    %59 = arith.truncf %58 : vector<286x3xf32> to vector<286x3xbf16>
    %c8 = arith.constant 8 : index
    %c0_45 = arith.constant 0 : index
    %c0_46 = arith.constant 0 : index
    %60 = vector.load %arg2[%c8, %c0_45, %c0_46] : memref<9x3x64xbf16, #tpu.memory_space<vmem>>, vector<1x3x64xbf16>
    %61 = vector.shape_cast %60 : vector<1x3x64xbf16> to vector<3x64xbf16>
    %cst_47 = arith.constant dense<0.000000e+00> : vector<286x64xf32>
    %62 = tpu.matmul %59, %61, %cst_47 {dimension_numbers = #tpu.dot_dimension_numbers<[1], [0], [0], [1], [0, 0, 1, 1], [], []>} : vector<286x3xbf16>, vector<3x64xbf16>, vector<286x64xf32> -> vector<286x64xf32>
    %63 = arith.addf %56, %62 : vector<286x64xf32>
    %c0_48 = arith.constant 0 : index
    %c0_49 = arith.constant 0 : index
    %64 = vector.load %arg3[%c0_48, %c0_49] : memref<1x64xf32, #tpu.memory_space<vmem>>, vector<1x64xf32>
    %65 = vector.broadcast %64 : vector<1x64xf32> to vector<286x64xf32>
    %66 = arith.mulf %63, %65 : vector<286x64xf32>
    %c0_50 = arith.constant 0 : index
    %c0_51 = arith.constant 0 : index
    %67 = vector.load %arg4[%c0_50, %c0_51] : memref<1x64xf32, #tpu.memory_space<vmem>>, vector<1x64xf32>
    %68 = vector.broadcast %67 : vector<1x64xf32> to vector<286x64xf32>
    %69 = arith.addf %66, %68 : vector<286x64xf32>
    %cst_52 = arith.constant 0.000000e+00 : f32
    %70 = vector.broadcast %cst_52 : f32 to vector<286x64xf32>
    %71 = arith.maximumf %69, %70 : vector<286x64xf32>
    %c0_53 = arith.constant 0 : index
    %c0_54 = arith.constant 0 : index
    %72 = vector.load %arg24[%c0_53, %c0_54] : memref<286x64xf32, #tpu.memory_space<vmem>>, vector<286x64xf32>
    tpu.vector_store %arg24[%c0_53, %c0_54], %71 {strides = array<i32>} : memref<286x64xf32, #tpu.memory_space<vmem>>, vector<286x64xf32>,
    %c0_55 = arith.constant 0 : index
    %c0_56 = arith.constant 0 : index
    %73 = vector.load %arg24[%c0_55, %c0_56] : memref<286x64xf32, #tpu.memory_space<vmem>>, vector<267x64xf32>
    %c1_57 = arith.constant 1 : index
    %c0_58 = arith.constant 0 : index
    %74 = vector.load %arg24[%c1_57, %c0_58] : memref<286x64xf32, #tpu.memory_space<vmem>>, vector<267x64xf32>
    %75 = arith.maximumf %73, %74 : vector<267x64xf32>
    %c18_59 = arith.constant 18 : index
    %c0_60 = arith.constant 0 : index
    %76 = vector.load %arg24[%c18_59, %c0_60] : memref<286x64xf32, #tpu.memory_space<vmem>>, vector<267x64xf32>
    %c19_61 = arith.constant 19 : index
    %c0_62 = arith.constant 0 : index
    %77 = vector.load %arg24[%c19_61, %c0_62] : memref<286x64xf32, #tpu.memory_space<vmem>>, vector<267x64xf32>
    %78 = arith.maximumf %76, %77 : vector<267x64xf32>
    %79 = arith.maximumf %75, %78 : vector<267x64xf32>
    %c0_63 = arith.constant 0 : index
    %c0_64 = arith.constant 0 : index
    %80 = vector.load %arg5[%c0_63, %c0_64] : memref<100x267xbf16, #tpu.memory_space<vmem>>, vector<100x267xbf16>
    %81 = arith.truncf %79 : vector<267x64xf32> to vector<267x64xbf16>
    %cst_65 = arith.constant dense<0.000000e+00> : vector<100x64xf32>
    %82 = tpu.matmul %80, %81, %cst_65 {dimension_numbers = #tpu.dot_dimension_numbers<[1], [0], [0], [1], [0, 0, 1, 1], [], []>} : vector<100x267xbf16>, vector<267x64xbf16>, vector<100x64xf32> -> vector<100x64xf32>
    %c0_66 = arith.constant 0 : index
    %c0_67 = arith.constant 0 : index
    %83 = vector.load %arg21[%c0_66, %c0_67] : memref<100x64xf32, #tpu.memory_space<vmem>>, vector<100x64xf32>
    tpu.vector_store %arg21[%c0_66, %c0_67], %82 {strides = array<i32>} : memref<100x64xf32, #tpu.memory_space<vmem>>, vector<100x64xf32>,
    %cst_68 = arith.constant 0.000000e+00 : f32
    %84 = vector.broadcast %cst_68 : f32 to vector<78x128xf32>
    %c0_69 = arith.constant 0 : index
    %c0_70 = arith.constant 0 : index
    %85 = vector.load %arg21[%c0_69, %c0_70] : memref<100x64xf32, #tpu.memory_space<vmem>>, vector<78x64xf32>
    %86 = arith.truncf %85 : vector<78x64xf32> to vector<78x64xbf16>
    %c0_71 = arith.constant 0 : index
    %c0_72 = arith.constant 0 : index
    %c0_73 = arith.constant 0 : index
    %87 = vector.load %arg6[%c0_71, %c0_72, %c0_73] : memref<9x64x128xbf16, #tpu.memory_space<vmem>>, vector<1x64x128xbf16>
    %88 = vector.shape_cast %87 : vector<1x64x128xbf16> to vector<64x128xbf16>
    %cst_74 = arith.constant dense<0.000000e+00> : vector<78x128xf32>
    %89 = tpu.matmul %86, %88, %cst_74 {dimension_numbers = #tpu.dot_dimension_numbers<[1], [0], [0], [1], [0, 0, 1, 1], [], []>} : vector<78x64xbf16>, vector<64x128xbf16>, vector<78x128xf32> -> vector<78x128xf32>
    %90 = arith.addf %84, %89 : vector<78x128xf32>
    %c1_75 = arith.constant 1 : index
    %c0_76 = arith.constant 0 : index
    %91 = vector.load %arg21[%c1_75, %c0_76] : memref<100x64xf32, #tpu.memory_space<vmem>>, vector<78x64xf32>
    %92 = arith.truncf %91 : vector<78x64xf32> to vector<78x64xbf16>
    %c1_77 = arith.constant 1 : index
    %c0_78 = arith.constant 0 : index
    %c0_79 = arith.constant 0 : index
    %93 = vector.load %arg6[%c1_77, %c0_78, %c0_79] : memref<9x64x128xbf16, #tpu.memory_space<vmem>>, vector<1x64x128xbf16>
    %94 = vector.shape_cast %93 : vector<1x64x128xbf16> to vector<64x128xbf16>
    %cst_80 = arith.constant dense<0.000000e+00> : vector<78x128xf32>
    %95 = tpu.matmul %92, %94, %cst_80 {dimension_numbers = #tpu.dot_dimension_numbers<[1], [0], [0], [1], [0, 0, 1, 1], [], []>} : vector<78x64xbf16>, vector<64x128xbf16>, vector<78x128xf32> -> vector<78x128xf32>
    %96 = arith.addf %90, %95 : vector<78x128xf32>
    %c2_81 = arith.constant 2 : index
    %c0_82 = arith.constant 0 : index
    %97 = vector.load %arg21[%c2_81, %c0_82] : memref<100x64xf32, #tpu.memory_space<vmem>>, vector<78x64xf32>
    %98 = arith.truncf %97 : vector<78x64xf32> to vector<78x64xbf16>
    %c2_83 = arith.constant 2 : index
    %c0_84 = arith.constant 0 : index
    %c0_85 = arith.constant 0 : index
    %99 = vector.load %arg6[%c2_83, %c0_84, %c0_85] : memref<9x64x128xbf16, #tpu.memory_space<vmem>>, vector<1x64x128xbf16>
    %100 = vector.shape_cast %99 : vector<1x64x128xbf16> to vector<64x128xbf16>
    %cst_86 = arith.constant dense<0.000000e+00> : vector<78x128xf32>
    %101 = tpu.matmul %98, %100, %cst_86 {dimension_numbers = #tpu.dot_dimension_numbers<[1], [0], [0], [1], [0, 0, 1, 1], [], []>} : vector<78x64xbf16>, vector<64x128xbf16>, vector<78x128xf32> -> vector<78x128xf32>
    %102 = arith.addf %96, %101 : vector<78x128xf32>
    %c10 = arith.constant 10 : index
    %c0_87 = arith.constant 0 : index
    %103 = vector.load %arg21[%c10, %c0_87] : memref<100x64xf32, #tpu.memory_space<vmem>>, vector<78x64xf32>
    %104 = arith.truncf %103 : vector<78x64xf32> to vector<78x64xbf16>
    %c3_88 = arith.constant 3 : index
    %c0_89 = arith.constant 0 : index
    %c0_90 = arith.constant 0 : index
    %105 = vector.load %arg6[%c3_88, %c0_89, %c0_90] : memref<9x64x128xbf16, #tpu.memory_space<vmem>>, vector<1x64x128xbf16>
    %106 = vector.shape_cast %105 : vector<1x64x128xbf16> to vector<64x128xbf16>
    %cst_91 = arith.constant dense<0.000000e+00> : vector<78x128xf32>
    %107 = tpu.matmul %104, %106, %cst_91 {dimension_numbers = #tpu.dot_dimension_numbers<[1], [0], [0], [1], [0, 0, 1, 1], [], []>} : vector<78x64xbf16>, vector<64x128xbf16>, vector<78x128xf32> -> vector<78x128xf32>
    %108 = arith.addf %102, %107 : vector<78x128xf32>
    %c11 = arith.constant 11 : index
    %c0_92 = arith.constant 0 : index
    %109 = vector.load %arg21[%c11, %c0_92] : memref<100x64xf32, #tpu.memory_space<vmem>>, vector<78x64xf32>
    %110 = arith.truncf %109 : vector<78x64xf32> to vector<78x64xbf16>
    %c4_93 = arith.constant 4 : index
    %c0_94 = arith.constant 0 : index
    %c0_95 = arith.constant 0 : index
    %111 = vector.load %arg6[%c4_93, %c0_94, %c0_95] : memref<9x64x128xbf16, #tpu.memory_space<vmem>>, vector<1x64x128xbf16>
    %112 = vector.shape_cast %111 : vector<1x64x128xbf16> to vector<64x128xbf16>
    %cst_96 = arith.constant dense<0.000000e+00> : vector<78x128xf32>
    %113 = tpu.matmul %110, %112, %cst_96 {dimension_numbers = #tpu.dot_dimension_numbers<[1], [0], [0], [1], [0, 0, 1, 1], [], []>} : vector<78x64xbf16>, vector<64x128xbf16>, vector<78x128xf32> -> vector<78x128xf32>
    %114 = arith.addf %108, %113 : vector<78x128xf32>
    %c12 = arith.constant 12 : index
    %c0_97 = arith.constant 0 : index
    %115 = vector.load %arg21[%c12, %c0_97] : memref<100x64xf32, #tpu.memory_space<vmem>>, vector<78x64xf32>
    %116 = arith.truncf %115 : vector<78x64xf32> to vector<78x64xbf16>
    %c5_98 = arith.constant 5 : index
    %c0_99 = arith.constant 0 : index
    %c0_100 = arith.constant 0 : index
    %117 = vector.load %arg6[%c5_98, %c0_99, %c0_100] : memref<9x64x128xbf16, #tpu.memory_space<vmem>>, vector<1x64x128xbf16>
    %118 = vector.shape_cast %117 : vector<1x64x128xbf16> to vector<64x128xbf16>
    %cst_101 = arith.constant dense<0.000000e+00> : vector<78x128xf32>
    %119 = tpu.matmul %116, %118, %cst_101 {dimension_numbers = #tpu.dot_dimension_numbers<[1], [0], [0], [1], [0, 0, 1, 1], [], []>} : vector<78x64xbf16>, vector<64x128xbf16>, vector<78x128xf32> -> vector<78x128xf32>
    %120 = arith.addf %114, %119 : vector<78x128xf32>
    %c20_102 = arith.constant 20 : index
    %c0_103 = arith.constant 0 : index
    %121 = vector.load %arg21[%c20_102, %c0_103] : memref<100x64xf32, #tpu.memory_space<vmem>>, vector<78x64xf32>
    %122 = arith.truncf %121 : vector<78x64xf32> to vector<78x64xbf16>
    %c6_104 = arith.constant 6 : index
    %c0_105 = arith.constant 0 : index
    %c0_106 = arith.constant 0 : index
    %123 = vector.load %arg6[%c6_104, %c0_105, %c0_106] : memref<9x64x128xbf16, #tpu.memory_space<vmem>>, vector<1x64x128xbf16>
    %124 = vector.shape_cast %123 : vector<1x64x128xbf16> to vector<64x128xbf16>
    %cst_107 = arith.constant dense<0.000000e+00> : vector<78x128xf32>
    %125 = tpu.matmul %122, %124, %cst_107 {dimension_numbers = #tpu.dot_dimension_numbers<[1], [0], [0], [1], [0, 0, 1, 1], [], []>} : vector<78x64xbf16>, vector<64x128xbf16>, vector<78x128xf32> -> vector<78x128xf32>
    %126 = arith.addf %120, %125 : vector<78x128xf32>
    %c21 = arith.constant 21 : index
    %c0_108 = arith.constant 0 : index
    %127 = vector.load %arg21[%c21, %c0_108] : memref<100x64xf32, #tpu.memory_space<vmem>>, vector<78x64xf32>
    %128 = arith.truncf %127 : vector<78x64xf32> to vector<78x64xbf16>
    %c7_109 = arith.constant 7 : index
    %c0_110 = arith.constant 0 : index
    %c0_111 = arith.constant 0 : index
    %129 = vector.load %arg6[%c7_109, %c0_110, %c0_111] : memref<9x64x128xbf16, #tpu.memory_space<vmem>>, vector<1x64x128xbf16>
    %130 = vector.shape_cast %129 : vector<1x64x128xbf16> to vector<64x128xbf16>
    %cst_112 = arith.constant dense<0.000000e+00> : vector<78x128xf32>
    %131 = tpu.matmul %128, %130, %cst_112 {dimension_numbers = #tpu.dot_dimension_numbers<[1], [0], [0], [1], [0, 0, 1, 1], [], []>} : vector<78x64xbf16>, vector<64x128xbf16>, vector<78x128xf32> -> vector<78x128xf32>
    %132 = arith.addf %126, %131 : vector<78x128xf32>
    %c22 = arith.constant 22 : index
    %c0_113 = arith.constant 0 : index
    %133 = vector.load %arg21[%c22, %c0_113] : memref<100x64xf32, #tpu.memory_space<vmem>>, vector<78x64xf32>
    %134 = arith.truncf %133 : vector<78x64xf32> to vector<78x64xbf16>
    %c8_114 = arith.constant 8 : index
    %c0_115 = arith.constant 0 : index
    %c0_116 = arith.constant 0 : index
    %135 = vector.load %arg6[%c8_114, %c0_115, %c0_116] : memref<9x64x128xbf16, #tpu.memory_space<vmem>>, vector<1x64x128xbf16>
    %136 = vector.shape_cast %135 : vector<1x64x128xbf16> to vector<64x128xbf16>
    %cst_117 = arith.constant dense<0.000000e+00> : vector<78x128xf32>
    %137 = tpu.matmul %134, %136, %cst_117 {dimension_numbers = #tpu.dot_dimension_numbers<[1], [0], [0], [1], [0, 0, 1, 1], [], []>} : vector<78x64xbf16>, vector<64x128xbf16>, vector<78x128xf32> -> vector<78x128xf32>
    %138 = arith.addf %132, %137 : vector<78x128xf32>
    %c0_118 = arith.constant 0 : index
    %c0_119 = arith.constant 0 : index
    %139 = vector.load %arg7[%c0_118, %c0_119] : memref<1x128xf32, #tpu.memory_space<vmem>>, vector<1x128xf32>
    %140 = vector.broadcast %139 : vector<1x128xf32> to vector<78x128xf32>
    %141 = arith.mulf %138, %140 : vector<78x128xf32>
    %c0_120 = arith.constant 0 : index
    %c0_121 = arith.constant 0 : index
    %142 = vector.load %arg8[%c0_120, %c0_121] : memref<1x128xf32, #tpu.memory_space<vmem>>, vector<1x128xf32>
    %143 = vector.broadcast %142 : vector<1x128xf32> to vector<78x128xf32>
    %144 = arith.addf %141, %143 : vector<78x128xf32>
    %cst_122 = arith.constant 0.000000e+00 : f32
    %145 = vector.broadcast %cst_122 : f32 to vector<78x128xf32>
    %146 = arith.maximumf %144, %145 : vector<78x128xf32>
    %c0_123 = arith.constant 0 : index
    %c0_124 = arith.constant 0 : index
    %147 = vector.load %arg25[%c0_123, %c0_124] : memref<78x128xf32, #tpu.memory_space<vmem>>, vector<78x128xf32>
    tpu.vector_store %arg25[%c0_123, %c0_124], %146 {strides = array<i32>} : memref<78x128xf32, #tpu.memory_space<vmem>>, vector<78x128xf32>,
    %c0_125 = arith.constant 0 : index
    %c0_126 = arith.constant 0 : index
    %148 = vector.load %arg25[%c0_125, %c0_126] : memref<78x128xf32, #tpu.memory_space<vmem>>, vector<67x128xf32>
    %c1_127 = arith.constant 1 : index
    %c0_128 = arith.constant 0 : index
    %149 = vector.load %arg25[%c1_127, %c0_128] : memref<78x128xf32, #tpu.memory_space<vmem>>, vector<67x128xf32>
    %150 = arith.maximumf %148, %149 : vector<67x128xf32>
    %c10_129 = arith.constant 10 : index
    %c0_130 = arith.constant 0 : index
    %151 = vector.load %arg25[%c10_129, %c0_130] : memref<78x128xf32, #tpu.memory_space<vmem>>, vector<67x128xf32>
    %c11_131 = arith.constant 11 : index
    %c0_132 = arith.constant 0 : index
    %152 = vector.load %arg25[%c11_131, %c0_132] : memref<78x128xf32, #tpu.memory_space<vmem>>, vector<67x128xf32>
    %153 = arith.maximumf %151, %152 : vector<67x128xf32>
    %154 = arith.maximumf %150, %153 : vector<67x128xf32>
    %c0_133 = arith.constant 0 : index
    %c0_134 = arith.constant 0 : index
    %155 = vector.load %arg9[%c0_133, %c0_134] : memref<36x67xbf16, #tpu.memory_space<vmem>>, vector<36x67xbf16>
    %156 = arith.truncf %154 : vector<67x128xf32> to vector<67x128xbf16>
    %cst_135 = arith.constant dense<0.000000e+00> : vector<36x128xf32>
    %157 = tpu.matmul %155, %156, %cst_135 {dimension_numbers = #tpu.dot_dimension_numbers<[1], [0], [0], [1], [0, 0, 1, 1], [], []>} : vector<36x67xbf16>, vector<67x128xbf16>, vector<36x128xf32> -> vector<36x128xf32>
    %c0_136 = arith.constant 0 : index
    %c0_137 = arith.constant 0 : index
    %158 = vector.load %arg22[%c0_136, %c0_137] : memref<36x128xf32, #tpu.memory_space<vmem>>, vector<36x128xf32>
    tpu.vector_store %arg22[%c0_136, %c0_137], %157 {strides = array<i32>} : memref<36x128xf32, #tpu.memory_space<vmem>>, vector<36x128xf32>,
    %cst_138 = arith.constant 0.000000e+00 : f32
    %159 = vector.broadcast %cst_138 : f32 to vector<22x256xf32>
    %c0_139 = arith.constant 0 : index
    %c0_140 = arith.constant 0 : index
    %160 = vector.load %arg22[%c0_139, %c0_140] : memref<36x128xf32, #tpu.memory_space<vmem>>, vector<22x128xf32>
    %161 = arith.truncf %160 : vector<22x128xf32> to vector<22x128xbf16>
    %c0_141 = arith.constant 0 : index
    %c0_142 = arith.constant 0 : index
    %c0_143 = arith.constant 0 : index
    %162 = vector.load %arg10[%c0_141, %c0_142, %c0_143] : memref<9x128x256xbf16, #tpu.memory_space<vmem>>, vector<1x128x256xbf16>
    %163 = vector.shape_cast %162 : vector<1x128x256xbf16> to vector<128x256xbf16>
    %cst_144 = arith.constant dense<0.000000e+00> : vector<22x256xf32>
    %164 = tpu.matmul %161, %163, %cst_144 {dimension_numbers = #tpu.dot_dimension_numbers<[1], [0], [0], [1], [0, 0, 1, 1], [], []>} : vector<22x128xbf16>, vector<128x256xbf16>, vector<22x256xf32> -> vector<22x256xf32>
    %165 = arith.addf %159, %164 : vector<22x256xf32>
    %c1_145 = arith.constant 1 : index
    %c0_146 = arith.constant 0 : index
    %166 = vector.load %arg22[%c1_145, %c0_146] : memref<36x128xf32, #tpu.memory_space<vmem>>, vector<22x128xf32>
    %167 = arith.truncf %166 : vector<22x128xf32> to vector<22x128xbf16>
    %c1_147 = arith.constant 1 : index
    %c0_148 = arith.constant 0 : index
    %c0_149 = arith.constant 0 : index
    %168 = vector.load %arg10[%c1_147, %c0_148, %c0_149] : memref<9x128x256xbf16, #tpu.memory_space<vmem>>, vector<1x128x256xbf16>
    %169 = vector.shape_cast %168 : vector<1x128x256xbf16> to vector<128x256xbf16>
    %cst_150 = arith.constant dense<0.000000e+00> : vector<22x256xf32>
    %170 = tpu.matmul %167, %169, %cst_150 {dimension_numbers = #tpu.dot_dimension_numbers<[1], [0], [0], [1], [0, 0, 1, 1], [], []>} : vector<22x128xbf16>, vector<128x256xbf16>, vector<22x256xf32> -> vector<22x256xf32>
    %171 = arith.addf %165, %170 : vector<22x256xf32>
    %c2_151 = arith.constant 2 : index
    %c0_152 = arith.constant 0 : index
    %172 = vector.load %arg22[%c2_151, %c0_152] : memref<36x128xf32, #tpu.memory_space<vmem>>, vector<22x128xf32>
    %173 = arith.truncf %172 : vector<22x128xf32> to vector<22x128xbf16>
    %c2_153 = arith.constant 2 : index
    %c0_154 = arith.constant 0 : index
    %c0_155 = arith.constant 0 : index
    %174 = vector.load %arg10[%c2_153, %c0_154, %c0_155] : memref<9x128x256xbf16, #tpu.memory_space<vmem>>, vector<1x128x256xbf16>
    %175 = vector.shape_cast %174 : vector<1x128x256xbf16> to vector<128x256xbf16>
    %cst_156 = arith.constant dense<0.000000e+00> : vector<22x256xf32>
    %176 = tpu.matmul %173, %175, %cst_156 {dimension_numbers = #tpu.dot_dimension_numbers<[1], [0], [0], [1], [0, 0, 1, 1], [], []>} : vector<22x128xbf16>, vector<128x256xbf16>, vector<22x256xf32> -> vector<22x256xf32>
    %177 = arith.addf %171, %176 : vector<22x256xf32>
    %c6_157 = arith.constant 6 : index
    %c0_158 = arith.constant 0 : index
    %178 = vector.load %arg22[%c6_157, %c0_158] : memref<36x128xf32, #tpu.memory_space<vmem>>, vector<22x128xf32>
    %179 = arith.truncf %178 : vector<22x128xf32> to vector<22x128xbf16>
    %c3_159 = arith.constant 3 : index
    %c0_160 = arith.constant 0 : index
    %c0_161 = arith.constant 0 : index
    %180 = vector.load %arg10[%c3_159, %c0_160, %c0_161] : memref<9x128x256xbf16, #tpu.memory_space<vmem>>, vector<1x128x256xbf16>
    %181 = vector.shape_cast %180 : vector<1x128x256xbf16> to vector<128x256xbf16>
    %cst_162 = arith.constant dense<0.000000e+00> : vector<22x256xf32>
    %182 = tpu.matmul %179, %181, %cst_162 {dimension_numbers = #tpu.dot_dimension_numbers<[1], [0], [0], [1], [0, 0, 1, 1], [], []>} : vector<22x128xbf16>, vector<128x256xbf16>, vector<22x256xf32> -> vector<22x256xf32>
    %183 = arith.addf %177, %182 : vector<22x256xf32>
    %c7_163 = arith.constant 7 : index
    %c0_164 = arith.constant 0 : index
    %184 = vector.load %arg22[%c7_163, %c0_164] : memref<36x128xf32, #tpu.memory_space<vmem>>, vector<22x128xf32>
    %185 = arith.truncf %184 : vector<22x128xf32> to vector<22x128xbf16>
    %c4_165 = arith.constant 4 : index
    %c0_166 = arith.constant 0 : index
    %c0_167 = arith.constant 0 : index
    %186 = vector.load %arg10[%c4_165, %c0_166, %c0_167] : memref<9x128x256xbf16, #tpu.memory_space<vmem>>, vector<1x128x256xbf16>
    %187 = vector.shape_cast %186 : vector<1x128x256xbf16> to vector<128x256xbf16>
    %cst_168 = arith.constant dense<0.000000e+00> : vector<22x256xf32>
    %188 = tpu.matmul %185, %187, %cst_168 {dimension_numbers = #tpu.dot_dimension_numbers<[1], [0], [0], [1], [0, 0, 1, 1], [], []>} : vector<22x128xbf16>, vector<128x256xbf16>, vector<22x256xf32> -> vector<22x256xf32>
    %189 = arith.addf %183, %188 : vector<22x256xf32>
    %c8_169 = arith.constant 8 : index
    %c0_170 = arith.constant 0 : index
    %190 = vector.load %arg22[%c8_169, %c0_170] : memref<36x128xf32, #tpu.memory_space<vmem>>, vector<22x128xf32>
    %191 = arith.truncf %190 : vector<22x128xf32> to vector<22x128xbf16>
    %c5_171 = arith.constant 5 : index
    %c0_172 = arith.constant 0 : index
    %c0_173 = arith.constant 0 : index
    %192 = vector.load %arg10[%c5_171, %c0_172, %c0_173] : memref<9x128x256xbf16, #tpu.memory_space<vmem>>, vector<1x128x256xbf16>
    %193 = vector.shape_cast %192 : vector<1x128x256xbf16> to vector<128x256xbf16>
    %cst_174 = arith.constant dense<0.000000e+00> : vector<22x256xf32>
    %194 = tpu.matmul %191, %193, %cst_174 {dimension_numbers = #tpu.dot_dimension_numbers<[1], [0], [0], [1], [0, 0, 1, 1], [], []>} : vector<22x128xbf16>, vector<128x256xbf16>, vector<22x256xf32> -> vector<22x256xf32>
    %195 = arith.addf %189, %194 : vector<22x256xf32>
    %c12_175 = arith.constant 12 : index
    %c0_176 = arith.constant 0 : index
    %196 = vector.load %arg22[%c12_175, %c0_176] : memref<36x128xf32, #tpu.memory_space<vmem>>, vector<22x128xf32>
    %197 = arith.truncf %196 : vector<22x128xf32> to vector<22x128xbf16>
    %c6_177 = arith.constant 6 : index
    %c0_178 = arith.constant 0 : index
    %c0_179 = arith.constant 0 : index
    %198 = vector.load %arg10[%c6_177, %c0_178, %c0_179] : memref<9x128x256xbf16, #tpu.memory_space<vmem>>, vector<1x128x256xbf16>
    %199 = vector.shape_cast %198 : vector<1x128x256xbf16> to vector<128x256xbf16>
    %cst_180 = arith.constant dense<0.000000e+00> : vector<22x256xf32>
    %200 = tpu.matmul %197, %199, %cst_180 {dimension_numbers = #tpu.dot_dimension_numbers<[1], [0], [0], [1], [0, 0, 1, 1], [], []>} : vector<22x128xbf16>, vector<128x256xbf16>, vector<22x256xf32> -> vector<22x256xf32>
    %201 = arith.addf %195, %200 : vector<22x256xf32>
    %c13 = arith.constant 13 : index
    %c0_181 = arith.constant 0 : index
    %202 = vector.load %arg22[%c13, %c0_181] : memref<36x128xf32, #tpu.memory_space<vmem>>, vector<22x128xf32>
    %203 = arith.truncf %202 : vector<22x128xf32> to vector<22x128xbf16>
    %c7_182 = arith.constant 7 : index
    %c0_183 = arith.constant 0 : index
    %c0_184 = arith.constant 0 : index
    %204 = vector.load %arg10[%c7_182, %c0_183, %c0_184] : memref<9x128x256xbf16, #tpu.memory_space<vmem>>, vector<1x128x256xbf16>
    %205 = vector.shape_cast %204 : vector<1x128x256xbf16> to vector<128x256xbf16>
    %cst_185 = arith.constant dense<0.000000e+00> : vector<22x256xf32>
    %206 = tpu.matmul %203, %205, %cst_185 {dimension_numbers = #tpu.dot_dimension_numbers<[1], [0], [0], [1], [0, 0, 1, 1], [], []>} : vector<22x128xbf16>, vector<128x256xbf16>, vector<22x256xf32> -> vector<22x256xf32>
    %207 = arith.addf %201, %206 : vector<22x256xf32>
    %c14 = arith.constant 14 : index
    %c0_186 = arith.constant 0 : index
    %208 = vector.load %arg22[%c14, %c0_186] : memref<36x128xf32, #tpu.memory_space<vmem>>, vector<22x128xf32>
    %209 = arith.truncf %208 : vector<22x128xf32> to vector<22x128xbf16>
    %c8_187 = arith.constant 8 : index
    %c0_188 = arith.constant 0 : index
    %c0_189 = arith.constant 0 : index
    %210 = vector.load %arg10[%c8_187, %c0_188, %c0_189] : memref<9x128x256xbf16, #tpu.memory_space<vmem>>, vector<1x128x256xbf16>
    %211 = vector.shape_cast %210 : vector<1x128x256xbf16> to vector<128x256xbf16>
    %cst_190 = arith.constant dense<0.000000e+00> : vector<22x256xf32>
    %212 = tpu.matmul %209, %211, %cst_190 {dimension_numbers = #tpu.dot_dimension_numbers<[1], [0], [0], [1], [0, 0, 1, 1], [], []>} : vector<22x128xbf16>, vector<128x256xbf16>, vector<22x256xf32> -> vector<22x256xf32>
    %213 = arith.addf %207, %212 : vector<22x256xf32>
    %c0_191 = arith.constant 0 : index
    %c0_192 = arith.constant 0 : index
    %214 = vector.load %arg11[%c0_191, %c0_192] : memref<1x256xf32, #tpu.memory_space<vmem>>, vector<1x256xf32>
    %215 = vector.broadcast %214 : vector<1x256xf32> to vector<22x256xf32>
    %216 = arith.mulf %213, %215 : vector<22x256xf32>
    %c0_193 = arith.constant 0 : index
    %c0_194 = arith.constant 0 : index
    %217 = vector.load %arg12[%c0_193, %c0_194] : memref<1x256xf32, #tpu.memory_space<vmem>>, vector<1x256xf32>
    %218 = vector.broadcast %217 : vector<1x256xf32> to vector<22x256xf32>
    %219 = arith.addf %216, %218 : vector<22x256xf32>
    %cst_195 = arith.constant 0.000000e+00 : f32
    %220 = vector.broadcast %cst_195 : f32 to vector<22x256xf32>
    %221 = arith.maximumf %219, %220 : vector<22x256xf32>
    %c0_196 = arith.constant 0 : index
    %c0_197 = arith.constant 0 : index
    %222 = vector.load %arg26[%c0_196, %c0_197] : memref<22x256xf32, #tpu.memory_space<vmem>>, vector<22x256xf32>
    tpu.vector_store %arg26[%c0_196, %c0_197], %221 {strides = array<i32>} : memref<22x256xf32, #tpu.memory_space<vmem>>, vector<22x256xf32>,
    %c0_198 = arith.constant 0 : index
    %c0_199 = arith.constant 0 : index
    %223 = vector.load %arg26[%c0_198, %c0_199] : memref<22x256xf32, #tpu.memory_space<vmem>>, vector<15x256xf32>
    %c1_200 = arith.constant 1 : index
    %c0_201 = arith.constant 0 : index
    %224 = vector.load %arg26[%c1_200, %c0_201] : memref<22x256xf32, #tpu.memory_space<vmem>>, vector<15x256xf32>
    %225 = arith.maximumf %223, %224 : vector<15x256xf32>
    %c6_202 = arith.constant 6 : index
    %c0_203 = arith.constant 0 : index
    %226 = vector.load %arg26[%c6_202, %c0_203] : memref<22x256xf32, #tpu.memory_space<vmem>>, vector<15x256xf32>
    %c7_204 = arith.constant 7 : index
    %c0_205 = arith.constant 0 : index
    %227 = vector.load %arg26[%c7_204, %c0_205] : memref<22x256xf32, #tpu.memory_space<vmem>>, vector<15x256xf32>
    %228 = arith.maximumf %226, %227 : vector<15x256xf32>
    %229 = arith.maximumf %225, %228 : vector<15x256xf32>
    %c0_206 = arith.constant 0 : index
    %c0_207 = arith.constant 0 : index
    %230 = vector.load %arg13[%c0_206, %c0_207] : memref<16x15xbf16, #tpu.memory_space<vmem>>, vector<16x15xbf16>
    %231 = arith.truncf %229 : vector<15x256xf32> to vector<15x256xbf16>
    %cst_208 = arith.constant dense<0.000000e+00> : vector<16x256xf32>
    %232 = tpu.matmul %230, %231, %cst_208 {dimension_numbers = #tpu.dot_dimension_numbers<[1], [0], [0], [1], [0, 0, 1, 1], [], []>} : vector<16x15xbf16>, vector<15x256xbf16>, vector<16x256xf32> -> vector<16x256xf32>
    %c0_209 = arith.constant 0 : index
    %c0_210 = arith.constant 0 : index
    %233 = vector.load %arg23[%c0_209, %c0_210] : memref<16x256xf32, #tpu.memory_space<vmem>>, vector<16x256xf32>
    tpu.vector_store %arg23[%c0_209, %c0_210], %232 {strides = array<i32>} : memref<16x256xf32, #tpu.memory_space<vmem>>, vector<16x256xf32>,
    %cst_211 = arith.constant 0.000000e+00 : f32
    %234 = vector.broadcast %cst_211 : f32 to vector<6x512xf32>
    %c0_212 = arith.constant 0 : index
    %c0_213 = arith.constant 0 : index
    %235 = vector.load %arg23[%c0_212, %c0_213] : memref<16x256xf32, #tpu.memory_space<vmem>>, vector<6x256xf32>
    %236 = arith.truncf %235 : vector<6x256xf32> to vector<6x256xbf16>
    %c0_214 = arith.constant 0 : index
    %c0_215 = arith.constant 0 : index
    %c0_216 = arith.constant 0 : index
    %237 = vector.load %arg14[%c0_214, %c0_215, %c0_216] : memref<9x256x512xbf16, #tpu.memory_space<vmem>>, vector<1x256x512xbf16>
    %238 = vector.shape_cast %237 : vector<1x256x512xbf16> to vector<256x512xbf16>
    %cst_217 = arith.constant dense<0.000000e+00> : vector<6x512xf32>
    %239 = tpu.matmul %236, %238, %cst_217 {dimension_numbers = #tpu.dot_dimension_numbers<[1], [0], [0], [1], [0, 0, 1, 1], [], []>} : vector<6x256xbf16>, vector<256x512xbf16>, vector<6x512xf32> -> vector<6x512xf32>
    %240 = arith.addf %234, %239 : vector<6x512xf32>
    %c1_218 = arith.constant 1 : index
    %c0_219 = arith.constant 0 : index
    %241 = vector.load %arg23[%c1_218, %c0_219] : memref<16x256xf32, #tpu.memory_space<vmem>>, vector<6x256xf32>
    %242 = arith.truncf %241 : vector<6x256xf32> to vector<6x256xbf16>
    %c1_220 = arith.constant 1 : index
    %c0_221 = arith.constant 0 : index
    %c0_222 = arith.constant 0 : index
    %243 = vector.load %arg14[%c1_220, %c0_221, %c0_222] : memref<9x256x512xbf16, #tpu.memory_space<vmem>>, vector<1x256x512xbf16>
    %244 = vector.shape_cast %243 : vector<1x256x512xbf16> to vector<256x512xbf16>
    %cst_223 = arith.constant dense<0.000000e+00> : vector<6x512xf32>
    %245 = tpu.matmul %242, %244, %cst_223 {dimension_numbers = #tpu.dot_dimension_numbers<[1], [0], [0], [1], [0, 0, 1, 1], [], []>} : vector<6x256xbf16>, vector<256x512xbf16>, vector<6x512xf32> -> vector<6x512xf32>
    %246 = arith.addf %240, %245 : vector<6x512xf32>
    %c2_224 = arith.constant 2 : index
    %c0_225 = arith.constant 0 : index
    %247 = vector.load %arg23[%c2_224, %c0_225] : memref<16x256xf32, #tpu.memory_space<vmem>>, vector<6x256xf32>
    %248 = arith.truncf %247 : vector<6x256xf32> to vector<6x256xbf16>
    %c2_226 = arith.constant 2 : index
    %c0_227 = arith.constant 0 : index
    %c0_228 = arith.constant 0 : index
    %249 = vector.load %arg14[%c2_226, %c0_227, %c0_228] : memref<9x256x512xbf16, #tpu.memory_space<vmem>>, vector<1x256x512xbf16>
    %250 = vector.shape_cast %249 : vector<1x256x512xbf16> to vector<256x512xbf16>
    %cst_229 = arith.constant dense<0.000000e+00> : vector<6x512xf32>
    %251 = tpu.matmul %248, %250, %cst_229 {dimension_numbers = #tpu.dot_dimension_numbers<[1], [0], [0], [1], [0, 0, 1, 1], [], []>} : vector<6x256xbf16>, vector<256x512xbf16>, vector<6x512xf32> -> vector<6x512xf32>
    %252 = arith.addf %246, %251 : vector<6x512xf32>
    %c4_230 = arith.constant 4 : index
    %c0_231 = arith.constant 0 : index
    %253 = vector.load %arg23[%c4_230, %c0_231] : memref<16x256xf32, #tpu.memory_space<vmem>>, vector<6x256xf32>
    %254 = arith.truncf %253 : vector<6x256xf32> to vector<6x256xbf16>
    %c3_232 = arith.constant 3 : index
    %c0_233 = arith.constant 0 : index
    %c0_234 = arith.constant 0 : index
    %255 = vector.load %arg14[%c3_232, %c0_233, %c0_234] : memref<9x256x512xbf16, #tpu.memory_space<vmem>>, vector<1x256x512xbf16>
    %256 = vector.shape_cast %255 : vector<1x256x512xbf16> to vector<256x512xbf16>
    %cst_235 = arith.constant dense<0.000000e+00> : vector<6x512xf32>
    %257 = tpu.matmul %254, %256, %cst_235 {dimension_numbers = #tpu.dot_dimension_numbers<[1], [0], [0], [1], [0, 0, 1, 1], [], []>} : vector<6x256xbf16>, vector<256x512xbf16>, vector<6x512xf32> -> vector<6x512xf32>
    %258 = arith.addf %252, %257 : vector<6x512xf32>
    %c5_236 = arith.constant 5 : index
    %c0_237 = arith.constant 0 : index
    %259 = vector.load %arg23[%c5_236, %c0_237] : memref<16x256xf32, #tpu.memory_space<vmem>>, vector<6x256xf32>
    %260 = arith.truncf %259 : vector<6x256xf32> to vector<6x256xbf16>
    %c4_238 = arith.constant 4 : index
    %c0_239 = arith.constant 0 : index
    %c0_240 = arith.constant 0 : index
    %261 = vector.load %arg14[%c4_238, %c0_239, %c0_240] : memref<9x256x512xbf16, #tpu.memory_space<vmem>>, vector<1x256x512xbf16>
    %262 = vector.shape_cast %261 : vector<1x256x512xbf16> to vector<256x512xbf16>
    %cst_241 = arith.constant dense<0.000000e+00> : vector<6x512xf32>
    %263 = tpu.matmul %260, %262, %cst_241 {dimension_numbers = #tpu.dot_dimension_numbers<[1], [0], [0], [1], [0, 0, 1, 1], [], []>} : vector<6x256xbf16>, vector<256x512xbf16>, vector<6x512xf32> -> vector<6x512xf32>
    %264 = arith.addf %258, %263 : vector<6x512xf32>
    %c6_242 = arith.constant 6 : index
    %c0_243 = arith.constant 0 : index
    %265 = vector.load %arg23[%c6_242, %c0_243] : memref<16x256xf32, #tpu.memory_space<vmem>>, vector<6x256xf32>
    %266 = arith.truncf %265 : vector<6x256xf32> to vector<6x256xbf16>
    %c5_244 = arith.constant 5 : index
    %c0_245 = arith.constant 0 : index
    %c0_246 = arith.constant 0 : index
    %267 = vector.load %arg14[%c5_244, %c0_245, %c0_246] : memref<9x256x512xbf16, #tpu.memory_space<vmem>>, vector<1x256x512xbf16>
    %268 = vector.shape_cast %267 : vector<1x256x512xbf16> to vector<256x512xbf16>
    %cst_247 = arith.constant dense<0.000000e+00> : vector<6x512xf32>
    %269 = tpu.matmul %266, %268, %cst_247 {dimension_numbers = #tpu.dot_dimension_numbers<[1], [0], [0], [1], [0, 0, 1, 1], [], []>} : vector<6x256xbf16>, vector<256x512xbf16>, vector<6x512xf32> -> vector<6x512xf32>
    %270 = arith.addf %264, %269 : vector<6x512xf32>
    %c8_248 = arith.constant 8 : index
    %c0_249 = arith.constant 0 : index
    %271 = vector.load %arg23[%c8_248, %c0_249] : memref<16x256xf32, #tpu.memory_space<vmem>>, vector<6x256xf32>
    %272 = arith.truncf %271 : vector<6x256xf32> to vector<6x256xbf16>
    %c6_250 = arith.constant 6 : index
    %c0_251 = arith.constant 0 : index
    %c0_252 = arith.constant 0 : index
    %273 = vector.load %arg14[%c6_250, %c0_251, %c0_252] : memref<9x256x512xbf16, #tpu.memory_space<vmem>>, vector<1x256x512xbf16>
    %274 = vector.shape_cast %273 : vector<1x256x512xbf16> to vector<256x512xbf16>
    %cst_253 = arith.constant dense<0.000000e+00> : vector<6x512xf32>
    %275 = tpu.matmul %272, %274, %cst_253 {dimension_numbers = #tpu.dot_dimension_numbers<[1], [0], [0], [1], [0, 0, 1, 1], [], []>} : vector<6x256xbf16>, vector<256x512xbf16>, vector<6x512xf32> -> vector<6x512xf32>
    %276 = arith.addf %270, %275 : vector<6x512xf32>
    %c9 = arith.constant 9 : index
    %c0_254 = arith.constant 0 : index
    %277 = vector.load %arg23[%c9, %c0_254] : memref<16x256xf32, #tpu.memory_space<vmem>>, vector<6x256xf32>
    %278 = arith.truncf %277 : vector<6x256xf32> to vector<6x256xbf16>
    %c7_255 = arith.constant 7 : index
    %c0_256 = arith.constant 0 : index
    %c0_257 = arith.constant 0 : index
    %279 = vector.load %arg14[%c7_255, %c0_256, %c0_257] : memref<9x256x512xbf16, #tpu.memory_space<vmem>>, vector<1x256x512xbf16>
    %280 = vector.shape_cast %279 : vector<1x256x512xbf16> to vector<256x512xbf16>
    %cst_258 = arith.constant dense<0.000000e+00> : vector<6x512xf32>
    %281 = tpu.matmul %278, %280, %cst_258 {dimension_numbers = #tpu.dot_dimension_numbers<[1], [0], [0], [1], [0, 0, 1, 1], [], []>} : vector<6x256xbf16>, vector<256x512xbf16>, vector<6x512xf32> -> vector<6x512xf32>
    %282 = arith.addf %276, %281 : vector<6x512xf32>
    %c10_259 = arith.constant 10 : index
    %c0_260 = arith.constant 0 : index
    %283 = vector.load %arg23[%c10_259, %c0_260] : memref<16x256xf32, #tpu.memory_space<vmem>>, vector<6x256xf32>
    %284 = arith.truncf %283 : vector<6x256xf32> to vector<6x256xbf16>
    %c8_261 = arith.constant 8 : index
    %c0_262 = arith.constant 0 : index
    %c0_263 = arith.constant 0 : index
    %285 = vector.load %arg14[%c8_261, %c0_262, %c0_263] : memref<9x256x512xbf16, #tpu.memory_space<vmem>>, vector<1x256x512xbf16>
    %286 = vector.shape_cast %285 : vector<1x256x512xbf16> to vector<256x512xbf16>
    %cst_264 = arith.constant dense<0.000000e+00> : vector<6x512xf32>
    %287 = tpu.matmul %284, %286, %cst_264 {dimension_numbers = #tpu.dot_dimension_numbers<[1], [0], [0], [1], [0, 0, 1, 1], [], []>} : vector<6x256xbf16>, vector<256x512xbf16>, vector<6x512xf32> -> vector<6x512xf32>
    %288 = arith.addf %282, %287 : vector<6x512xf32>
    %c0_265 = arith.constant 0 : index
    %c0_266 = arith.constant 0 : index
    %289 = vector.load %arg15[%c0_265, %c0_266] : memref<1x512xf32, #tpu.memory_space<vmem>>, vector<1x512xf32>
    %290 = vector.broadcast %289 : vector<1x512xf32> to vector<6x512xf32>
    %291 = arith.mulf %288, %290 : vector<6x512xf32>
    %c0_267 = arith.constant 0 : index
    %c0_268 = arith.constant 0 : index
    %292 = vector.load %arg16[%c0_267, %c0_268] : memref<1x512xf32, #tpu.memory_space<vmem>>, vector<1x512xf32>
    %293 = vector.broadcast %292 : vector<1x512xf32> to vector<6x512xf32>
    %294 = arith.addf %291, %293 : vector<6x512xf32>
    %cst_269 = arith.constant 0.000000e+00 : f32
    %295 = vector.broadcast %cst_269 : f32 to vector<6x512xf32>
    %296 = arith.maximumf %294, %295 : vector<6x512xf32>
    %c0_270 = arith.constant 0 : index
    %c0_271 = arith.constant 0 : index
    %297 = vector.load %arg27[%c0_270, %c0_271] : memref<6x512xf32, #tpu.memory_space<vmem>>, vector<6x512xf32>
    tpu.vector_store %arg27[%c0_270, %c0_271], %296 {strides = array<i32>} : memref<6x512xf32, #tpu.memory_space<vmem>>, vector<6x512xf32>,
    %c0_272 = arith.constant 0 : index
    %c0_273 = arith.constant 0 : index
    %298 = vector.load %arg27[%c0_272, %c0_273] : memref<6x512xf32, #tpu.memory_space<vmem>>, vector<1x512xf32>
    %c1_274 = arith.constant 1 : index
    %c0_275 = arith.constant 0 : index
    %299 = vector.load %arg27[%c1_274, %c0_275] : memref<6x512xf32, #tpu.memory_space<vmem>>, vector<1x512xf32>
    %300 = arith.maximumf %298, %299 : vector<1x512xf32>
    %c4_276 = arith.constant 4 : index
    %c0_277 = arith.constant 0 : index
    %301 = vector.load %arg27[%c4_276, %c0_277] : memref<6x512xf32, #tpu.memory_space<vmem>>, vector<1x512xf32>
    %c5_278 = arith.constant 5 : index
    %c0_279 = arith.constant 0 : index
    %302 = vector.load %arg27[%c5_278, %c0_279] : memref<6x512xf32, #tpu.memory_space<vmem>>, vector<1x512xf32>
    %303 = arith.maximumf %301, %302 : vector<1x512xf32>
    %304 = arith.maximumf %300, %303 : vector<1x512xf32>
    %305 = arith.truncf %304 : vector<1x512xf32> to vector<1x512xbf16>
    %c0_280 = arith.constant 0 : index
    %c0_281 = arith.constant 0 : index
    %306 = vector.load %arg18[%c0_280, %c0_281] : memref<512x128xbf16, #tpu.memory_space<vmem>>, vector<512x128xbf16>
    %cst_282 = arith.constant dense<0.000000e+00> : vector<1x128xf32>
    %307 = tpu.matmul %305, %306, %cst_282 {dimension_numbers = #tpu.dot_dimension_numbers<[1], [0], [0], [1], [0, 0, 1, 1], [], []>} : vector<1x512xbf16>, vector<512x128xbf16>, vector<1x128xf32> -> vector<1x128xf32>
    %c0_283 = arith.constant 0 : index
    %c0_284 = arith.constant 0 : index
    %308 = vector.load %arg19[%c0_283, %c0_284] : memref<1x128xf32, #tpu.memory_space<vmem>>, vector<1x128xf32>
    %309 = arith.addf %307, %308 : vector<1x128xf32>
    %c0_285 = arith.constant 0 : index
    %c0_286 = arith.constant 0 : index
    %c0_287 = arith.constant 0 : index
    %310 = vector.load %arg20[%c0_285, %c0_286, %c0_287] : memref<1x1x128xf32, #tpu.memory_space<vmem>>, vector<1x1x128xf32>
    %311 = vector.shape_cast %310 : vector<1x1x128xf32> to vector<1x128xf32>
    %312 = vector.shape_cast %309 : vector<1x128xf32> to vector<1x1x128xf32>
    tpu.vector_store %arg20[%c0_285, %c0_286, %c0_287], %312 {strides = array<i32>} : memref<1x1x128xf32, #tpu.memory_space<vmem>>, vector<1x1x128xf32>,
    return
  }
  func.func @transform_0(%arg0: i32) -> (i32, i32, i32) {
    %c0_i32 = arith.constant 0 : i32
    %c0_i32_0 = arith.constant 0 : i32
    %c0_i32_1 = arith.constant 0 : i32
    return %arg0, %c0_i32, %c0_i32_0 : i32, i32, i32
  }
  func.func @transform_1(%arg0: i32) -> (i32, i32, i32) {
    %c0_i32 = arith.constant 0 : i32
    %c0_i32_0 = arith.constant 0 : i32
    %c0_i32_1 = arith.constant 0 : i32
    %c0_i32_2 = arith.constant 0 : i32
    return %c0_i32, %c0_i32_0, %c0_i32_1 : i32, i32, i32
  }
  func.func @transform_2(%arg0: i32) -> (i32, i32) {
    %c0_i32 = arith.constant 0 : i32
    %c0_i32_0 = arith.constant 0 : i32
    %c0_i32_1 = arith.constant 0 : i32
    return %c0_i32, %c0_i32_0 : i32, i32
  }
  func.func @transform_3(%arg0: i32) -> (i32, i32) {
    %c0_i32 = arith.constant 0 : i32
    %c0_i32_0 = arith.constant 0 : i32
    %c0_i32_1 = arith.constant 0 : i32
    return %c0_i32, %c0_i32_0 : i32, i32
  }
  func.func @transform_4(%arg0: i32) -> (i32, i32) {
    %c0_i32 = arith.constant 0 : i32
    %c0_i32_0 = arith.constant 0 : i32
    %c0_i32_1 = arith.constant 0 : i32
    return %c0_i32, %c0_i32_0 : i32, i32
  }
  func.func @transform_5(%arg0: i32) -> (i32, i32, i32) {
    %c0_i32 = arith.constant 0 : i32
    %c0_i32_0 = arith.constant 0 : i32
    %c0_i32_1 = arith.constant 0 : i32
    %c0_i32_2 = arith.constant 0 : i32
    return %c0_i32, %c0_i32_0, %c0_i32_1 : i32, i32, i32
  }
  func.func @transform_6(%arg0: i32) -> (i32, i32) {
    %c0_i32 = arith.constant 0 : i32
    %c0_i32_0 = arith.constant 0 : i32
    %c0_i32_1 = arith.constant 0 : i32
    return %c0_i32, %c0_i32_0 : i32, i32
  }
  func.func @transform_7(%arg0: i32) -> (i32, i32) {
    %c0_i32 = arith.constant 0 : i32
    %c0_i32_0 = arith.constant 0 : i32
    %c0_i32_1 = arith.constant 0 : i32
    return %c0_i32, %c0_i32_0 : i32, i32
  }
  func.func @transform_8(%arg0: i32) -> (i32, i32) {
    %c0_i32 = arith.constant 0 : i32
    %c0_i32_0 = arith.constant 0 : i32
    %c0_i32_1 = arith.constant 0 : i32
    return %c0_i32, %c0_i32_0 : i32, i32
  }
  func.func @transform_9(%arg0: i32) -> (i32, i32, i32) {
    %c0_i32 = arith.constant 0 : i32
    %c0_i32_0 = arith.constant 0 : i32
    %c0_i32_1 = arith.constant 0 : i32
    %c0_i32_2 = arith.constant 0 : i32
    return %c0_i32, %c0_i32_0, %c0_i32_1 : i32, i32, i32
  }
  func.func @transform_10(%arg0: i32) -> (i32, i32) {
    %c0_i32 = arith.constant 0 : i32
    %c0_i32_0 = arith.constant 0 : i32
    %c0_i32_1 = arith.constant 0 : i32
    return %c0_i32, %c0_i32_0 : i32, i32
  }
  func.func @transform_11(%arg0: i32) -> (i32, i32) {
    %c0_i32 = arith.constant 0 : i32
    %c0_i32_0 = arith.constant 0 : i32
    %c0_i32_1 = arith.constant 0 : i32
    return %c0_i32, %c0_i32_0 : i32, i32
  }
  func.func @transform_12(%arg0: i32) -> (i32, i32) {
    %c0_i32 = arith.constant 0 : i32
    %c0_i32_0 = arith.constant 0 : i32
    %c0_i32_1 = arith.constant 0 : i32
    return %c0_i32, %c0_i32_0 : i32, i32
  }
  func.func @transform_13(%arg0: i32) -> (i32, i32, i32) {
    %c0_i32 = arith.constant 0 : i32
    %c0_i32_0 = arith.constant 0 : i32
    %c0_i32_1 = arith.constant 0 : i32
    %c0_i32_2 = arith.constant 0 : i32
    return %c0_i32, %c0_i32_0, %c0_i32_1 : i32, i32, i32
  }
  func.func @transform_14(%arg0: i32) -> (i32, i32) {
    %c0_i32 = arith.constant 0 : i32
    %c0_i32_0 = arith.constant 0 : i32
    %c0_i32_1 = arith.constant 0 : i32
    return %c0_i32, %c0_i32_0 : i32, i32
  }
  func.func @transform_15(%arg0: i32) -> (i32, i32) {
    %c0_i32 = arith.constant 0 : i32
    %c0_i32_0 = arith.constant 0 : i32
    %c0_i32_1 = arith.constant 0 : i32
    return %c0_i32, %c0_i32_0 : i32, i32
  }
  func.func @transform_16(%arg0: i32) -> (i32, i32) {
    %c0_i32 = arith.constant 0 : i32
    %c0_i32_0 = arith.constant 0 : i32
    %c0_i32_1 = arith.constant 0 : i32
    return %c0_i32, %c0_i32_0 : i32, i32
  }
  func.func @transform_17(%arg0: i32) -> (i32, i32) {
    %c0_i32 = arith.constant 0 : i32
    %c0_i32_0 = arith.constant 0 : i32
    %c0_i32_1 = arith.constant 0 : i32
    return %c0_i32, %c0_i32_0 : i32, i32
  }
  func.func @transform_18(%arg0: i32) -> (i32, i32) {
    %c0_i32 = arith.constant 0 : i32
    %c0_i32_0 = arith.constant 0 : i32
    %c0_i32_1 = arith.constant 0 : i32
    return %c0_i32, %c0_i32_0 : i32, i32
  }
  func.func @transform_19(%arg0: i32) -> (i32, i32, i32) {
    %c0_i32 = arith.constant 0 : i32
    %c0_i32_0 = arith.constant 0 : i32
    %c0_i32_1 = arith.constant 0 : i32
    return %arg0, %c0_i32, %c0_i32_0 : i32, i32, i32
  }
}

</mosaic_0001>

<llo_original>
// kernel: classifier_forward.1
$region0: #{classifier_forward.1}
  #allocation0 [shape = 'u32[]', space=smem, size = 0x4, offset = 0x4, fixed_abs, tag = 'smem constant byte address 0x4 - core index']
  #allocation1 [shape = 'u32[72,128]{1,0:T(1,128)}', space=vmem, size = 0x9000, scoped, tag = 'internal scratch']
  #allocation2 [shape = 'f32[100,64]{1,0:T(8,128)}', space=vmem, size = 0xd000, scoped, tag = 'scratch operand']
  #allocation3 [shape = 'f32[36,128]{1,0:T(8,128)}', space=vmem, size = 0x5000, scoped, tag = 'scratch operand']
  #allocation4 [shape = 'f32[16,256]{1,0:T(8,128)}', space=vmem, size = 0x4000, scoped, tag = 'scratch operand']
  #allocation5 [shape = 'f32[286,64]{1,0:T(8,128)}', space=vmem, size = 0x24000, scoped, tag = 'scratch operand']
  #allocation6 [shape = 'f32[78,128]{1,0:T(8,128)}', space=vmem, size = 0xa000, scoped, tag = 'scratch operand']
  #allocation7 [shape = 'f32[22,256]{1,0:T(8,128)}', space=vmem, size = 0x6000, scoped, tag = 'scratch operand']
  #allocation8 [shape = 'f32[6,512]{1,0:T(8,128)}', space=vmem, size = 0x4000, scoped, tag = 'scratch operand']
  #allocation9 [shape = 'bf16[1,1]{1,0:T(2,128)S(1)}', space=vmem, size = 0x200, scoped, tag = 'scoped memory for classifier_forward.1']
  %s0 = inlined_call_operand.vmem [shape: f32[2,324,3], index: 0, kind: input, shape index: {}]
  %s1 = inlined_call_operand.vmem [shape: bf16[9,3,64], index: 1, kind: input, shape index: {}]
  %s2 = inlined_call_operand.vmem [shape: f32[1,64], index: 2, kind: input, shape index: {}]
  %s3 = inlined_call_operand.vmem [shape: f32[1,64], index: 3, kind: input, shape index: {}]
  %s4 = inlined_call_operand.vmem [shape: bf16[100,267], index: 4, kind: input, shape index: {}]
  %s5 = inlined_call_operand.vmem [shape: bf16[9,64,128], index: 5, kind: input, shape index: {}]
  %s6 = inlined_call_operand.vmem [shape: f32[1,128], index: 6, kind: input, shape index: {}]
  %s7 = inlined_call_operand.vmem [shape: f32[1,128], index: 7, kind: input, shape index: {}]
  %s8 = inlined_call_operand.vmem [shape: bf16[36,67], index: 8, kind: input, shape index: {}]
  %s9 = inlined_call_operand.vmem [shape: bf16[9,128,256], index: 9, kind: input, shape index: {}]
  %s10 = inlined_call_operand.vmem [shape: f32[1,256], index: 10, kind: input, shape index: {}]
  %s11 = inlined_call_operand.vmem [shape: f32[1,256], index: 11, kind: input, shape index: {}]
  %s12 = inlined_call_operand.vmem [shape: bf16[16,15], index: 12, kind: input, shape index: {}]
  %s13 = inlined_call_operand.vmem [shape: bf16[9,256,512], index: 13, kind: input, shape index: {}]
  %s14 = inlined_call_operand.vmem [shape: f32[1,512], index: 14, kind: input, shape index: {}]
  %s15 = inlined_call_operand.vmem [shape: f32[1,512], index: 15, kind: input, shape index: {}]
  %s16 = inlined_call_operand.<no memory space> [shape: bf16[1,1], index: 16, kind: input, shape index: {}]
  %s17 = inlined_call_operand.vmem [shape: bf16[512,128], index: 17, kind: input, shape index: {}]
  %s18 = inlined_call_operand.vmem [shape: f32[1,128], index: 18, kind: input, shape index: {}]
  %s19 = inlined_call_operand.hbm [shape: f32[2,1,128], index: 19, kind: output, shape index: {}]
  %s20 = sld [smem:[#allocation0]]
  $region109: #{classifier_forward.1} parent=0
    _
  %s22 = ssub.s32 1, %s20
  %s23 = scalar_select 0, %s22, %s20
  %v24 = vstv %s16
  %25 = vst [vmem:[#allocation9] sm:$0x1] %v24
  $region1: #{classifier_forward.1} parent=0
    #allocation10 [shape = 'u8[1024]{0}', space=vmem, size = 0x400, scoped, tag = 'output window, operand 0']
    #allocation11 [shape = 's32[2]{0}', space=sflag, size = 0x8, scoped, tag = 'scoped memory for classifier_forward.1']
    %26 = vsyncpa [#allocation11], 0
    %s27 = scalar_lea.sflag [#allocation11], 1
    %28 = vsyncpa %s27, 0
    loop: start=0, step=1, limit=4
    $region2: #{classifier_forward.1} parent=1 // loop_pre_header
      _
    $region3: #{classifier_forward.1} parent=1 // loop_header
      %s30 = sphi 0, %s34
      %p31 = scmp.ge.s32.totalorder %s30, 4
      %s40 = sphi 0, %s42
      %s43 = sphi 0, %s40
      %s44 = sphi 0, %s43
      %s60 = sphi 0, %s44
      %s64 = sphi 0, %s64
      %s66 = sphi 0, %s64
      %s67 = sphi 0, %s66
      %s81 = sphi 0, %s67
      %s85 = sphi 0, %s85
      %s87 = sphi 0, %s85
      %s88 = sphi 0, %s87
      %s102 = sphi 0, %s88
      %s106 = sphi 0, %s106
      %s108 = sphi 0, %s106
      %s109 = sphi 0, %s108
      %s123 = sphi 0, %s109
      %s127 = sphi 0, %s127
      %s129 = sphi 0, %s127
      %s130 = sphi 0, %s129
      %s144 = sphi 0, %s130
      %s148 = sphi 0, %s148
      %s150 = sphi 0, %s148
      %s151 = sphi 0, %s150
      %s165 = sphi 0, %s151
      %s169 = sphi 0, %s169
      %s171 = sphi 0, %s169
      %s172 = sphi 0, %s171
      %s186 = sphi 0, %s172
      %s190 = sphi 0, %s190
      %s192 = sphi 0, %s190
      %s193 = sphi 0, %s192
      %s207 = sphi 0, %s193
      %s211 = sphi 0, %s211
      %s213 = sphi 0, %s211
      %s214 = sphi 0, %s213
      %s228 = sphi 0, %s214
      %s232 = sphi 0, %s232
      %s234 = sphi 0, %s232
      %s235 = sphi 0, %s234
      %s249 = sphi 0, %s235
      %s253 = sphi 0, %s253
      %s255 = sphi 0, %s253
      %s256 = sphi 0, %s255
      %s270 = sphi 0, %s256
      %s274 = sphi 0, %s274
      %s276 = sphi 0, %s274
      %s277 = sphi 0, %s276
      %s291 = sphi 0, %s277
      %s295 = sphi 0, %s295
      %s297 = sphi 0, %s295
      %s298 = sphi 0, %s297
      %s312 = sphi 0, %s298
      %s316 = sphi 0, %s316
      %s318 = sphi 0, %s316
      %s319 = sphi 0, %s318
      %s333 = sphi 0, %s319
      %s337 = sphi 0, %s337
      %s339 = sphi 0, %s337
      %s340 = sphi 0, %s339
      %s354 = sphi 0, %s340
      %s358 = sphi 0, %s358
      %s360 = sphi 0, %s358
      %s361 = sphi 0, %s360
      %s375 = sphi 0, %s361
      %s379 = sphi 0, %s379
      %s381 = sphi 0, %s379
      %s382 = sphi 0, %s381
      %s396 = sphi 0, %s382
      %s400 = sphi 0, %s400
      %s402 = sphi 0, %s400
      %s403 = sphi 0, %s402
      %s417 = sphi 0, %s403
      %s421 = sphi 0, %s421
      %s423 = sphi 0, %s421
      %s424 = sphi 0, %s423
      %s438 = sphi 0, %s424
      %s444 = sphi 0, %s446
      %s447 = sphi 0, %s444
      %s448 = sphi 0, %s447
      %s464 = sphi 0, %s448
    $region4: #{classifier_forward.1} parent=1 // loop_header_branch
      %33 = sbr.rel (%p31) target = $region8
    $region5: #{classifier_forward.1} parent=1 // loop_body
      %s35 = ssub.s32 %s30, 1
      %s36 = ssub.s32 %s30, 2
      %s37 = sadd.s32 %s30, 1
      %s38 = ssub.s32 %s30, %s37
      %p39 = scmp.eq.s32.totalorder %s38, 0
      %s41 = sadd.s32 %s40, 1
      %s42 = scalar_select %p39, %s40, %s41
      %p45 = pneg %p39
      %p46 = scmp.eq.s32.totalorder %s30, 1
      %p47 = por %p45, %p46
      %p48 = scmp.ne.s32.totalorder %s40, %s43
      %p49 = scmp.eq.s32.totalorder %s30, 0
      %p50 = por %p48, %p49
      %p51 = scmp.ne.s32.totalorder %s40, %s43
      %p52 = scmp.eq.s32.totalorder %s35, 1
      %p53 = por %p51, %p52
      %p54 = scmp.ne.s32.totalorder %s43, %s44
      %p55 = scmp.eq.s32.totalorder %s35, 0
      %p56 = por %p54, %p55
      %p57 = scmp.ne.s32.totalorder %s43, %s44
      %p58 = scmp.eq.s32.totalorder %s36, 1
      %p59 = por %p57, %p58
      %p61 = scmp.ne.s32.totalorder %s44, %s60
      %p62 = scmp.eq.s32.totalorder %s36, 0
      %p63 = por %p61, %p62
      %s65 = sadd.s32 %s64, 1
      %p68 = scmp.eq.s32.totalorder %s30, 1
      %p69 = scmp.ne.s32.totalorder %s64, %s66
      %p70 = scmp.eq.s32.totalorder %s30, 0
      %p71 = por %p69, %p70
      %p72 = scmp.ne.s32.totalorder %s64, %s66
      %p73 = scmp.eq.s32.totalorder %s35, 1
      %p74 = por %p72, %p73
      %p75 = scmp.ne.s32.totalorder %s66, %s67
      %p76 = scmp.eq.s32.totalorder %s35, 0
      %p77 = por %p75, %p76
      %p78 = scmp.ne.s32.totalorder %s66, %s67
      %p79 = scmp.eq.s32.totalorder %s36, 1
      %p80 = por %p78, %p79
      %p82 = scmp.ne.s32.totalorder %s67, %s81
      %p83 = scmp.eq.s32.totalorder %s36, 0
      %p84 = por %p82, %p83
      %s86 = sadd.s32 %s85, 1
      %p89 = scmp.eq.s32.totalorder %s30, 1
      %p90 = scmp.ne.s32.totalorder %s85, %s87
      %p91 = scmp.eq.s32.totalorder %s30, 0
      %p92 = por %p90, %p91
      %p93 = scmp.ne.s32.totalorder %s85, %s87
      %p94 = scmp.eq.s32.totalorder %s35, 1
      %p95 = por %p93, %p94
      %p96 = scmp.ne.s32.totalorder %s87, %s88
      %p97 = scmp.eq.s32.totalorder %s35, 0
      %p98 = por %p96, %p97
      %p99 = scmp.ne.s32.totalorder %s87, %s88
      %p100 = scmp.eq.s32.totalorder %s36, 1
      %p101 = por %p99, %p100
      %p103 = scmp.ne.s32.totalorder %s88, %s102
      %p104 = scmp.eq.s32.totalorder %s36, 0
      %p105 = por %p103, %p104
      %s107 = sadd.s32 %s106, 1
      %p110 = scmp.eq.s32.totalorder %s30, 1
      %p111 = scmp.ne.s32.totalorder %s106, %s108
      %p112 = scmp.eq.s32.totalorder %s30, 0
      %p113 = por %p111, %p112
      %p114 = scmp.ne.s32.totalorder %s106, %s108
      %p115 = scmp.eq.s32.totalorder %s35, 1
      %p116 = por %p114, %p115
      %p117 = scmp.ne.s32.totalorder %s108, %s109
      %p118 = scmp.eq.s32.totalorder %s35, 0
      %p119 = por %p117, %p118
      %p120 = scmp.ne.s32.totalorder %s108, %s109
      %p121 = scmp.eq.s32.totalorder %s36, 1
      %p122 = por %p120, %p121
      %p124 = scmp.ne.s32.totalorder %s109, %s123
      %p125 = scmp.eq.s32.totalorder %s36, 0
      %p126 = por %p124, %p125
      %s128 = sadd.s32 %s127, 1
      %p131 = scmp.eq.s32.totalorder %s30, 1
      %p132 = scmp.ne.s32.totalorder %s127, %s129
      %p133 = scmp.eq.s32.totalorder %s30, 0
      %p134 = por %p132, %p133
      %p135 = scmp.ne.s32.totalorder %s127, %s129
      %p136 = scmp.eq.s32.totalorder %s35, 1
      %p137 = por %p135, %p136
      %p138 = scmp.ne.s32.totalorder %s129, %s130
      %p139 = scmp.eq.s32.totalorder %s35, 0
      %p140 = por %p138, %p139
      %p141 = scmp.ne.s32.totalorder %s129, %s130
      %p142 = scmp.eq.s32.totalorder %s36, 1
      %p143 = por %p141, %p142
      %p145 = scmp.ne.s32.totalorder %s130, %s144
      %p146 = scmp.eq.s32.totalorder %s36, 0
      %p147 = por %p145, %p146
      %s149 = sadd.s32 %s148, 1
      %p152 = scmp.eq.s32.totalorder %s30, 1
      %p153 = scmp.ne.s32.totalorder %s148, %s150
      %p154 = scmp.eq.s32.totalorder %s30, 0
      %p155 = por %p153, %p154
      %p156 = scmp.ne.s32.totalorder %s148, %s150
      %p157 = scmp.eq.s32.totalorder %s35, 1
      %p158 = por %p156, %p157
      %p159 = scmp.ne.s32.totalorder %s150, %s151
      %p160 = scmp.eq.s32.totalorder %s35, 0
      %p161 = por %p159, %p160
      %p162 = scmp.ne.s32.totalorder %s150, %s151
      %p163 = scmp.eq.s32.totalorder %s36, 1
      %p164 = por %p162, %p163
      %p166 = scmp.ne.s32.totalorder %s151, %s165
      %p167 = scmp.eq.s32.totalorder %s36, 0
      %p168 = por %p166, %p167
      %s170 = sadd.s32 %s169, 1
      %p173 = scmp.eq.s32.totalorder %s30, 1
      %p174 = scmp.ne.s32.totalorder %s169, %s171
      %p175 = scmp.eq.s32.totalorder %s30, 0
      %p176 = por %p174, %p175
      %p177 = scmp.ne.s32.totalorder %s169, %s171
      %p178 = scmp.eq.s32.totalorder %s35, 1
      %p179 = por %p177, %p178
      %p180 = scmp.ne.s32.totalorder %s171, %s172
      %p181 = scmp.eq.s32.totalorder %s35, 0
      %p182 = por %p180, %p181
      %p183 = scmp.ne.s32.totalorder %s171, %s172
      %p184 = scmp.eq.s32.totalorder %s36, 1
      %p185 = por %p183, %p184
      %p187 = scmp.ne.s32.totalorder %s172, %s186
      %p188 = scmp.eq.s32.totalorder %s36, 0
      %p189 = por %p187, %p188
      %s191 = sadd.s32 %s190, 1
      %p194 = scmp.eq.s32.totalorder %s30, 1
      %p195 = scmp.ne.s32.totalorder %s190, %s192
      %p196 = scmp.eq.s32.totalorder %s30, 0
      %p197 = por %p195, %p196
      %p198 = scmp.ne.s32.totalorder %s190, %s192
      %p199 = scmp.eq.s32.totalorder %s35, 1
      %p200 = por %p198, %p199
      %p201 = scmp.ne.s32.totalorder %s192, %s193
      %p202 = scmp.eq.s32.totalorder %s35, 0
      %p203 = por %p201, %p202
      %p204 = scmp.ne.s32.totalorder %s192, %s193
      %p205 = scmp.eq.s32.totalorder %s36, 1
      %p206 = por %p204, %p205
      %p208 = scmp.ne.s32.totalorder %s193, %s207
      %p209 = scmp.eq.s32.totalorder %s36, 0
      %p210 = por %p208, %p209
      %s212 = sadd.s32 %s211, 1
      %p215 = scmp.eq.s32.totalorder %s30, 1
      %p216 = scmp.ne.s32.totalorder %s211, %s213
      %p217 = scmp.eq.s32.totalorder %s30, 0
      %p218 = por %p216, %p217
      %p219 = scmp.ne.s32.totalorder %s211, %s213
      %p220 = scmp.eq.s32.totalorder %s35, 1
      %p221 = por %p219, %p220
      %p222 = scmp.ne.s32.totalorder %s213, %s214
      %p223 = scmp.eq.s32.totalorder %s35, 0
      %p224 = por %p222, %p223
      %p225 = scmp.ne.s32.totalorder %s213, %s214
      %p226 = scmp.eq.s32.totalorder %s36, 1
      %p227 = por %p225, %p226
      %p229 = scmp.ne.s32.totalorder %s214, %s228
      %p230 = scmp.eq.s32.totalorder %s36, 0
      %p231 = por %p229, %p230
      %s233 = sadd.s32 %s232, 1
      %p236 = scmp.eq.s32.totalorder %s30, 1
      %p237 = scmp.ne.s32.totalorder %s232, %s234
      %p238 = scmp.eq.s32.totalorder %s30, 0
      %p239 = por %p237, %p238
      %p240 = scmp.ne.s32.totalorder %s232, %s234
      %p241 = scmp.eq.s32.totalorder %s35, 1
      %p242 = por %p240, %p241
      %p243 = scmp.ne.s32.totalorder %s234, %s235
      %p244 = scmp.eq.s32.totalorder %s35, 0
      %p245 = por %p243, %p244
      %p246 = scmp.ne.s32.totalorder %s234, %s235
      %p247 = scmp.eq.s32.totalorder %s36, 1
      %p248 = por %p246, %p247
      %p250 = scmp.ne.s32.totalorder %s235, %s249
      %p251 = scmp.eq.s32.totalorder %s36, 0
      %p252 = por %p250, %p251
      %s254 = sadd.s32 %s253, 1
      %p257 = scmp.eq.s32.totalorder %s30, 1
      %p258 = scmp.ne.s32.totalorder %s253, %s255
      %p259 = scmp.eq.s32.totalorder %s30, 0
      %p260 = por %p258, %p259
      %p261 = scmp.ne.s32.totalorder %s253, %s255
      %p262 = scmp.eq.s32.totalorder %s35, 1
      %p263 = por %p261, %p262
      %p264 = scmp.ne.s32.totalorder %s255, %s256
      %p265 = scmp.eq.s32.totalorder %s35, 0
      %p266 = por %p264, %p265
      %p267 = scmp.ne.s32.totalorder %s255, %s256
      %p268 = scmp.eq.s32.totalorder %s36, 1
      %p269 = por %p267, %p268
      %p271 = scmp.ne.s32.totalorder %s256, %s270
      %p272 = scmp.eq.s32.totalorder %s36, 0
      %p273 = por %p271, %p272
      %s275 = sadd.s32 %s274, 1
      %p278 = scmp.eq.s32.totalorder %s30, 1
      %p279 = scmp.ne.s32.totalorder %s274, %s276
      %p280 = scmp.eq.s32.totalorder %s30, 0
      %p281 = por %p279, %p280
      %p282 = scmp.ne.s32.totalorder %s274, %s276
      %p283 = scmp.eq.s32.totalorder %s35, 1
      %p284 = por %p282, %p283
      %p285 = scmp.ne.s32.totalorder %s276, %s277
      %p286 = scmp.eq.s32.totalorder %s35, 0
      %p287 = por %p285, %p286
      %p288 = scmp.ne.s32.totalorder %s276, %s277
      %p289 = scmp.eq.s32.totalorder %s36, 1
      %p290 = por %p288, %p289
      %p292 = scmp.ne.s32.totalorder %s277, %s291
      %p293 = scmp.eq.s32.totalorder %s36, 0
      %p294 = por %p292, %p293
      %s296 = sadd.s32 %s295, 1
      %p299 = scmp.eq.s32.totalorder %s30, 1
      %p300 = scmp.ne.s32.totalorder %s295, %s297
      %p301 = scmp.eq.s32.totalorder %s30, 0
      %p302 = por %p300, %p301
      %p303 = scmp.ne.s32.totalorder %s295, %s297
      %p304 = scmp.eq.s32.totalorder %s35, 1
      %p305 = por %p303, %p304
      %p306 = scmp.ne.s32.totalorder %s297, %s298
      %p307 = scmp.eq.s32.totalorder %s35, 0
      %p308 = por %p306, %p307
      %p309 = scmp.ne.s32.totalorder %s297, %s298
      %p310 = scmp.eq.s32.totalorder %s36, 1
      %p311 = por %p309, %p310
      %p313 = scmp.ne.s32.totalorder %s298, %s312
      %p314 = scmp.eq.s32.totalorder %s36, 0
      %p315 = por %p313, %p314
      %s317 = sadd.s32 %s316, 1
      %p320 = scmp.eq.s32.totalorder %s30, 1
      %p321 = scmp.ne.s32.totalorder %s316, %s318
      %p322 = scmp.eq.s32.totalorder %s30, 0
      %p323 = por %p321, %p322
      %p324 = scmp.ne.s32.totalorder %s316, %s318
      %p325 = scmp.eq.s32.totalorder %s35, 1
      %p326 = por %p324, %p325
      %p327 = scmp.ne.s32.totalorder %s318, %s319
      %p328 = scmp.eq.s32.totalorder %s35, 0
      %p329 = por %p327, %p328
      %p330 = scmp.ne.s32.totalorder %s318, %s319
      %p331 = scmp.eq.s32.totalorder %s36, 1
      %p332 = por %p330, %p331
      %p334 = scmp.ne.s32.totalorder %s319, %s333
      %p335 = scmp.eq.s32.totalorder %s36, 0
      %p336 = por %p334, %p335
      %s338 = sadd.s32 %s337, 1
      %p341 = scmp.eq.s32.totalorder %s30, 1
      %p342 = scmp.ne.s32.totalorder %s337, %s339
      %p343 = scmp.eq.s32.totalorder %s30, 0
      %p344 = por %p342, %p343
      %p345 = scmp.ne.s32.totalorder %s337, %s339
      %p346 = scmp.eq.s32.totalorder %s35, 1
      %p347 = por %p345, %p346
      %p348 = scmp.ne.s32.totalorder %s339, %s340
      %p349 = scmp.eq.s32.totalorder %s35, 0
      %p350 = por %p348, %p349
      %p351 = scmp.ne.s32.totalorder %s339, %s340
      %p352 = scmp.eq.s32.totalorder %s36, 1
      %p353 = por %p351, %p352
      %p355 = scmp.ne.s32.totalorder %s340, %s354
      %p356 = scmp.eq.s32.totalorder %s36, 0
      %p357 = por %p355, %p356
      %s359 = sadd.s32 %s358, 1
      %p362 = scmp.eq.s32.totalorder %s30, 1
      %p363 = scmp.ne.s32.totalorder %s358, %s360
      %p364 = scmp.eq.s32.totalorder %s30, 0
      %p365 = por %p363, %p364
      %p366 = scmp.ne.s32.totalorder %s358, %s360
      %p367 = scmp.eq.s32.totalorder %s35, 1
      %p368 = por %p366, %p367
      %p369 = scmp.ne.s32.totalorder %s360, %s361
      %p370 = scmp.eq.s32.totalorder %s35, 0
      %p371 = por %p369, %p370
      %p372 = scmp.ne.s32.totalorder %s360, %s361
      %p373 = scmp.eq.s32.totalorder %s36, 1
      %p374 = por %p372, %p373
      %p376 = scmp.ne.s32.totalorder %s361, %s375
      %p377 = scmp.eq.s32.totalorder %s36, 0
      %p378 = por %p376, %p377
      %s380 = sadd.s32 %s379, 1
      %p383 = scmp.eq.s32.totalorder %s30, 1
      %p384 = scmp.ne.s32.totalorder %s379, %s381
      %p385 = scmp.eq.s32.totalorder %s30, 0
      %p386 = por %p384, %p385
      %p387 = scmp.ne.s32.totalorder %s379, %s381
      %p388 = scmp.eq.s32.totalorder %s35, 1
      %p389 = por %p387, %p388
      %p390 = scmp.ne.s32.totalorder %s381, %s382
      %p391 = scmp.eq.s32.totalorder %s35, 0
      %p392 = por %p390, %p391
      %p393 = scmp.ne.s32.totalorder %s381, %s382
      %p394 = scmp.eq.s32.totalorder %s36, 1
      %p395 = por %p393, %p394
      %p397 = scmp.ne.s32.totalorder %s382, %s396
      %p398 = scmp.eq.s32.totalorder %s36, 0
      %p399 = por %p397, %p398
      %s401 = sadd.s32 %s400, 1
      %p404 = scmp.eq.s32.totalorder %s30, 1
      %p405 = scmp.ne.s32.totalorder %s400, %s402
      %p406 = scmp.eq.s32.totalorder %s30, 0
      %p407 = por %p405, %p406
      %p408 = scmp.ne.s32.totalorder %s400, %s402
      %p409 = scmp.eq.s32.totalorder %s35, 1
      %p410 = por %p408, %p409
      %p411 = scmp.ne.s32.totalorder %s402, %s403
      %p412 = scmp.eq.s32.totalorder %s35, 0
      %p413 = por %p411, %p412
      %p414 = scmp.ne.s32.totalorder %s402, %s403
      %p415 = scmp.eq.s32.totalorder %s36, 1
      %p416 = por %p414, %p415
      %p418 = scmp.ne.s32.totalorder %s403, %s417
      %p419 = scmp.eq.s32.totalorder %s36, 0
      %p420 = por %p418, %p419
      %s422 = sadd.s32 %s421, 1
      %p425 = scmp.eq.s32.totalorder %s30, 1
      %p426 = scmp.ne.s32.totalorder %s421, %s423
      %p427 = scmp.eq.s32.totalorder %s30, 0
      %p428 = por %p426, %p427
      %p429 = scmp.ne.s32.totalorder %s421, %s423
      %p430 = scmp.eq.s32.totalorder %s35, 1
      %p431 = por %p429, %p430
      %p432 = scmp.ne.s32.totalorder %s423, %s424
      %p433 = scmp.eq.s32.totalorder %s35, 0
      %p434 = por %p432, %p433
      %p435 = scmp.ne.s32.totalorder %s423, %s424
      %p436 = scmp.eq.s32.totalorder %s36, 1
      %p437 = por %p435, %p436
      %p439 = scmp.ne.s32.totalorder %s424, %s438
      %p440 = scmp.eq.s32.totalorder %s36, 0
      %p441 = por %p439, %p440
      %s442 = ssub.s32 %s30, %s37
      %p443 = scmp.eq.s32.totalorder %s442, 0
      %s445 = sadd.s32 %s444, 1
      %s446 = scalar_select %p443, %s444, %s445
      %p449 = pneg %p443
      %p450 = scmp.eq.s32.totalorder %s30, 1
      %p451 = por %p449, %p450
      %p452 = scmp.ne.s32.totalorder %s444, %s447
      %p453 = scmp.eq.s32.totalorder %s30, 0
      %p454 = por %p452, %p453
      %p455 = scmp.ne.s32.totalorder %s444, %s447
      %p456 = scmp.eq.s32.totalorder %s35, 1
      %p457 = por %p455, %p456
      %p458 = scmp.ne.s32.totalorder %s447, %s448
      %p459 = scmp.eq.s32.totalorder %s35, 0
      %p460 = por %p458, %p459
      %p461 = scmp.ne.s32.totalorder %s447, %s448
      %p462 = scmp.eq.s32.totalorder %s36, 1
      %p463 = por %p461, %p462
      %p465 = scmp.ne.s32.totalorder %s448, %s464
      %p466 = scmp.eq.s32.totalorder %s36, 0
      %p467 = por %p465, %p466
      %p468 = scmp.le.s32.totalorder 1, %s30
      %p469 = scmp.lt.s32.totalorder %s30, 3
      %p470 = pnand %p468, %p469
      %p471 = pneg %p470
      // Predicated region
      $region9: #{classifier_forward.1} parent=5 // pred_check
        _
      $region10: #{classifier_forward.1} parent=5 // pred_check_branch
        %473 = sbr.rel (%p470) target = $region12
      $region11: #{classifier_forward.1} parent=5 // pred_region
        %s474 = ssub.s32 %s30, 1
        // Predicated region
        $region13: #{classifier_forward.1} parent=11 // pred_check
          %p475 = pneg %p77
        $region14: #{classifier_forward.1} parent=11 // pred_check_branch
          %477 = sbr.rel (%p475) target = $region16
        $region15: #{classifier_forward.1} parent=11 // pred_region
          _
        $region16: #{classifier_forward.1} parent=11 // pred_fallthru
          _
        // Predicated region
        $region17: #{classifier_forward.1} parent=11 // pred_check
          %p478 = pneg %p98
        $region18: #{classifier_forward.1} parent=11 // pred_check_branch
          %480 = sbr.rel (%p478) target = $region20
        $region19: #{classifier_forward.1} parent=11 // pred_region
          _
        $region20: #{classifier_forward.1} parent=11 // pred_fallthru
          _
        // Predicated region
        $region21: #{classifier_forward.1} parent=11 // pred_check
          %p481 = pneg %p119
        $region22: #{classifier_forward.1} parent=11 // pred_check_branch
          %483 = sbr.rel (%p481) target = $region24
        $region23: #{classifier_forward.1} parent=11 // pred_region
          _
        $region24: #{classifier_forward.1} parent=11 // pred_fallthru
          _
        // Predicated region
        $region25: #{classifier_forward.1} parent=11 // pred_check
          %p484 = pneg %p140
        $region26: #{classifier_forward.1} parent=11 // pred_check_branch
          %486 = sbr.rel (%p484) target = $region28
        $region27: #{classifier_forward.1} parent=11 // pred_region
          _
        $region28: #{classifier_forward.1} parent=11 // pred_fallthru
          _
        // Predicated region
        $region29: #{classifier_forward.1} parent=11 // pred_check
          %p487 = pneg %p161
        $region30: #{classifier_forward.1} parent=11 // pred_check_branch
          %489 = sbr.rel (%p487) target = $region32
        $region31: #{classifier_forward.1} parent=11 // pred_region
          _
        $region32: #{classifier_forward.1} parent=11 // pred_fallthru
          _
        // Predicated region
        $region33: #{classifier_forward.1} parent=11 // pred_check
          %p490 = pneg %p182
        $region34: #{classifier_forward.1} parent=11 // pred_check_branch
          %492 = sbr.rel (%p490) target = $region36
        $region35: #{classifier_forward.1} parent=11 // pred_region
          _
        $region36: #{classifier_forward.1} parent=11 // pred_fallthru
          _
        // Predicated region
        $region37: #{classifier_forward.1} parent=11 // pred_check
          %p493 = pneg %p203
        $region38: #{classifier_forward.1} parent=11 // pred_check_branch
          %495 = sbr.rel (%p493) target = $region40
        $region39: #{classifier_forward.1} parent=11 // pred_region
          _
        $region40: #{classifier_forward.1} parent=11 // pred_fallthru
          _
        // Predicated region
        $region41: #{classifier_forward.1} parent=11 // pred_check
          %p496 = pneg %p224
        $region42: #{classifier_forward.1} parent=11 // pred_check_branch
          %498 = sbr.rel (%p496) target = $region44
        $region43: #{classifier_forward.1} parent=11 // pred_region
          _
        $region44: #{classifier_forward.1} parent=11 // pred_fallthru
          _
        // Predicated region
        $region45: #{classifier_forward.1} parent=11 // pred_check
          %p499 = pneg %p245
        $region46: #{classifier_forward.1} parent=11 // pred_check_branch
          %501 = sbr.rel (%p499) target = $region48
        $region47: #{classifier_forward.1} parent=11 // pred_region
          _
        $region48: #{classifier_forward.1} parent=11 // pred_fallthru
          _
        // Predicated region
        $region49: #{classifier_forward.1} parent=11 // pred_check
          %p502 = pneg %p266
        $region50: #{classifier_forward.1} parent=11 // pred_check_branch
          %504 = sbr.rel (%p502) target = $region52
        $region51: #{classifier_forward.1} parent=11 // pred_region
          _
        $region52: #{classifier_forward.1} parent=11 // pred_fallthru
          _
        // Predicated region
        $region53: #{classifier_forward.1} parent=11 // pred_check
          %p505 = pneg %p287
        $region54: #{classifier_forward.1} parent=11 // pred_check_branch
          %507 = sbr.rel (%p505) target = $region56
        $region55: #{classifier_forward.1} parent=11 // pred_region
          _
        $region56: #{classifier_forward.1} parent=11 // pred_fallthru
          _
        // Predicated region
        $region57: #{classifier_forward.1} parent=11 // pred_check
          %p508 = pneg %p308
        $region58: #{classifier_forward.1} parent=11 // pred_check_branch
          %510 = sbr.rel (%p508) target = $region60
        $region59: #{classifier_forward.1} parent=11 // pred_region
          _
        $region60: #{classifier_forward.1} parent=11 // pred_fallthru
          _
        // Predicated region
        $region61: #{classifier_forward.1} parent=11 // pred_check
          %p511 = pneg %p329
        $region62: #{classifier_forward.1} parent=11 // pred_check_branch
          %513 = sbr.rel (%p511) target = $region64
        $region63: #{classifier_forward.1} parent=11 // pred_region
          _
        $region64: #{classifier_forward.1} parent=11 // pred_fallthru
          _
        // Predicated region
        $region65: #{classifier_forward.1} parent=11 // pred_check
          %p514 = pneg %p350
        $region66: #{classifier_forward.1} parent=11 // pred_check_branch
          %516 = sbr.rel (%p514) target = $region68
        $region67: #{classifier_forward.1} parent=11 // pred_region
          _
        $region68: #{classifier_forward.1} parent=11 // pred_fallthru
          _
        // Predicated region
        $region69: #{classifier_forward.1} parent=11 // pred_check
          %p517 = pneg %p371
        $region70: #{classifier_forward.1} parent=11 // pred_check_branch
          %519 = sbr.rel (%p517) target = $region72
        $region71: #{classifier_forward.1} parent=11 // pred_region
          _
        $region72: #{classifier_forward.1} parent=11 // pred_fallthru
          _
        // Predicated region
        $region73: #{classifier_forward.1} parent=11 // pred_check
          %p520 = pneg %p392
        $region74: #{classifier_forward.1} parent=11 // pred_check_branch
          %522 = sbr.rel (%p520) target = $region76
        $region75: #{classifier_forward.1} parent=11 // pred_region
          _
        $region76: #{classifier_forward.1} parent=11 // pred_fallthru
          _
        // Predicated region
        $region77: #{classifier_forward.1} parent=11 // pred_check
          %p523 = pneg %p413
        $region78: #{classifier_forward.1} parent=11 // pred_check_branch
          %525 = sbr.rel (%p523) target = $region80
        $region79: #{classifier_forward.1} parent=11 // pred_region
          _
        $region80: #{classifier_forward.1} parent=11 // pred_fallthru
          _
        // Predicated region
        $region81: #{classifier_forward.1} parent=11 // pred_check
          %p526 = pneg %p434
        $region82: #{classifier_forward.1} parent=11 // pred_check_branch
          %528 = sbr.rel (%p526) target = $region84
        $region83: #{classifier_forward.1} parent=11 // pred_region
          _
        $region84: #{classifier_forward.1} parent=11 // pred_fallthru
          _
      $region12: #{classifier_forward.1} parent=5 // pred_fallthru
        _
      %p529 = scmp.lt.s32.totalorder %s30, 2
      // Predicated region
      $region85: #{classifier_forward.1} parent=5 // pred_check
        %p530 = pneg %p529
      $region86: #{classifier_forward.1} parent=5 // pred_check_branch
        %532 = sbr.rel (%p530) target = $region88
      $region87: #{classifier_forward.1} parent=5 // pred_region
        // Predicated region
        $region89: #{classifier_forward.1} parent=87 // pred_check
          %p533 = pneg %p50
        $region90: #{classifier_forward.1} parent=87 // pred_check_branch
          %535 = sbr.rel (%p533) target = $region92
        $region91: #{classifier_forward.1} parent=87 // pred_region
          %p536 = scmp.lt.s32.totalorder %s30, 1
          %s537 = scalar_select %p536, %s30, 1
          %s538 = smul.addr %s537, 41
          %s539 = smul.addr %s538, 8
          %s540 = scalar_lea.vmem %s0, %s539
        $region92: #{classifier_forward.1} parent=87 // pred_fallthru
          _
      $region88: #{classifier_forward.1} parent=5 // pred_fallthru
        _
      %p541 = scmp.le.s32.totalorder 1, %s30
      %p542 = scmp.lt.s32.totalorder %s30, 3
      %p543 = pnand %p541, %p542
      %p544 = pneg %p543
      // Predicated region
      $region93: #{classifier_forward.1} parent=5 // pred_check
        _
      $region94: #{classifier_forward.1} parent=5 // pred_check_branch
        %546 = sbr.rel (%p543) target = $region96
      $region95: #{classifier_forward.1} parent=5 // pred_region
        %s547 = ssub.s32 %s30, 1
        %p548 = scmp.lt.s32.totalorder %s35, 1
        %s549 = scalar_select %p548, %s35, 1
        %s550 = smul.addr %s549, 41
        %s551 = smul.addr %s550, 8
        %s552 = scalar_lea.vmem %s0, %s551
        %p553 = pneg %p56
        %p554 = pneg %p53
        %p555 = pneg %p77
        %p556 = pneg %p74
        %p557 = pneg %p98
        %p558 = pneg %p95
        %p559 = pneg %p119
        %p560 = pneg %p116
        %p561 = pneg %p140
        %p562 = pneg %p137
        %p563 = pneg %p161
        %p564 = pneg %p158
        %p565 = pneg %p182
        %p566 = pneg %p179
        %p567 = pneg %p203
        %p568 = pneg %p200
        %p569 = pneg %p224
        %p570 = pneg %p221
        %p571 = pneg %p245
        %p572 = pneg %p242
        %p573 = pneg %p266
        %p574 = pneg %p263
        %p575 = pneg %p287
        %p576 = pneg %p284
        %p577 = pneg %p308
        %p578 = pneg %p305
        %p579 = pneg %p329
        %p580 = pneg %p326
        %p581 = pneg %p350
        %p582 = pneg %p347
        %p583 = pneg %p371
        %p584 = pneg %p368
        %p585 = pneg %p392
        %p586 = pneg %p389
        %p587 = pneg %p413
        %p588 = pneg %p410
        %p589 = pneg %p434
        %p590 = pneg %p431
        %p591 = pneg %p460
        %p592 = pneg %p457
        %s593 = sand.u32 %s447, 1
        %s594 = scalar_lea.sflag [#allocation11], %s593
        %s595 = sand.u32 %s447, 1
        %s596 = scalar_lea.vmem [#allocation10], %s595
        %p597 = scmp.lt.s32.totalorder %s35, 1
        %s598 = scalar_select %p597, %s35, 1
        %s599 = smul.addr %s598, 41
        %s600 = smul.addr %s599, 8
        %s601 = scalar_lea.vmem %s0, %s600
        %v603 = vld [vmem:[%s601] sm:$0xff]
        %v604 = vld [vmem:[%s601 + $0x8] sm:$0xff]
        %v605 = vld [vmem:[%s601 + $0x10] sm:$0xff]
        %v606 = vld [vmem:[%s601 + $0x18] sm:$0xff]
        %v607 = vld [vmem:[%s601 + $0x20] sm:$0xff]
        %v608 = vld [vmem:[%s601 + $0x28] sm:$0xff]
        %v609 = vld [vmem:[%s601 + $0x30] sm:$0xff]
        %v610 = vld [vmem:[%s601 + $0x38] sm:$0xff]
        %v611 = vld [vmem:[%s601 + $0x40] sm:$0xff]
        %v612 = vld [vmem:[%s601 + $0x48] sm:$0xff]
        %v613 = vld [vmem:[%s601 + $0x50] sm:$0xff]
        %v614 = vld [vmem:[%s601 + $0x58] sm:$0xff]
        %v615 = vld [vmem:[%s601 + $0x60] sm:$0xff]
        %v616 = vld [vmem:[%s601 + $0x68] sm:$0xff]
        %v617 = vld [vmem:[%s601 + $0x70] sm:$0xff]
        %v618 = vld [vmem:[%s601 + $0x78] sm:$0xff]
        %v619 = vld [vmem:[%s601 + $0x80] sm:$0xff]
        %v620 = vld [vmem:[%s601 + $0x88] sm:$0xff]
        %v621 = vld [vmem:[%s601 + $0x90] sm:$0xff]
        %v622 = vld [vmem:[%s601 + $0x98] sm:$0xff]
        %v623 = vld [vmem:[%s601 + $0xa0] sm:$0xff]
        %v624 = vld [vmem:[%s601 + $0xa8] sm:$0xff]
        %v625 = vld [vmem:[%s601 + $0xb0] sm:$0xff]
        %v626 = vld [vmem:[%s601 + $0xb8] sm:$0xff]
        %v627 = vld [vmem:[%s601 + $0xc0] sm:$0xff]
        %v628 = vld [vmem:[%s601 + $0xc8] sm:$0xff]
        %v629 = vld [vmem:[%s601 + $0xd0] sm:$0xff]
        %v630 = vld [vmem:[%s601 + $0xd8] sm:$0xff]
        %v631 = vld [vmem:[%s601 + $0xe0] sm:$0xff]
        %v632 = vld [vmem:[%s601 + $0xe8] sm:$0xff]
        %v633 = vld [vmem:[%s601 + $0xf0] sm:$0xff]
        %v634 = vld [vmem:[%s601 + $0xf8] sm:$0xff]
        %v635 = vld [vmem:[%s601 + $0x100] sm:$0xff]
        %v636 = vld [vmem:[%s601 + $0x108] sm:$0xff]
        %v637 = vld [vmem:[%s601 + $0x110] sm:$0xff]
        %v638 = vld [vmem:[%s601 + $0x118] sm:$0x3f]
        %v639 = vpack.c.bf16 %v604, %v603
        %v640 = vpack.c.bf16 %v606, %v605
        %v641 = vpack.c.bf16 %v608, %v607
        %v642 = vpack.c.bf16 %v610, %v609
        %v643 = vpack.c.bf16 %v612, %v611
        %v644 = vpack.c.bf16 %v614, %v613
        %v645 = vpack.c.bf16 %v616, %v615
        %v646 = vpack.c.bf16 %v618, %v617
        %v647 = vpack.c.bf16 %v620, %v619
        %v648 = vpack.c.bf16 %v622, %v621
        %v649 = vpack.c.bf16 %v624, %v623
        %v650 = vpack.c.bf16 %v626, %v625
        %v651 = vpack.c.bf16 %v628, %v627
        %v652 = vpack.c.bf16 %v630, %v629
        %v653 = vpack.c.bf16 %v632, %v631
        %v654 = vpack.c.bf16 %v634, %v633
        %v655 = vpack.c.bf16 %v636, %v635
        %v656 = vpack.c.bf16 %v638, %v637
        %v657 = vld [vmem:[%s1] sm:$0x3]
        %v658 = vld [vmem:[%s601 + $0x1] sm:$0xff]
        %v659 = vld [vmem:[%s601 + $0x9] sm:$0xff]
        %v660 = vld [vmem:[%s601 + $0x11] sm:$0xff]
        %v661 = vld [vmem:[%s601 + $0x19] sm:$0xff]
        %v662 = vld [vmem:[%s601 + $0x21] sm:$0xff]
        %v663 = vld [vmem:[%s601 + $0x29] sm:$0xff]
        %v664 = vld [vmem:[%s601 + $0x31] sm:$0xff]
        %v665 = vld [vmem:[%s601 + $0x39] sm:$0xff]
        %v666 = vld [vmem:[%s601 + $0x41] sm:$0xff]
        %v667 = vld [vmem:[%s601 + $0x49] sm:$0xff]
        %v668 = vld [vmem:[%s601 + $0x51] sm:$0xff]
        %v669 = vld [vmem:[%s601 + $0x59] sm:$0xff]
        %v670 = vld [vmem:[%s601 + $0x61] sm:$0xff]
        %v671 = vld [vmem:[%s601 + $0x69] sm:$0xff]
        %v672 = vld [vmem:[%s601 + $0x71] sm:$0xff]
        %v673 = vld [vmem:[%s601 + $0x79] sm:$0xff]
        %v674 = vld [vmem:[%s601 + $0x81] sm:$0xff]
        %v675 = vld [vmem:[%s601 + $0x89] sm:$0xff]
        %v676 = vld [vmem:[%s601 + $0x91] sm:$0xff]
        %v677 = vld [vmem:[%s601 + $0x99] sm:$0xff]
        %v678 = vld [vmem:[%s601 + $0xa1] sm:$0xff]
        %v679 = vld [vmem:[%s601 + $0xa9] sm:$0xff]
        %v680 = vld [vmem:[%s601 + $0xb1] sm:$0xff]
        %v681 = vld [vmem:[%s601 + $0xb9] sm:$0xff]
        %v682 = vld [vmem:[%s601 + $0xc1] sm:$0xff]
        %v683 = vld [vmem:[%s601 + $0xc9] sm:$0xff]
        %v684 = vld [vmem:[%s601 + $0xd1] sm:$0xff]
        %v685 = vld [vmem:[%s601 + $0xd9] sm:$0xff]
        %v686 = vld [vmem:[%s601 + $0xe1] sm:$0xff]
        %v687 = vld [vmem:[%s601 + $0xe9] sm:$0xff]
        %v688 = vld [vmem:[%s601 + $0xf1] sm:$0xff]
        %v689 = vld [vmem:[%s601 + $0xf9] sm:$0xff]
        %v690 = vld [vmem:[%s601 + $0x101] sm:$0xff]
        %v691 = vld [vmem:[%s601 + $0x109] sm:$0xff]
        %v692 = vld [vmem:[%s601 + $0x111] sm:$0xff]
        %v693 = vld [vmem:[%s601 + $0x119] sm:$0x3f]
        %v694 = vpack.c.bf16 %v659, %v658
        %v695 = vpack.c.bf16 %v661, %v660
        %v696 = vpack.c.bf16 %v663, %v662
        %v697 = vpack.c.bf16 %v665, %v664
        %v698 = vpack.c.bf16 %v667, %v666
        %v699 = vpack.c.bf16 %v669, %v668
        %v700 = vpack.c.bf16 %v671, %v670
        %v701 = vpack.c.bf16 %v673, %v672
        %v702 = vpack.c.bf16 %v675, %v674
        %v703 = vpack.c.bf16 %v677, %v676
        %v704 = vpack.c.bf16 %v679, %v678
        %v705 = vpack.c.bf16 %v681, %v680
        %v706 = vpack.c.bf16 %v683, %v682
        %v707 = vpack.c.bf16 %v685, %v684
        %v708 = vpack.c.bf16 %v687, %v686
        %v709 = vpack.c.bf16 %v689, %v688
        %v710 = vpack.c.bf16 %v691, %v690
        %v711 = vpack.c.bf16 %v693, %v692
        %s712 = scalar_lea.vmem %s1, 2
        %v713 = vld [vmem:[%s712] sm:$0x3]
        %vm714 = vcmask 23552
        %v716 = vsel %vm714, %v694, 0
        %v719 = vsel %vm714, %v695, 0
        %v722 = vsel %vm714, %v696, 0
        %v725 = vsel %vm714, %v697, 0
        %v728 = vsel %vm714, %v698, 0
        %v731 = vsel %vm714, %v699, 0
        %v734 = vsel %vm714, %v700, 0
        %v737 = vsel %vm714, %v701, 0
        %v740 = vsel %vm714, %v702, 0
        %v743 = vsel %vm714, %v703, 0
        %v746 = vsel %vm714, %v704, 0
        %v749 = vsel %vm714, %v705, 0
        %v752 = vsel %vm714, %v706, 0
        %v755 = vsel %vm714, %v707, 0
        %v758 = vsel %vm714, %v708, 0
        %v761 = vsel %vm714, %v709, 0
        %v764 = vsel %vm714, %v710, 0
        %v767 = vsel %vm714, %v711, 0
        %vm769 = vcmask 1040384
        %vm770 = vcmask 1041408
        %v771 = vsel %vm769, 4294967295, 65535
        %v772 = vsel %vm770, %v771, 0
        %v774 = vand.u32 %v713, %v772
        %776 = vmatpush.bf16.msra.mxu0 0
        %777 = vmatpush.bf16.msra.mxu0 0
        %778 = vmatpush.bf16.msra.mxu0 0
        %779 = vmatpush.bf16.msra.mxu0 0
        %780 = vmatpush.bf16.msra.mxu0 0
        %781 = vmatpush.bf16.msra.mxu0 0
        %782 = vmatpush.bf16.msra.mxu0 0
        %783 = vmatpush.bf16.msra.mxu0 %v774
        %784 = vmatmul.bf16.gmra.mxu0 %v716
        %v785 = vpop.f32.mrf.mxu0
        %v786 = vadd.f32 0.0, %v785
        %v787 = vpop.f32.mrf.mxu0
        %v788 = vadd.f32 0.0, %v787
        %789 = vmatmul.bf16.gmra.mxu0 %v719
        %v790 = vpop.f32.mrf.mxu0
        %v791 = vadd.f32 0.0, %v790
        %v792 = vpop.f32.mrf.mxu0
        %v793 = vadd.f32 0.0, %v792
        %794 = vmatmul.bf16.gmra.mxu0 %v722
        %v795 = vpop.f32.mrf.mxu0
        %v796 = vadd.f32 0.0, %v795
        %v797 = vpop.f32.mrf.mxu0
        %v798 = vadd.f32 0.0, %v797
        %799 = vmatmul.bf16.gmra.mxu0 %v725
        %v800 = vpop.f32.mrf.mxu0
        %v801 = vadd.f32 0.0, %v800
        %v802 = vpop.f32.mrf.mxu0
        %v803 = vadd.f32 0.0, %v802
        %804 = vmatmul.bf16.gmra.mxu0 %v728
        %v805 = vpop.f32.mrf.mxu0
        %v806 = vadd.f32 0.0, %v805
        %v807 = vpop.f32.mrf.mxu0
        %v808 = vadd.f32 0.0, %v807
        %809 = vmatmul.bf16.gmra.mxu0 %v731
        %v810 = vpop.f32.mrf.mxu0
        %v811 = vadd.f32 0.0, %v810
        %v812 = vpop.f32.mrf.mxu0
        %v813 = vadd.f32 0.0, %v812
        %814 = vmatmul.bf16.gmra.mxu0 %v734
        %v815 = vpop.f32.mrf.mxu0
        %v816 = vadd.f32 0.0, %v815
        %v817 = vpop.f32.mrf.mxu0
        %v818 = vadd.f32 0.0, %v817
        %819 = vmatmul.bf16.gmra.mxu0 %v737
        %v820 = vpop.f32.mrf.mxu0
        %v821 = vadd.f32 0.0, %v820
        %v822 = vpop.f32.mrf.mxu0
        %v823 = vadd.f32 0.0, %v822
        %824 = vmatmul.bf16.gmra.mxu0 %v740
        %v825 = vpop.f32.mrf.mxu0
        %v826 = vadd.f32 0.0, %v825
        %v827 = vpop.f32.mrf.mxu0
        %v828 = vadd.f32 0.0, %v827
        %829 = vmatmul.bf16.gmra.mxu0 %v743
        %v830 = vpop.f32.mrf.mxu0
        %v831 = vadd.f32 0.0, %v830
        %v832 = vpop.f32.mrf.mxu0
        %v833 = vadd.f32 0.0, %v832
        %834 = vmatmul.bf16.gmra.mxu0 %v746
        %v835 = vpop.f32.mrf.mxu0
        %v836 = vadd.f32 0.0, %v835
        %v837 = vpop.f32.mrf.mxu0
        %v838 = vadd.f32 0.0, %v837
        %839 = vmatmul.bf16.gmra.mxu0 %v749
        %v840 = vpop.f32.mrf.mxu0
        %v841 = vadd.f32 0.0, %v840
        %v842 = vpop.f32.mrf.mxu0
        %v843 = vadd.f32 0.0, %v842
        %844 = vmatmul.bf16.gmra.mxu0 %v752
        %v845 = vpop.f32.mrf.mxu0
        %v846 = vadd.f32 0.0, %v845
        %v847 = vpop.f32.mrf.mxu0
        %v848 = vadd.f32 0.0, %v847
        %849 = vmatmul.bf16.gmra.mxu0 %v755
        %v850 = vpop.f32.mrf.mxu0
        %v851 = vadd.f32 0.0, %v850
        %v852 = vpop.f32.mrf.mxu0
        %v853 = vadd.f32 0.0, %v852
        %854 = vmatmul.bf16.gmra.mxu0 %v758
        %v855 = vpop.f32.mrf.mxu0
        %v856 = vadd.f32 0.0, %v855
        %v857 = vpop.f32.mrf.mxu0
        %v858 = vadd.f32 0.0, %v857
        %859 = vmatmul.bf16.gmra.mxu0 %v761
        %v860 = vpop.f32.mrf.mxu0
        %v861 = vadd.f32 0.0, %v860
        %v862 = vpop.f32.mrf.mxu0
        %v863 = vadd.f32 0.0, %v862
        %864 = vmatmul.bf16.gmra.mxu0 %v764
        %v865 = vpop.f32.mrf.mxu0
        %v866 = vadd.f32 0.0, %v865
        %v867 = vpop.f32.mrf.mxu0
        %v868 = vadd.f32 0.0, %v867
        %869 = vmatmul.bf16.gmra.mxu0 %v767
        %v870 = vpop.f32.mrf.mxu0
        %v871 = vadd.f32 0.0, %v870
        %v872 = vpop.f32.mrf.mxu0
        %v873 = vadd.f32 0.0, %v872
        %874 = vdwg.mxu0
        %v876 = vsel %vm714, %v639, 0
        %v879 = vsel %vm714, %v640, 0
        %v882 = vsel %vm714, %v641, 0
        %v885 = vsel %vm714, %v642, 0
        %v888 = vsel %vm714, %v643, 0
        %v891 = vsel %vm714, %v644, 0
        %v894 = vsel %vm714, %v645, 0
        %v897 = vsel %vm714, %v646, 0
        %v900 = vsel %vm714, %v647, 0
        %v903 = vsel %vm714, %v648, 0
        %v906 = vsel %vm714, %v649, 0
        %v909 = vsel %vm714, %v650, 0
        %v912 = vsel %vm714, %v651, 0
        %v915 = vsel %vm714, %v652, 0
        %v918 = vsel %vm714, %v653, 0
        %v921 = vsel %vm714, %v654, 0
        %v924 = vsel %vm714, %v655, 0
        %v927 = vsel %vm714, %v656, 0
        %v930 = vand.u32 %v657, %v772
        %932 = vmatpush.bf16.msra.mxu0 0
        %933 = vmatpush.bf16.msra.mxu0 0
        %934 = vmatpush.bf16.msra.mxu0 0
        %935 = vmatpush.bf16.msra.mxu0 0
        %936 = vmatpush.bf16.msra.mxu0 0
        %937 = vmatpush.bf16.msra.mxu0 0
        %938 = vmatpush.bf16.msra.mxu0 0
        %939 = vmatpush.bf16.msra.mxu0 %v930
        %940 = vmatmul.bf16.gmra.mxu0 %v876
        %v941 = vpop.f32.mrf.mxu0
        %v942 = vadd.f32 %v786, %v941
        %v943 = vpop.f32.mrf.mxu0
        %v944 = vadd.f32 %v788, %v943
        %945 = vmatmul.bf16.gmra.mxu0 %v879
        %v946 = vpop.f32.mrf.mxu0
        %v947 = vadd.f32 %v791, %v946
        %v948 = vpop.f32.mrf.mxu0
        %v949 = vadd.f32 %v793, %v948
        %950 = vmatmul.bf16.gmra.mxu0 %v882
        %v951 = vpop.f32.mrf.mxu0
        %v952 = vadd.f32 %v796, %v951
        %v953 = vpop.f32.mrf.mxu0
        %v954 = vadd.f32 %v798, %v953
        %955 = vmatmul.bf16.gmra.mxu0 %v885
        %v956 = vpop.f32.mrf.mxu0
        %v957 = vadd.f32 %v801, %v956
        %v958 = vpop.f32.mrf.mxu0
        %v959 = vadd.f32 %v803, %v958
        %960 = vmatmul.bf16.gmra.mxu0 %v888
        %v961 = vpop.f32.mrf.mxu0
        %v962 = vadd.f32 %v806, %v961
        %v963 = vpop.f32.mrf.mxu0
        %v964 = vadd.f32 %v808, %v963
        %965 = vmatmul.bf16.gmra.mxu0 %v891
        %v966 = vpop.f32.mrf.mxu0
        %v967 = vadd.f32 %v811, %v966
        %v968 = vpop.f32.mrf.mxu0
        %v969 = vadd.f32 %v813, %v968
        %970 = vmatmul.bf16.gmra.mxu0 %v894
        %v971 = vpop.f32.mrf.mxu0
        %v972 = vadd.f32 %v816, %v971
        %v973 = vpop.f32.mrf.mxu0
        %v974 = vadd.f32 %v818, %v973
        %975 = vmatmul.bf16.gmra.mxu0 %v897
        %v976 = vpop.f32.mrf.mxu0
        %v977 = vadd.f32 %v821, %v976
        %v978 = vpop.f32.mrf.mxu0
        %v979 = vadd.f32 %v823, %v978
        %980 = vmatmul.bf16.gmra.mxu0 %v900
        %v981 = vpop.f32.mrf.mxu0
        %v982 = vadd.f32 %v826, %v981
        %v983 = vpop.f32.mrf.mxu0
        %v984 = vadd.f32 %v828, %v983
        %985 = vmatmul.bf16.gmra.mxu0 %v903
        %v986 = vpop.f32.mrf.mxu0
        %v987 = vadd.f32 %v831, %v986
        %v988 = vpop.f32.mrf.mxu0
        %v989 = vadd.f32 %v833, %v988
        %990 = vmatmul.bf16.gmra.mxu0 %v906
        %v991 = vpop.f32.mrf.mxu0
        %v992 = vadd.f32 %v836, %v991
        %v993 = vpop.f32.mrf.mxu0
        %v994 = vadd.f32 %v838, %v993
        %995 = vmatmul.bf16.gmra.mxu0 %v909
        %v996 = vpop.f32.mrf.mxu0
        %v997 = vadd.f32 %v841, %v996
        %v998 = vpop.f32.mrf.mxu0
        %v999 = vadd.f32 %v843, %v998
        %1000 = vmatmul.bf16.gmra.mxu0 %v912
        %v1001 = vpop.f32.mrf.mxu0
        %v1002 = vadd.f32 %v846, %v1001
        %v1003 = vpop.f32.mrf.mxu0
        %v1004 = vadd.f32 %v848, %v1003
        %1005 = vmatmul.bf16.gmra.mxu0 %v915
        %v1006 = vpop.f32.mrf.mxu0
        %v1007 = vadd.f32 %v851, %v1006
        %v1008 = vpop.f32.mrf.mxu0
        %v1009 = vadd.f32 %v853, %v1008
        %1010 = vmatmul.bf16.gmra.mxu0 %v918
        %v1011 = vpop.f32.mrf.mxu0
        %v1012 = vadd.f32 %v856, %v1011
        %v1013 = vpop.f32.mrf.mxu0
        %v1014 = vadd.f32 %v858, %v1013
        %1015 = vmatmul.bf16.gmra.mxu0 %v921
        %v1016 = vpop.f32.mrf.mxu0
        %v1017 = vadd.f32 %v861, %v1016
        %v1018 = vpop.f32.mrf.mxu0
        %v1019 = vadd.f32 %v863, %v1018
        %1020 = vmatmul.bf16.gmra.mxu0 %v924
        %v1021 = vpop.f32.mrf.mxu0
        %v1022 = vadd.f32 %v866, %v1021
        %v1023 = vpop.f32.mrf.mxu0
        %v1024 = vadd.f32 %v868, %v1023
        %1025 = vmatmul.bf16.gmra.mxu0 %v927
        %v1026 = vpop.f32.mrf.mxu0
        %v1027 = vadd.f32 %v871, %v1026
        %v1028 = vpop.f32.mrf.mxu0
        %v1029 = vadd.f32 %v873, %v1028
        %1030 = vdwg.mxu0
        %v1031 = vld [vmem:[%s601 + $0x2] sm:$0xff]
        %v1032 = vld [vmem:[%s601 + $0xa] sm:$0xff]
        %v1033 = vld [vmem:[%s601 + $0x12] sm:$0xff]
        %v1034 = vld [vmem:[%s601 + $0x1a] sm:$0xff]
        %v1035 = vld [vmem:[%s601 + $0x22] sm:$0xff]
        %v1036 = vld [vmem:[%s601 + $0x2a] sm:$0xff]
        %v1037 = vld [vmem:[%s601 + $0x32] sm:$0xff]
        %v1038 = vld [vmem:[%s601 + $0x3a] sm:$0xff]
        %v1039 = vld [vmem:[%s601 + $0x42] sm:$0xff]
        %v1040 = vld [vmem:[%s601 + $0x4a] sm:$0xff]
        %v1041 = vld [vmem:[%s601 + $0x52] sm:$0xff]
        %v1042 = vld [vmem:[%s601 + $0x5a] sm:$0xff]
        %v1043 = vld [vmem:[%s601 + $0x62] sm:$0xff]
        %v1044 = vld [vmem:[%s601 + $0x6a] sm:$0xff]
        %v1045 = vld [vmem:[%s601 + $0x72] sm:$0xff]
        %v1046 = vld [vmem:[%s601 + $0x7a] sm:$0xff]
        %v1047 = vld [vmem:[%s601 + $0x82] sm:$0xff]
        %v1048 = vld [vmem:[%s601 + $0x8a] sm:$0xff]
        %v1049 = vld [vmem:[%s601 + $0x92] sm:$0xff]
        %v1050 = vld [vmem:[%s601 + $0x9a] sm:$0xff]
        %v1051 = vld [vmem:[%s601 + $0xa2] sm:$0xff]
        %v1052 = vld [vmem:[%s601 + $0xaa] sm:$0xff]
        %v1053 = vld [vmem:[%s601 + $0xb2] sm:$0xff]
        %v1054 = vld [vmem:[%s601 + $0xba] sm:$0xff]
        %v1055 = vld [vmem:[%s601 + $0xc2] sm:$0xff]
        %v1056 = vld [vmem:[%s601 + $0xca] sm:$0xff]
        %v1057 = vld [vmem:[%s601 + $0xd2] sm:$0xff]
        %v1058 = vld [vmem:[%s601 + $0xda] sm:$0xff]
        %v1059 = vld [vmem:[%s601 + $0xe2] sm:$0xff]
        %v1060 = vld [vmem:[%s601 + $0xea] sm:$0xff]
        %v1061 = vld [vmem:[%s601 + $0xf2] sm:$0xff]
        %v1062 = vld [vmem:[%s601 + $0xfa] sm:$0xff]
        %v1063 = vld [vmem:[%s601 + $0x102] sm:$0xff]
        %v1064 = vld [vmem:[%s601 + $0x10a] sm:$0xff]
        %v1065 = vld [vmem:[%s601 + $0x112] sm:$0xff]
        %v1066 = vld [vmem:[%s601 + $0x11a] sm:$0x3f]
        %v1067 = vpack.c.bf16 %v1032, %v1031
        %v1068 = vpack.c.bf16 %v1034, %v1033
        %v1069 = vpack.c.bf16 %v1036, %v1035
        %v1070 = vpack.c.bf16 %v1038, %v1037
        %v1071 = vpack.c.bf16 %v1040, %v1039
        %v1072 = vpack.c.bf16 %v1042, %v1041
        %v1073 = vpack.c.bf16 %v1044, %v1043
        %v1074 = vpack.c.bf16 %v1046, %v1045
        %v1075 = vpack.c.bf16 %v1048, %v1047
        %v1076 = vpack.c.bf16 %v1050, %v1049
        %v1077 = vpack.c.bf16 %v1052, %v1051
        %v1078 = vpack.c.bf16 %v1054, %v1053
        %v1079 = vpack.c.bf16 %v1056, %v1055
        %v1080 = vpack.c.bf16 %v1058, %v1057
        %v1081 = vpack.c.bf16 %v1060, %v1059
        %v1082 = vpack.c.bf16 %v1062, %v1061
        %v1083 = vpack.c.bf16 %v1064, %v1063
        %v1084 = vpack.c.bf16 %v1066, %v1065
        %s1085 = scalar_lea.vmem %s1, 4
        %v1086 = vld [vmem:[%s1085] sm:$0x3]
        %v1088 = vsel %vm714, %v1067, 0
        %v1091 = vsel %vm714, %v1068, 0
        %v1094 = vsel %vm714, %v1069, 0
        %v1097 = vsel %vm714, %v1070, 0
        %v1100 = vsel %vm714, %v1071, 0
        %v1103 = vsel %vm714, %v1072, 0
        %v1106 = vsel %vm714, %v1073, 0
        %v1109 = vsel %vm714, %v1074, 0
        %v1112 = vsel %vm714, %v1075, 0
        %v1115 = vsel %vm714, %v1076, 0
        %v1118 = vsel %vm714, %v1077, 0
        %v1121 = vsel %vm714, %v1078, 0
        %v1124 = vsel %vm714, %v1079, 0
        %v1127 = vsel %vm714, %v1080, 0
        %v1130 = vsel %vm714, %v1081, 0
        %v1133 = vsel %vm714, %v1082, 0
        %v1136 = vsel %vm714, %v1083, 0
        %v1139 = vsel %vm714, %v1084, 0
        %v1142 = vand.u32 %v1086, %v772
        %1144 = vmatpush.bf16.msra.mxu0 0
        %1145 = vmatpush.bf16.msra.mxu0 0
        %1146 = vmatpush.bf16.msra.mxu0 0
        %1147 = vmatpush.bf16.msra.mxu0 0
        %1148 = vmatpush.bf16.msra.mxu0 0
        %1149 = vmatpush.bf16.msra.mxu0 0
        %1150 = vmatpush.bf16.msra.mxu0 0
        %1151 = vmatpush.bf16.msra.mxu0 %v1142
        %1152 = vmatmul.bf16.gmra.mxu0 %v1088
        %v1153 = vpop.f32.mrf.mxu0
        %v1154 = vadd.f32 0.0, %v1153
        %v1155 = vpop.f32.mrf.mxu0
        %v1156 = vadd.f32 0.0, %v1155
        %1157 = vmatmul.bf16.gmra.mxu0 %v1091
        %v1158 = vpop.f32.mrf.mxu0
        %v1159 = vadd.f32 0.0, %v1158
        %v1160 = vpop.f32.mrf.mxu0
        %v1161 = vadd.f32 0.0, %v1160
        %1162 = vmatmul.bf16.gmra.mxu0 %v1094
        %v1163 = vpop.f32.mrf.mxu0
        %v1164 = vadd.f32 0.0, %v1163
        %v1165 = vpop.f32.mrf.mxu0
        %v1166 = vadd.f32 0.0, %v1165
        %1167 = vmatmul.bf16.gmra.mxu0 %v1097
        %v1168 = vpop.f32.mrf.mxu0
        %v1169 = vadd.f32 0.0, %v1168
        %v1170 = vpop.f32.mrf.mxu0
        %v1171 = vadd.f32 0.0, %v1170
        %1172 = vmatmul.bf16.gmra.mxu0 %v1100
        %v1173 = vpop.f32.mrf.mxu0
        %v1174 = vadd.f32 0.0, %v1173
        %v1175 = vpop.f32.mrf.mxu0
        %v1176 = vadd.f32 0.0, %v1175
        %1177 = vmatmul.bf16.gmra.mxu0 %v1103
        %v1178 = vpop.f32.mrf.mxu0
        %v1179 = vadd.f32 0.0, %v1178
        %v1180 = vpop.f32.mrf.mxu0
        %v1181 = vadd.f32 0.0, %v1180
        %1182 = vmatmul.bf16.gmra.mxu0 %v1106
        %v1183 = vpop.f32.mrf.mxu0
        %v1184 = vadd.f32 0.0, %v1183
        %v1185 = vpop.f32.mrf.mxu0
        %v1186 = vadd.f32 0.0, %v1185
        %1187 = vmatmul.bf16.gmra.mxu0 %v1109
        %v1188 = vpop.f32.mrf.mxu0
        %v1189 = vadd.f32 0.0, %v1188
        %v1190 = vpop.f32.mrf.mxu0
        %v1191 = vadd.f32 0.0, %v1190
        %1192 = vmatmul.bf16.gmra.mxu0 %v1112
        %v1193 = vpop.f32.mrf.mxu0
        %v1194 = vadd.f32 0.0, %v1193
        %v1195 = vpop.f32.mrf.mxu0
        %v1196 = vadd.f32 0.0, %v1195
        %1197 = vmatmul.bf16.gmra.mxu0 %v1115
        %v1198 = vpop.f32.mrf.mxu0
        %v1199 = vadd.f32 0.0, %v1198
        %v1200 = vpop.f32.mrf.mxu0
        %v1201 = vadd.f32 0.0, %v1200
        %1202 = vmatmul.bf16.gmra.mxu0 %v1118
        %v1203 = vpop.f32.mrf.mxu0
        %v1204 = vadd.f32 0.0, %v1203
        %v1205 = vpop.f32.mrf.mxu0
        %v1206 = vadd.f32 0.0, %v1205
        %1207 = vmatmul.bf16.gmra.mxu0 %v1121
        %v1208 = vpop.f32.mrf.mxu0
        %v1209 = vadd.f32 0.0, %v1208
        %v1210 = vpop.f32.mrf.mxu0
        %v1211 = vadd.f32 0.0, %v1210
        %1212 = vmatmul.bf16.gmra.mxu0 %v1124
        %v1213 = vpop.f32.mrf.mxu0
        %v1214 = vadd.f32 0.0, %v1213
        %v1215 = vpop.f32.mrf.mxu0
        %v1216 = vadd.f32 0.0, %v1215
        %1217 = vmatmul.bf16.gmra.mxu0 %v1127
        %v1218 = vpop.f32.mrf.mxu0
        %v1219 = vadd.f32 0.0, %v1218
        %v1220 = vpop.f32.mrf.mxu0
        %v1221 = vadd.f32 0.0, %v1220
        %1222 = vmatmul.bf16.gmra.mxu0 %v1130
        %v1223 = vpop.f32.mrf.mxu0
        %v1224 = vadd.f32 0.0, %v1223
        %v1225 = vpop.f32.mrf.mxu0
        %v1226 = vadd.f32 0.0, %v1225
        %1227 = vmatmul.bf16.gmra.mxu0 %v1133
        %v1228 = vpop.f32.mrf.mxu0
        %v1229 = vadd.f32 0.0, %v1228
        %v1230 = vpop.f32.mrf.mxu0
        %v1231 = vadd.f32 0.0, %v1230
        %1232 = vmatmul.bf16.gmra.mxu0 %v1136
        %v1233 = vpop.f32.mrf.mxu0
        %v1234 = vadd.f32 0.0, %v1233
        %v1235 = vpop.f32.mrf.mxu0
        %v1236 = vadd.f32 0.0, %v1235
        %1237 = vmatmul.bf16.gmra.mxu0 %v1139
        %v1238 = vpop.f32.mrf.mxu0
        %v1239 = vadd.f32 0.0, %v1238
        %v1240 = vpop.f32.mrf.mxu0
        %v1241 = vadd.f32 0.0, %v1240
        %1242 = vdwg.mxu0
        %v1243 = vadd.f32 %v942, %v1154
        %v1244 = vadd.f32 %v944, %v1156
        %v1245 = vadd.f32 %v947, %v1159
        %v1246 = vadd.f32 %v949, %v1161
        %v1247 = vadd.f32 %v952, %v1164
        %v1248 = vadd.f32 %v954, %v1166
        %v1249 = vadd.f32 %v957, %v1169
        %v1250 = vadd.f32 %v959, %v1171
        %v1251 = vadd.f32 %v962, %v1174
        %v1252 = vadd.f32 %v964, %v1176
        %v1253 = vadd.f32 %v967, %v1179
        %v1254 = vadd.f32 %v969, %v1181
        %v1255 = vadd.f32 %v972, %v1184
        %v1256 = vadd.f32 %v974, %v1186
        %v1257 = vadd.f32 %v977, %v1189
        %v1258 = vadd.f32 %v979, %v1191
        %v1259 = vadd.f32 %v982, %v1194
        %v1260 = vadd.f32 %v984, %v1196
        %v1261 = vadd.f32 %v987, %v1199
        %v1262 = vadd.f32 %v989, %v1201
        %v1263 = vadd.f32 %v992, %v1204
        %v1264 = vadd.f32 %v994, %v1206
        %v1265 = vadd.f32 %v997, %v1209
        %v1266 = vadd.f32 %v999, %v1211
        %v1267 = vadd.f32 %v1002, %v1214
        %v1268 = vadd.f32 %v1004, %v1216
        %v1269 = vadd.f32 %v1007, %v1219
        %v1270 = vadd.f32 %v1009, %v1221
        %v1271 = vadd.f32 %v1012, %v1224
        %v1272 = vadd.f32 %v1014, %v1226
        %v1273 = vadd.f32 %v1017, %v1229
        %v1274 = vadd.f32 %v1019, %v1231
        %v1275 = vadd.f32 %v1022, %v1234
        %v1276 = vadd.f32 %v1024, %v1236
        %v1277 = vadd.f32 %v1027, %v1239
        %v1278 = vadd.f32 %v1029, %v1241
        %v1279 = vld [vmem:[%s601 + $0x12] sm:$0xff]
        %v1280 = vld [vmem:[%s601 + $0x1a] sm:$0xff]
        %v1281 = vld [vmem:[%s601 + $0x22] sm:$0xff]
        %v1282 = vld [vmem:[%s601 + $0x2a] sm:$0xff]
        %v1283 = vld [vmem:[%s601 + $0x32] sm:$0xff]
        %v1284 = vld [vmem:[%s601 + $0x3a] sm:$0xff]
        %v1285 = vld [vmem:[%s601 + $0x42] sm:$0xff]
        %v1286 = vld [vmem:[%s601 + $0x4a] sm:$0xff]
        %v1287 = vld [vmem:[%s601 + $0x52] sm:$0xff]
        %v1288 = vld [vmem:[%s601 + $0x5a] sm:$0xff]
        %v1289 = vld [vmem:[%s601 + $0x62] sm:$0xff]
        %v1290 = vld [vmem:[%s601 + $0x6a] sm:$0xff]
        %v1291 = vld [vmem:[%s601 + $0x72] sm:$0xff]
        %v1292 = vld [vmem:[%s601 + $0x7a] sm:$0xff]
        %v1293 = vld [vmem:[%s601 + $0x82] sm:$0xff]
        %v1294 = vld [vmem:[%s601 + $0x8a] sm:$0xff]
        %v1295 = vld [vmem:[%s601 + $0x92] sm:$0xff]
        %v1296 = vld [vmem:[%s601 + $0x9a] sm:$0xff]
        %v1297 = vld [vmem:[%s601 + $0xa2] sm:$0xff]
        %v1298 = vld [vmem:[%s601 + $0xaa] sm:$0xff]
        %v1299 = vld [vmem:[%s601 + $0xb2] sm:$0xff]
        %v1300 = vld [vmem:[%s601 + $0xba] sm:$0xff]
        %v1301 = vld [vmem:[%s601 + $0xc2] sm:$0xff]
        %v1302 = vld [vmem:[%s601 + $0xca] sm:$0xff]
        %v1303 = vld [vmem:[%s601 + $0xd2] sm:$0xff]
        %v1304 = vld [vmem:[%s601 + $0xda] sm:$0xff]
        %v1305 = vld [vmem:[%s601 + $0xe2] sm:$0xff]
        %v1306 = vld [vmem:[%s601 + $0xea] sm:$0xff]
        %v1307 = vld [vmem:[%s601 + $0xf2] sm:$0xff]
        %v1308 = vld [vmem:[%s601 + $0xfa] sm:$0xff]
        %v1309 = vld [vmem:[%s601 + $0x102] sm:$0xff]
        %v1310 = vld [vmem:[%s601 + $0x10a] sm:$0xff]
        %v1311 = vld [vmem:[%s601 + $0x112] sm:$0xff]
        %v1312 = vld [vmem:[%s601 + $0x11a] sm:$0xff]
        %v1313 = vld [vmem:[%s601 + $0x122] sm:$0xff]
        %v1314 = vld [vmem:[%s601 + $0x12a] sm:$0x3f]
        %v1315 = vpack.c.bf16 %v1280, %v1279
        %v1316 = vpack.c.bf16 %v1282, %v1281
        %v1317 = vpack.c.bf16 %v1284, %v1283
        %v1318 = vpack.c.bf16 %v1286, %v1285
        %v1319 = vpack.c.bf16 %v1288, %v1287
        %v1320 = vpack.c.bf16 %v1290, %v1289
        %v1321 = vpack.c.bf16 %v1292, %v1291
        %v1322 = vpack.c.bf16 %v1294, %v1293
        %v1323 = vpack.c.bf16 %v1296, %v1295
        %v1324 = vpack.c.bf16 %v1298, %v1297
        %v1325 = vpack.c.bf16 %v1300, %v1299
        %v1326 = vpack.c.bf16 %v1302, %v1301
        %v1327 = vpack.c.bf16 %v1304, %v1303
        %v1328 = vpack.c.bf16 %v1306, %v1305
        %v1329 = vpack.c.bf16 %v1308, %v1307
        %v1330 = vpack.c.bf16 %v1310, %v1309
        %v1331 = vpack.c.bf16 %v1312, %v1311
        %v1332 = vpack.c.bf16 %v1314, %v1313
        %s1333 = scalar_lea.vmem %s1, 6
        %v1334 = vld [vmem:[%s1333] sm:$0x3]
        %v1336 = vsel %vm714, %v1315, 0
        %v1339 = vsel %vm714, %v1316, 0
        %v1342 = vsel %vm714, %v1317, 0
        %v1345 = vsel %vm714, %v1318, 0
        %v1348 = vsel %vm714, %v1319, 0
        %v1351 = vsel %vm714, %v1320, 0
        %v1354 = vsel %vm714, %v1321, 0
        %v1357 = vsel %vm714, %v1322, 0
        %v1360 = vsel %vm714, %v1323, 0
        %v1363 = vsel %vm714, %v1324, 0
        %v1366 = vsel %vm714, %v1325, 0
        %v1369 = vsel %vm714, %v1326, 0
        %v1372 = vsel %vm714, %v1327, 0
        %v1375 = vsel %vm714, %v1328, 0
        %v1378 = vsel %vm714, %v1329, 0
        %v1381 = vsel %vm714, %v1330, 0
        %v1384 = vsel %vm714, %v1331, 0
        %v1387 = vsel %vm714, %v1332, 0
        %v1390 = vand.u32 %v1334, %v772
        %1392 = vmatpush.bf16.msra.mxu0 0
        %1393 = vmatpush.bf16.msra.mxu0 0
        %1394 = vmatpush.bf16.msra.mxu0 0
        %1395 = vmatpush.bf16.msra.mxu0 0
        %1396 = vmatpush.bf16.msra.mxu0 0
        %1397 = vmatpush.bf16.msra.mxu0 0
        %1398 = vmatpush.bf16.msra.mxu0 0
        %1399 = vmatpush.bf16.msra.mxu0 %v1390
        %1400 = vmatmul.bf16.gmra.mxu0 %v1336
        %v1401 = vpop.f32.mrf.mxu0
        %v1402 = vadd.f32 0.0, %v1401
        %v1403 = vpop.f32.mrf.mxu0
        %v1404 = vadd.f32 0.0, %v1403
        %1405 = vmatmul.bf16.gmra.mxu0 %v1339
        %v1406 = vpop.f32.mrf.mxu0
        %v1407 = vadd.f32 0.0, %v1406
        %v1408 = vpop.f32.mrf.mxu0
        %v1409 = vadd.f32 0.0, %v1408
        %1410 = vmatmul.bf16.gmra.mxu0 %v1342
        %v1411 = vpop.f32.mrf.mxu0
        %v1412 = vadd.f32 0.0, %v1411
        %v1413 = vpop.f32.mrf.mxu0
        %v1414 = vadd.f32 0.0, %v1413
        %1415 = vmatmul.bf16.gmra.mxu0 %v1345
        %v1416 = vpop.f32.mrf.mxu0
        %v1417 = vadd.f32 0.0, %v1416
        %v1418 = vpop.f32.mrf.mxu0
        %v1419 = vadd.f32 0.0, %v1418
        %1420 = vmatmul.bf16.gmra.mxu0 %v1348
        %v1421 = vpop.f32.mrf.mxu0
        %v1422 = vadd.f32 0.0, %v1421
        %v1423 = vpop.f32.mrf.mxu0
        %v1424 = vadd.f32 0.0, %v1423
        %1425 = vmatmul.bf16.gmra.mxu0 %v1351
        %v1426 = vpop.f32.mrf.mxu0
        %v1427 = vadd.f32 0.0, %v1426
        %v1428 = vpop.f32.mrf.mxu0
        %v1429 = vadd.f32 0.0, %v1428
        %1430 = vmatmul.bf16.gmra.mxu0 %v1354
        %v1431 = vpop.f32.mrf.mxu0
        %v1432 = vadd.f32 0.0, %v1431
        %v1433 = vpop.f32.mrf.mxu0
        %v1434 = vadd.f32 0.0, %v1433
        %1435 = vmatmul.bf16.gmra.mxu0 %v1357
        %v1436 = vpop.f32.mrf.mxu0
        %v1437 = vadd.f32 0.0, %v1436
        %v1438 = vpop.f32.mrf.mxu0
        %v1439 = vadd.f32 0.0, %v1438
        %1440 = vmatmul.bf16.gmra.mxu0 %v1360
        %v1441 = vpop.f32.mrf.mxu0
        %v1442 = vadd.f32 0.0, %v1441
        %v1443 = vpop.f32.mrf.mxu0
        %v1444 = vadd.f32 0.0, %v1443
        %1445 = vmatmul.bf16.gmra.mxu0 %v1363
        %v1446 = vpop.f32.mrf.mxu0
        %v1447 = vadd.f32 0.0, %v1446
        %v1448 = vpop.f32.mrf.mxu0
        %v1449 = vadd.f32 0.0, %v1448
        %1450 = vmatmul.bf16.gmra.mxu0 %v1366
        %v1451 = vpop.f32.mrf.mxu0
        %v1452 = vadd.f32 0.0, %v1451
        %v1453 = vpop.f32.mrf.mxu0
        %v1454 = vadd.f32 0.0, %v1453
        %1455 = vmatmul.bf16.gmra.mxu0 %v1369
        %v1456 = vpop.f32.mrf.mxu0
        %v1457 = vadd.f32 0.0, %v1456
        %v1458 = vpop.f32.mrf.mxu0
        %v1459 = vadd.f32 0.0, %v1458
        %1460 = vmatmul.bf16.gmra.mxu0 %v1372
        %v1461 = vpop.f32.mrf.mxu0
        %v1462 = vadd.f32 0.0, %v1461
        %v1463 = vpop.f32.mrf.mxu0
        %v1464 = vadd.f32 0.0, %v1463
        %1465 = vmatmul.bf16.gmra.mxu0 %v1375
        %v1466 = vpop.f32.mrf.mxu0
        %v1467 = vadd.f32 0.0, %v1466
        %v1468 = vpop.f32.mrf.mxu0
        %v1469 = vadd.f32 0.0, %v1468
        %1470 = vmatmul.bf16.gmra.mxu0 %v1378
        %v1471 = vpop.f32.mrf.mxu0
        %v1472 = vadd.f32 0.0, %v1471
        %v1473 = vpop.f32.mrf.mxu0
        %v1474 = vadd.f32 0.0, %v1473
        %1475 = vmatmul.bf16.gmra.mxu0 %v1381
        %v1476 = vpop.f32.mrf.mxu0
        %v1477 = vadd.f32 0.0, %v1476
        %v1478 = vpop.f32.mrf.mxu0
        %v1479 = vadd.f32 0.0, %v1478
        %1480 = vmatmul.bf16.gmra.mxu0 %v1384
        %v1481 = vpop.f32.mrf.mxu0
        %v1482 = vadd.f32 0.0, %v1481
        %v1483 = vpop.f32.mrf.mxu0
        %v1484 = vadd.f32 0.0, %v1483
        %1485 = vmatmul.bf16.gmra.mxu0 %v1387
        %v1486 = vpop.f32.mrf.mxu0
        %v1487 = vadd.f32 0.0, %v1486
        %v1488 = vpop.f32.mrf.mxu0
        %v1489 = vadd.f32 0.0, %v1488
        %1490 = vdwg.mxu0
        %v1491 = vadd.f32 %v1243, %v1402
        %v1492 = vadd.f32 %v1244, %v1404
        %v1493 = vadd.f32 %v1245, %v1407
        %v1494 = vadd.f32 %v1246, %v1409
        %v1495 = vadd.f32 %v1247, %v1412
        %v1496 = vadd.f32 %v1248, %v1414
        %v1497 = vadd.f32 %v1249, %v1417
        %v1498 = vadd.f32 %v1250, %v1419
        %v1499 = vadd.f32 %v1251, %v1422
        %v1500 = vadd.f32 %v1252, %v1424
        %v1501 = vadd.f32 %v1253, %v1427
        %v1502 = vadd.f32 %v1254, %v1429
        %v1503 = vadd.f32 %v1255, %v1432
        %v1504 = vadd.f32 %v1256, %v1434
        %v1505 = vadd.f32 %v1257, %v1437
        %v1506 = vadd.f32 %v1258, %v1439
        %v1507 = vadd.f32 %v1259, %v1442
        %v1508 = vadd.f32 %v1260, %v1444
        %v1509 = vadd.f32 %v1261, %v1447
        %v1510 = vadd.f32 %v1262, %v1449
        %v1511 = vadd.f32 %v1263, %v1452
        %v1512 = vadd.f32 %v1264, %v1454
        %v1513 = vadd.f32 %v1265, %v1457
        %v1514 = vadd.f32 %v1266, %v1459
        %v1515 = vadd.f32 %v1267, %v1462
        %v1516 = vadd.f32 %v1268, %v1464
        %v1517 = vadd.f32 %v1269, %v1467
        %v1518 = vadd.f32 %v1270, %v1469
        %v1519 = vadd.f32 %v1271, %v1472
        %v1520 = vadd.f32 %v1272, %v1474
        %v1521 = vadd.f32 %v1273, %v1477
        %v1522 = vadd.f32 %v1274, %v1479
        %v1523 = vadd.f32 %v1275, %v1482
        %v1524 = vadd.f32 %v1276, %v1484
        %v1525 = vadd.f32 %v1277, %v1487
        %v1526 = vadd.f32 %v1278, %v1489
        %v1527 = vld [vmem:[%s601 + $0x13] sm:$0xff]
        %v1528 = vld [vmem:[%s601 + $0x1b] sm:$0xff]
        %v1529 = vld [vmem:[%s601 + $0x23] sm:$0xff]
        %v1530 = vld [vmem:[%s601 + $0x2b] sm:$0xff]
        %v1531 = vld [vmem:[%s601 + $0x33] sm:$0xff]
        %v1532 = vld [vmem:[%s601 + $0x3b] sm:$0xff]
        %v1533 = vld [vmem:[%s601 + $0x43] sm:$0xff]
        %v1534 = vld [vmem:[%s601 + $0x4b] sm:$0xff]
        %v1535 = vld [vmem:[%s601 + $0x53] sm:$0xff]
        %v1536 = vld [vmem:[%s601 + $0x5b] sm:$0xff]
        %v1537 = vld [vmem:[%s601 + $0x63] sm:$0xff]
        %v1538 = vld [vmem:[%s601 + $0x6b] sm:$0xff]
        %v1539 = vld [vmem:[%s601 + $0x73] sm:$0xff]
        %v1540 = vld [vmem:[%s601 + $0x7b] sm:$0xff]
        %v1541 = vld [vmem:[%s601 + $0x83] sm:$0xff]
        %v1542 = vld [vmem:[%s601 + $0x8b] sm:$0xff]
        %v1543 = vld [vmem:[%s601 + $0x93] sm:$0xff]
        %v1544 = vld [vmem:[%s601 + $0x9b] sm:$0xff]
        %v1545 = vld [vmem:[%s601 + $0xa3] sm:$0xff]
        %v1546 = vld [vmem:[%s601 + $0xab] sm:$0xff]
        %v1547 = vld [vmem:[%s601 + $0xb3] sm:$0xff]
        %v1548 = vld [vmem:[%s601 + $0xbb] sm:$0xff]
        %v1549 = vld [vmem:[%s601 + $0xc3] sm:$0xff]
        %v1550 = vld [vmem:[%s601 + $0xcb] sm:$0xff]
        %v1551 = vld [vmem:[%s601 + $0xd3] sm:$0xff]
        %v1552 = vld [vmem:[%s601 + $0xdb] sm:$0xff]
        %v1553 = vld [vmem:[%s601 + $0xe3] sm:$0xff]
        %v1554 = vld [vmem:[%s601 + $0xeb] sm:$0xff]
        %v1555 = vld [vmem:[%s601 + $0xf3] sm:$0xff]
        %v1556 = vld [vmem:[%s601 + $0xfb] sm:$0xff]
        %v1557 = vld [vmem:[%s601 + $0x103] sm:$0xff]
        %v1558 = vld [vmem:[%s601 + $0x10b] sm:$0xff]
        %v1559 = vld [vmem:[%s601 + $0x113] sm:$0xff]
        %v1560 = vld [vmem:[%s601 + $0x11b] sm:$0xff]
        %v1561 = vld [vmem:[%s601 + $0x123] sm:$0xff]
        %v1562 = vld [vmem:[%s601 + $0x12b] sm:$0x3f]
        %v1563 = vpack.c.bf16 %v1528, %v1527
        %v1564 = vpack.c.bf16 %v1530, %v1529
        %v1565 = vpack.c.bf16 %v1532, %v1531
        %v1566 = vpack.c.bf16 %v1534, %v1533
        %v1567 = vpack.c.bf16 %v1536, %v1535
        %v1568 = vpack.c.bf16 %v1538, %v1537
        %v1569 = vpack.c.bf16 %v1540, %v1539
        %v1570 = vpack.c.bf16 %v1542, %v1541
        %v1571 = vpack.c.bf16 %v1544, %v1543
        %v1572 = vpack.c.bf16 %v1546, %v1545
        %v1573 = vpack.c.bf16 %v1548, %v1547
        %v1574 = vpack.c.bf16 %v1550, %v1549
        %v1575 = vpack.c.bf16 %v1552, %v1551
        %v1576 = vpack.c.bf16 %v1554, %v1553
        %v1577 = vpack.c.bf16 %v1556, %v1555
        %v1578 = vpack.c.bf16 %v1558, %v1557
        %v1579 = vpack.c.bf16 %v1560, %v1559
        %v1580 = vpack.c.bf16 %v1562, %v1561
        %s1581 = scalar_lea.vmem %s1, 8
        %v1582 = vld [vmem:[%s1581] sm:$0x3]
        %v1584 = vsel %vm714, %v1563, 0
        %v1587 = vsel %vm714, %v1564, 0
        %v1590 = vsel %vm714, %v1565, 0
        %v1593 = vsel %vm714, %v1566, 0
        %v1596 = vsel %vm714, %v1567, 0
        %v1599 = vsel %vm714, %v1568, 0
        %v1602 = vsel %vm714, %v1569, 0
        %v1605 = vsel %vm714, %v1570, 0
        %v1608 = vsel %vm714, %v1571, 0
        %v1611 = vsel %vm714, %v1572, 0
        %v1614 = vsel %vm714, %v1573, 0
        %v1617 = vsel %vm714, %v1574, 0
        %v1620 = vsel %vm714, %v1575, 0
        %v1623 = vsel %vm714, %v1576, 0
        %v1626 = vsel %vm714, %v1577, 0
        %v1629 = vsel %vm714, %v1578, 0
        %v1632 = vsel %vm714, %v1579, 0
        %v1635 = vsel %vm714, %v1580, 0
        %v1638 = vand.u32 %v1582, %v772
        %1640 = vmatpush.bf16.msra.mxu0 0
        %1641 = vmatpush.bf16.msra.mxu0 0
        %1642 = vmatpush.bf16.msra.mxu0 0
        %1643 = vmatpush.bf16.msra.mxu0 0
        %1644 = vmatpush.bf16.msra.mxu0 0
        %1645 = vmatpush.bf16.msra.mxu0 0
        %1646 = vmatpush.bf16.msra.mxu0 0
        %1647 = vmatpush.bf16.msra.mxu0 %v1638
        %1648 = vmatmul.bf16.gmra.mxu0 %v1584
        %v1649 = vpop.f32.mrf.mxu0
        %v1650 = vadd.f32 0.0, %v1649
        %v1651 = vpop.f32.mrf.mxu0
        %v1652 = vadd.f32 0.0, %v1651
        %1653 = vmatmul.bf16.gmra.mxu0 %v1587
        %v1654 = vpop.f32.mrf.mxu0
        %v1655 = vadd.f32 0.0, %v1654
        %v1656 = vpop.f32.mrf.mxu0
        %v1657 = vadd.f32 0.0, %v1656
        %1658 = vmatmul.bf16.gmra.mxu0 %v1590
        %v1659 = vpop.f32.mrf.mxu0
        %v1660 = vadd.f32 0.0, %v1659
        %v1661 = vpop.f32.mrf.mxu0
        %v1662 = vadd.f32 0.0, %v1661
        %1663 = vmatmul.bf16.gmra.mxu0 %v1593
        %v1664 = vpop.f32.mrf.mxu0
        %v1665 = vadd.f32 0.0, %v1664
        %v1666 = vpop.f32.mrf.mxu0
        %v1667 = vadd.f32 0.0, %v1666
        %1668 = vmatmul.bf16.gmra.mxu0 %v1596
        %v1669 = vpop.f32.mrf.mxu0
        %v1670 = vadd.f32 0.0, %v1669
        %v1671 = vpop.f32.mrf.mxu0
        %v1672 = vadd.f32 0.0, %v1671
        %1673 = vmatmul.bf16.gmra.mxu0 %v1599
        %v1674 = vpop.f32.mrf.mxu0
        %v1675 = vadd.f32 0.0, %v1674
        %v1676 = vpop.f32.mrf.mxu0
        %v1677 = vadd.f32 0.0, %v1676
        %1678 = vmatmul.bf16.gmra.mxu0 %v1602
        %v1679 = vpop.f32.mrf.mxu0
        %v1680 = vadd.f32 0.0, %v1679
        %v1681 = vpop.f32.mrf.mxu0
        %v1682 = vadd.f32 0.0, %v1681
        %1683 = vmatmul.bf16.gmra.mxu0 %v1605
        %v1684 = vpop.f32.mrf.mxu0
        %v1685 = vadd.f32 0.0, %v1684
        %v1686 = vpop.f32.mrf.mxu0
        %v1687 = vadd.f32 0.0, %v1686
        %1688 = vmatmul.bf16.gmra.mxu0 %v1608
        %v1689 = vpop.f32.mrf.mxu0
        %v1690 = vadd.f32 0.0, %v1689
        %v1691 = vpop.f32.mrf.mxu0
        %v1692 = vadd.f32 0.0, %v1691
        %1693 = vmatmul.bf16.gmra.mxu0 %v1611
        %v1694 = vpop.f32.mrf.mxu0
        %v1695 = vadd.f32 0.0, %v1694
        %v1696 = vpop.f32.mrf.mxu0
        %v1697 = vadd.f32 0.0, %v1696
        %1698 = vmatmul.bf16.gmra.mxu0 %v1614
        %v1699 = vpop.f32.mrf.mxu0
        %v1700 = vadd.f32 0.0, %v1699
        %v1701 = vpop.f32.mrf.mxu0
        %v1702 = vadd.f32 0.0, %v1701
        %1703 = vmatmul.bf16.gmra.mxu0 %v1617
        %v1704 = vpop.f32.mrf.mxu0
        %v1705 = vadd.f32 0.0, %v1704
        %v1706 = vpop.f32.mrf.mxu0
        %v1707 = vadd.f32 0.0, %v1706
        %1708 = vmatmul.bf16.gmra.mxu0 %v1620
        %v1709 = vpop.f32.mrf.mxu0
        %v1710 = vadd.f32 0.0, %v1709
        %v1711 = vpop.f32.mrf.mxu0
        %v1712 = vadd.f32 0.0, %v1711
        %1713 = vmatmul.bf16.gmra.mxu0 %v1623
        %v1714 = vpop.f32.mrf.mxu0
        %v1715 = vadd.f32 0.0, %v1714
        %v1716 = vpop.f32.mrf.mxu0
        %v1717 = vadd.f32 0.0, %v1716
        %1718 = vmatmul.bf16.gmra.mxu0 %v1626
        %v1719 = vpop.f32.mrf.mxu0
        %v1720 = vadd.f32 0.0, %v1719
        %v1721 = vpop.f32.mrf.mxu0
        %v1722 = vadd.f32 0.0, %v1721
        %1723 = vmatmul.bf16.gmra.mxu0 %v1629
        %v1724 = vpop.f32.mrf.mxu0
        %v1725 = vadd.f32 0.0, %v1724
        %v1726 = vpop.f32.mrf.mxu0
        %v1727 = vadd.f32 0.0, %v1726
        %1728 = vmatmul.bf16.gmra.mxu0 %v1632
        %v1729 = vpop.f32.mrf.mxu0
        %v1730 = vadd.f32 0.0, %v1729
        %v1731 = vpop.f32.mrf.mxu0
        %v1732 = vadd.f32 0.0, %v1731
        %1733 = vmatmul.bf16.gmra.mxu0 %v1635
        %v1734 = vpop.f32.mrf.mxu0
        %v1735 = vadd.f32 0.0, %v1734
        %v1736 = vpop.f32.mrf.mxu0
        %v1737 = vadd.f32 0.0, %v1736
        %1738 = vdwg.mxu0
        %v1739 = vadd.f32 %v1491, %v1650
        %v1740 = vadd.f32 %v1492, %v1652
        %v1741 = vadd.f32 %v1493, %v1655
        %v1742 = vadd.f32 %v1494, %v1657
        %v1743 = vadd.f32 %v1495, %v1660
        %v1744 = vadd.f32 %v1496, %v1662
        %v1745 = vadd.f32 %v1497, %v1665
        %v1746 = vadd.f32 %v1498, %v1667
        %v1747 = vadd.f32 %v1499, %v1670
        %v1748 = vadd.f32 %v1500, %v1672
        %v1749 = vadd.f32 %v1501, %v1675
        %v1750 = vadd.f32 %v1502, %v1677
        %v1751 = vadd.f32 %v1503, %v1680
        %v1752 = vadd.f32 %v1504, %v1682
        %v1753 = vadd.f32 %v1505, %v1685
        %v1754 = vadd.f32 %v1506, %v1687
        %v1755 = vadd.f32 %v1507, %v1690
        %v1756 = vadd.f32 %v1508, %v1692
        %v1757 = vadd.f32 %v1509, %v1695
        %v1758 = vadd.f32 %v1510, %v1697
        %v1759 = vadd.f32 %v1511, %v1700
        %v1760 = vadd.f32 %v1512, %v1702
        %v1761 = vadd.f32 %v1513, %v1705
        %v1762 = vadd.f32 %v1514, %v1707
        %v1763 = vadd.f32 %v1515, %v1710
        %v1764 = vadd.f32 %v1516, %v1712
        %v1765 = vadd.f32 %v1517, %v1715
        %v1766 = vadd.f32 %v1518, %v1717
        %v1767 = vadd.f32 %v1519, %v1720
        %v1768 = vadd.f32 %v1520, %v1722
        %v1769 = vadd.f32 %v1521, %v1725
        %v1770 = vadd.f32 %v1522, %v1727
        %v1771 = vadd.f32 %v1523, %v1730
        %v1772 = vadd.f32 %v1524, %v1732
        %v1773 = vadd.f32 %v1525, %v1735
        %v1774 = vadd.f32 %v1526, %v1737
        %v1775 = vld [vmem:[%s601 + $0x14] sm:$0xff]
        %v1776 = vld [vmem:[%s601 + $0x1c] sm:$0xff]
        %v1777 = vld [vmem:[%s601 + $0x24] sm:$0xff]
        %v1778 = vld [vmem:[%s601 + $0x2c] sm:$0xff]
        %v1779 = vld [vmem:[%s601 + $0x34] sm:$0xff]
        %v1780 = vld [vmem:[%s601 + $0x3c] sm:$0xff]
        %v1781 = vld [vmem:[%s601 + $0x44] sm:$0xff]
        %v1782 = vld [vmem:[%s601 + $0x4c] sm:$0xff]
        %v1783 = vld [vmem:[%s601 + $0x54] sm:$0xff]
        %v1784 = vld [vmem:[%s601 + $0x5c] sm:$0xff]
        %v1785 = vld [vmem:[%s601 + $0x64] sm:$0xff]
        %v1786 = vld [vmem:[%s601 + $0x6c] sm:$0xff]
        %v1787 = vld [vmem:[%s601 + $0x74] sm:$0xff]
        %v1788 = vld [vmem:[%s601 + $0x7c] sm:$0xff]
        %v1789 = vld [vmem:[%s601 + $0x84] sm:$0xff]
        %v1790 = vld [vmem:[%s601 + $0x8c] sm:$0xff]
        %v1791 = vld [vmem:[%s601 + $0x94] sm:$0xff]
        %v1792 = vld [vmem:[%s601 + $0x9c] sm:$0xff]
        %v1793 = vld [vmem:[%s601 + $0xa4] sm:$0xff]
        %v1794 = vld [vmem:[%s601 + $0xac] sm:$0xff]
        %v1795 = vld [vmem:[%s601 + $0xb4] sm:$0xff]
        %v1796 = vld [vmem:[%s601 + $0xbc] sm:$0xff]
        %v1797 = vld [vmem:[%s601 + $0xc4] sm:$0xff]
        %v1798 = vld [vmem:[%s601 + $0xcc] sm:$0xff]
        %v1799 = vld [vmem:[%s601 + $0xd4] sm:$0xff]
        %v1800 = vld [vmem:[%s601 + $0xdc] sm:$0xff]
        %v1801 = vld [vmem:[%s601 + $0xe4] sm:$0xff]
        %v1802 = vld [vmem:[%s601 + $0xec] sm:$0xff]
        %v1803 = vld [vmem:[%s601 + $0xf4] sm:$0xff]
        %v1804 = vld [vmem:[%s601 + $0xfc] sm:$0xff]
        %v1805 = vld [vmem:[%s601 + $0x104] sm:$0xff]
        %v1806 = vld [vmem:[%s601 + $0x10c] sm:$0xff]
        %v1807 = vld [vmem:[%s601 + $0x114] sm:$0xff]
        %v1808 = vld [vmem:[%s601 + $0x11c] sm:$0xff]
        %v1809 = vld [vmem:[%s601 + $0x124] sm:$0xff]
        %v1810 = vld [vmem:[%s601 + $0x12c] sm:$0x3f]
        %v1811 = vpack.c.bf16 %v1776, %v1775
        %v1812 = vpack.c.bf16 %v1778, %v1777
        %v1813 = vpack.c.bf16 %v1780, %v1779
        %v1814 = vpack.c.bf16 %v1782, %v1781
        %v1815 = vpack.c.bf16 %v1784, %v1783
        %v1816 = vpack.c.bf16 %v1786, %v1785
        %v1817 = vpack.c.bf16 %v1788, %v1787
        %v1818 = vpack.c.bf16 %v1790, %v1789
        %v1819 = vpack.c.bf16 %v1792, %v1791
        %v1820 = vpack.c.bf16 %v1794, %v1793
        %v1821 = vpack.c.bf16 %v1796, %v1795
        %v1822 = vpack.c.bf16 %v1798, %v1797
        %v1823 = vpack.c.bf16 %v1800, %v1799
        %v1824 = vpack.c.bf16 %v1802, %v1801
        %v1825 = vpack.c.bf16 %v1804, %v1803
        %v1826 = vpack.c.bf16 %v1806, %v1805
        %v1827 = vpack.c.bf16 %v1808, %v1807
        %v1828 = vpack.c.bf16 %v1810, %v1809
        %s1829 = scalar_lea.vmem %s1, 10
        %v1830 = vld [vmem:[%s1829] sm:$0x3]
        %v1832 = vsel %vm714, %v1811, 0
        %v1835 = vsel %vm714, %v1812, 0
        %v1838 = vsel %vm714, %v1813, 0
        %v1841 = vsel %vm714, %v1814, 0
        %v1844 = vsel %vm714, %v1815, 0
        %v1847 = vsel %vm714, %v1816, 0
        %v1850 = vsel %vm714, %v1817, 0
        %v1853 = vsel %vm714, %v1818, 0
        %v1856 = vsel %vm714, %v1819, 0
        %v1859 = vsel %vm714, %v1820, 0
        %v1862 = vsel %vm714, %v1821, 0
        %v1865 = vsel %vm714, %v1822, 0
        %v1868 = vsel %vm714, %v1823, 0
        %v1871 = vsel %vm714, %v1824, 0
        %v1874 = vsel %vm714, %v1825, 0
        %v1877 = vsel %vm714, %v1826, 0
        %v1880 = vsel %vm714, %v1827, 0
        %v1883 = vsel %vm714, %v1828, 0
        %v1886 = vand.u32 %v1830, %v772
        %1888 = vmatpush.bf16.msra.mxu0 0
        %1889 = vmatpush.bf16.msra.mxu0 0
        %1890 = vmatpush.bf16.msra.mxu0 0
        %1891 = vmatpush.bf16.msra.mxu0 0
        %1892 = vmatpush.bf16.msra.mxu0 0
        %1893 = vmatpush.bf16.msra.mxu0 0
        %1894 = vmatpush.bf16.msra.mxu0 0
        %1895 = vmatpush.bf16.msra.mxu0 %v1886
        %1896 = vmatmul.bf16.gmra.mxu0 %v1832
        %v1897 = vpop.f32.mrf.mxu0
        %v1898 = vadd.f32 0.0, %v1897
        %v1899 = vpop.f32.mrf.mxu0
        %v1900 = vadd.f32 0.0, %v1899
        %1901 = vmatmul.bf16.gmra.mxu0 %v1835
        %v1902 = vpop.f32.mrf.mxu0
        %v1903 = vadd.f32 0.0, %v1902
        %v1904 = vpop.f32.mrf.mxu0
        %v1905 = vadd.f32 0.0, %v1904
        %1906 = vmatmul.bf16.gmra.mxu0 %v1838
        %v1907 = vpop.f32.mrf.mxu0
        %v1908 = vadd.f32 0.0, %v1907
        %v1909 = vpop.f32.mrf.mxu0
        %v1910 = vadd.f32 0.0, %v1909
        %1911 = vmatmul.bf16.gmra.mxu0 %v1841
        %v1912 = vpop.f32.mrf.mxu0
        %v1913 = vadd.f32 0.0, %v1912
        %v1914 = vpop.f32.mrf.mxu0
        %v1915 = vadd.f32 0.0, %v1914
        %1916 = vmatmul.bf16.gmra.mxu0 %v1844
        %v1917 = vpop.f32.mrf.mxu0
        %v1918 = vadd.f32 0.0, %v1917
        %v1919 = vpop.f32.mrf.mxu0
        %v1920 = vadd.f32 0.0, %v1919
        %1921 = vmatmul.bf16.gmra.mxu0 %v1847
        %v1922 = vpop.f32.mrf.mxu0
        %v1923 = vadd.f32 0.0, %v1922
        %v1924 = vpop.f32.mrf.mxu0
        %v1925 = vadd.f32 0.0, %v1924
        %1926 = vmatmul.bf16.gmra.mxu0 %v1850
        %v1927 = vpop.f32.mrf.mxu0
        %v1928 = vadd.f32 0.0, %v1927
        %v1929 = vpop.f32.mrf.mxu0
        %v1930 = vadd.f32 0.0, %v1929
        %1931 = vmatmul.bf16.gmra.mxu0 %v1853
        %v1932 = vpop.f32.mrf.mxu0
        %v1933 = vadd.f32 0.0, %v1932
        %v1934 = vpop.f32.mrf.mxu0
        %v1935 = vadd.f32 0.0, %v1934
        %1936 = vmatmul.bf16.gmra.mxu0 %v1856
        %v1937 = vpop.f32.mrf.mxu0
        %v1938 = vadd.f32 0.0, %v1937
        %v1939 = vpop.f32.mrf.mxu0
        %v1940 = vadd.f32 0.0, %v1939
        %1941 = vmatmul.bf16.gmra.mxu0 %v1859
        %v1942 = vpop.f32.mrf.mxu0
        %v1943 = vadd.f32 0.0, %v1942
        %v1944 = vpop.f32.mrf.mxu0
        %v1945 = vadd.f32 0.0, %v1944
        %1946 = vmatmul.bf16.gmra.mxu0 %v1862
        %v1947 = vpop.f32.mrf.mxu0
        %v1948 = vadd.f32 0.0, %v1947
        %v1949 = vpop.f32.mrf.mxu0
        %v1950 = vadd.f32 0.0, %v1949
        %1951 = vmatmul.bf16.gmra.mxu0 %v1865
        %v1952 = vpop.f32.mrf.mxu0
        %v1953 = vadd.f32 0.0, %v1952
        %v1954 = vpop.f32.mrf.mxu0
        %v1955 = vadd.f32 0.0, %v1954
        %1956 = vmatmul.bf16.gmra.mxu0 %v1868
        %v1957 = vpop.f32.mrf.mxu0
        %v1958 = vadd.f32 0.0, %v1957
        %v1959 = vpop.f32.mrf.mxu0
        %v1960 = vadd.f32 0.0, %v1959
        %1961 = vmatmul.bf16.gmra.mxu0 %v1871
        %v1962 = vpop.f32.mrf.mxu0
        %v1963 = vadd.f32 0.0, %v1962
        %v1964 = vpop.f32.mrf.mxu0
        %v1965 = vadd.f32 0.0, %v1964
        %1966 = vmatmul.bf16.gmra.mxu0 %v1874
        %v1967 = vpop.f32.mrf.mxu0
        %v1968 = vadd.f32 0.0, %v1967
        %v1969 = vpop.f32.mrf.mxu0
        %v1970 = vadd.f32 0.0, %v1969
        %1971 = vmatmul.bf16.gmra.mxu0 %v1877
        %v1972 = vpop.f32.mrf.mxu0
        %v1973 = vadd.f32 0.0, %v1972
        %v1974 = vpop.f32.mrf.mxu0
        %v1975 = vadd.f32 0.0, %v1974
        %1976 = vmatmul.bf16.gmra.mxu0 %v1880
        %v1977 = vpop.f32.mrf.mxu0
        %v1978 = vadd.f32 0.0, %v1977
        %v1979 = vpop.f32.mrf.mxu0
        %v1980 = vadd.f32 0.0, %v1979
        %1981 = vmatmul.bf16.gmra.mxu0 %v1883
        %v1982 = vpop.f32.mrf.mxu0
        %v1983 = vadd.f32 0.0, %v1982
        %v1984 = vpop.f32.mrf.mxu0
        %v1985 = vadd.f32 0.0, %v1984
        %1986 = vdwg.mxu0
        %v1987 = vadd.f32 %v1739, %v1898
        %v1988 = vadd.f32 %v1740, %v1900
        %v1989 = vadd.f32 %v1741, %v1903
        %v1990 = vadd.f32 %v1742, %v1905
        %v1991 = vadd.f32 %v1743, %v1908
        %v1992 = vadd.f32 %v1744, %v1910
        %v1993 = vadd.f32 %v1745, %v1913
        %v1994 = vadd.f32 %v1746, %v1915
        %v1995 = vadd.f32 %v1747, %v1918
        %v1996 = vadd.f32 %v1748, %v1920
        %v1997 = vadd.f32 %v1749, %v1923
        %v1998 = vadd.f32 %v1750, %v1925
        %v1999 = vadd.f32 %v1751, %v1928
        %v2000 = vadd.f32 %v1752, %v1930
        %v2001 = vadd.f32 %v1753, %v1933
        %v2002 = vadd.f32 %v1754, %v1935
        %v2003 = vadd.f32 %v1755, %v1938
        %v2004 = vadd.f32 %v1756, %v1940
        %v2005 = vadd.f32 %v1757, %v1943
        %v2006 = vadd.f32 %v1758, %v1945
        %v2007 = vadd.f32 %v1759, %v1948
        %v2008 = vadd.f32 %v1760, %v1950
        %v2009 = vadd.f32 %v1761, %v1953
        %v2010 = vadd.f32 %v1762, %v1955
        %v2011 = vadd.f32 %v1763, %v1958
        %v2012 = vadd.f32 %v1764, %v1960
        %v2013 = vadd.f32 %v1765, %v1963
        %v2014 = vadd.f32 %v1766, %v1965
        %v2015 = vadd.f32 %v1767, %v1968
        %v2016 = vadd.f32 %v1768, %v1970
        %v2017 = vadd.f32 %v1769, %v1973
        %v2018 = vadd.f32 %v1770, %v1975
        %v2019 = vadd.f32 %v1771, %v1978
        %v2020 = vadd.f32 %v1772, %v1980
        %v2021 = vadd.f32 %v1773, %v1983
        %v2022 = vadd.f32 %v1774, %v1985
        %v2023 = vld [vmem:[%s601 + $0x24] sm:$0xff]
        %v2024 = vld [vmem:[%s601 + $0x2c] sm:$0xff]
        %v2025 = vld [vmem:[%s601 + $0x34] sm:$0xff]
        %v2026 = vld [vmem:[%s601 + $0x3c] sm:$0xff]
        %v2027 = vld [vmem:[%s601 + $0x44] sm:$0xff]
        %v2028 = vld [vmem:[%s601 + $0x4c] sm:$0xff]
        %v2029 = vld [vmem:[%s601 + $0x54] sm:$0xff]
        %v2030 = vld [vmem:[%s601 + $0x5c] sm:$0xff]
        %v2031 = vld [vmem:[%s601 + $0x64] sm:$0xff]
        %v2032 = vld [vmem:[%s601 + $0x6c] sm:$0xff]
        %v2033 = vld [vmem:[%s601 + $0x74] sm:$0xff]
        %v2034 = vld [vmem:[%s601 + $0x7c] sm:$0xff]
        %v2035 = vld [vmem:[%s601 + $0x84] sm:$0xff]
        %v2036 = vld [vmem:[%s601 + $0x8c] sm:$0xff]
        %v2037 = vld [vmem:[%s601 + $0x94] sm:$0xff]
        %v2038 = vld [vmem:[%s601 + $0x9c] sm:$0xff]
        %v2039 = vld [vmem:[%s601 + $0xa4] sm:$0xff]
        %v2040 = vld [vmem:[%s601 + $0xac] sm:$0xff]
        %v2041 = vld [vmem:[%s601 + $0xb4] sm:$0xff]
        %v2042 = vld [vmem:[%s601 + $0xbc] sm:$0xff]
        %v2043 = vld [vmem:[%s601 + $0xc4] sm:$0xff]
        %v2044 = vld [vmem:[%s601 + $0xcc] sm:$0xff]
        %v2045 = vld [vmem:[%s601 + $0xd4] sm:$0xff]
        %v2046 = vld [vmem:[%s601 + $0xdc] sm:$0xff]
        %v2047 = vld [vmem:[%s601 + $0xe4] sm:$0xff]
        %v2048 = vld [vmem:[%s601 + $0xec] sm:$0xff]
        %v2049 = vld [vmem:[%s601 + $0xf4] sm:$0xff]
        %v2050 = vld [vmem:[%s601 + $0xfc] sm:$0xff]
        %v2051 = vld [vmem:[%s601 + $0x104] sm:$0xff]
        %v2052 = vld [vmem:[%s601 + $0x10c] sm:$0xff]
        %v2053 = vld [vmem:[%s601 + $0x114] sm:$0xff]
        %v2054 = vld [vmem:[%s601 + $0x11c] sm:$0xff]
        %v2055 = vld [vmem:[%s601 + $0x124] sm:$0xff]
        %v2056 = vld [vmem:[%s601 + $0x12c] sm:$0xff]
        %v2057 = vld [vmem:[%s601 + $0x134] sm:$0xff]
        %v2058 = vld [vmem:[%s601 + $0x13c] sm:$0x3f]
        %v2059 = vpack.c.bf16 %v2024, %v2023
        %v2060 = vpack.c.bf16 %v2026, %v2025
        %v2061 = vpack.c.bf16 %v2028, %v2027
        %v2062 = vpack.c.bf16 %v2030, %v2029
        %v2063 = vpack.c.bf16 %v2032, %v2031
        %v2064 = vpack.c.bf16 %v2034, %v2033
        %v2065 = vpack.c.bf16 %v2036, %v2035
        %v2066 = vpack.c.bf16 %v2038, %v2037
        %v2067 = vpack.c.bf16 %v2040, %v2039
        %v2068 = vpack.c.bf16 %v2042, %v2041
        %v2069 = vpack.c.bf16 %v2044, %v2043
        %v2070 = vpack.c.bf16 %v2046, %v2045
        %v2071 = vpack.c.bf16 %v2048, %v2047
        %v2072 = vpack.c.bf16 %v2050, %v2049
        %v2073 = vpack.c.bf16 %v2052, %v2051
        %v2074 = vpack.c.bf16 %v2054, %v2053
        %v2075 = vpack.c.bf16 %v2056, %v2055
        %v2076 = vpack.c.bf16 %v2058, %v2057
        %s2077 = scalar_lea.vmem %s1, 12
        %v2078 = vld [vmem:[%s2077] sm:$0x3]
        %v2080 = vsel %vm714, %v2059, 0
        %v2083 = vsel %vm714, %v2060, 0
        %v2086 = vsel %vm714, %v2061, 0
        %v2089 = vsel %vm714, %v2062, 0
        %v2092 = vsel %vm714, %v2063, 0
        %v2095 = vsel %vm714, %v2064, 0
        %v2098 = vsel %vm714, %v2065, 0
        %v2101 = vsel %vm714, %v2066, 0
        %v2104 = vsel %vm714, %v2067, 0
        %v2107 = vsel %vm714, %v2068, 0
        %v2110 = vsel %vm714, %v2069, 0
        %v2113 = vsel %vm714, %v2070, 0
        %v2116 = vsel %vm714, %v2071, 0
        %v2119 = vsel %vm714, %v2072, 0
        %v2122 = vsel %vm714, %v2073, 0
        %v2125 = vsel %vm714, %v2074, 0
        %v2128 = vsel %vm714, %v2075, 0
        %v2131 = vsel %vm714, %v2076, 0
        %v2134 = vand.u32 %v2078, %v772
        %2136 = vmatpush.bf16.msra.mxu0 0
        %2137 = vmatpush.bf16.msra.mxu0 0
        %2138 = vmatpush.bf16.msra.mxu0 0
        %2139 = vmatpush.bf16.msra.mxu0 0
        %2140 = vmatpush.bf16.msra.mxu0 0
        %2141 = vmatpush.bf16.msra.mxu0 0
        %2142 = vmatpush.bf16.msra.mxu0 0
        %2143 = vmatpush.bf16.msra.mxu0 %v2134
        %2144 = vmatmul.bf16.gmra.mxu0 %v2080
        %v2145 = vpop.f32.mrf.mxu0
        %v2146 = vadd.f32 0.0, %v2145
        %v2147 = vpop.f32.mrf.mxu0
        %v2148 = vadd.f32 0.0, %v2147
        %2149 = vmatmul.bf16.gmra.mxu0 %v2083
        %v2150 = vpop.f32.mrf.mxu0
        %v2151 = vadd.f32 0.0, %v2150
        %v2152 = vpop.f32.mrf.mxu0
        %v2153 = vadd.f32 0.0, %v2152
        %2154 = vmatmul.bf16.gmra.mxu0 %v2086
        %v2155 = vpop.f32.mrf.mxu0
        %v2156 = vadd.f32 0.0, %v2155
        %v2157 = vpop.f32.mrf.mxu0
        %v2158 = vadd.f32 0.0, %v2157
        %2159 = vmatmul.bf16.gmra.mxu0 %v2089
        %v2160 = vpop.f32.mrf.mxu0
        %v2161 = vadd.f32 0.0, %v2160
        %v2162 = vpop.f32.mrf.mxu0
        %v2163 = vadd.f32 0.0, %v2162
        %2164 = vmatmul.bf16.gmra.mxu0 %v2092
        %v2165 = vpop.f32.mrf.mxu0
        %v2166 = vadd.f32 0.0, %v2165
        %v2167 = vpop.f32.mrf.mxu0
        %v2168 = vadd.f32 0.0, %v2167
        %2169 = vmatmul.bf16.gmra.mxu0 %v2095
        %v2170 = vpop.f32.mrf.mxu0
        %v2171 = vadd.f32 0.0, %v2170
        %v2172 = vpop.f32.mrf.mxu0
        %v2173 = vadd.f32 0.0, %v2172
        %2174 = vmatmul.bf16.gmra.mxu0 %v2098
        %v2175 = vpop.f32.mrf.mxu0
        %v2176 = vadd.f32 0.0, %v2175
        %v2177 = vpop.f32.mrf.mxu0
        %v2178 = vadd.f32 0.0, %v2177
        %2179 = vmatmul.bf16.gmra.mxu0 %v2101
        %v2180 = vpop.f32.mrf.mxu0
        %v2181 = vadd.f32 0.0, %v2180
        %v2182 = vpop.f32.mrf.mxu0
        %v2183 = vadd.f32 0.0, %v2182
        %2184 = vmatmul.bf16.gmra.mxu0 %v2104
        %v2185 = vpop.f32.mrf.mxu0
        %v2186 = vadd.f32 0.0, %v2185
        %v2187 = vpop.f32.mrf.mxu0
        %v2188 = vadd.f32 0.0, %v2187
        %2189 = vmatmul.bf16.gmra.mxu0 %v2107
        %v2190 = vpop.f32.mrf.mxu0
        %v2191 = vadd.f32 0.0, %v2190
        %v2192 = vpop.f32.mrf.mxu0
        %v2193 = vadd.f32 0.0, %v2192
        %2194 = vmatmul.bf16.gmra.mxu0 %v2110
        %v2195 = vpop.f32.mrf.mxu0
        %v2196 = vadd.f32 0.0, %v2195
        %v2197 = vpop.f32.mrf.mxu0
        %v2198 = vadd.f32 0.0, %v2197
        %2199 = vmatmul.bf16.gmra.mxu0 %v2113
        %v2200 = vpop.f32.mrf.mxu0
        %v2201 = vadd.f32 0.0, %v2200
        %v2202 = vpop.f32.mrf.mxu0
        %v2203 = vadd.f32 0.0, %v2202
        %2204 = vmatmul.bf16.gmra.mxu0 %v2116
        %v2205 = vpop.f32.mrf.mxu0
        %v2206 = vadd.f32 0.0, %v2205
        %v2207 = vpop.f32.mrf.mxu0
        %v2208 = vadd.f32 0.0, %v2207
        %2209 = vmatmul.bf16.gmra.mxu0 %v2119
        %v2210 = vpop.f32.mrf.mxu0
        %v2211 = vadd.f32 0.0, %v2210
        %v2212 = vpop.f32.mrf.mxu0
        %v2213 = vadd.f32 0.0, %v2212
        %2214 = vmatmul.bf16.gmra.mxu0 %v2122
        %v2215 = vpop.f32.mrf.mxu0
        %v2216 = vadd.f32 0.0, %v2215
        %v2217 = vpop.f32.mrf.mxu0
        %v2218 = vadd.f32 0.0, %v2217
        %2219 = vmatmul.bf16.gmra.mxu0 %v2125
        %v2220 = vpop.f32.mrf.mxu0
        %v2221 = vadd.f32 0.0, %v2220
        %v2222 = vpop.f32.mrf.mxu0
        %v2223 = vadd.f32 0.0, %v2222
        %2224 = vmatmul.bf16.gmra.mxu0 %v2128
        %v2225 = vpop.f32.mrf.mxu0
        %v2226 = vadd.f32 0.0, %v2225
        %v2227 = vpop.f32.mrf.mxu0
        %v2228 = vadd.f32 0.0, %v2227
        %2229 = vmatmul.bf16.gmra.mxu0 %v2131
        %v2230 = vpop.f32.mrf.mxu0
        %v2231 = vadd.f32 0.0, %v2230
        %v2232 = vpop.f32.mrf.mxu0
        %v2233 = vadd.f32 0.0, %v2232
        %2234 = vdwg.mxu0
        %v2235 = vadd.f32 %v1987, %v2146
        %v2236 = vadd.f32 %v1988, %v2148
        %v2237 = vadd.f32 %v1989, %v2151
        %v2238 = vadd.f32 %v1990, %v2153
        %v2239 = vadd.f32 %v1991, %v2156
        %v2240 = vadd.f32 %v1992, %v2158
        %v2241 = vadd.f32 %v1993, %v2161
        %v2242 = vadd.f32 %v1994, %v2163
        %v2243 = vadd.f32 %v1995, %v2166
        %v2244 = vadd.f32 %v1996, %v2168
        %v2245 = vadd.f32 %v1997, %v2171
        %v2246 = vadd.f32 %v1998, %v2173
        %v2247 = vadd.f32 %v1999, %v2176
        %v2248 = vadd.f32 %v2000, %v2178
        %v2249 = vadd.f32 %v2001, %v2181
        %v2250 = vadd.f32 %v2002, %v2183
        %v2251 = vadd.f32 %v2003, %v2186
        %v2252 = vadd.f32 %v2004, %v2188
        %v2253 = vadd.f32 %v2005, %v2191
        %v2254 = vadd.f32 %v2006, %v2193
        %v2255 = vadd.f32 %v2007, %v2196
        %v2256 = vadd.f32 %v2008, %v2198
        %v2257 = vadd.f32 %v2009, %v2201
        %v2258 = vadd.f32 %v2010, %v2203
        %v2259 = vadd.f32 %v2011, %v2206
        %v2260 = vadd.f32 %v2012, %v2208
        %v2261 = vadd.f32 %v2013, %v2211
        %v2262 = vadd.f32 %v2014, %v2213
        %v2263 = vadd.f32 %v2015, %v2216
        %v2264 = vadd.f32 %v2016, %v2218
        %v2265 = vadd.f32 %v2017, %v2221
        %v2266 = vadd.f32 %v2018, %v2223
        %v2267 = vadd.f32 %v2019, %v2226
        %v2268 = vadd.f32 %v2020, %v2228
        %v2269 = vadd.f32 %v2021, %v2231
        %v2270 = vadd.f32 %v2022, %v2233
        %v2271 = vld [vmem:[%s601 + $0x25] sm:$0xff]
        %v2272 = vld [vmem:[%s601 + $0x2d] sm:$0xff]
        %v2273 = vld [vmem:[%s601 + $0x35] sm:$0xff]
        %v2274 = vld [vmem:[%s601 + $0x3d] sm:$0xff]
        %v2275 = vld [vmem:[%s601 + $0x45] sm:$0xff]
        %v2276 = vld [vmem:[%s601 + $0x4d] sm:$0xff]
        %v2277 = vld [vmem:[%s601 + $0x55] sm:$0xff]
        %v2278 = vld [vmem:[%s601 + $0x5d] sm:$0xff]
        %v2279 = vld [vmem:[%s601 + $0x65] sm:$0xff]
        %v2280 = vld [vmem:[%s601 + $0x6d] sm:$0xff]
        %v2281 = vld [vmem:[%s601 + $0x75] sm:$0xff]
        %v2282 = vld [vmem:[%s601 + $0x7d] sm:$0xff]
        %v2283 = vld [vmem:[%s601 + $0x85] sm:$0xff]
        %v2284 = vld [vmem:[%s601 + $0x8d] sm:$0xff]
        %v2285 = vld [vmem:[%s601 + $0x95] sm:$0xff]
        %v2286 = vld [vmem:[%s601 + $0x9d] sm:$0xff]
        %v2287 = vld [vmem:[%s601 + $0xa5] sm:$0xff]
        %v2288 = vld [vmem:[%s601 + $0xad] sm:$0xff]
        %v2289 = vld [vmem:[%s601 + $0xb5] sm:$0xff]
        %v2290 = vld [vmem:[%s601 + $0xbd] sm:$0xff]
        %v2291 = vld [vmem:[%s601 + $0xc5] sm:$0xff]
        %v2292 = vld [vmem:[%s601 + $0xcd] sm:$0xff]
        %v2293 = vld [vmem:[%s601 + $0xd5] sm:$0xff]
        %v2294 = vld [vmem:[%s601 + $0xdd] sm:$0xff]
        %v2295 = vld [vmem:[%s601 + $0xe5] sm:$0xff]
        %v2296 = vld [vmem:[%s601 + $0xed] sm:$0xff]
        %v2297 = vld [vmem:[%s601 + $0xf5] sm:$0xff]
        %v2298 = vld [vmem:[%s601 + $0xfd] sm:$0xff]
        %v2299 = vld [vmem:[%s601 + $0x105] sm:$0xff]
        %v2300 = vld [vmem:[%s601 + $0x10d] sm:$0xff]
        %v2301 = vld [vmem:[%s601 + $0x115] sm:$0xff]
        %v2302 = vld [vmem:[%s601 + $0x11d] sm:$0xff]
        %v2303 = vld [vmem:[%s601 + $0x125] sm:$0xff]
        %v2304 = vld [vmem:[%s601 + $0x12d] sm:$0xff]
        %v2305 = vld [vmem:[%s601 + $0x135] sm:$0xff]
        %v2306 = vld [vmem:[%s601 + $0x13d] sm:$0x3f]
        %v2307 = vpack.c.bf16 %v2272, %v2271
        %v2308 = vpack.c.bf16 %v2274, %v2273
        %v2309 = vpack.c.bf16 %v2276, %v2275
        %v2310 = vpack.c.bf16 %v2278, %v2277
        %v2311 = vpack.c.bf16 %v2280, %v2279
        %v2312 = vpack.c.bf16 %v2282, %v2281
        %v2313 = vpack.c.bf16 %v2284, %v2283
        %v2314 = vpack.c.bf16 %v2286, %v2285
        %v2315 = vpack.c.bf16 %v2288, %v2287
        %v2316 = vpack.c.bf16 %v2290, %v2289
        %v2317 = vpack.c.bf16 %v2292, %v2291
        %v2318 = vpack.c.bf16 %v2294, %v2293
        %v2319 = vpack.c.bf16 %v2296, %v2295
        %v2320 = vpack.c.bf16 %v2298, %v2297
        %v2321 = vpack.c.bf16 %v2300, %v2299
        %v2322 = vpack.c.bf16 %v2302, %v2301
        %v2323 = vpack.c.bf16 %v2304, %v2303
        %v2324 = vpack.c.bf16 %v2306, %v2305
        %s2325 = scalar_lea.vmem %s1, 14
        %v2326 = vld [vmem:[%s2325] sm:$0x3]
        %v2328 = vsel %vm714, %v2307, 0
        %v2331 = vsel %vm714, %v2308, 0
        %v2334 = vsel %vm714, %v2309, 0
        %v2337 = vsel %vm714, %v2310, 0
        %v2340 = vsel %vm714, %v2311, 0
        %v2343 = vsel %vm714, %v2312, 0
        %v2346 = vsel %vm714, %v2313, 0
        %v2349 = vsel %vm714, %v2314, 0
        %v2352 = vsel %vm714, %v2315, 0
        %v2355 = vsel %vm714, %v2316, 0
        %v2358 = vsel %vm714, %v2317, 0
        %v2361 = vsel %vm714, %v2318, 0
        %v2364 = vsel %vm714, %v2319, 0
        %v2367 = vsel %vm714, %v2320, 0
        %v2370 = vsel %vm714, %v2321, 0
        %v2373 = vsel %vm714, %v2322, 0
        %v2376 = vsel %vm714, %v2323, 0
        %v2379 = vsel %vm714, %v2324, 0
        %v2382 = vand.u32 %v2326, %v772
        %2384 = vmatpush.bf16.msra.mxu0 0
        %2385 = vmatpush.bf16.msra.mxu0 0
        %2386 = vmatpush.bf16.msra.mxu0 0
        %2387 = vmatpush.bf16.msra.mxu0 0
        %2388 = vmatpush.bf16.msra.mxu0 0
        %2389 = vmatpush.bf16.msra.mxu0 0
        %2390 = vmatpush.bf16.msra.mxu0 0
        %2391 = vmatpush.bf16.msra.mxu0 %v2382
        %2392 = vmatmul.bf16.gmra.mxu0 %v2328
        %v2393 = vpop.f32.mrf.mxu0
        %v2394 = vadd.f32 0.0, %v2393
        %v2395 = vpop.f32.mrf.mxu0
        %v2396 = vadd.f32 0.0, %v2395
        %2397 = vmatmul.bf16.gmra.mxu0 %v2331
        %v2398 = vpop.f32.mrf.mxu0
        %v2399 = vadd.f32 0.0, %v2398
        %v2400 = vpop.f32.mrf.mxu0
        %v2401 = vadd.f32 0.0, %v2400
        %2402 = vmatmul.bf16.gmra.mxu0 %v2334
        %v2403 = vpop.f32.mrf.mxu0
        %v2404 = vadd.f32 0.0, %v2403
        %v2405 = vpop.f32.mrf.mxu0
        %v2406 = vadd.f32 0.0, %v2405
        %2407 = vmatmul.bf16.gmra.mxu0 %v2337
        %v2408 = vpop.f32.mrf.mxu0
        %v2409 = vadd.f32 0.0, %v2408
        %v2410 = vpop.f32.mrf.mxu0
        %v2411 = vadd.f32 0.0, %v2410
        %2412 = vmatmul.bf16.gmra.mxu0 %v2340
        %v2413 = vpop.f32.mrf.mxu0
        %v2414 = vadd.f32 0.0, %v2413
        %v2415 = vpop.f32.mrf.mxu0
        %v2416 = vadd.f32 0.0, %v2415
        %2417 = vmatmul.bf16.gmra.mxu0 %v2343
        %v2418 = vpop.f32.mrf.mxu0
        %v2419 = vadd.f32 0.0, %v2418
        %v2420 = vpop.f32.mrf.mxu0
        %v2421 = vadd.f32 0.0, %v2420
        %2422 = vmatmul.bf16.gmra.mxu0 %v2346
        %v2423 = vpop.f32.mrf.mxu0
        %v2424 = vadd.f32 0.0, %v2423
        %v2425 = vpop.f32.mrf.mxu0
        %v2426 = vadd.f32 0.0, %v2425
        %2427 = vmatmul.bf16.gmra.mxu0 %v2349
        %v2428 = vpop.f32.mrf.mxu0
        %v2429 = vadd.f32 0.0, %v2428
        %v2430 = vpop.f32.mrf.mxu0
        %v2431 = vadd.f32 0.0, %v2430
        %2432 = vmatmul.bf16.gmra.mxu0 %v2352
        %v2433 = vpop.f32.mrf.mxu0
        %v2434 = vadd.f32 0.0, %v2433
        %v2435 = vpop.f32.mrf.mxu0
        %v2436 = vadd.f32 0.0, %v2435
        %2437 = vmatmul.bf16.gmra.mxu0 %v2355
        %v2438 = vpop.f32.mrf.mxu0
        %v2439 = vadd.f32 0.0, %v2438
        %v2440 = vpop.f32.mrf.mxu0
        %v2441 = vadd.f32 0.0, %v2440
        %2442 = vmatmul.bf16.gmra.mxu0 %v2358
        %v2443 = vpop.f32.mrf.mxu0
        %v2444 = vadd.f32 0.0, %v2443
        %v2445 = vpop.f32.mrf.mxu0
        %v2446 = vadd.f32 0.0, %v2445
        %2447 = vmatmul.bf16.gmra.mxu0 %v2361
        %v2448 = vpop.f32.mrf.mxu0
        %v2449 = vadd.f32 0.0, %v2448
        %v2450 = vpop.f32.mrf.mxu0
        %v2451 = vadd.f32 0.0, %v2450
        %2452 = vmatmul.bf16.gmra.mxu0 %v2364
        %v2453 = vpop.f32.mrf.mxu0
        %v2454 = vadd.f32 0.0, %v2453
        %v2455 = vpop.f32.mrf.mxu0
        %v2456 = vadd.f32 0.0, %v2455
        %2457 = vmatmul.bf16.gmra.mxu0 %v2367
        %v2458 = vpop.f32.mrf.mxu0
        %v2459 = vadd.f32 0.0, %v2458
        %v2460 = vpop.f32.mrf.mxu0
        %v2461 = vadd.f32 0.0, %v2460
        %2462 = vmatmul.bf16.gmra.mxu0 %v2370
        %v2463 = vpop.f32.mrf.mxu0
        %v2464 = vadd.f32 0.0, %v2463
        %v2465 = vpop.f32.mrf.mxu0
        %v2466 = vadd.f32 0.0, %v2465
        %2467 = vmatmul.bf16.gmra.mxu0 %v2373
        %v2468 = vpop.f32.mrf.mxu0
        %v2469 = vadd.f32 0.0, %v2468
        %v2470 = vpop.f32.mrf.mxu0
        %v2471 = vadd.f32 0.0, %v2470
        %2472 = vmatmul.bf16.gmra.mxu0 %v2376
        %v2473 = vpop.f32.mrf.mxu0
        %v2474 = vadd.f32 0.0, %v2473
        %v2475 = vpop.f32.mrf.mxu0
        %v2476 = vadd.f32 0.0, %v2475
        %2477 = vmatmul.bf16.gmra.mxu0 %v2379
        %v2478 = vpop.f32.mrf.mxu0
        %v2479 = vadd.f32 0.0, %v2478
        %v2480 = vpop.f32.mrf.mxu0
        %v2481 = vadd.f32 0.0, %v2480
        %2482 = vdwg.mxu0
        %v2483 = vadd.f32 %v2235, %v2394
        %v2484 = vadd.f32 %v2236, %v2396
        %v2485 = vadd.f32 %v2237, %v2399
        %v2486 = vadd.f32 %v2238, %v2401
        %v2487 = vadd.f32 %v2239, %v2404
        %v2488 = vadd.f32 %v2240, %v2406
        %v2489 = vadd.f32 %v2241, %v2409
        %v2490 = vadd.f32 %v2242, %v2411
        %v2491 = vadd.f32 %v2243, %v2414
        %v2492 = vadd.f32 %v2244, %v2416
        %v2493 = vadd.f32 %v2245, %v2419
        %v2494 = vadd.f32 %v2246, %v2421
        %v2495 = vadd.f32 %v2247, %v2424
        %v2496 = vadd.f32 %v2248, %v2426
        %v2497 = vadd.f32 %v2249, %v2429
        %v2498 = vadd.f32 %v2250, %v2431
        %v2499 = vadd.f32 %v2251, %v2434
        %v2500 = vadd.f32 %v2252, %v2436
        %v2501 = vadd.f32 %v2253, %v2439
        %v2502 = vadd.f32 %v2254, %v2441
        %v2503 = vadd.f32 %v2255, %v2444
        %v2504 = vadd.f32 %v2256, %v2446
        %v2505 = vadd.f32 %v2257, %v2449
        %v2506 = vadd.f32 %v2258, %v2451
        %v2507 = vadd.f32 %v2259, %v2454
        %v2508 = vadd.f32 %v2260, %v2456
        %v2509 = vadd.f32 %v2261, %v2459
        %v2510 = vadd.f32 %v2262, %v2461
        %v2511 = vadd.f32 %v2263, %v2464
        %v2512 = vadd.f32 %v2264, %v2466
        %v2513 = vadd.f32 %v2265, %v2469
        %v2514 = vadd.f32 %v2266, %v2471
        %v2515 = vadd.f32 %v2267, %v2474
        %v2516 = vadd.f32 %v2268, %v2476
        %v2517 = vadd.f32 %v2269, %v2479
        %v2518 = vadd.f32 %v2270, %v2481
        %v2519 = vld [vmem:[%s601 + $0x26] sm:$0xff]
        %v2520 = vld [vmem:[%s601 + $0x2e] sm:$0xff]
        %v2521 = vld [vmem:[%s601 + $0x36] sm:$0xff]
        %v2522 = vld [vmem:[%s601 + $0x3e] sm:$0xff]
        %v2523 = vld [vmem:[%s601 + $0x46] sm:$0xff]
        %v2524 = vld [vmem:[%s601 + $0x4e] sm:$0xff]
        %v2525 = vld [vmem:[%s601 + $0x56] sm:$0xff]
        %v2526 = vld [vmem:[%s601 + $0x5e] sm:$0xff]
        %v2527 = vld [vmem:[%s601 + $0x66] sm:$0xff]
        %v2528 = vld [vmem:[%s601 + $0x6e] sm:$0xff]
        %v2529 = vld [vmem:[%s601 + $0x76] sm:$0xff]
        %v2530 = vld [vmem:[%s601 + $0x7e] sm:$0xff]
        %v2531 = vld [vmem:[%s601 + $0x86] sm:$0xff]
        %v2532 = vld [vmem:[%s601 + $0x8e] sm:$0xff]
        %v2533 = vld [vmem:[%s601 + $0x96] sm:$0xff]
        %v2534 = vld [vmem:[%s601 + $0x9e] sm:$0xff]
        %v2535 = vld [vmem:[%s601 + $0xa6] sm:$0xff]
        %v2536 = vld [vmem:[%s601 + $0xae] sm:$0xff]
        %v2537 = vld [vmem:[%s601 + $0xb6] sm:$0xff]
        %v2538 = vld [vmem:[%s601 + $0xbe] sm:$0xff]
        %v2539 = vld [vmem:[%s601 + $0xc6] sm:$0xff]
        %v2540 = vld [vmem:[%s601 + $0xce] sm:$0xff]
        %v2541 = vld [vmem:[%s601 + $0xd6] sm:$0xff]
        %v2542 = vld [vmem:[%s601 + $0xde] sm:$0xff]
        %v2543 = vld [vmem:[%s601 + $0xe6] sm:$0xff]
        %v2544 = vld [vmem:[%s601 + $0xee] sm:$0xff]
        %v2545 = vld [vmem:[%s601 + $0xf6] sm:$0xff]
        %v2546 = vld [vmem:[%s601 + $0xfe] sm:$0xff]
        %v2547 = vld [vmem:[%s601 + $0x106] sm:$0xff]
        %v2548 = vld [vmem:[%s601 + $0x10e] sm:$0xff]
        %v2549 = vld [vmem:[%s601 + $0x116] sm:$0xff]
        %v2550 = vld [vmem:[%s601 + $0x11e] sm:$0xff]
        %v2551 = vld [vmem:[%s601 + $0x126] sm:$0xff]
        %v2552 = vld [vmem:[%s601 + $0x12e] sm:$0xff]
        %v2553 = vld [vmem:[%s601 + $0x136] sm:$0xff]
        %v2554 = vld [vmem:[%s601 + $0x13e] sm:$0x3f]
        %v2555 = vpack.c.bf16 %v2520, %v2519
        %v2556 = vpack.c.bf16 %v2522, %v2521
        %v2557 = vpack.c.bf16 %v2524, %v2523
        %v2558 = vpack.c.bf16 %v2526, %v2525
        %v2559 = vpack.c.bf16 %v2528, %v2527
        %v2560 = vpack.c.bf16 %v2530, %v2529
        %v2561 = vpack.c.bf16 %v2532, %v2531
        %v2562 = vpack.c.bf16 %v2534, %v2533
        %v2563 = vpack.c.bf16 %v2536, %v2535
        %v2564 = vpack.c.bf16 %v2538, %v2537
        %v2565 = vpack.c.bf16 %v2540, %v2539
        %v2566 = vpack.c.bf16 %v2542, %v2541
        %v2567 = vpack.c.bf16 %v2544, %v2543
        %v2568 = vpack.c.bf16 %v2546, %v2545
        %v2569 = vpack.c.bf16 %v2548, %v2547
        %v2570 = vpack.c.bf16 %v2550, %v2549
        %v2571 = vpack.c.bf16 %v2552, %v2551
        %v2572 = vpack.c.bf16 %v2554, %v2553
        %s2573 = scalar_lea.vmem %s1, 16
        %v2574 = vld [vmem:[%s2573] sm:$0x3]
        %v2576 = vsel %vm714, %v2555, 0
        %v2579 = vsel %vm714, %v2556, 0
        %v2582 = vsel %vm714, %v2557, 0
        %v2585 = vsel %vm714, %v2558, 0
        %v2588 = vsel %vm714, %v2559, 0
        %v2591 = vsel %vm714, %v2560, 0
        %v2594 = vsel %vm714, %v2561, 0
        %v2597 = vsel %vm714, %v2562, 0
        %v2600 = vsel %vm714, %v2563, 0
        %v2603 = vsel %vm714, %v2564, 0
        %v2606 = vsel %vm714, %v2565, 0
        %v2609 = vsel %vm714, %v2566, 0
        %v2612 = vsel %vm714, %v2567, 0
        %v2615 = vsel %vm714, %v2568, 0
        %v2618 = vsel %vm714, %v2569, 0
        %v2621 = vsel %vm714, %v2570, 0
        %v2624 = vsel %vm714, %v2571, 0
        %v2627 = vsel %vm714, %v2572, 0
        %v2630 = vand.u32 %v2574, %v772
        %2632 = vmatpush.bf16.msra.mxu0 0
        %2633 = vmatpush.bf16.msra.mxu0 0
        %2634 = vmatpush.bf16.msra.mxu0 0
        %2635 = vmatpush.bf16.msra.mxu0 0
        %2636 = vmatpush.bf16.msra.mxu0 0
        %2637 = vmatpush.bf16.msra.mxu0 0
        %2638 = vmatpush.bf16.msra.mxu0 0
        %2639 = vmatpush.bf16.msra.mxu0 %v2630
        %2640 = vmatmul.bf16.gmra.mxu0 %v2576
        %v2641 = vpop.f32.mrf.mxu0
        %v2642 = vadd.f32 0.0, %v2641
        %v2643 = vpop.f32.mrf.mxu0
        %v2644 = vadd.f32 0.0, %v2643
        %2645 = vmatmul.bf16.gmra.mxu0 %v2579
        %v2646 = vpop.f32.mrf.mxu0
        %v2647 = vadd.f32 0.0, %v2646
        %v2648 = vpop.f32.mrf.mxu0
        %v2649 = vadd.f32 0.0, %v2648
        %2650 = vmatmul.bf16.gmra.mxu0 %v2582
        %v2651 = vpop.f32.mrf.mxu0
        %v2652 = vadd.f32 0.0, %v2651
        %v2653 = vpop.f32.mrf.mxu0
        %v2654 = vadd.f32 0.0, %v2653
        %2655 = vmatmul.bf16.gmra.mxu0 %v2585
        %v2656 = vpop.f32.mrf.mxu0
        %v2657 = vadd.f32 0.0, %v2656
        %v2658 = vpop.f32.mrf.mxu0
        %v2659 = vadd.f32 0.0, %v2658
        %2660 = vmatmul.bf16.gmra.mxu0 %v2588
        %v2661 = vpop.f32.mrf.mxu0
        %v2662 = vadd.f32 0.0, %v2661
        %v2663 = vpop.f32.mrf.mxu0
        %v2664 = vadd.f32 0.0, %v2663
        %2665 = vmatmul.bf16.gmra.mxu0 %v2591
        %v2666 = vpop.f32.mrf.mxu0
        %v2667 = vadd.f32 0.0, %v2666
        %v2668 = vpop.f32.mrf.mxu0
        %v2669 = vadd.f32 0.0, %v2668
        %2670 = vmatmul.bf16.gmra.mxu0 %v2594
        %v2671 = vpop.f32.mrf.mxu0
        %v2672 = vadd.f32 0.0, %v2671
        %v2673 = vpop.f32.mrf.mxu0
        %v2674 = vadd.f32 0.0, %v2673
        %2675 = vmatmul.bf16.gmra.mxu0 %v2597
        %v2676 = vpop.f32.mrf.mxu0
        %v2677 = vadd.f32 0.0, %v2676
        %v2678 = vpop.f32.mrf.mxu0
        %v2679 = vadd.f32 0.0, %v2678
        %2680 = vmatmul.bf16.gmra.mxu0 %v2600
        %v2681 = vpop.f32.mrf.mxu0
        %v2682 = vadd.f32 0.0, %v2681
        %v2683 = vpop.f32.mrf.mxu0
        %v2684 = vadd.f32 0.0, %v2683
        %2685 = vmatmul.bf16.gmra.mxu0 %v2603
        %v2686 = vpop.f32.mrf.mxu0
        %v2687 = vadd.f32 0.0, %v2686
        %v2688 = vpop.f32.mrf.mxu0
        %v2689 = vadd.f32 0.0, %v2688
        %2690 = vmatmul.bf16.gmra.mxu0 %v2606
        %v2691 = vpop.f32.mrf.mxu0
        %v2692 = vadd.f32 0.0, %v2691
        %v2693 = vpop.f32.mrf.mxu0
        %v2694 = vadd.f32 0.0, %v2693
        %2695 = vmatmul.bf16.gmra.mxu0 %v2609
        %v2696 = vpop.f32.mrf.mxu0
        %v2697 = vadd.f32 0.0, %v2696
        %v2698 = vpop.f32.mrf.mxu0
        %v2699 = vadd.f32 0.0, %v2698
        %2700 = vmatmul.bf16.gmra.mxu0 %v2612
        %v2701 = vpop.f32.mrf.mxu0
        %v2702 = vadd.f32 0.0, %v2701
        %v2703 = vpop.f32.mrf.mxu0
        %v2704 = vadd.f32 0.0, %v2703
        %2705 = vmatmul.bf16.gmra.mxu0 %v2615
        %v2706 = vpop.f32.mrf.mxu0
        %v2707 = vadd.f32 0.0, %v2706
        %v2708 = vpop.f32.mrf.mxu0
        %v2709 = vadd.f32 0.0, %v2708
        %2710 = vmatmul.bf16.gmra.mxu0 %v2618
        %v2711 = vpop.f32.mrf.mxu0
        %v2712 = vadd.f32 0.0, %v2711
        %v2713 = vpop.f32.mrf.mxu0
        %v2714 = vadd.f32 0.0, %v2713
        %2715 = vmatmul.bf16.gmra.mxu0 %v2621
        %v2716 = vpop.f32.mrf.mxu0
        %v2717 = vadd.f32 0.0, %v2716
        %v2718 = vpop.f32.mrf.mxu0
        %v2719 = vadd.f32 0.0, %v2718
        %2720 = vmatmul.bf16.gmra.mxu0 %v2624
        %v2721 = vpop.f32.mrf.mxu0
        %v2722 = vadd.f32 0.0, %v2721
        %v2723 = vpop.f32.mrf.mxu0
        %v2724 = vadd.f32 0.0, %v2723
        %2725 = vmatmul.bf16.gmra.mxu0 %v2627
        %v2726 = vpop.f32.mrf.mxu0
        %v2727 = vadd.f32 0.0, %v2726
        %v2728 = vpop.f32.mrf.mxu0
        %v2729 = vadd.f32 0.0, %v2728
        %2730 = vdwg.mxu0
        %v2731 = vadd.f32 %v2483, %v2642
        %v2732 = vadd.f32 %v2484, %v2644
        %v2733 = vadd.f32 %v2485, %v2647
        %v2734 = vadd.f32 %v2486, %v2649
        %v2735 = vadd.f32 %v2487, %v2652
        %v2736 = vadd.f32 %v2488, %v2654
        %v2737 = vadd.f32 %v2489, %v2657
        %v2738 = vadd.f32 %v2490, %v2659
        %v2739 = vadd.f32 %v2491, %v2662
        %v2740 = vadd.f32 %v2492, %v2664
        %v2741 = vadd.f32 %v2493, %v2667
        %v2742 = vadd.f32 %v2494, %v2669
        %v2743 = vadd.f32 %v2495, %v2672
        %v2744 = vadd.f32 %v2496, %v2674
        %v2745 = vadd.f32 %v2497, %v2677
        %v2746 = vadd.f32 %v2498, %v2679
        %v2747 = vadd.f32 %v2499, %v2682
        %v2748 = vadd.f32 %v2500, %v2684
        %v2749 = vadd.f32 %v2501, %v2687
        %v2750 = vadd.f32 %v2502, %v2689
        %v2751 = vadd.f32 %v2503, %v2692
        %v2752 = vadd.f32 %v2504, %v2694
        %v2753 = vadd.f32 %v2505, %v2697
        %v2754 = vadd.f32 %v2506, %v2699
        %v2755 = vadd.f32 %v2507, %v2702
        %v2756 = vadd.f32 %v2508, %v2704
        %v2757 = vadd.f32 %v2509, %v2707
        %v2758 = vadd.f32 %v2510, %v2709
        %v2759 = vadd.f32 %v2511, %v2712
        %v2760 = vadd.f32 %v2512, %v2714
        %v2761 = vadd.f32 %v2513, %v2717
        %v2762 = vadd.f32 %v2514, %v2719
        %v2763 = vadd.f32 %v2515, %v2722
        %v2764 = vadd.f32 %v2516, %v2724
        %v2765 = vadd.f32 %v2517, %v2727
        %v2766 = vadd.f32 %v2518, %v2729
        %v2767 = vld [vmem:[%s2] sm:$0x1]
        %v2769 = vperm.slane %v2767, 0
        %v2771 = vmul.f32 %v2731, %v2769
        %v2772 = vmul.f32 %v2732, %v2769
        %v2773 = vmul.f32 %v2733, %v2769
        %v2774 = vmul.f32 %v2734, %v2769
        %v2775 = vmul.f32 %v2735, %v2769
        %v2776 = vmul.f32 %v2736, %v2769
        %v2777 = vmul.f32 %v2737, %v2769
        %v2778 = vmul.f32 %v2738, %v2769
        %v2779 = vmul.f32 %v2739, %v2769
        %v2780 = vmul.f32 %v2740, %v2769
        %v2781 = vmul.f32 %v2741, %v2769
        %v2782 = vmul.f32 %v2742, %v2769
        %v2783 = vmul.f32 %v2743, %v2769
        %v2784 = vmul.f32 %v2744, %v2769
        %v2785 = vmul.f32 %v2745, %v2769
        %v2786 = vmul.f32 %v2746, %v2769
        %v2787 = vmul.f32 %v2747, %v2769
        %v2788 = vmul.f32 %v2748, %v2769
        %v2789 = vmul.f32 %v2749, %v2769
        %v2790 = vmul.f32 %v2750, %v2769
        %v2791 = vmul.f32 %v2751, %v2769
        %v2792 = vmul.f32 %v2752, %v2769
        %v2793 = vmul.f32 %v2753, %v2769
        %v2794 = vmul.f32 %v2754, %v2769
        %v2795 = vmul.f32 %v2755, %v2769
        %v2796 = vmul.f32 %v2756, %v2769
        %v2797 = vmul.f32 %v2757, %v2769
        %v2798 = vmul.f32 %v2758, %v2769
        %v2799 = vmul.f32 %v2759, %v2769
        %v2800 = vmul.f32 %v2760, %v2769
        %v2801 = vmul.f32 %v2761, %v2769
        %v2802 = vmul.f32 %v2762, %v2769
        %v2803 = vmul.f32 %v2763, %v2769
        %v2804 = vmul.f32 %v2764, %v2769
        %v2805 = vmul.f32 %v2765, %v2769
        %v2806 = vmul.f32 %v2766, %v2769
        %v2807 = vld [vmem:[%s3] sm:$0x1]
        %v2809 = vperm.slane %v2807, 0
        %v2811 = vadd.f32 %v2771, %v2809
        %v2812 = vadd.f32 %v2772, %v2809
        %v2813 = vadd.f32 %v2773, %v2809
        %v2814 = vadd.f32 %v2774, %v2809
        %v2815 = vadd.f32 %v2775, %v2809
        %v2816 = vadd.f32 %v2776, %v2809
        %v2817 = vadd.f32 %v2777, %v2809
        %v2818 = vadd.f32 %v2778, %v2809
        %v2819 = vadd.f32 %v2779, %v2809
        %v2820 = vadd.f32 %v2780, %v2809
        %v2821 = vadd.f32 %v2781, %v2809
        %v2822 = vadd.f32 %v2782, %v2809
        %v2823 = vadd.f32 %v2783, %v2809
        %v2824 = vadd.f32 %v2784, %v2809
        %v2825 = vadd.f32 %v2785, %v2809
        %v2826 = vadd.f32 %v2786, %v2809
        %v2827 = vadd.f32 %v2787, %v2809
        %v2828 = vadd.f32 %v2788, %v2809
        %v2829 = vadd.f32 %v2789, %v2809
        %v2830 = vadd.f32 %v2790, %v2809
        %v2831 = vadd.f32 %v2791, %v2809
        %v2832 = vadd.f32 %v2792, %v2809
        %v2833 = vadd.f32 %v2793, %v2809
        %v2834 = vadd.f32 %v2794, %v2809
        %v2835 = vadd.f32 %v2795, %v2809
        %v2836 = vadd.f32 %v2796, %v2809
        %v2837 = vadd.f32 %v2797, %v2809
        %v2838 = vadd.f32 %v2798, %v2809
        %v2839 = vadd.f32 %v2799, %v2809
        %v2840 = vadd.f32 %v2800, %v2809
        %v2841 = vadd.f32 %v2801, %v2809
        %v2842 = vadd.f32 %v2802, %v2809
        %v2843 = vadd.f32 %v2803, %v2809
        %v2844 = vadd.f32 %v2804, %v2809
        %v2845 = vadd.f32 %v2805, %v2809
        %v2846 = vadd.f32 %v2806, %v2809
        %v2847 = vmax.f32 %v2811, 0.0
        %v2848 = vmax.f32 %v2812, 0.0
        %v2849 = vmax.f32 %v2813, 0.0
        %v2850 = vmax.f32 %v2814, 0.0
        %v2851 = vmax.f32 %v2815, 0.0
        %v2852 = vmax.f32 %v2816, 0.0
        %v2853 = vmax.f32 %v2817, 0.0
        %v2854 = vmax.f32 %v2818, 0.0
        %v2855 = vmax.f32 %v2819, 0.0
        %v2856 = vmax.f32 %v2820, 0.0
        %v2857 = vmax.f32 %v2821, 0.0
        %v2858 = vmax.f32 %v2822, 0.0
        %v2859 = vmax.f32 %v2823, 0.0
        %v2860 = vmax.f32 %v2824, 0.0
        %v2861 = vmax.f32 %v2825, 0.0
        %v2862 = vmax.f32 %v2826, 0.0
        %v2863 = vmax.f32 %v2827, 0.0
        %v2864 = vmax.f32 %v2828, 0.0
        %v2865 = vmax.f32 %v2829, 0.0
        %v2866 = vmax.f32 %v2830, 0.0
        %v2867 = vmax.f32 %v2831, 0.0
        %v2868 = vmax.f32 %v2832, 0.0
        %v2869 = vmax.f32 %v2833, 0.0
        %v2870 = vmax.f32 %v2834, 0.0
        %v2871 = vmax.f32 %v2835, 0.0
        %v2872 = vmax.f32 %v2836, 0.0
        %v2873 = vmax.f32 %v2837, 0.0
        %v2874 = vmax.f32 %v2838, 0.0
        %v2875 = vmax.f32 %v2839, 0.0
        %v2876 = vmax.f32 %v2840, 0.0
        %v2877 = vmax.f32 %v2841, 0.0
        %v2878 = vmax.f32 %v2842, 0.0
        %v2879 = vmax.f32 %v2843, 0.0
        %v2880 = vmax.f32 %v2844, 0.0
        %v2881 = vmax.f32 %v2845, 0.0
        %v2882 = vmax.f32 %v2846, 0.0
        %vm2883 = vcmask 523264
        %2884 = vst.msk [vmem:[#allocation5] sm:$0xff] %vm2883, %v2847
        %2885 = vst.msk [vmem:[#allocation5 + $0x8] sm:$0xff] %vm2883, %v2848
        %2886 = vst.msk [vmem:[#allocation5 + $0x10] sm:$0xff] %vm2883, %v2849
        %2887 = vst.msk [vmem:[#allocation5 + $0x18] sm:$0xff] %vm2883, %v2850
        %2888 = vst.msk [vmem:[#allocation5 + $0x20] sm:$0xff] %vm2883, %v2851
        %2889 = vst.msk [vmem:[#allocation5 + $0x28] sm:$0xff] %vm2883, %v2852
        %2890 = vst.msk [vmem:[#allocation5 + $0x30] sm:$0xff] %vm2883, %v2853
        %2891 = vst.msk [vmem:[#allocation5 + $0x38] sm:$0xff] %vm2883, %v2854
        %2892 = vst.msk [vmem:[#allocation5 + $0x40] sm:$0xff] %vm2883, %v2855
        %2893 = vst.msk [vmem:[#allocation5 + $0x48] sm:$0xff] %vm2883, %v2856
        %2894 = vst.msk [vmem:[#allocation5 + $0x50] sm:$0xff] %vm2883, %v2857
        %2895 = vst.msk [vmem:[#allocation5 + $0x58] sm:$0xff] %vm2883, %v2858
        %2896 = vst.msk [vmem:[#allocation5 + $0x60] sm:$0xff] %vm2883, %v2859
        %2897 = vst.msk [vmem:[#allocation5 + $0x68] sm:$0xff] %vm2883, %v2860
        %2898 = vst.msk [vmem:[#allocation5 + $0x70] sm:$0xff] %vm2883, %v2861
        %2899 = vst.msk [vmem:[#allocation5 + $0x78] sm:$0xff] %vm2883, %v2862
        %2900 = vst.msk [vmem:[#allocation5 + $0x80] sm:$0xff] %vm2883, %v2863
        %2901 = vst.msk [vmem:[#allocation5 + $0x88] sm:$0xff] %vm2883, %v2864
        %2902 = vst.msk [vmem:[#allocation5 + $0x90] sm:$0xff] %vm2883, %v2865
        %2903 = vst.msk [vmem:[#allocation5 + $0x98] sm:$0xff] %vm2883, %v2866
        %2904 = vst.msk [vmem:[#allocation5 + $0xa0] sm:$0xff] %vm2883, %v2867
        %2905 = vst.msk [vmem:[#allocation5 + $0xa8] sm:$0xff] %vm2883, %v2868
        %2906 = vst.msk [vmem:[#allocation5 + $0xb0] sm:$0xff] %vm2883, %v2869
        %2907 = vst.msk [vmem:[#allocation5 + $0xb8] sm:$0xff] %vm2883, %v2870
        %2908 = vst.msk [vmem:[#allocation5 + $0xc0] sm:$0xff] %vm2883, %v2871
        %2909 = vst.msk [vmem:[#allocation5 + $0xc8] sm:$0xff] %vm2883, %v2872
        %2910 = vst.msk [vmem:[#allocation5 + $0xd0] sm:$0xff] %vm2883, %v2873
        %2911 = vst.msk [vmem:[#allocation5 + $0xd8] sm:$0xff] %vm2883, %v2874
        %2912 = vst.msk [vmem:[#allocation5 + $0xe0] sm:$0xff] %vm2883, %v2875
        %2913 = vst.msk [vmem:[#allocation5 + $0xe8] sm:$0xff] %vm2883, %v2876
        %2914 = vst.msk [vmem:[#allocation5 + $0xf0] sm:$0xff] %vm2883, %v2877
        %2915 = vst.msk [vmem:[#allocation5 + $0xf8] sm:$0xff] %vm2883, %v2878
        %2916 = vst.msk [vmem:[#allocation5 + $0x100] sm:$0xff] %vm2883, %v2879
        %2917 = vst.msk [vmem:[#allocation5 + $0x108] sm:$0xff] %vm2883, %v2880
        %2918 = vst.msk [vmem:[#allocation5 + $0x110] sm:$0xff] %vm2883, %v2881
        %vm2919 = vcmask 521216
        %2920 = vst.msk [vmem:[#allocation5 + $0x118] sm:$0x3f] %vm2919, %v2882
        %v2921 = vld [vmem:[#allocation5] sm:$0xff]
        %v2922 = vld [vmem:[#allocation5 + $0x8] sm:$0xff]
        %v2923 = vld [vmem:[#allocation5 + $0x10] sm:$0xff]
        %v2924 = vld [vmem:[#allocation5 + $0x18] sm:$0xff]
        %v2925 = vld [vmem:[#allocation5 + $0x20] sm:$0xff]
        %v2926 = vld [vmem:[#allocation5 + $0x28] sm:$0xff]
        %v2927 = vld [vmem:[#allocation5 + $0x30] sm:$0xff]
        %v2928 = vld [vmem:[#allocation5 + $0x38] sm:$0xff]
        %v2929 = vld [vmem:[#allocation5 + $0x40] sm:$0xff]
        %v2930 = vld [vmem:[#allocation5 + $0x48] sm:$0xff]
        %v2931 = vld [vmem:[#allocation5 + $0x50] sm:$0xff]
        %v2932 = vld [vmem:[#allocation5 + $0x58] sm:$0xff]
        %v2933 = vld [vmem:[#allocation5 + $0x60] sm:$0xff]
        %v2934 = vld [vmem:[#allocation5 + $0x68] sm:$0xff]
        %v2935 = vld [vmem:[#allocation5 + $0x70] sm:$0xff]
        %v2936 = vld [vmem:[#allocation5 + $0x78] sm:$0xff]
        %v2937 = vld [vmem:[#allocation5 + $0x80] sm:$0xff]
        %v2938 = vld [vmem:[#allocation5 + $0x88] sm:$0xff]
        %v2939 = vld [vmem:[#allocation5 + $0x90] sm:$0xff]
        %v2940 = vld [vmem:[#allocation5 + $0x98] sm:$0xff]
        %v2941 = vld [vmem:[#allocation5 + $0xa0] sm:$0xff]
        %v2942 = vld [vmem:[#allocation5 + $0xa8] sm:$0xff]
        %v2943 = vld [vmem:[#allocation5 + $0xb0] sm:$0xff]
        %v2944 = vld [vmem:[#allocation5 + $0xb8] sm:$0xff]
        %v2945 = vld [vmem:[#allocation5 + $0xc0] sm:$0xff]
        %v2946 = vld [vmem:[#allocation5 + $0xc8] sm:$0xff]
        %v2947 = vld [vmem:[#allocation5 + $0xd0] sm:$0xff]
        %v2948 = vld [vmem:[#allocation5 + $0xd8] sm:$0xff]
        %v2949 = vld [vmem:[#allocation5 + $0xe0] sm:$0xff]
        %v2950 = vld [vmem:[#allocation5 + $0xe8] sm:$0xff]
        %v2951 = vld [vmem:[#allocation5 + $0xf0] sm:$0xff]
        %v2952 = vld [vmem:[#allocation5 + $0xf8] sm:$0xff]
        %v2953 = vld [vmem:[#allocation5 + $0x100] sm:$0xff]
        %v2954 = vld [vmem:[#allocation5 + $0x108] sm:$0x7]
        %v2955 = vld [vmem:[#allocation5 + $0x1] sm:$0xff]
        %v2956 = vld [vmem:[#allocation5 + $0x9] sm:$0xff]
        %v2957 = vld [vmem:[#allocation5 + $0x11] sm:$0xff]
        %v2958 = vld [vmem:[#allocation5 + $0x19] sm:$0xff]
        %v2959 = vld [vmem:[#allocation5 + $0x21] sm:$0xff]
        %v2960 = vld [vmem:[#allocation5 + $0x29] sm:$0xff]
        %v2961 = vld [vmem:[#allocation5 + $0x31] sm:$0xff]
        %v2962 = vld [vmem:[#allocation5 + $0x39] sm:$0xff]
        %v2963 = vld [vmem:[#allocation5 + $0x41] sm:$0xff]
        %v2964 = vld [vmem:[#allocation5 + $0x49] sm:$0xff]
        %v2965 = vld [vmem:[#allocation5 + $0x51] sm:$0xff]
        %v2966 = vld [vmem:[#allocation5 + $0x59] sm:$0xff]
        %v2967 = vld [vmem:[#allocation5 + $0x61] sm:$0xff]
        %v2968 = vld [vmem:[#allocation5 + $0x69] sm:$0xff]
        %v2969 = vld [vmem:[#allocation5 + $0x71] sm:$0xff]
        %v2970 = vld [vmem:[#allocation5 + $0x79] sm:$0xff]
        %v2971 = vld [vmem:[#allocation5 + $0x81] sm:$0xff]
        %v2972 = vld [vmem:[#allocation5 + $0x89] sm:$0xff]
        %v2973 = vld [vmem:[#allocation5 + $0x91] sm:$0xff]
        %v2974 = vld [vmem:[#allocation5 + $0x99] sm:$0xff]
        %v2975 = vld [vmem:[#allocation5 + $0xa1] sm:$0xff]
        %v2976 = vld [vmem:[#allocation5 + $0xa9] sm:$0xff]
        %v2977 = vld [vmem:[#allocation5 + $0xb1] sm:$0xff]
        %v2978 = vld [vmem:[#allocation5 + $0xb9] sm:$0xff]
        %v2979 = vld [vmem:[#allocation5 + $0xc1] sm:$0xff]
        %v2980 = vld [vmem:[#allocation5 + $0xc9] sm:$0xff]
        %v2981 = vld [vmem:[#allocation5 + $0xd1] sm:$0xff]
        %v2982 = vld [vmem:[#allocation5 + $0xd9] sm:$0xff]
        %v2983 = vld [vmem:[#allocation5 + $0xe1] sm:$0xff]
        %v2984 = vld [vmem:[#allocation5 + $0xe9] sm:$0xff]
        %v2985 = vld [vmem:[#allocation5 + $0xf1] sm:$0xff]
        %v2986 = vld [vmem:[#allocation5 + $0xf9] sm:$0xff]
        %v2987 = vld [vmem:[#allocation5 + $0x101] sm:$0xff]
        %v2988 = vld [vmem:[#allocation5 + $0x109] sm:$0x7]
        %v2989 = vmax.f32 %v2921, %v2955
        %v2990 = vmax.f32 %v2922, %v2956
        %v2991 = vmax.f32 %v2923, %v2957
        %v2992 = vmax.f32 %v2924, %v2958
        %v2993 = vmax.f32 %v2925, %v2959
        %v2994 = vmax.f32 %v2926, %v2960
        %v2995 = vmax.f32 %v2927, %v2961
        %v2996 = vmax.f32 %v2928, %v2962
        %v2997 = vmax.f32 %v2929, %v2963
        %v2998 = vmax.f32 %v2930, %v2964
        %v2999 = vmax.f32 %v2931, %v2965
        %v3000 = vmax.f32 %v2932, %v2966
        %v3001 = vmax.f32 %v2933, %v2967
        %v3002 = vmax.f32 %v2934, %v2968
        %v3003 = vmax.f32 %v2935, %v2969
        %v3004 = vmax.f32 %v2936, %v2970
        %v3005 = vmax.f32 %v2937, %v2971
        %v3006 = vmax.f32 %v2938, %v2972
        %v3007 = vmax.f32 %v2939, %v2973
        %v3008 = vmax.f32 %v2940, %v2974
        %v3009 = vmax.f32 %v2941, %v2975
        %v3010 = vmax.f32 %v2942, %v2976
        %v3011 = vmax.f32 %v2943, %v2977
        %v3012 = vmax.f32 %v2944, %v2978
        %v3013 = vmax.f32 %v2945, %v2979
        %v3014 = vmax.f32 %v2946, %v2980
        %v3015 = vmax.f32 %v2947, %v2981
        %v3016 = vmax.f32 %v2948, %v2982
        %v3017 = vmax.f32 %v2949, %v2983
        %v3018 = vmax.f32 %v2950, %v2984
        %v3019 = vmax.f32 %v2951, %v2985
        %v3020 = vmax.f32 %v2952, %v2986
        %v3021 = vmax.f32 %v2953, %v2987
        %v3022 = vmax.f32 %v2954, %v2988
        %v3023 = vld [vmem:[#allocation5 + $0x12] sm:$0xff]
        %v3024 = vld [vmem:[#allocation5 + $0x1a] sm:$0xff]
        %v3025 = vld [vmem:[#allocation5 + $0x22] sm:$0xff]
        %v3026 = vld [vmem:[#allocation5 + $0x2a] sm:$0xff]
        %v3027 = vld [vmem:[#allocation5 + $0x32] sm:$0xff]
        %v3028 = vld [vmem:[#allocation5 + $0x3a] sm:$0xff]
        %v3029 = vld [vmem:[#allocation5 + $0x42] sm:$0xff]
        %v3030 = vld [vmem:[#allocation5 + $0x4a] sm:$0xff]
        %v3031 = vld [vmem:[#allocation5 + $0x52] sm:$0xff]
        %v3032 = vld [vmem:[#allocation5 + $0x5a] sm:$0xff]
        %v3033 = vld [vmem:[#allocation5 + $0x62] sm:$0xff]
        %v3034 = vld [vmem:[#allocation5 + $0x6a] sm:$0xff]
        %v3035 = vld [vmem:[#allocation5 + $0x72] sm:$0xff]
        %v3036 = vld [vmem:[#allocation5 + $0x7a] sm:$0xff]
        %v3037 = vld [vmem:[#allocation5 + $0x82] sm:$0xff]
        %v3038 = vld [vmem:[#allocation5 + $0x8a] sm:$0xff]
        %v3039 = vld [vmem:[#allocation5 + $0x92] sm:$0xff]
        %v3040 = vld [vmem:[#allocation5 + $0x9a] sm:$0xff]
        %v3041 = vld [vmem:[#allocation5 + $0xa2] sm:$0xff]
        %v3042 = vld [vmem:[#allocation5 + $0xaa] sm:$0xff]
        %v3043 = vld [vmem:[#allocation5 + $0xb2] sm:$0xff]
        %v3044 = vld [vmem:[#allocation5 + $0xba] sm:$0xff]
        %v3045 = vld [vmem:[#allocation5 + $0xc2] sm:$0xff]
        %v3046 = vld [vmem:[#allocation5 + $0xca] sm:$0xff]
        %v3047 = vld [vmem:[#allocation5 + $0xd2] sm:$0xff]
        %v3048 = vld [vmem:[#allocation5 + $0xda] sm:$0xff]
        %v3049 = vld [vmem:[#allocation5 + $0xe2] sm:$0xff]
        %v3050 = vld [vmem:[#allocation5 + $0xea] sm:$0xff]
        %v3051 = vld [vmem:[#allocation5 + $0xf2] sm:$0xff]
        %v3052 = vld [vmem:[#allocation5 + $0xfa] sm:$0xff]
        %v3053 = vld [vmem:[#allocation5 + $0x102] sm:$0xff]
        %v3054 = vld [vmem:[#allocation5 + $0x10a] sm:$0xff]
        %v3055 = vld [vmem:[#allocation5 + $0x112] sm:$0xff]
        %v3056 = vld [vmem:[#allocation5 + $0x11a] sm:$0x7]
        %v3057 = vld [vmem:[#allocation5 + $0x13] sm:$0xff]
        %v3058 = vld [vmem:[#allocation5 + $0x1b] sm:$0xff]
        %v3059 = vld [vmem:[#allocation5 + $0x23] sm:$0xff]
        %v3060 = vld [vmem:[#allocation5 + $0x2b] sm:$0xff]
        %v3061 = vld [vmem:[#allocation5 + $0x33] sm:$0xff]
        %v3062 = vld [vmem:[#allocation5 + $0x3b] sm:$0xff]
        %v3063 = vld [vmem:[#allocation5 + $0x43] sm:$0xff]
        %v3064 = vld [vmem:[#allocation5 + $0x4b] sm:$0xff]
        %v3065 = vld [vmem:[#allocation5 + $0x53] sm:$0xff]
        %v3066 = vld [vmem:[#allocation5 + $0x5b] sm:$0xff]
        %v3067 = vld [vmem:[#allocation5 + $0x63] sm:$0xff]
        %v3068 = vld [vmem:[#allocation5 + $0x6b] sm:$0xff]
        %v3069 = vld [vmem:[#allocation5 + $0x73] sm:$0xff]
        %v3070 = vld [vmem:[#allocation5 + $0x7b] sm:$0xff]
        %v3071 = vld [vmem:[#allocation5 + $0x83] sm:$0xff]
        %v3072 = vld [vmem:[#allocation5 + $0x8b] sm:$0xff]
        %v3073 = vld [vmem:[#allocation5 + $0x93] sm:$0xff]
        %v3074 = vld [vmem:[#allocation5 + $0x9b] sm:$0xff]
        %v3075 = vld [vmem:[#allocation5 + $0xa3] sm:$0xff]
        %v3076 = vld [vmem:[#allocation5 + $0xab] sm:$0xff]
        %v3077 = vld [vmem:[#allocation5 + $0xb3] sm:$0xff]
        %v3078 = vld [vmem:[#allocation5 + $0xbb] sm:$0xff]
        %v3079 = vld [vmem:[#allocation5 + $0xc3] sm:$0xff]
        %v3080 = vld [vmem:[#allocation5 + $0xcb] sm:$0xff]
        %v3081 = vld [vmem:[#allocation5 + $0xd3] sm:$0xff]
        %v3082 = vld [vmem:[#allocation5 + $0xdb] sm:$0xff]
        %v3083 = vld [vmem:[#allocation5 + $0xe3] sm:$0xff]
        %v3084 = vld [vmem:[#allocation5 + $0xeb] sm:$0xff]
        %v3085 = vld [vmem:[#allocation5 + $0xf3] sm:$0xff]
        %v3086 = vld [vmem:[#allocation5 + $0xfb] sm:$0xff]
        %v3087 = vld [vmem:[#allocation5 + $0x103] sm:$0xff]
        %v3088 = vld [vmem:[#allocation5 + $0x10b] sm:$0xff]
        %v3089 = vld [vmem:[#allocation5 + $0x113] sm:$0xff]
        %v3090 = vld [vmem:[#allocation5 + $0x11b] sm:$0x7]
        %v3091 = vmax.f32 %v3023, %v3057
        %v3092 = vmax.f32 %v3024, %v3058
        %v3093 = vmax.f32 %v3025, %v3059
        %v3094 = vmax.f32 %v3026, %v3060
        %v3095 = vmax.f32 %v3027, %v3061
        %v3096 = vmax.f32 %v3028, %v3062
        %v3097 = vmax.f32 %v3029, %v3063
        %v3098 = vmax.f32 %v3030, %v3064
        %v3099 = vmax.f32 %v3031, %v3065
        %v3100 = vmax.f32 %v3032, %v3066
        %v3101 = vmax.f32 %v3033, %v3067
        %v3102 = vmax.f32 %v3034, %v3068
        %v3103 = vmax.f32 %v3035, %v3069
        %v3104 = vmax.f32 %v3036, %v3070
        %v3105 = vmax.f32 %v3037, %v3071
        %v3106 = vmax.f32 %v3038, %v3072
        %v3107 = vmax.f32 %v3039, %v3073
        %v3108 = vmax.f32 %v3040, %v3074
        %v3109 = vmax.f32 %v3041, %v3075
        %v3110 = vmax.f32 %v3042, %v3076
        %v3111 = vmax.f32 %v3043, %v3077
        %v3112 = vmax.f32 %v3044, %v3078
        %v3113 = vmax.f32 %v3045, %v3079
        %v3114 = vmax.f32 %v3046, %v3080
        %v3115 = vmax.f32 %v3047, %v3081
        %v3116 = vmax.f32 %v3048, %v3082
        %v3117 = vmax.f32 %v3049, %v3083
        %v3118 = vmax.f32 %v3050, %v3084
        %v3119 = vmax.f32 %v3051, %v3085
        %v3120 = vmax.f32 %v3052, %v3086
        %v3121 = vmax.f32 %v3053, %v3087
        %v3122 = vmax.f32 %v3054, %v3088
        %v3123 = vmax.f32 %v3055, %v3089
        %v3124 = vmax.f32 %v3056, %v3090
        %v3125 = vmax.f32 %v2989, %v3091
        %v3126 = vmax.f32 %v2990, %v3092
        %v3127 = vmax.f32 %v2991, %v3093
        %v3128 = vmax.f32 %v2992, %v3094
        %v3129 = vmax.f32 %v2993, %v3095
        %v3130 = vmax.f32 %v2994, %v3096
        %v3131 = vmax.f32 %v2995, %v3097
        %v3132 = vmax.f32 %v2996, %v3098
        %v3133 = vmax.f32 %v2997, %v3099
        %v3134 = vmax.f32 %v2998, %v3100
        %v3135 = vmax.f32 %v2999, %v3101
        %v3136 = vmax.f32 %v3000, %v3102
        %v3137 = vmax.f32 %v3001, %v3103
        %v3138 = vmax.f32 %v3002, %v3104
        %v3139 = vmax.f32 %v3003, %v3105
        %v3140 = vmax.f32 %v3004, %v3106
        %v3141 = vmax.f32 %v3005, %v3107
        %v3142 = vmax.f32 %v3006, %v3108
        %v3143 = vmax.f32 %v3007, %v3109
        %v3144 = vmax.f32 %v3008, %v3110
        %v3145 = vmax.f32 %v3009, %v3111
        %v3146 = vmax.f32 %v3010, %v3112
        %v3147 = vmax.f32 %v3011, %v3113
        %v3148 = vmax.f32 %v3012, %v3114
        %v3149 = vmax.f32 %v3013, %v3115
        %v3150 = vmax.f32 %v3014, %v3116
        %v3151 = vmax.f32 %v3015, %v3117
        %v3152 = vmax.f32 %v3016, %v3118
        %v3153 = vmax.f32 %v3017, %v3119
        %v3154 = vmax.f32 %v3018, %v3120
        %v3155 = vmax.f32 %v3019, %v3121
        %v3156 = vmax.f32 %v3020, %v3122
        %v3157 = vmax.f32 %v3021, %v3123
        %v3158 = vmax.f32 %v3022, %v3124
        %v3159 = vld [vmem:[%s4] sm:$0xff]
        %v3160 = vld [vmem:[%s4 + $0x8] sm:$0xf]
        %v3161 = vld [vmem:[%s4 + $0xc] sm:$0xff]
        %v3162 = vld [vmem:[%s4 + $0x14] sm:$0xf]
        %v3163 = vld [vmem:[%s4 + $0x18] sm:$0xff]
        %v3164 = vld [vmem:[%s4 + $0x20] sm:$0xf]
        %v3165 = vld [vmem:[%s4 + $0x24] sm:$0xff]
        %v3166 = vld [vmem:[%s4 + $0x2c] sm:$0xf]
        %v3167 = vld [vmem:[%s4 + $0x30] sm:$0xff]
        %v3168 = vld [vmem:[%s4 + $0x38] sm:$0xf]
        %v3169 = vld [vmem:[%s4 + $0x3c] sm:$0xff]
        %v3170 = vld [vmem:[%s4 + $0x44] sm:$0xf]
        %v3171 = vld [vmem:[%s4 + $0x48] sm:$0xff]
        %v3172 = vld [vmem:[%s4 + $0x50] sm:$0xf]
        %v3173 = vld [vmem:[%s4 + $0x54] sm:$0xff]
        %v3174 = vld [vmem:[%s4 + $0x5c] sm:$0xf]
        %v3175 = vld [vmem:[%s4 + $0x60] sm:$0xff]
        %v3176 = vld [vmem:[%s4 + $0x68] sm:$0xf]
        %v3177 = vld [vmem:[%s4 + $0x6c] sm:$0xff]
        %v3178 = vld [vmem:[%s4 + $0x74] sm:$0xf]
        %v3179 = vld [vmem:[%s4 + $0x78] sm:$0xff]
        %v3180 = vld [vmem:[%s4 + $0x80] sm:$0xf]
        %v3181 = vld [vmem:[%s4 + $0x84] sm:$0xff]
        %v3182 = vld [vmem:[%s4 + $0x8c] sm:$0xf]
        %v3183 = vld [vmem:[%s4 + $0x90] sm:$0x33]
        %v3184 = vld [vmem:[%s4 + $0x98] sm:$0x3]
        %v3185 = vpack.c.bf16 %v3126, %v3125
        %v3186 = vpack.c.bf16 %v3128, %v3127
        %v3187 = vpack.c.bf16 %v3130, %v3129
        %v3188 = vpack.c.bf16 %v3132, %v3131
        %v3189 = vpack.c.bf16 %v3134, %v3133
        %v3190 = vpack.c.bf16 %v3136, %v3135
        %v3191 = vpack.c.bf16 %v3138, %v3137
        %v3192 = vpack.c.bf16 %v3140, %v3139
        %v3193 = vpack.c.bf16 %v3142, %v3141
        %v3194 = vpack.c.bf16 %v3144, %v3143
        %v3195 = vpack.c.bf16 %v3146, %v3145
        %v3196 = vpack.c.bf16 %v3148, %v3147
        %v3197 = vpack.c.bf16 %v3150, %v3149
        %v3198 = vpack.c.bf16 %v3152, %v3151
        %v3199 = vpack.c.bf16 %v3154, %v3153
        %v3200 = vpack.c.bf16 %v3156, %v3155
        %v3201 = vpack.c.bf16 %v3158, %v3157
        %v3228 = vunpack.c.l.b16 %v3159
        %v3229 = vunpack.c.h.b16 %v3159
        %v3230 = vunpack.c.l.b16 %v3160
        %v3231 = vunpack.c.l.b16 %v3161
        %v3232 = vunpack.c.h.b16 %v3161
        %v3233 = vunpack.c.l.b16 %v3162
        %v3234 = vunpack.c.l.b16 %v3163
        %v3235 = vunpack.c.h.b16 %v3163
        %v3236 = vunpack.c.l.b16 %v3164
        %v3237 = vunpack.c.l.b16 %v3165
        %v3238 = vunpack.c.h.b16 %v3165
        %v3239 = vunpack.c.l.b16 %v3166
        %v3240 = vunpack.c.l.b16 %v3167
        %v3241 = vunpack.c.h.b16 %v3167
        %v3242 = vunpack.c.l.b16 %v3168
        %v3243 = vunpack.c.l.b16 %v3169
        %v3244 = vunpack.c.h.b16 %v3169
        %v3245 = vunpack.c.l.b16 %v3170
        %v3246 = vunpack.c.l.b16 %v3171
        %v3247 = vunpack.c.h.b16 %v3171
        %v3248 = vunpack.c.l.b16 %v3172
        %v3249 = vunpack.c.l.b16 %v3173
        %v3250 = vunpack.c.h.b16 %v3173
        %v3251 = vunpack.c.l.b16 %v3174
        %v3252 = vunpack.c.l.b16 %v3175
        %v3253 = vunpack.c.h.b16 %v3175
        %v3254 = vunpack.c.l.b16 %v3176
        %v3255 = vunpack.c.l.b16 %v3177
        %v3256 = vunpack.c.h.b16 %v3177
        %v3257 = vunpack.c.l.b16 %v3178
        %v3258 = vunpack.c.l.b16 %v3179
        %v3259 = vunpack.c.h.b16 %v3179
        %v3260 = vunpack.c.l.b16 %v3180
        %v3261 = vunpack.c.l.b16 %v3181
        %v3262 = vunpack.c.h.b16 %v3181
        %v3263 = vunpack.c.l.b16 %v3182
        %v3264 = vunpack.c.l.b16 %v3183
        %v3265 = vunpack.c.h.b16 %v3183
        %v3266 = vunpack.c.l.b16 %v3184
        %v3267 = vpack.c.b16 %v3231, %v3228
        %v3268 = vpack.c.b16 %v3232, %v3229
        %v3269 = vpack.c.b16 %v3233, %v3230
        %v3270 = vpack.c.b16 %v3237, %v3234
        %v3271 = vpack.c.b16 %v3238, %v3235
        %v3272 = vpack.c.b16 %v3239, %v3236
        %v3273 = vpack.c.b16 %v3243, %v3240
        %v3274 = vpack.c.b16 %v3244, %v3241
        %v3275 = vpack.c.b16 %v3245, %v3242
        %v3276 = vpack.c.b16 %v3249, %v3246
        %v3277 = vpack.c.b16 %v3250, %v3247
        %v3278 = vpack.c.b16 %v3251, %v3248
        %v3279 = vpack.c.b16 %v3255, %v3252
        %v3280 = vpack.c.b16 %v3256, %v3253
        %v3281 = vpack.c.b16 %v3257, %v3254
        %v3282 = vpack.c.b16 %v3261, %v3258
        %v3283 = vpack.c.b16 %v3262, %v3259
        %v3284 = vpack.c.b16 %v3263, %v3260
        %v3285 = vpack.c.b16 %v3264, %v3264
        %v3286 = vpack.c.b16 %v3265, %v3265
        %v3287 = vpack.c.b16 %v3266, %v3266
        %vm3302 = vcmask 89088
        %v3304 = vsel %vm3302, %v3269, 0
        %v3307 = vsel %vm3302, %v3272, 0
        %v3310 = vsel %vm3302, %v3275, 0
        %v3313 = vsel %vm3302, %v3278, 0
        %v3316 = vsel %vm3302, %v3281, 0
        %v3319 = vsel %vm3302, %v3284, 0
        %v3322 = vsel %vm3302, %v3287, 0
        %vm3324 = vcmask 1044480
        %vm3325 = vcmask 1045504
        %v3326 = vsel %vm3324, 4294967295, 65535
        %v3327 = vsel %vm3325, %v3326, 0
        %v3329 = vand.u32 %v3201, %v3327
        %3331 = vmatpush.bf16.msra.mxu0 %v3192
        %3332 = vmatpush.bf16.msra.mxu0 %v3191
        %3333 = vmatpush.bf16.msra.mxu0 %v3190
        %3334 = vmatpush.bf16.msra.mxu0 %v3189
        %3335 = vmatpush.bf16.msra.mxu0 %v3188
        %3336 = vmatpush.bf16.msra.mxu0 %v3187
        %3337 = vmatpush.bf16.msra.mxu0 %v3186
        %3338 = vmatpush.bf16.msra.mxu0 %v3185
        %3339 = vmatmul.bf16.gmra.mxu0 %v3267
        %v3340 = vpop.f32.mrf.mxu0
        %v3341 = vadd.f32 0.0, %v3340
        %v3342 = vpop.f32.mrf.mxu0
        %v3343 = vadd.f32 0.0, %v3342
        %3344 = vmatmul.bf16.gmra.mxu0 %v3270
        %v3345 = vpop.f32.mrf.mxu0
        %v3346 = vadd.f32 0.0, %v3345
        %v3347 = vpop.f32.mrf.mxu0
        %v3348 = vadd.f32 0.0, %v3347
        %3349 = vmatmul.bf16.gmra.mxu0 %v3273
        %v3350 = vpop.f32.mrf.mxu0
        %v3351 = vadd.f32 0.0, %v3350
        %v3352 = vpop.f32.mrf.mxu0
        %v3353 = vadd.f32 0.0, %v3352
        %3354 = vmatmul.bf16.gmra.mxu0 %v3276
        %v3355 = vpop.f32.mrf.mxu0
        %v3356 = vadd.f32 0.0, %v3355
        %v3357 = vpop.f32.mrf.mxu0
        %v3358 = vadd.f32 0.0, %v3357
        %3359 = vmatmul.bf16.gmra.mxu0 %v3279
        %v3360 = vpop.f32.mrf.mxu0
        %v3361 = vadd.f32 0.0, %v3360
        %v3362 = vpop.f32.mrf.mxu0
        %v3363 = vadd.f32 0.0, %v3362
        %3364 = vmatmul.bf16.gmra.mxu0 %v3282
        %v3365 = vpop.f32.mrf.mxu0
        %v3366 = vadd.f32 0.0, %v3365
        %v3367 = vpop.f32.mrf.mxu0
        %v3368 = vadd.f32 0.0, %v3367
        %3369 = vmatmul.bf16.gmra.mxu0 %v3285
        %v3370 = vpop.f32.mrf.mxu0
        %v3371 = vadd.f32 0.0, %v3370
        %v3372 = vpop.f32.mrf.mxu0
        %3373 = vdwg.mxu0
        %3374 = vmatpush.bf16.msra.mxu0 %v3200
        %3375 = vmatpush.bf16.msra.mxu0 %v3199
        %3376 = vmatpush.bf16.msra.mxu0 %v3198
        %3377 = vmatpush.bf16.msra.mxu0 %v3197
        %3378 = vmatpush.bf16.msra.mxu0 %v3196
        %3379 = vmatpush.bf16.msra.mxu0 %v3195
        %3380 = vmatpush.bf16.msra.mxu0 %v3194
        %3381 = vmatpush.bf16.msra.mxu0 %v3193
        %3382 = vmatmul.bf16.gmra.mxu0 %v3268
        %v3383 = vpop.f32.mrf.mxu0
        %v3384 = vadd.f32 %v3341, %v3383
        %v3385 = vpop.f32.mrf.mxu0
        %v3386 = vadd.f32 %v3343, %v3385
        %3387 = vmatmul.bf16.gmra.mxu0 %v3271
        %v3388 = vpop.f32.mrf.mxu0
        %v3389 = vadd.f32 %v3346, %v3388
        %v3390 = vpop.f32.mrf.mxu0
        %v3391 = vadd.f32 %v3348, %v3390
        %3392 = vmatmul.bf16.gmra.mxu0 %v3274
        %v3393 = vpop.f32.mrf.mxu0
        %v3394 = vadd.f32 %v3351, %v3393
        %v3395 = vpop.f32.mrf.mxu0
        %v3396 = vadd.f32 %v3353, %v3395
        %3397 = vmatmul.bf16.gmra.mxu0 %v3277
        %v3398 = vpop.f32.mrf.mxu0
        %v3399 = vadd.f32 %v3356, %v3398
        %v3400 = vpop.f32.mrf.mxu0
        %v3401 = vadd.f32 %v3358, %v3400
        %3402 = vmatmul.bf16.gmra.mxu0 %v3280
        %v3403 = vpop.f32.mrf.mxu0
        %v3404 = vadd.f32 %v3361, %v3403
        %v3405 = vpop.f32.mrf.mxu0
        %v3406 = vadd.f32 %v3363, %v3405
        %3407 = vmatmul.bf16.gmra.mxu0 %v3283
        %v3408 = vpop.f32.mrf.mxu0
        %v3409 = vadd.f32 %v3366, %v3408
        %v3410 = vpop.f32.mrf.mxu0
        %v3411 = vadd.f32 %v3368, %v3410
        %3412 = vmatmul.bf16.gmra.mxu0 %v3286
        %v3413 = vpop.f32.mrf.mxu0
        %v3414 = vadd.f32 %v3371, %v3413
        %v3415 = vpop.f32.mrf.mxu0
        %3416 = vdwg.mxu0
        %3417 = vmatpush.bf16.msra.mxu0 0
        %3418 = vmatpush.bf16.msra.mxu0 0
        %3419 = vmatpush.bf16.msra.mxu0 0
        %3420 = vmatpush.bf16.msra.mxu0 0
        %3421 = vmatpush.bf16.msra.mxu0 0
        %3422 = vmatpush.bf16.msra.mxu0 0
        %3423 = vmatpush.bf16.msra.mxu0 0
        %3424 = vmatpush.bf16.msra.mxu0 %v3329
        %3425 = vmatmul.bf16.gmra.mxu0 %v3304
        %v3426 = vpop.f32.mrf.mxu0
        %v3427 = vadd.f32 %v3384, %v3426
        %v3428 = vpop.f32.mrf.mxu0
        %v3429 = vadd.f32 %v3386, %v3428
        %3430 = vmatmul.bf16.gmra.mxu0 %v3307
        %v3431 = vpop.f32.mrf.mxu0
        %v3432 = vadd.f32 %v3389, %v3431
        %v3433 = vpop.f32.mrf.mxu0
        %v3434 = vadd.f32 %v3391, %v3433
        %3435 = vmatmul.bf16.gmra.mxu0 %v3310
        %v3436 = vpop.f32.mrf.mxu0
        %v3437 = vadd.f32 %v3394, %v3436
        %v3438 = vpop.f32.mrf.mxu0
        %v3439 = vadd.f32 %v3396, %v3438
        %3440 = vmatmul.bf16.gmra.mxu0 %v3313
        %v3441 = vpop.f32.mrf.mxu0
        %v3442 = vadd.f32 %v3399, %v3441
        %v3443 = vpop.f32.mrf.mxu0
        %v3444 = vadd.f32 %v3401, %v3443
        %3445 = vmatmul.bf16.gmra.mxu0 %v3316
        %v3446 = vpop.f32.mrf.mxu0
        %v3447 = vadd.f32 %v3404, %v3446
        %v3448 = vpop.f32.mrf.mxu0
        %v3449 = vadd.f32 %v3406, %v3448
        %3450 = vmatmul.bf16.gmra.mxu0 %v3319
        %v3451 = vpop.f32.mrf.mxu0
        %v3452 = vadd.f32 %v3409, %v3451
        %v3453 = vpop.f32.mrf.mxu0
        %v3454 = vadd.f32 %v3411, %v3453
        %3455 = vmatmul.bf16.gmra.mxu0 %v3322
        %v3456 = vpop.f32.mrf.mxu0
        %v3457 = vadd.f32 %v3414, %v3456
        %v3458 = vpop.f32.mrf.mxu0
        %3459 = vdwg.mxu0
        %3460 = vst.msk [vmem:[#allocation2] sm:$0xff] %vm2883, %v3427
        %3461 = vst.msk [vmem:[#allocation2 + $0x8] sm:$0xff] %vm2883, %v3429
        %3462 = vst.msk [vmem:[#allocation2 + $0x10] sm:$0xff] %vm2883, %v3432
        %3463 = vst.msk [vmem:[#allocation2 + $0x18] sm:$0xff] %vm2883, %v3434
        %3464 = vst.msk [vmem:[#allocation2 + $0x20] sm:$0xff] %vm2883, %v3437
        %3465 = vst.msk [vmem:[#allocation2 + $0x28] sm:$0xff] %vm2883, %v3439
        %3466 = vst.msk [vmem:[#allocation2 + $0x30] sm:$0xff] %vm2883, %v3442
        %3467 = vst.msk [vmem:[#allocation2 + $0x38] sm:$0xff] %vm2883, %v3444
        %3468 = vst.msk [vmem:[#allocation2 + $0x40] sm:$0xff] %vm2883, %v3447
        %3469 = vst.msk [vmem:[#allocation2 + $0x48] sm:$0xff] %vm2883, %v3449
        %3470 = vst.msk [vmem:[#allocation2 + $0x50] sm:$0xff] %vm2883, %v3452
        %3471 = vst.msk [vmem:[#allocation2 + $0x58] sm:$0xff] %vm2883, %v3454
        %vm3472 = vcmask 519168
        %3473 = vst.msk [vmem:[#allocation2 + $0x60] sm:$0xf] %vm3472, %v3457
        %v3474 = vld [vmem:[#allocation2] sm:$0xff]
        %v3475 = vld [vmem:[#allocation2 + $0x8] sm:$0xff]
        %v3476 = vld [vmem:[#allocation2 + $0x10] sm:$0xff]
        %v3477 = vld [vmem:[#allocation2 + $0x18] sm:$0xff]
        %v3478 = vld [vmem:[#allocation2 + $0x20] sm:$0xff]
        %v3479 = vld [vmem:[#allocation2 + $0x28] sm:$0xff]
        %v3480 = vld [vmem:[#allocation2 + $0x30] sm:$0xff]
        %v3481 = vld [vmem:[#allocation2 + $0x38] sm:$0xff]
        %v3482 = vld [vmem:[#allocation2 + $0x40] sm:$0xff]
        %v3483 = vld [vmem:[#allocation2 + $0x48] sm:$0x3f]
        %v3484 = vpack.c.bf16 %v3475, %v3474
        %v3485 = vpack.c.bf16 %v3477, %v3476
        %v3486 = vpack.c.bf16 %v3479, %v3478
        %v3487 = vpack.c.bf16 %v3481, %v3480
        %v3488 = vpack.c.bf16 %v3483, %v3482
        %v3489 = vld [vmem:[%s5] sm:$0xf]
        %v3490 = vld [vmem:[%s5 + $0x4] sm:$0xf]
        %v3491 = vld [vmem:[%s5 + $0x8] sm:$0xf]
        %v3492 = vld [vmem:[%s5 + $0xc] sm:$0xf]
        %v3493 = vld [vmem:[%s5 + $0x10] sm:$0xf]
        %v3494 = vld [vmem:[%s5 + $0x14] sm:$0xf]
        %v3495 = vld [vmem:[%s5 + $0x18] sm:$0xf]
        %v3496 = vld [vmem:[%s5 + $0x1c] sm:$0xf]
        %v3497 = vld [vmem:[#allocation2 + $0x1] sm:$0xff]
        %v3498 = vld [vmem:[#allocation2 + $0x9] sm:$0xff]
        %v3499 = vld [vmem:[#allocation2 + $0x11] sm:$0xff]
        %v3500 = vld [vmem:[#allocation2 + $0x19] sm:$0xff]
        %v3501 = vld [vmem:[#allocation2 + $0x21] sm:$0xff]
        %v3502 = vld [vmem:[#allocation2 + $0x29] sm:$0xff]
        %v3503 = vld [vmem:[#allocation2 + $0x31] sm:$0xff]
        %v3504 = vld [vmem:[#allocation2 + $0x39] sm:$0xff]
        %v3505 = vld [vmem:[#allocation2 + $0x41] sm:$0xff]
        %v3506 = vld [vmem:[#allocation2 + $0x49] sm:$0x3f]
        %v3507 = vpack.c.bf16 %v3498, %v3497
        %v3508 = vpack.c.bf16 %v3500, %v3499
        %v3509 = vpack.c.bf16 %v3502, %v3501
        %v3510 = vpack.c.bf16 %v3504, %v3503
        %v3511 = vpack.c.bf16 %v3506, %v3505
        %s3512 = scalar_lea.vmem %s5, 32
        %v3513 = vld [vmem:[%s3512] sm:$0xf]
        %v3514 = vld [vmem:[%s3512 + $0x4] sm:$0xf]
        %v3515 = vld [vmem:[%s3512 + $0x8] sm:$0xf]
        %v3516 = vld [vmem:[%s3512 + $0xc] sm:$0xf]
        %v3517 = vld [vmem:[%s3512 + $0x10] sm:$0xf]
        %v3518 = vld [vmem:[%s3512 + $0x14] sm:$0xf]
        %v3519 = vld [vmem:[%s3512 + $0x18] sm:$0xf]
        %v3520 = vld [vmem:[%s3512 + $0x1c] sm:$0xf]
        %v3529 = vunpack.c.l.b16 %v3513
        %v3530 = vunpack.c.l.b16 %v3514
        %v3531 = vunpack.c.l.b16 %v3515
        %v3532 = vunpack.c.l.b16 %v3516
        %v3533 = vunpack.c.l.b16 %v3517
        %v3534 = vunpack.c.l.b16 %v3518
        %v3535 = vunpack.c.l.b16 %v3519
        %v3536 = vunpack.c.l.b16 %v3520
        %v3537 = vpack.c.b16 %v3530, %v3529
        %v3538 = vpack.c.b16 %v3532, %v3531
        %v3539 = vpack.c.b16 %v3534, %v3533
        %v3540 = vpack.c.b16 %v3536, %v3535
        %v3546 = vsel %vm2883, %v3507, 0
        %v3549 = vsel %vm2883, %v3508, 0
        %v3552 = vsel %vm2883, %v3509, 0
        %v3555 = vsel %vm2883, %v3510, 0
        %v3558 = vsel %vm2883, %v3511, 0
        %3560 = vmatpush.bf16.msra.mxu0 0
        %3561 = vmatpush.bf16.msra.mxu0 0
        %3562 = vmatpush.bf16.msra.mxu0 0
        %3563 = vmatpush.bf16.msra.mxu0 0
        %3564 = vmatpush.bf16.msra.mxu0 %v3540
        %3565 = vmatpush.bf16.msra.mxu0 %v3539
        %3566 = vmatpush.bf16.msra.mxu0 %v3538
        %3567 = vmatpush.bf16.msra.mxu0 %v3537
        %3568 = vmatmul.bf16.gmra.mxu0 %v3546
        %v3569 = vpop.f32.mrf.mxu0
        %v3570 = vadd.f32 0.0, %v3569
        %v3571 = vpop.f32.mrf.mxu0
        %v3572 = vadd.f32 0.0, %v3571
        %3573 = vmatmul.bf16.gmra.mxu0 %v3549
        %v3574 = vpop.f32.mrf.mxu0
        %v3575 = vadd.f32 0.0, %v3574
        %v3576 = vpop.f32.mrf.mxu0
        %v3577 = vadd.f32 0.0, %v3576
        %3578 = vmatmul.bf16.gmra.mxu0 %v3552
        %v3579 = vpop.f32.mrf.mxu0
        %v3580 = vadd.f32 0.0, %v3579
        %v3581 = vpop.f32.mrf.mxu0
        %v3582 = vadd.f32 0.0, %v3581
        %3583 = vmatmul.bf16.gmra.mxu0 %v3555
        %v3584 = vpop.f32.mrf.mxu0
        %v3585 = vadd.f32 0.0, %v3584
        %v3586 = vpop.f32.mrf.mxu0
        %v3587 = vadd.f32 0.0, %v3586
        %3588 = vmatmul.bf16.gmra.mxu0 %v3558
        %v3589 = vpop.f32.mrf.mxu0
        %v3590 = vadd.f32 0.0, %v3589
        %v3591 = vpop.f32.mrf.mxu0
        %v3592 = vadd.f32 0.0, %v3591
        %3593 = vdwg.mxu0
        %v3602 = vunpack.c.l.b16 %v3489
        %v3603 = vunpack.c.l.b16 %v3490
        %v3604 = vunpack.c.l.b16 %v3491
        %v3605 = vunpack.c.l.b16 %v3492
        %v3606 = vunpack.c.l.b16 %v3493
        %v3607 = vunpack.c.l.b16 %v3494
        %v3608 = vunpack.c.l.b16 %v3495
        %v3609 = vunpack.c.l.b16 %v3496
        %v3610 = vpack.c.b16 %v3603, %v3602
        %v3611 = vpack.c.b16 %v3605, %v3604
        %v3612 = vpack.c.b16 %v3607, %v3606
        %v3613 = vpack.c.b16 %v3609, %v3608
        %v3619 = vsel %vm2883, %v3484, 0
        %v3622 = vsel %vm2883, %v3485, 0
        %v3625 = vsel %vm2883, %v3486, 0
        %v3628 = vsel %vm2883, %v3487, 0
        %v3631 = vsel %vm2883, %v3488, 0
        %3633 = vmatpush.bf16.msra.mxu0 0
        %3634 = vmatpush.bf16.msra.mxu0 0
        %3635 = vmatpush.bf16.msra.mxu0 0
        %3636 = vmatpush.bf16.msra.mxu0 0
        %3637 = vmatpush.bf16.msra.mxu0 %v3613
        %3638 = vmatpush.bf16.msra.mxu0 %v3612
        %3639 = vmatpush.bf16.msra.mxu0 %v3611
        %3640 = vmatpush.bf16.msra.mxu0 %v3610
        %3641 = vmatmul.bf16.gmra.mxu0 %v3619
        %v3642 = vpop.f32.mrf.mxu0
        %v3643 = vadd.f32 %v3570, %v3642
        %v3644 = vpop.f32.mrf.mxu0
        %v3645 = vadd.f32 %v3572, %v3644
        %3646 = vmatmul.bf16.gmra.mxu0 %v3622
        %v3647 = vpop.f32.mrf.mxu0
        %v3648 = vadd.f32 %v3575, %v3647
        %v3649 = vpop.f32.mrf.mxu0
        %v3650 = vadd.f32 %v3577, %v3649
        %3651 = vmatmul.bf16.gmra.mxu0 %v3625
        %v3652 = vpop.f32.mrf.mxu0
        %v3653 = vadd.f32 %v3580, %v3652
        %v3654 = vpop.f32.mrf.mxu0
        %v3655 = vadd.f32 %v3582, %v3654
        %3656 = vmatmul.bf16.gmra.mxu0 %v3628
        %v3657 = vpop.f32.mrf.mxu0
        %v3658 = vadd.f32 %v3585, %v3657
        %v3659 = vpop.f32.mrf.mxu0
        %v3660 = vadd.f32 %v3587, %v3659
        %3661 = vmatmul.bf16.gmra.mxu0 %v3631
        %v3662 = vpop.f32.mrf.mxu0
        %v3663 = vadd.f32 %v3590, %v3662
        %v3664 = vpop.f32.mrf.mxu0
        %v3665 = vadd.f32 %v3592, %v3664
        %3666 = vdwg.mxu0
        %v3667 = vld [vmem:[#allocation2 + $0x2] sm:$0xff]
        %v3668 = vld [vmem:[#allocation2 + $0xa] sm:$0xff]
        %v3669 = vld [vmem:[#allocation2 + $0x12] sm:$0xff]
        %v3670 = vld [vmem:[#allocation2 + $0x1a] sm:$0xff]
        %v3671 = vld [vmem:[#allocation2 + $0x22] sm:$0xff]
        %v3672 = vld [vmem:[#allocation2 + $0x2a] sm:$0xff]
        %v3673 = vld [vmem:[#allocation2 + $0x32] sm:$0xff]
        %v3674 = vld [vmem:[#allocation2 + $0x3a] sm:$0xff]
        %v3675 = vld [vmem:[#allocation2 + $0x42] sm:$0xff]
        %v3676 = vld [vmem:[#allocation2 + $0x4a] sm:$0x3f]
        %v3677 = vpack.c.bf16 %v3668, %v3667
        %v3678 = vpack.c.bf16 %v3670, %v3669
        %v3679 = vpack.c.bf16 %v3672, %v3671
        %v3680 = vpack.c.bf16 %v3674, %v3673
        %v3681 = vpack.c.bf16 %v3676, %v3675
        %s3682 = scalar_lea.vmem %s5, 64
        %v3683 = vld [vmem:[%s3682] sm:$0xf]
        %v3684 = vld [vmem:[%s3682 + $0x4] sm:$0xf]
        %v3685 = vld [vmem:[%s3682 + $0x8] sm:$0xf]
        %v3686 = vld [vmem:[%s3682 + $0xc] sm:$0xf]
        %v3687 = vld [vmem:[%s3682 + $0x10] sm:$0xf]
        %v3688 = vld [vmem:[%s3682 + $0x14] sm:$0xf]
        %v3689 = vld [vmem:[%s3682 + $0x18] sm:$0xf]
        %v3690 = vld [vmem:[%s3682 + $0x1c] sm:$0xf]
        %v3699 = vunpack.c.l.b16 %v3683
        %v3700 = vunpack.c.l.b16 %v3684
        %v3701 = vunpack.c.l.b16 %v3685
        %v3702 = vunpack.c.l.b16 %v3686
        %v3703 = vunpack.c.l.b16 %v3687
        %v3704 = vunpack.c.l.b16 %v3688
        %v3705 = vunpack.c.l.b16 %v3689
        %v3706 = vunpack.c.l.b16 %v3690
        %v3707 = vpack.c.b16 %v3700, %v3699
        %v3708 = vpack.c.b16 %v3702, %v3701
        %v3709 = vpack.c.b16 %v3704, %v3703
        %v3710 = vpack.c.b16 %v3706, %v3705
        %v3716 = vsel %vm2883, %v3677, 0
        %v3719 = vsel %vm2883, %v3678, 0
        %v3722 = vsel %vm2883, %v3679, 0
        %v3725 = vsel %vm2883, %v3680, 0
        %v3728 = vsel %vm2883, %v3681, 0
        %3730 = vmatpush.bf16.msra.mxu0 0
        %3731 = vmatpush.bf16.msra.mxu0 0
        %3732 = vmatpush.bf16.msra.mxu0 0
        %3733 = vmatpush.bf16.msra.mxu0 0
        %3734 = vmatpush.bf16.msra.mxu0 %v3710
        %3735 = vmatpush.bf16.msra.mxu0 %v3709
        %3736 = vmatpush.bf16.msra.mxu0 %v3708
        %3737 = vmatpush.bf16.msra.mxu0 %v3707
        %3738 = vmatmul.bf16.gmra.mxu0 %v3716
        %v3739 = vpop.f32.mrf.mxu0
        %v3740 = vadd.f32 0.0, %v3739
        %v3741 = vpop.f32.mrf.mxu0
        %v3742 = vadd.f32 0.0, %v3741
        %3743 = vmatmul.bf16.gmra.mxu0 %v3719
        %v3744 = vpop.f32.mrf.mxu0
        %v3745 = vadd.f32 0.0, %v3744
        %v3746 = vpop.f32.mrf.mxu0
        %v3747 = vadd.f32 0.0, %v3746
        %3748 = vmatmul.bf16.gmra.mxu0 %v3722
        %v3749 = vpop.f32.mrf.mxu0
        %v3750 = vadd.f32 0.0, %v3749
        %v3751 = vpop.f32.mrf.mxu0
        %v3752 = vadd.f32 0.0, %v3751
        %3753 = vmatmul.bf16.gmra.mxu0 %v3725
        %v3754 = vpop.f32.mrf.mxu0
        %v3755 = vadd.f32 0.0, %v3754
        %v3756 = vpop.f32.mrf.mxu0
        %v3757 = vadd.f32 0.0, %v3756
        %3758 = vmatmul.bf16.gmra.mxu0 %v3728
        %v3759 = vpop.f32.mrf.mxu0
        %v3760 = vadd.f32 0.0, %v3759
        %v3761 = vpop.f32.mrf.mxu0
        %v3762 = vadd.f32 0.0, %v3761
        %3763 = vdwg.mxu0
        %v3764 = vadd.f32 %v3643, %v3740
        %v3765 = vadd.f32 %v3645, %v3742
        %v3766 = vadd.f32 %v3648, %v3745
        %v3767 = vadd.f32 %v3650, %v3747
        %v3768 = vadd.f32 %v3653, %v3750
        %v3769 = vadd.f32 %v3655, %v3752
        %v3770 = vadd.f32 %v3658, %v3755
        %v3771 = vadd.f32 %v3660, %v3757
        %v3772 = vadd.f32 %v3663, %v3760
        %v3773 = vadd.f32 %v3665, %v3762
        %v3774 = vld [vmem:[#allocation2 + $0xa] sm:$0xff]
        %v3775 = vld [vmem:[#allocation2 + $0x12] sm:$0xff]
        %v3776 = vld [vmem:[#allocation2 + $0x1a] sm:$0xff]
        %v3777 = vld [vmem:[#allocation2 + $0x22] sm:$0xff]
        %v3778 = vld [vmem:[#allocation2 + $0x2a] sm:$0xff]
        %v3779 = vld [vmem:[#allocation2 + $0x32] sm:$0xff]
        %v3780 = vld [vmem:[#allocation2 + $0x3a] sm:$0xff]
        %v3781 = vld [vmem:[#allocation2 + $0x42] sm:$0xff]
        %v3782 = vld [vmem:[#allocation2 + $0x4a] sm:$0xff]
        %v3783 = vld [vmem:[#allocation2 + $0x52] sm:$0x3f]
        %v3784 = vpack.c.bf16 %v3775, %v3774
        %v3785 = vpack.c.bf16 %v3777, %v3776
        %v3786 = vpack.c.bf16 %v3779, %v3778
        %v3787 = vpack.c.bf16 %v3781, %v3780
        %v3788 = vpack.c.bf16 %v3783, %v3782
        %s3789 = scalar_lea.vmem %s5, 96
        %v3790 = vld [vmem:[%s3789] sm:$0xf]
        %v3791 = vld [vmem:[%s3789 + $0x4] sm:$0xf]
        %v3792 = vld [vmem:[%s3789 + $0x8] sm:$0xf]
        %v3793 = vld [vmem:[%s3789 + $0xc] sm:$0xf]
        %v3794 = vld [vmem:[%s3789 + $0x10] sm:$0xf]
        %v3795 = vld [vmem:[%s3789 + $0x14] sm:$0xf]
        %v3796 = vld [vmem:[%s3789 + $0x18] sm:$0xf]
        %v3797 = vld [vmem:[%s3789 + $0x1c] sm:$0xf]
        %v3806 = vunpack.c.l.b16 %v3790
        %v3807 = vunpack.c.l.b16 %v3791
        %v3808 = vunpack.c.l.b16 %v3792
        %v3809 = vunpack.c.l.b16 %v3793
        %v3810 = vunpack.c.l.b16 %v3794
        %v3811 = vunpack.c.l.b16 %v3795
        %v3812 = vunpack.c.l.b16 %v3796
        %v3813 = vunpack.c.l.b16 %v3797
        %v3814 = vpack.c.b16 %v3807, %v3806
        %v3815 = vpack.c.b16 %v3809, %v3808
        %v3816 = vpack.c.b16 %v3811, %v3810
        %v3817 = vpack.c.b16 %v3813, %v3812
        %v3823 = vsel %vm2883, %v3784, 0
        %v3826 = vsel %vm2883, %v3785, 0
        %v3829 = vsel %vm2883, %v3786, 0
        %v3832 = vsel %vm2883, %v3787, 0
        %v3835 = vsel %vm2883, %v3788, 0
        %3837 = vmatpush.bf16.msra.mxu0 0
        %3838 = vmatpush.bf16.msra.mxu0 0
        %3839 = vmatpush.bf16.msra.mxu0 0
        %3840 = vmatpush.bf16.msra.mxu0 0
        %3841 = vmatpush.bf16.msra.mxu0 %v3817
        %3842 = vmatpush.bf16.msra.mxu0 %v3816
        %3843 = vmatpush.bf16.msra.mxu0 %v3815
        %3844 = vmatpush.bf16.msra.mxu0 %v3814
        %3845 = vmatmul.bf16.gmra.mxu0 %v3823
        %v3846 = vpop.f32.mrf.mxu0
        %v3847 = vadd.f32 0.0, %v3846
        %v3848 = vpop.f32.mrf.mxu0
        %v3849 = vadd.f32 0.0, %v3848
        %3850 = vmatmul.bf16.gmra.mxu0 %v3826
        %v3851 = vpop.f32.mrf.mxu0
        %v3852 = vadd.f32 0.0, %v3851
        %v3853 = vpop.f32.mrf.mxu0
        %v3854 = vadd.f32 0.0, %v3853
        %3855 = vmatmul.bf16.gmra.mxu0 %v3829
        %v3856 = vpop.f32.mrf.mxu0
        %v3857 = vadd.f32 0.0, %v3856
        %v3858 = vpop.f32.mrf.mxu0
        %v3859 = vadd.f32 0.0, %v3858
        %3860 = vmatmul.bf16.gmra.mxu0 %v3832
        %v3861 = vpop.f32.mrf.mxu0
        %v3862 = vadd.f32 0.0, %v3861
        %v3863 = vpop.f32.mrf.mxu0
        %v3864 = vadd.f32 0.0, %v3863
        %3865 = vmatmul.bf16.gmra.mxu0 %v3835
        %v3866 = vpop.f32.mrf.mxu0
        %v3867 = vadd.f32 0.0, %v3866
        %v3868 = vpop.f32.mrf.mxu0
        %v3869 = vadd.f32 0.0, %v3868
        %3870 = vdwg.mxu0
        %v3871 = vadd.f32 %v3764, %v3847
        %v3872 = vadd.f32 %v3765, %v3849
        %v3873 = vadd.f32 %v3766, %v3852
        %v3874 = vadd.f32 %v3767, %v3854
        %v3875 = vadd.f32 %v3768, %v3857
        %v3876 = vadd.f32 %v3769, %v3859
        %v3877 = vadd.f32 %v3770, %v3862
        %v3878 = vadd.f32 %v3771, %v3864
        %v3879 = vadd.f32 %v3772, %v3867
        %v3880 = vadd.f32 %v3773, %v3869
        %v3881 = vld [vmem:[#allocation2 + $0xb] sm:$0xff]
        %v3882 = vld [vmem:[#allocation2 + $0x13] sm:$0xff]
        %v3883 = vld [vmem:[#allocation2 + $0x1b] sm:$0xff]
        %v3884 = vld [vmem:[#allocation2 + $0x23] sm:$0xff]
        %v3885 = vld [vmem:[#allocation2 + $0x2b] sm:$0xff]
        %v3886 = vld [vmem:[#allocation2 + $0x33] sm:$0xff]
        %v3887 = vld [vmem:[#allocation2 + $0x3b] sm:$0xff]
        %v3888 = vld [vmem:[#allocation2 + $0x43] sm:$0xff]
        %v3889 = vld [vmem:[#allocation2 + $0x4b] sm:$0xff]
        %v3890 = vld [vmem:[#allocation2 + $0x53] sm:$0x3f]
        %v3891 = vpack.c.bf16 %v3882, %v3881
        %v3892 = vpack.c.bf16 %v3884, %v3883
        %v3893 = vpack.c.bf16 %v3886, %v3885
        %v3894 = vpack.c.bf16 %v3888, %v3887
        %v3895 = vpack.c.bf16 %v3890, %v3889
        %s3896 = scalar_lea.vmem %s5, 128
        %v3897 = vld [vmem:[%s3896] sm:$0xf]
        %v3898 = vld [vmem:[%s3896 + $0x4] sm:$0xf]
        %v3899 = vld [vmem:[%s3896 + $0x8] sm:$0xf]
        %v3900 = vld [vmem:[%s3896 + $0xc] sm:$0xf]
        %v3901 = vld [vmem:[%s3896 + $0x10] sm:$0xf]
        %v3902 = vld [vmem:[%s3896 + $0x14] sm:$0xf]
        %v3903 = vld [vmem:[%s3896 + $0x18] sm:$0xf]
        %v3904 = vld [vmem:[%s3896 + $0x1c] sm:$0xf]
        %v3913 = vunpack.c.l.b16 %v3897
        %v3914 = vunpack.c.l.b16 %v3898
        %v3915 = vunpack.c.l.b16 %v3899
        %v3916 = vunpack.c.l.b16 %v3900
        %v3917 = vunpack.c.l.b16 %v3901
        %v3918 = vunpack.c.l.b16 %v3902
        %v3919 = vunpack.c.l.b16 %v3903
        %v3920 = vunpack.c.l.b16 %v3904
        %v3921 = vpack.c.b16 %v3914, %v3913
        %v3922 = vpack.c.b16 %v3916, %v3915
        %v3923 = vpack.c.b16 %v3918, %v3917
        %v3924 = vpack.c.b16 %v3920, %v3919
        %v3930 = vsel %vm2883, %v3891, 0
        %v3933 = vsel %vm2883, %v3892, 0
        %v3936 = vsel %vm2883, %v3893, 0
        %v3939 = vsel %vm2883, %v3894, 0
        %v3942 = vsel %vm2883, %v3895, 0
        %3944 = vmatpush.bf16.msra.mxu0 0
        %3945 = vmatpush.bf16.msra.mxu0 0
        %3946 = vmatpush.bf16.msra.mxu0 0
        %3947 = vmatpush.bf16.msra.mxu0 0
        %3948 = vmatpush.bf16.msra.mxu0 %v3924
        %3949 = vmatpush.bf16.msra.mxu0 %v3923
        %3950 = vmatpush.bf16.msra.mxu0 %v3922
        %3951 = vmatpush.bf16.msra.mxu0 %v3921
        %3952 = vmatmul.bf16.gmra.mxu0 %v3930
        %v3953 = vpop.f32.mrf.mxu0
        %v3954 = vadd.f32 0.0, %v3953
        %v3955 = vpop.f32.mrf.mxu0
        %v3956 = vadd.f32 0.0, %v3955
        %3957 = vmatmul.bf16.gmra.mxu0 %v3933
        %v3958 = vpop.f32.mrf.mxu0
        %v3959 = vadd.f32 0.0, %v3958
        %v3960 = vpop.f32.mrf.mxu0
        %v3961 = vadd.f32 0.0, %v3960
        %3962 = vmatmul.bf16.gmra.mxu0 %v3936
        %v3963 = vpop.f32.mrf.mxu0
        %v3964 = vadd.f32 0.0, %v3963
        %v3965 = vpop.f32.mrf.mxu0
        %v3966 = vadd.f32 0.0, %v3965
        %3967 = vmatmul.bf16.gmra.mxu0 %v3939
        %v3968 = vpop.f32.mrf.mxu0
        %v3969 = vadd.f32 0.0, %v3968
        %v3970 = vpop.f32.mrf.mxu0
        %v3971 = vadd.f32 0.0, %v3970
        %3972 = vmatmul.bf16.gmra.mxu0 %v3942
        %v3973 = vpop.f32.mrf.mxu0
        %v3974 = vadd.f32 0.0, %v3973
        %v3975 = vpop.f32.mrf.mxu0
        %v3976 = vadd.f32 0.0, %v3975
        %3977 = vdwg.mxu0
        %v3978 = vadd.f32 %v3871, %v3954
        %v3979 = vadd.f32 %v3872, %v3956
        %v3980 = vadd.f32 %v3873, %v3959
        %v3981 = vadd.f32 %v3874, %v3961
        %v3982 = vadd.f32 %v3875, %v3964
        %v3983 = vadd.f32 %v3876, %v3966
        %v3984 = vadd.f32 %v3877, %v3969
        %v3985 = vadd.f32 %v3878, %v3971
        %v3986 = vadd.f32 %v3879, %v3974
        %v3987 = vadd.f32 %v3880, %v3976
        %v3988 = vld [vmem:[#allocation2 + $0xc] sm:$0xff]
        %v3989 = vld [vmem:[#allocation2 + $0x14] sm:$0xff]
        %v3990 = vld [vmem:[#allocation2 + $0x1c] sm:$0xff]
        %v3991 = vld [vmem:[#allocation2 + $0x24] sm:$0xff]
        %v3992 = vld [vmem:[#allocation2 + $0x2c] sm:$0xff]
        %v3993 = vld [vmem:[#allocation2 + $0x34] sm:$0xff]
        %v3994 = vld [vmem:[#allocation2 + $0x3c] sm:$0xff]
        %v3995 = vld [vmem:[#allocation2 + $0x44] sm:$0xff]
        %v3996 = vld [vmem:[#allocation2 + $0x4c] sm:$0xff]
        %v3997 = vld [vmem:[#allocation2 + $0x54] sm:$0x3f]
        %v3998 = vpack.c.bf16 %v3989, %v3988
        %v3999 = vpack.c.bf16 %v3991, %v3990
        %v4000 = vpack.c.bf16 %v3993, %v3992
        %v4001 = vpack.c.bf16 %v3995, %v3994
        %v4002 = vpack.c.bf16 %v3997, %v3996
        %s4003 = scalar_lea.vmem %s5, 160
        %v4004 = vld [vmem:[%s4003] sm:$0xf]
        %v4005 = vld [vmem:[%s4003 + $0x4] sm:$0xf]
        %v4006 = vld [vmem:[%s4003 + $0x8] sm:$0xf]
        %v4007 = vld [vmem:[%s4003 + $0xc] sm:$0xf]
        %v4008 = vld [vmem:[%s4003 + $0x10] sm:$0xf]
        %v4009 = vld [vmem:[%s4003 + $0x14] sm:$0xf]
        %v4010 = vld [vmem:[%s4003 + $0x18] sm:$0xf]
        %v4011 = vld [vmem:[%s4003 + $0x1c] sm:$0xf]
        %v4020 = vunpack.c.l.b16 %v4004
        %v4021 = vunpack.c.l.b16 %v4005
        %v4022 = vunpack.c.l.b16 %v4006
        %v4023 = vunpack.c.l.b16 %v4007
        %v4024 = vunpack.c.l.b16 %v4008
        %v4025 = vunpack.c.l.b16 %v4009
        %v4026 = vunpack.c.l.b16 %v4010
        %v4027 = vunpack.c.l.b16 %v4011
        %v4028 = vpack.c.b16 %v4021, %v4020
        %v4029 = vpack.c.b16 %v4023, %v4022
        %v4030 = vpack.c.b16 %v4025, %v4024
        %v4031 = vpack.c.b16 %v4027, %v4026
        %v4037 = vsel %vm2883, %v3998, 0
        %v4040 = vsel %vm2883, %v3999, 0
        %v4043 = vsel %vm2883, %v4000, 0
        %v4046 = vsel %vm2883, %v4001, 0
        %v4049 = vsel %vm2883, %v4002, 0
        %4051 = vmatpush.bf16.msra.mxu0 0
        %4052 = vmatpush.bf16.msra.mxu0 0
        %4053 = vmatpush.bf16.msra.mxu0 0
        %4054 = vmatpush.bf16.msra.mxu0 0
        %4055 = vmatpush.bf16.msra.mxu0 %v4031
        %4056 = vmatpush.bf16.msra.mxu0 %v4030
        %4057 = vmatpush.bf16.msra.mxu0 %v4029
        %4058 = vmatpush.bf16.msra.mxu0 %v4028
        %4059 = vmatmul.bf16.gmra.mxu0 %v4037
        %v4060 = vpop.f32.mrf.mxu0
        %v4061 = vadd.f32 0.0, %v4060
        %v4062 = vpop.f32.mrf.mxu0
        %v4063 = vadd.f32 0.0, %v4062
        %4064 = vmatmul.bf16.gmra.mxu0 %v4040
        %v4065 = vpop.f32.mrf.mxu0
        %v4066 = vadd.f32 0.0, %v4065
        %v4067 = vpop.f32.mrf.mxu0
        %v4068 = vadd.f32 0.0, %v4067
        %4069 = vmatmul.bf16.gmra.mxu0 %v4043
        %v4070 = vpop.f32.mrf.mxu0
        %v4071 = vadd.f32 0.0, %v4070
        %v4072 = vpop.f32.mrf.mxu0
        %v4073 = vadd.f32 0.0, %v4072
        %4074 = vmatmul.bf16.gmra.mxu0 %v4046
        %v4075 = vpop.f32.mrf.mxu0
        %v4076 = vadd.f32 0.0, %v4075
        %v4077 = vpop.f32.mrf.mxu0
        %v4078 = vadd.f32 0.0, %v4077
        %4079 = vmatmul.bf16.gmra.mxu0 %v4049
        %v4080 = vpop.f32.mrf.mxu0
        %v4081 = vadd.f32 0.0, %v4080
        %v4082 = vpop.f32.mrf.mxu0
        %v4083 = vadd.f32 0.0, %v4082
        %4084 = vdwg.mxu0
        %v4085 = vadd.f32 %v3978, %v4061
        %v4086 = vadd.f32 %v3979, %v4063
        %v4087 = vadd.f32 %v3980, %v4066
        %v4088 = vadd.f32 %v3981, %v4068
        %v4089 = vadd.f32 %v3982, %v4071
        %v4090 = vadd.f32 %v3983, %v4073
        %v4091 = vadd.f32 %v3984, %v4076
        %v4092 = vadd.f32 %v3985, %v4078
        %v4093 = vadd.f32 %v3986, %v4081
        %v4094 = vadd.f32 %v3987, %v4083
        %v4095 = vld [vmem:[#allocation2 + $0x14] sm:$0xff]
        %v4096 = vld [vmem:[#allocation2 + $0x1c] sm:$0xff]
        %v4097 = vld [vmem:[#allocation2 + $0x24] sm:$0xff]
        %v4098 = vld [vmem:[#allocation2 + $0x2c] sm:$0xff]
        %v4099 = vld [vmem:[#allocation2 + $0x34] sm:$0xff]
        %v4100 = vld [vmem:[#allocation2 + $0x3c] sm:$0xff]
        %v4101 = vld [vmem:[#allocation2 + $0x44] sm:$0xff]
        %v4102 = vld [vmem:[#allocation2 + $0x4c] sm:$0xff]
        %v4103 = vld [vmem:[#allocation2 + $0x54] sm:$0xff]
        %v4104 = vld [vmem:[#allocation2 + $0x5c] sm:$0x3f]
        %v4105 = vpack.c.bf16 %v4096, %v4095
        %v4106 = vpack.c.bf16 %v4098, %v4097
        %v4107 = vpack.c.bf16 %v4100, %v4099
        %v4108 = vpack.c.bf16 %v4102, %v4101
        %v4109 = vpack.c.bf16 %v4104, %v4103
        %s4110 = scalar_lea.vmem %s5, 192
        %v4111 = vld [vmem:[%s4110] sm:$0xf]
        %v4112 = vld [vmem:[%s4110 + $0x4] sm:$0xf]
        %v4113 = vld [vmem:[%s4110 + $0x8] sm:$0xf]
        %v4114 = vld [vmem:[%s4110 + $0xc] sm:$0xf]
        %v4115 = vld [vmem:[%s4110 + $0x10] sm:$0xf]
        %v4116 = vld [vmem:[%s4110 + $0x14] sm:$0xf]
        %v4117 = vld [vmem:[%s4110 + $0x18] sm:$0xf]
        %v4118 = vld [vmem:[%s4110 + $0x1c] sm:$0xf]
        %v4127 = vunpack.c.l.b16 %v4111
        %v4128 = vunpack.c.l.b16 %v4112
        %v4129 = vunpack.c.l.b16 %v4113
        %v4130 = vunpack.c.l.b16 %v4114
        %v4131 = vunpack.c.l.b16 %v4115
        %v4132 = vunpack.c.l.b16 %v4116
        %v4133 = vunpack.c.l.b16 %v4117
        %v4134 = vunpack.c.l.b16 %v4118
        %v4135 = vpack.c.b16 %v4128, %v4127
        %v4136 = vpack.c.b16 %v4130, %v4129
        %v4137 = vpack.c.b16 %v4132, %v4131
        %v4138 = vpack.c.b16 %v4134, %v4133
        %v4144 = vsel %vm2883, %v4105, 0
        %v4147 = vsel %vm2883, %v4106, 0
        %v4150 = vsel %vm2883, %v4107, 0
        %v4153 = vsel %vm2883, %v4108, 0
        %v4156 = vsel %vm2883, %v4109, 0
        %4158 = vmatpush.bf16.msra.mxu0 0
        %4159 = vmatpush.bf16.msra.mxu0 0
        %4160 = vmatpush.bf16.msra.mxu0 0
        %4161 = vmatpush.bf16.msra.mxu0 0
        %4162 = vmatpush.bf16.msra.mxu0 %v4138
        %4163 = vmatpush.bf16.msra.mxu0 %v4137
        %4164 = vmatpush.bf16.msra.mxu0 %v4136
        %4165 = vmatpush.bf16.msra.mxu0 %v4135
        %4166 = vmatmul.bf16.gmra.mxu0 %v4144
        %v4167 = vpop.f32.mrf.mxu0
        %v4168 = vadd.f32 0.0, %v4167
        %v4169 = vpop.f32.mrf.mxu0
        %v4170 = vadd.f32 0.0, %v4169
        %4171 = vmatmul.bf16.gmra.mxu0 %v4147
        %v4172 = vpop.f32.mrf.mxu0
        %v4173 = vadd.f32 0.0, %v4172
        %v4174 = vpop.f32.mrf.mxu0
        %v4175 = vadd.f32 0.0, %v4174
        %4176 = vmatmul.bf16.gmra.mxu0 %v4150
        %v4177 = vpop.f32.mrf.mxu0
        %v4178 = vadd.f32 0.0, %v4177
        %v4179 = vpop.f32.mrf.mxu0
        %v4180 = vadd.f32 0.0, %v4179
        %4181 = vmatmul.bf16.gmra.mxu0 %v4153
        %v4182 = vpop.f32.mrf.mxu0
        %v4183 = vadd.f32 0.0, %v4182
        %v4184 = vpop.f32.mrf.mxu0
        %v4185 = vadd.f32 0.0, %v4184
        %4186 = vmatmul.bf16.gmra.mxu0 %v4156
        %v4187 = vpop.f32.mrf.mxu0
        %v4188 = vadd.f32 0.0, %v4187
        %v4189 = vpop.f32.mrf.mxu0
        %v4190 = vadd.f32 0.0, %v4189
        %4191 = vdwg.mxu0
        %v4192 = vadd.f32 %v4085, %v4168
        %v4193 = vadd.f32 %v4086, %v4170
        %v4194 = vadd.f32 %v4087, %v4173
        %v4195 = vadd.f32 %v4088, %v4175
        %v4196 = vadd.f32 %v4089, %v4178
        %v4197 = vadd.f32 %v4090, %v4180
        %v4198 = vadd.f32 %v4091, %v4183
        %v4199 = vadd.f32 %v4092, %v4185
        %v4200 = vadd.f32 %v4093, %v4188
        %v4201 = vadd.f32 %v4094, %v4190
        %v4202 = vld [vmem:[#allocation2 + $0x15] sm:$0xff]
        %v4203 = vld [vmem:[#allocation2 + $0x1d] sm:$0xff]
        %v4204 = vld [vmem:[#allocation2 + $0x25] sm:$0xff]
        %v4205 = vld [vmem:[#allocation2 + $0x2d] sm:$0xff]
        %v4206 = vld [vmem:[#allocation2 + $0x35] sm:$0xff]
        %v4207 = vld [vmem:[#allocation2 + $0x3d] sm:$0xff]
        %v4208 = vld [vmem:[#allocation2 + $0x45] sm:$0xff]
        %v4209 = vld [vmem:[#allocation2 + $0x4d] sm:$0xff]
        %v4210 = vld [vmem:[#allocation2 + $0x55] sm:$0xff]
        %v4211 = vld [vmem:[#allocation2 + $0x5d] sm:$0x3f]
        %v4212 = vpack.c.bf16 %v4203, %v4202
        %v4213 = vpack.c.bf16 %v4205, %v4204
        %v4214 = vpack.c.bf16 %v4207, %v4206
        %v4215 = vpack.c.bf16 %v4209, %v4208
        %v4216 = vpack.c.bf16 %v4211, %v4210
        %s4217 = scalar_lea.vmem %s5, 224
        %v4218 = vld [vmem:[%s4217] sm:$0xf]
        %v4219 = vld [vmem:[%s4217 + $0x4] sm:$0xf]
        %v4220 = vld [vmem:[%s4217 + $0x8] sm:$0xf]
        %v4221 = vld [vmem:[%s4217 + $0xc] sm:$0xf]
        %v4222 = vld [vmem:[%s4217 + $0x10] sm:$0xf]
        %v4223 = vld [vmem:[%s4217 + $0x14] sm:$0xf]
        %v4224 = vld [vmem:[%s4217 + $0x18] sm:$0xf]
        %v4225 = vld [vmem:[%s4217 + $0x1c] sm:$0xf]
        %v4234 = vunpack.c.l.b16 %v4218
        %v4235 = vunpack.c.l.b16 %v4219
        %v4236 = vunpack.c.l.b16 %v4220
        %v4237 = vunpack.c.l.b16 %v4221
        %v4238 = vunpack.c.l.b16 %v4222
        %v4239 = vunpack.c.l.b16 %v4223
        %v4240 = vunpack.c.l.b16 %v4224
        %v4241 = vunpack.c.l.b16 %v4225
        %v4242 = vpack.c.b16 %v4235, %v4234
        %v4243 = vpack.c.b16 %v4237, %v4236
        %v4244 = vpack.c.b16 %v4239, %v4238
        %v4245 = vpack.c.b16 %v4241, %v4240
        %v4251 = vsel %vm2883, %v4212, 0
        %v4254 = vsel %vm2883, %v4213, 0
        %v4257 = vsel %vm2883, %v4214, 0
        %v4260 = vsel %vm2883, %v4215, 0
        %v4263 = vsel %vm2883, %v4216, 0
        %4265 = vmatpush.bf16.msra.mxu0 0
        %4266 = vmatpush.bf16.msra.mxu0 0
        %4267 = vmatpush.bf16.msra.mxu0 0
        %4268 = vmatpush.bf16.msra.mxu0 0
        %4269 = vmatpush.bf16.msra.mxu0 %v4245
        %4270 = vmatpush.bf16.msra.mxu0 %v4244
        %4271 = vmatpush.bf16.msra.mxu0 %v4243
        %4272 = vmatpush.bf16.msra.mxu0 %v4242
        %4273 = vmatmul.bf16.gmra.mxu0 %v4251
        %v4274 = vpop.f32.mrf.mxu0
        %v4275 = vadd.f32 0.0, %v4274
        %v4276 = vpop.f32.mrf.mxu0
        %v4277 = vadd.f32 0.0, %v4276
        %4278 = vmatmul.bf16.gmra.mxu0 %v4254
        %v4279 = vpop.f32.mrf.mxu0
        %v4280 = vadd.f32 0.0, %v4279
        %v4281 = vpop.f32.mrf.mxu0
        %v4282 = vadd.f32 0.0, %v4281
        %4283 = vmatmul.bf16.gmra.mxu0 %v4257
        %v4284 = vpop.f32.mrf.mxu0
        %v4285 = vadd.f32 0.0, %v4284
        %v4286 = vpop.f32.mrf.mxu0
        %v4287 = vadd.f32 0.0, %v4286
        %4288 = vmatmul.bf16.gmra.mxu0 %v4260
        %v4289 = vpop.f32.mrf.mxu0
        %v4290 = vadd.f32 0.0, %v4289
        %v4291 = vpop.f32.mrf.mxu0
        %v4292 = vadd.f32 0.0, %v4291
        %4293 = vmatmul.bf16.gmra.mxu0 %v4263
        %v4294 = vpop.f32.mrf.mxu0
        %v4295 = vadd.f32 0.0, %v4294
        %v4296 = vpop.f32.mrf.mxu0
        %v4297 = vadd.f32 0.0, %v4296
        %4298 = vdwg.mxu0
        %v4299 = vadd.f32 %v4192, %v4275
        %v4300 = vadd.f32 %v4193, %v4277
        %v4301 = vadd.f32 %v4194, %v4280
        %v4302 = vadd.f32 %v4195, %v4282
        %v4303 = vadd.f32 %v4196, %v4285
        %v4304 = vadd.f32 %v4197, %v4287
        %v4305 = vadd.f32 %v4198, %v4290
        %v4306 = vadd.f32 %v4199, %v4292
        %v4307 = vadd.f32 %v4200, %v4295
        %v4308 = vadd.f32 %v4201, %v4297
        %v4309 = vld [vmem:[#allocation2 + $0x16] sm:$0xff]
        %v4310 = vld [vmem:[#allocation2 + $0x1e] sm:$0xff]
        %v4311 = vld [vmem:[#allocation2 + $0x26] sm:$0xff]
        %v4312 = vld [vmem:[#allocation2 + $0x2e] sm:$0xff]
        %v4313 = vld [vmem:[#allocation2 + $0x36] sm:$0xff]
        %v4314 = vld [vmem:[#allocation2 + $0x3e] sm:$0xff]
        %v4315 = vld [vmem:[#allocation2 + $0x46] sm:$0xff]
        %v4316 = vld [vmem:[#allocation2 + $0x4e] sm:$0xff]
        %v4317 = vld [vmem:[#allocation2 + $0x56] sm:$0xff]
        %v4318 = vld [vmem:[#allocation2 + $0x5e] sm:$0x3f]
        %v4319 = vpack.c.bf16 %v4310, %v4309
        %v4320 = vpack.c.bf16 %v4312, %v4311
        %v4321 = vpack.c.bf16 %v4314, %v4313
        %v4322 = vpack.c.bf16 %v4316, %v4315
        %v4323 = vpack.c.bf16 %v4318, %v4317
        %s4324 = scalar_lea.vmem %s5, 256
        %v4325 = vld [vmem:[%s4324] sm:$0xf]
        %v4326 = vld [vmem:[%s4324 + $0x4] sm:$0xf]
        %v4327 = vld [vmem:[%s4324 + $0x8] sm:$0xf]
        %v4328 = vld [vmem:[%s4324 + $0xc] sm:$0xf]
        %v4329 = vld [vmem:[%s4324 + $0x10] sm:$0xf]
        %v4330 = vld [vmem:[%s4324 + $0x14] sm:$0xf]
        %v4331 = vld [vmem:[%s4324 + $0x18] sm:$0xf]
        %v4332 = vld [vmem:[%s4324 + $0x1c] sm:$0xf]
        %v4341 = vunpack.c.l.b16 %v4325
        %v4342 = vunpack.c.l.b16 %v4326
        %v4343 = vunpack.c.l.b16 %v4327
        %v4344 = vunpack.c.l.b16 %v4328
        %v4345 = vunpack.c.l.b16 %v4329
        %v4346 = vunpack.c.l.b16 %v4330
        %v4347 = vunpack.c.l.b16 %v4331
        %v4348 = vunpack.c.l.b16 %v4332
        %v4349 = vpack.c.b16 %v4342, %v4341
        %v4350 = vpack.c.b16 %v4344, %v4343
        %v4351 = vpack.c.b16 %v4346, %v4345
        %v4352 = vpack.c.b16 %v4348, %v4347
        %v4358 = vsel %vm2883, %v4319, 0
        %v4361 = vsel %vm2883, %v4320, 0
        %v4364 = vsel %vm2883, %v4321, 0
        %v4367 = vsel %vm2883, %v4322, 0
        %v4370 = vsel %vm2883, %v4323, 0
        %4372 = vmatpush.bf16.msra.mxu0 0
        %4373 = vmatpush.bf16.msra.mxu0 0
        %4374 = vmatpush.bf16.msra.mxu0 0
        %4375 = vmatpush.bf16.msra.mxu0 0
        %4376 = vmatpush.bf16.msra.mxu0 %v4352
        %4377 = vmatpush.bf16.msra.mxu0 %v4351
        %4378 = vmatpush.bf16.msra.mxu0 %v4350
        %4379 = vmatpush.bf16.msra.mxu0 %v4349
        %4380 = vmatmul.bf16.gmra.mxu0 %v4358
        %v4381 = vpop.f32.mrf.mxu0
        %v4382 = vadd.f32 0.0, %v4381
        %v4383 = vpop.f32.mrf.mxu0
        %v4384 = vadd.f32 0.0, %v4383
        %4385 = vmatmul.bf16.gmra.mxu0 %v4361
        %v4386 = vpop.f32.mrf.mxu0
        %v4387 = vadd.f32 0.0, %v4386
        %v4388 = vpop.f32.mrf.mxu0
        %v4389 = vadd.f32 0.0, %v4388
        %4390 = vmatmul.bf16.gmra.mxu0 %v4364
        %v4391 = vpop.f32.mrf.mxu0
        %v4392 = vadd.f32 0.0, %v4391
        %v4393 = vpop.f32.mrf.mxu0
        %v4394 = vadd.f32 0.0, %v4393
        %4395 = vmatmul.bf16.gmra.mxu0 %v4367
        %v4396 = vpop.f32.mrf.mxu0
        %v4397 = vadd.f32 0.0, %v4396
        %v4398 = vpop.f32.mrf.mxu0
        %v4399 = vadd.f32 0.0, %v4398
        %4400 = vmatmul.bf16.gmra.mxu0 %v4370
        %v4401 = vpop.f32.mrf.mxu0
        %v4402 = vadd.f32 0.0, %v4401
        %v4403 = vpop.f32.mrf.mxu0
        %v4404 = vadd.f32 0.0, %v4403
        %4405 = vdwg.mxu0
        %v4406 = vadd.f32 %v4299, %v4382
        %v4407 = vadd.f32 %v4300, %v4384
        %v4408 = vadd.f32 %v4301, %v4387
        %v4409 = vadd.f32 %v4302, %v4389
        %v4410 = vadd.f32 %v4303, %v4392
        %v4411 = vadd.f32 %v4304, %v4394
        %v4412 = vadd.f32 %v4305, %v4397
        %v4413 = vadd.f32 %v4306, %v4399
        %v4414 = vadd.f32 %v4307, %v4402
        %v4415 = vadd.f32 %v4308, %v4404
        %v4416 = vld [vmem:[%s6] sm:$0x1]
        %v4418 = vperm.slane %v4416, 0
        %v4420 = vmul.f32 %v4406, %v4418
        %v4421 = vmul.f32 %v4407, %v4418
        %v4422 = vmul.f32 %v4408, %v4418
        %v4423 = vmul.f32 %v4409, %v4418
        %v4424 = vmul.f32 %v4410, %v4418
        %v4425 = vmul.f32 %v4411, %v4418
        %v4426 = vmul.f32 %v4412, %v4418
        %v4427 = vmul.f32 %v4413, %v4418
        %v4428 = vmul.f32 %v4414, %v4418
        %v4429 = vmul.f32 %v4415, %v4418
        %v4430 = vld [vmem:[%s7] sm:$0x1]
        %v4432 = vperm.slane %v4430, 0
        %v4434 = vadd.f32 %v4420, %v4432
        %v4435 = vadd.f32 %v4421, %v4432
        %v4436 = vadd.f32 %v4422, %v4432
        %v4437 = vadd.f32 %v4423, %v4432
        %v4438 = vadd.f32 %v4424, %v4432
        %v4439 = vadd.f32 %v4425, %v4432
        %v4440 = vadd.f32 %v4426, %v4432
        %v4441 = vadd.f32 %v4427, %v4432
        %v4442 = vadd.f32 %v4428, %v4432
        %v4443 = vadd.f32 %v4429, %v4432
        %v4444 = vmax.f32 %v4434, 0.0
        %v4445 = vmax.f32 %v4435, 0.0
        %v4446 = vmax.f32 %v4436, 0.0
        %v4447 = vmax.f32 %v4437, 0.0
        %v4448 = vmax.f32 %v4438, 0.0
        %v4449 = vmax.f32 %v4439, 0.0
        %v4450 = vmax.f32 %v4440, 0.0
        %v4451 = vmax.f32 %v4441, 0.0
        %v4452 = vmax.f32 %v4442, 0.0
        %v4453 = vmax.f32 %v4443, 0.0
        %4454 = vst [vmem:[#allocation6] sm:$0xff] %v4444
        %4455 = vst [vmem:[#allocation6 + $0x8] sm:$0xff] %v4445
        %4456 = vst [vmem:[#allocation6 + $0x10] sm:$0xff] %v4446
        %4457 = vst [vmem:[#allocation6 + $0x18] sm:$0xff] %v4447
        %4458 = vst [vmem:[#allocation6 + $0x20] sm:$0xff] %v4448
        %4459 = vst [vmem:[#allocation6 + $0x28] sm:$0xff] %v4449
        %4460 = vst [vmem:[#allocation6 + $0x30] sm:$0xff] %v4450
        %4461 = vst [vmem:[#allocation6 + $0x38] sm:$0xff] %v4451
        %4462 = vst [vmem:[#allocation6 + $0x40] sm:$0xff] %v4452
        %4463 = vst [vmem:[#allocation6 + $0x48] sm:$0x3f] %v4453
        %v4464 = vld [vmem:[#allocation6] sm:$0xff]
        %v4465 = vld [vmem:[#allocation6 + $0x8] sm:$0xff]
        %v4466 = vld [vmem:[#allocation6 + $0x10] sm:$0xff]
        %v4467 = vld [vmem:[#allocation6 + $0x18] sm:$0xff]
        %v4468 = vld [vmem:[#allocation6 + $0x20] sm:$0xff]
        %v4469 = vld [vmem:[#allocation6 + $0x28] sm:$0xff]
        %v4470 = vld [vmem:[#allocation6 + $0x30] sm:$0xff]
        %v4471 = vld [vmem:[#allocation6 + $0x38] sm:$0xff]
        %v4472 = vld [vmem:[#allocation6 + $0x40] sm:$0x7]
        %v4473 = vld [vmem:[#allocation6 + $0x1] sm:$0xff]
        %v4474 = vld [vmem:[#allocation6 + $0x9] sm:$0xff]
        %v4475 = vld [vmem:[#allocation6 + $0x11] sm:$0xff]
        %v4476 = vld [vmem:[#allocation6 + $0x19] sm:$0xff]
        %v4477 = vld [vmem:[#allocation6 + $0x21] sm:$0xff]
        %v4478 = vld [vmem:[#allocation6 + $0x29] sm:$0xff]
        %v4479 = vld [vmem:[#allocation6 + $0x31] sm:$0xff]
        %v4480 = vld [vmem:[#allocation6 + $0x39] sm:$0xff]
        %v4481 = vld [vmem:[#allocation6 + $0x41] sm:$0x7]
        %v4482 = vmax.f32 %v4464, %v4473
        %v4483 = vmax.f32 %v4465, %v4474
        %v4484 = vmax.f32 %v4466, %v4475
        %v4485 = vmax.f32 %v4467, %v4476
        %v4486 = vmax.f32 %v4468, %v4477
        %v4487 = vmax.f32 %v4469, %v4478
        %v4488 = vmax.f32 %v4470, %v4479
        %v4489 = vmax.f32 %v4471, %v4480
        %v4490 = vmax.f32 %v4472, %v4481
        %v4491 = vld [vmem:[#allocation6 + $0xa] sm:$0xff]
        %v4492 = vld [vmem:[#allocation6 + $0x12] sm:$0xff]
        %v4493 = vld [vmem:[#allocation6 + $0x1a] sm:$0xff]
        %v4494 = vld [vmem:[#allocation6 + $0x22] sm:$0xff]
        %v4495 = vld [vmem:[#allocation6 + $0x2a] sm:$0xff]
        %v4496 = vld [vmem:[#allocation6 + $0x32] sm:$0xff]
        %v4497 = vld [vmem:[#allocation6 + $0x3a] sm:$0xff]
        %v4498 = vld [vmem:[#allocation6 + $0x42] sm:$0xff]
        %v4499 = vld [vmem:[#allocation6 + $0x4a] sm:$0x7]
        %v4500 = vld [vmem:[#allocation6 + $0xb] sm:$0xff]
        %v4501 = vld [vmem:[#allocation6 + $0x13] sm:$0xff]
        %v4502 = vld [vmem:[#allocation6 + $0x1b] sm:$0xff]
        %v4503 = vld [vmem:[#allocation6 + $0x23] sm:$0xff]
        %v4504 = vld [vmem:[#allocation6 + $0x2b] sm:$0xff]
        %v4505 = vld [vmem:[#allocation6 + $0x33] sm:$0xff]
        %v4506 = vld [vmem:[#allocation6 + $0x3b] sm:$0xff]
        %v4507 = vld [vmem:[#allocation6 + $0x43] sm:$0xff]
        %v4508 = vld [vmem:[#allocation6 + $0x4b] sm:$0x7]
        %v4509 = vmax.f32 %v4491, %v4500
        %v4510 = vmax.f32 %v4492, %v4501
        %v4511 = vmax.f32 %v4493, %v4502
        %v4512 = vmax.f32 %v4494, %v4503
        %v4513 = vmax.f32 %v4495, %v4504
        %v4514 = vmax.f32 %v4496, %v4505
        %v4515 = vmax.f32 %v4497, %v4506
        %v4516 = vmax.f32 %v4498, %v4507
        %v4517 = vmax.f32 %v4499, %v4508
        %v4518 = vmax.f32 %v4482, %v4509
        %v4519 = vmax.f32 %v4483, %v4510
        %v4520 = vmax.f32 %v4484, %v4511
        %v4521 = vmax.f32 %v4485, %v4512
        %v4522 = vmax.f32 %v4486, %v4513
        %v4523 = vmax.f32 %v4487, %v4514
        %v4524 = vmax.f32 %v4488, %v4515
        %v4525 = vmax.f32 %v4489, %v4516
        %v4526 = vmax.f32 %v4490, %v4517
        %v4527 = vld [vmem:[%s8] sm:$0xf]
        %v4528 = vld [vmem:[%s8 + $0x4] sm:$0xf]
        %v4529 = vld [vmem:[%s8 + $0x8] sm:$0xf]
        %v4530 = vld [vmem:[%s8 + $0xc] sm:$0xf]
        %v4531 = vld [vmem:[%s8 + $0x10] sm:$0x3]
        %v4532 = vpack.c.bf16 %v4519, %v4518
        %v4533 = vpack.c.bf16 %v4521, %v4520
        %v4534 = vpack.c.bf16 %v4523, %v4522
        %v4535 = vpack.c.bf16 %v4525, %v4524
        %v4536 = vpack.c.bf16 %v4526, %v4526
        %v4542 = vunpack.c.l.b16 %v4527
        %v4543 = vunpack.c.l.b16 %v4528
        %v4544 = vunpack.c.l.b16 %v4529
        %v4545 = vunpack.c.l.b16 %v4530
        %v4546 = vunpack.c.l.b16 %v4531
        %v4547 = vpack.c.b16 %v4543, %v4542
        %v4548 = vpack.c.b16 %v4545, %v4544
        %v4549 = vpack.c.b16 %v4546, %v4546
        %vm4550 = vcmask 547840
        %v4552 = vsel %vm4550, %v4547, 0
        %v4555 = vsel %vm4550, %v4548, 0
        %v4558 = vsel %vm4550, %v4549, 0
        %v4561 = vand.u32 %v4536, %v772
        %4563 = vmatpush.bf16.msra.mxu0 0
        %4564 = vmatpush.bf16.msra.mxu0 0
        %4565 = vmatpush.bf16.msra.mxu0 0
        %4566 = vmatpush.bf16.msra.mxu0 %v4561
        %4567 = vmatpush.bf16.msra.mxu0 %v4535
        %4568 = vmatpush.bf16.msra.mxu0 %v4534
        %4569 = vmatpush.bf16.msra.mxu0 %v4533
        %4570 = vmatpush.bf16.msra.mxu0 %v4532
        %4571 = vmatmul.bf16.gmra.mxu0 %v4552
        %v4572 = vpop.f32.mrf.mxu0
        %v4573 = vadd.f32 0.0, %v4572
        %v4574 = vpop.f32.mrf.mxu0
        %v4575 = vadd.f32 0.0, %v4574
        %4576 = vmatmul.bf16.gmra.mxu0 %v4555
        %v4577 = vpop.f32.mrf.mxu0
        %v4578 = vadd.f32 0.0, %v4577
        %v4579 = vpop.f32.mrf.mxu0
        %v4580 = vadd.f32 0.0, %v4579
        %4581 = vmatmul.bf16.gmra.mxu0 %v4558
        %v4582 = vpop.f32.mrf.mxu0
        %v4583 = vadd.f32 0.0, %v4582
        %v4584 = vpop.f32.mrf.mxu0
        %4585 = vdwg.mxu0
        %4586 = vst [vmem:[#allocation3] sm:$0xff] %v4573
        %4587 = vst [vmem:[#allocation3 + $0x8] sm:$0xff] %v4575
        %4588 = vst [vmem:[#allocation3 + $0x10] sm:$0xff] %v4578
        %4589 = vst [vmem:[#allocation3 + $0x18] sm:$0xff] %v4580
        %4590 = vst [vmem:[#allocation3 + $0x20] sm:$0xf] %v4583
        %v4591 = vld [vmem:[#allocation3] sm:$0xff]
        %v4592 = vld [vmem:[#allocation3 + $0x8] sm:$0xff]
        %v4593 = vld [vmem:[#allocation3 + $0x10] sm:$0x3f]
        %v4594 = vpack.c.bf16 %v4592, %v4591
        %v4595 = vpack.c.bf16 %v4593, %v4593
        %v4596 = vld [vmem:[%s9] sm:$0xff]
        %v4597 = vld [vmem:[%s9 + $0x8] sm:$0xff]
        %v4598 = vld [vmem:[%s9 + $0x10] sm:$0xff]
        %v4599 = vld [vmem:[%s9 + $0x18] sm:$0xff]
        %v4600 = vld [vmem:[%s9 + $0x20] sm:$0xff]
        %v4601 = vld [vmem:[%s9 + $0x28] sm:$0xff]
        %v4602 = vld [vmem:[%s9 + $0x30] sm:$0xff]
        %v4603 = vld [vmem:[%s9 + $0x38] sm:$0xff]
        %v4604 = vld [vmem:[%s9 + $0x40] sm:$0xff]
        %v4605 = vld [vmem:[%s9 + $0x48] sm:$0xff]
        %v4606 = vld [vmem:[%s9 + $0x50] sm:$0xff]
        %v4607 = vld [vmem:[%s9 + $0x58] sm:$0xff]
        %v4608 = vld [vmem:[%s9 + $0x60] sm:$0xff]
        %v4609 = vld [vmem:[%s9 + $0x68] sm:$0xff]
        %v4610 = vld [vmem:[%s9 + $0x70] sm:$0xff]
        %v4611 = vld [vmem:[%s9 + $0x78] sm:$0xff]
        %v4612 = vld [vmem:[#allocation3 + $0x1] sm:$0xff]
        %v4613 = vld [vmem:[#allocation3 + $0x9] sm:$0xff]
        %v4614 = vld [vmem:[#allocation3 + $0x11] sm:$0x3f]
        %v4615 = vpack.c.bf16 %v4613, %v4612
        %v4616 = vpack.c.bf16 %v4614, %v4614
        %s4617 = scalar_lea.vmem %s9, 128
        %v4618 = vld [vmem:[%s4617] sm:$0xff]
        %v4619 = vld [vmem:[%s4617 + $0x8] sm:$0xff]
        %v4620 = vld [vmem:[%s4617 + $0x10] sm:$0xff]
        %v4621 = vld [vmem:[%s4617 + $0x18] sm:$0xff]
        %v4622 = vld [vmem:[%s4617 + $0x20] sm:$0xff]
        %v4623 = vld [vmem:[%s4617 + $0x28] sm:$0xff]
        %v4624 = vld [vmem:[%s4617 + $0x30] sm:$0xff]
        %v4625 = vld [vmem:[%s4617 + $0x38] sm:$0xff]
        %v4626 = vld [vmem:[%s4617 + $0x40] sm:$0xff]
        %v4627 = vld [vmem:[%s4617 + $0x48] sm:$0xff]
        %v4628 = vld [vmem:[%s4617 + $0x50] sm:$0xff]
        %v4629 = vld [vmem:[%s4617 + $0x58] sm:$0xff]
        %v4630 = vld [vmem:[%s4617 + $0x60] sm:$0xff]
        %v4631 = vld [vmem:[%s4617 + $0x68] sm:$0xff]
        %v4632 = vld [vmem:[%s4617 + $0x70] sm:$0xff]
        %v4633 = vld [vmem:[%s4617 + $0x78] sm:$0xff]
        %v4650 = vunpack.c.l.b16 %v4618
        %v4651 = vunpack.c.h.b16 %v4618
        %v4652 = vunpack.c.l.b16 %v4619
        %v4653 = vunpack.c.h.b16 %v4619
        %v4654 = vunpack.c.l.b16 %v4620
        %v4655 = vunpack.c.h.b16 %v4620
        %v4656 = vunpack.c.l.b16 %v4621
        %v4657 = vunpack.c.h.b16 %v4621
        %v4658 = vunpack.c.l.b16 %v4622
        %v4659 = vunpack.c.h.b16 %v4622
        %v4660 = vunpack.c.l.b16 %v4623
        %v4661 = vunpack.c.h.b16 %v4623
        %v4662 = vunpack.c.l.b16 %v4624
        %v4663 = vunpack.c.h.b16 %v4624
        %v4664 = vunpack.c.l.b16 %v4625
        %v4665 = vunpack.c.h.b16 %v4625
        %v4666 = vunpack.c.l.b16 %v4626
        %v4667 = vunpack.c.h.b16 %v4626
        %v4668 = vunpack.c.l.b16 %v4627
        %v4669 = vunpack.c.h.b16 %v4627
        %v4670 = vunpack.c.l.b16 %v4628
        %v4671 = vunpack.c.h.b16 %v4628
        %v4672 = vunpack.c.l.b16 %v4629
        %v4673 = vunpack.c.h.b16 %v4629
        %v4674 = vunpack.c.l.b16 %v4630
        %v4675 = vunpack.c.h.b16 %v4630
        %v4676 = vunpack.c.l.b16 %v4631
        %v4677 = vunpack.c.h.b16 %v4631
        %v4678 = vunpack.c.l.b16 %v4632
        %v4679 = vunpack.c.h.b16 %v4632
        %v4680 = vunpack.c.l.b16 %v4633
        %v4681 = vunpack.c.h.b16 %v4633
        %v4682 = vpack.c.b16 %v4652, %v4650
        %v4683 = vpack.c.b16 %v4653, %v4651
        %v4684 = vpack.c.b16 %v4656, %v4654
        %v4685 = vpack.c.b16 %v4657, %v4655
        %v4686 = vpack.c.b16 %v4660, %v4658
        %v4687 = vpack.c.b16 %v4661, %v4659
        %v4688 = vpack.c.b16 %v4664, %v4662
        %v4689 = vpack.c.b16 %v4665, %v4663
        %v4690 = vpack.c.b16 %v4668, %v4666
        %v4691 = vpack.c.b16 %v4669, %v4667
        %v4692 = vpack.c.b16 %v4672, %v4670
        %v4693 = vpack.c.b16 %v4673, %v4671
        %v4694 = vpack.c.b16 %v4676, %v4674
        %v4695 = vpack.c.b16 %v4677, %v4675
        %v4696 = vpack.c.b16 %v4680, %v4678
        %v4697 = vpack.c.b16 %v4681, %v4679
        %4714 = vmatpush.bf16.msra.mxu0 %v4696
        %4715 = vmatpush.bf16.msra.mxu0 %v4694
        %4716 = vmatpush.bf16.msra.mxu0 %v4692
        %4717 = vmatpush.bf16.msra.mxu0 %v4690
        %4718 = vmatpush.bf16.msra.mxu0 %v4688
        %4719 = vmatpush.bf16.msra.mxu0 %v4686
        %4720 = vmatpush.bf16.msra.mxu0 %v4684
        %4721 = vmatpush.bf16.msra.mxu0 %v4682
        %4722 = vmatmul.bf16.gmra.mxu0 %v4615
        %v4723 = vpop.f32.mrf.mxu0
        %v4724 = vadd.f32 0.0, %v4723
        %v4725 = vpop.f32.mrf.mxu0
        %v4726 = vadd.f32 0.0, %v4725
        %4727 = vmatmul.bf16.gmra.mxu0 %v4616
        %v4728 = vpop.f32.mrf.mxu0
        %v4729 = vadd.f32 0.0, %v4728
        %v4730 = vpop.f32.mrf.mxu0
        %4731 = vdwg.mxu0
        %4732 = vmatpush.bf16.msra.mxu0 %v4697
        %4733 = vmatpush.bf16.msra.mxu0 %v4695
        %4734 = vmatpush.bf16.msra.mxu0 %v4693
        %4735 = vmatpush.bf16.msra.mxu0 %v4691
        %4736 = vmatpush.bf16.msra.mxu0 %v4689
        %4737 = vmatpush.bf16.msra.mxu0 %v4687
        %4738 = vmatpush.bf16.msra.mxu0 %v4685
        %4739 = vmatpush.bf16.msra.mxu0 %v4683
        %4740 = vmatmul.bf16.gmra.mxu0 %v4615
        %v4741 = vpop.f32.mrf.mxu0
        %v4742 = vadd.f32 0.0, %v4741
        %v4743 = vpop.f32.mrf.mxu0
        %v4744 = vadd.f32 0.0, %v4743
        %4745 = vmatmul.bf16.gmra.mxu0 %v4616
        %v4746 = vpop.f32.mrf.mxu0
        %v4747 = vadd.f32 0.0, %v4746
        %v4748 = vpop.f32.mrf.mxu0
        %4749 = vdwg.mxu0
        %v4766 = vunpack.c.l.b16 %v4596
        %v4767 = vunpack.c.h.b16 %v4596
        %v4768 = vunpack.c.l.b16 %v4597
        %v4769 = vunpack.c.h.b16 %v4597
        %v4770 = vunpack.c.l.b16 %v4598
        %v4771 = vunpack.c.h.b16 %v4598
        %v4772 = vunpack.c.l.b16 %v4599
        %v4773 = vunpack.c.h.b16 %v4599
        %v4774 = vunpack.c.l.b16 %v4600
        %v4775 = vunpack.c.h.b16 %v4600
        %v4776 = vunpack.c.l.b16 %v4601
        %v4777 = vunpack.c.h.b16 %v4601
        %v4778 = vunpack.c.l.b16 %v4602
        %v4779 = vunpack.c.h.b16 %v4602
        %v4780 = vunpack.c.l.b16 %v4603
        %v4781 = vunpack.c.h.b16 %v4603
        %v4782 = vunpack.c.l.b16 %v4604
        %v4783 = vunpack.c.h.b16 %v4604
        %v4784 = vunpack.c.l.b16 %v4605
        %v4785 = vunpack.c.h.b16 %v4605
        %v4786 = vunpack.c.l.b16 %v4606
        %v4787 = vunpack.c.h.b16 %v4606
        %v4788 = vunpack.c.l.b16 %v4607
        %v4789 = vunpack.c.h.b16 %v4607
        %v4790 = vunpack.c.l.b16 %v4608
        %v4791 = vunpack.c.h.b16 %v4608
        %v4792 = vunpack.c.l.b16 %v4609
        %v4793 = vunpack.c.h.b16 %v4609
        %v4794 = vunpack.c.l.b16 %v4610
        %v4795 = vunpack.c.h.b16 %v4610
        %v4796 = vunpack.c.l.b16 %v4611
        %v4797 = vunpack.c.h.b16 %v4611
        %v4798 = vpack.c.b16 %v4768, %v4766
        %v4799 = vpack.c.b16 %v4769, %v4767
        %v4800 = vpack.c.b16 %v4772, %v4770
        %v4801 = vpack.c.b16 %v4773, %v4771
        %v4802 = vpack.c.b16 %v4776, %v4774
        %v4803 = vpack.c.b16 %v4777, %v4775
        %v4804 = vpack.c.b16 %v4780, %v4778
        %v4805 = vpack.c.b16 %v4781, %v4779
        %v4806 = vpack.c.b16 %v4784, %v4782
        %v4807 = vpack.c.b16 %v4785, %v4783
        %v4808 = vpack.c.b16 %v4788, %v4786
        %v4809 = vpack.c.b16 %v4789, %v4787
        %v4810 = vpack.c.b16 %v4792, %v4790
        %v4811 = vpack.c.b16 %v4793, %v4791
        %v4812 = vpack.c.b16 %v4796, %v4794
        %v4813 = vpack.c.b16 %v4797, %v4795
        %4830 = vmatpush.bf16.msra.mxu0 %v4812
        %4831 = vmatpush.bf16.msra.mxu0 %v4810
        %4832 = vmatpush.bf16.msra.mxu0 %v4808
        %4833 = vmatpush.bf16.msra.mxu0 %v4806
        %4834 = vmatpush.bf16.msra.mxu0 %v4804
        %4835 = vmatpush.bf16.msra.mxu0 %v4802
        %4836 = vmatpush.bf16.msra.mxu0 %v4800
        %4837 = vmatpush.bf16.msra.mxu0 %v4798
        %4838 = vmatmul.bf16.gmra.mxu0 %v4594
        %v4839 = vpop.f32.mrf.mxu0
        %v4840 = vadd.f32 %v4724, %v4839
        %v4841 = vpop.f32.mrf.mxu0
        %v4842 = vadd.f32 %v4726, %v4841
        %4843 = vmatmul.bf16.gmra.mxu0 %v4595
        %v4844 = vpop.f32.mrf.mxu0
        %v4845 = vadd.f32 %v4729, %v4844
        %v4846 = vpop.f32.mrf.mxu0
        %4847 = vdwg.mxu0
        %4848 = vmatpush.bf16.msra.mxu0 %v4813
        %4849 = vmatpush.bf16.msra.mxu0 %v4811
        %4850 = vmatpush.bf16.msra.mxu0 %v4809
        %4851 = vmatpush.bf16.msra.mxu0 %v4807
        %4852 = vmatpush.bf16.msra.mxu0 %v4805
        %4853 = vmatpush.bf16.msra.mxu0 %v4803
        %4854 = vmatpush.bf16.msra.mxu0 %v4801
        %4855 = vmatpush.bf16.msra.mxu0 %v4799
        %4856 = vmatmul.bf16.gmra.mxu0 %v4594
        %v4857 = vpop.f32.mrf.mxu0
        %v4858 = vadd.f32 %v4742, %v4857
        %v4859 = vpop.f32.mrf.mxu0
        %v4860 = vadd.f32 %v4744, %v4859
        %4861 = vmatmul.bf16.gmra.mxu0 %v4595
        %v4862 = vpop.f32.mrf.mxu0
        %v4863 = vadd.f32 %v4747, %v4862
        %v4864 = vpop.f32.mrf.mxu0
        %4865 = vdwg.mxu0
        %v4866 = vld [vmem:[#allocation3 + $0x2] sm:$0xff]
        %v4867 = vld [vmem:[#allocation3 + $0xa] sm:$0xff]
        %v4868 = vld [vmem:[#allocation3 + $0x12] sm:$0x3f]
        %v4869 = vpack.c.bf16 %v4867, %v4866
        %v4870 = vpack.c.bf16 %v4868, %v4868
        %s4871 = scalar_lea.vmem %s9, 256
        %v4872 = vld [vmem:[%s4871] sm:$0xff]
        %v4873 = vld [vmem:[%s4871 + $0x8] sm:$0xff]
        %v4874 = vld [vmem:[%s4871 + $0x10] sm:$0xff]
        %v4875 = vld [vmem:[%s4871 + $0x18] sm:$0xff]
        %v4876 = vld [vmem:[%s4871 + $0x20] sm:$0xff]
        %v4877 = vld [vmem:[%s4871 + $0x28] sm:$0xff]
        %v4878 = vld [vmem:[%s4871 + $0x30] sm:$0xff]
        %v4879 = vld [vmem:[%s4871 + $0x38] sm:$0xff]
        %v4880 = vld [vmem:[%s4871 + $0x40] sm:$0xff]
        %v4881 = vld [vmem:[%s4871 + $0x48] sm:$0xff]
        %v4882 = vld [vmem:[%s4871 + $0x50] sm:$0xff]
        %v4883 = vld [vmem:[%s4871 + $0x58] sm:$0xff]
        %v4884 = vld [vmem:[%s4871 + $0x60] sm:$0xff]
        %v4885 = vld [vmem:[%s4871 + $0x68] sm:$0xff]
        %v4886 = vld [vmem:[%s4871 + $0x70] sm:$0xff]
        %v4887 = vld [vmem:[%s4871 + $0x78] sm:$0xff]
        %v4904 = vunpack.c.l.b16 %v4872
        %v4905 = vunpack.c.h.b16 %v4872
        %v4906 = vunpack.c.l.b16 %v4873
        %v4907 = vunpack.c.h.b16 %v4873
        %v4908 = vunpack.c.l.b16 %v4874
        %v4909 = vunpack.c.h.b16 %v4874
        %v4910 = vunpack.c.l.b16 %v4875
        %v4911 = vunpack.c.h.b16 %v4875
        %v4912 = vunpack.c.l.b16 %v4876
        %v4913 = vunpack.c.h.b16 %v4876
        %v4914 = vunpack.c.l.b16 %v4877
        %v4915 = vunpack.c.h.b16 %v4877
        %v4916 = vunpack.c.l.b16 %v4878
        %v4917 = vunpack.c.h.b16 %v4878
        %v4918 = vunpack.c.l.b16 %v4879
        %v4919 = vunpack.c.h.b16 %v4879
        %v4920 = vunpack.c.l.b16 %v4880
        %v4921 = vunpack.c.h.b16 %v4880
        %v4922 = vunpack.c.l.b16 %v4881
        %v4923 = vunpack.c.h.b16 %v4881
        %v4924 = vunpack.c.l.b16 %v4882
        %v4925 = vunpack.c.h.b16 %v4882
        %v4926 = vunpack.c.l.b16 %v4883
        %v4927 = vunpack.c.h.b16 %v4883
        %v4928 = vunpack.c.l.b16 %v4884
        %v4929 = vunpack.c.h.b16 %v4884
        %v4930 = vunpack.c.l.b16 %v4885
        %v4931 = vunpack.c.h.b16 %v4885
        %v4932 = vunpack.c.l.b16 %v4886
        %v4933 = vunpack.c.h.b16 %v4886
        %v4934 = vunpack.c.l.b16 %v4887
        %v4935 = vunpack.c.h.b16 %v4887
        %v4936 = vpack.c.b16 %v4906, %v4904
        %v4937 = vpack.c.b16 %v4907, %v4905
        %v4938 = vpack.c.b16 %v4910, %v4908
        %v4939 = vpack.c.b16 %v4911, %v4909
        %v4940 = vpack.c.b16 %v4914, %v4912
        %v4941 = vpack.c.b16 %v4915, %v4913
        %v4942 = vpack.c.b16 %v4918, %v4916
        %v4943 = vpack.c.b16 %v4919, %v4917
        %v4944 = vpack.c.b16 %v4922, %v4920
        %v4945 = vpack.c.b16 %v4923, %v4921
        %v4946 = vpack.c.b16 %v4926, %v4924
        %v4947 = vpack.c.b16 %v4927, %v4925
        %v4948 = vpack.c.b16 %v4930, %v4928
        %v4949 = vpack.c.b16 %v4931, %v4929
        %v4950 = vpack.c.b16 %v4934, %v4932
        %v4951 = vpack.c.b16 %v4935, %v4933
        %4968 = vmatpush.bf16.msra.mxu0 %v4950
        %4969 = vmatpush.bf16.msra.mxu0 %v4948
        %4970 = vmatpush.bf16.msra.mxu0 %v4946
        %4971 = vmatpush.bf16.msra.mxu0 %v4944
        %4972 = vmatpush.bf16.msra.mxu0 %v4942
        %4973 = vmatpush.bf16.msra.mxu0 %v4940
        %4974 = vmatpush.bf16.msra.mxu0 %v4938
        %4975 = vmatpush.bf16.msra.mxu0 %v4936
        %4976 = vmatmul.bf16.gmra.mxu0 %v4869
        %v4977 = vpop.f32.mrf.mxu0
        %v4978 = vadd.f32 0.0, %v4977
        %v4979 = vpop.f32.mrf.mxu0
        %v4980 = vadd.f32 0.0, %v4979
        %4981 = vmatmul.bf16.gmra.mxu0 %v4870
        %v4982 = vpop.f32.mrf.mxu0
        %v4983 = vadd.f32 0.0, %v4982
        %v4984 = vpop.f32.mrf.mxu0
        %4985 = vdwg.mxu0
        %4986 = vmatpush.bf16.msra.mxu0 %v4951
        %4987 = vmatpush.bf16.msra.mxu0 %v4949
        %4988 = vmatpush.bf16.msra.mxu0 %v4947
        %4989 = vmatpush.bf16.msra.mxu0 %v4945
        %4990 = vmatpush.bf16.msra.mxu0 %v4943
        %4991 = vmatpush.bf16.msra.mxu0 %v4941
        %4992 = vmatpush.bf16.msra.mxu0 %v4939
        %4993 = vmatpush.bf16.msra.mxu0 %v4937
        %4994 = vmatmul.bf16.gmra.mxu0 %v4869
        %v4995 = vpop.f32.mrf.mxu0
        %v4996 = vadd.f32 0.0, %v4995
        %v4997 = vpop.f32.mrf.mxu0
        %v4998 = vadd.f32 0.0, %v4997
        %4999 = vmatmul.bf16.gmra.mxu0 %v4870
        %v5000 = vpop.f32.mrf.mxu0
        %v5001 = vadd.f32 0.0, %v5000
        %v5002 = vpop.f32.mrf.mxu0
        %5003 = vdwg.mxu0
        %v5004 = vadd.f32 %v4840, %v4978
        %v5005 = vadd.f32 %v4858, %v4996
        %v5006 = vadd.f32 %v4842, %v4980
        %v5007 = vadd.f32 %v4860, %v4998
        %v5008 = vadd.f32 %v4845, %v4983
        %v5009 = vadd.f32 %v4863, %v5001
        %v5010 = vld [vmem:[#allocation3 + $0x6] sm:$0xff]
        %v5011 = vld [vmem:[#allocation3 + $0xe] sm:$0xff]
        %v5012 = vld [vmem:[#allocation3 + $0x16] sm:$0x3f]
        %v5013 = vpack.c.bf16 %v5011, %v5010
        %v5014 = vpack.c.bf16 %v5012, %v5012
        %s5015 = scalar_lea.vmem %s9, 384
        %v5016 = vld [vmem:[%s5015] sm:$0xff]
        %v5017 = vld [vmem:[%s5015 + $0x8] sm:$0xff]
        %v5018 = vld [vmem:[%s5015 + $0x10] sm:$0xff]
        %v5019 = vld [vmem:[%s5015 + $0x18] sm:$0xff]
        %v5020 = vld [vmem:[%s5015 + $0x20] sm:$0xff]
        %v5021 = vld [vmem:[%s5015 + $0x28] sm:$0xff]
        %v5022 = vld [vmem:[%s5015 + $0x30] sm:$0xff]
        %v5023 = vld [vmem:[%s5015 + $0x38] sm:$0xff]
        %v5024 = vld [vmem:[%s5015 + $0x40] sm:$0xff]
        %v5025 = vld [vmem:[%s5015 + $0x48] sm:$0xff]
        %v5026 = vld [vmem:[%s5015 + $0x50] sm:$0xff]
        %v5027 = vld [vmem:[%s5015 + $0x58] sm:$0xff]
        %v5028 = vld [vmem:[%s5015 + $0x60] sm:$0xff]
        %v5029 = vld [vmem:[%s5015 + $0x68] sm:$0xff]
        %v5030 = vld [vmem:[%s5015 + $0x70] sm:$0xff]
        %v5031 = vld [vmem:[%s5015 + $0x78] sm:$0xff]
        %v5048 = vunpack.c.l.b16 %v5016
        %v5049 = vunpack.c.h.b16 %v5016
        %v5050 = vunpack.c.l.b16 %v5017
        %v5051 = vunpack.c.h.b16 %v5017
        %v5052 = vunpack.c.l.b16 %v5018
        %v5053 = vunpack.c.h.b16 %v5018
        %v5054 = vunpack.c.l.b16 %v5019
        %v5055 = vunpack.c.h.b16 %v5019
        %v5056 = vunpack.c.l.b16 %v5020
        %v5057 = vunpack.c.h.b16 %v5020
        %v5058 = vunpack.c.l.b16 %v5021
        %v5059 = vunpack.c.h.b16 %v5021
        %v5060 = vunpack.c.l.b16 %v5022
        %v5061 = vunpack.c.h.b16 %v5022
        %v5062 = vunpack.c.l.b16 %v5023
        %v5063 = vunpack.c.h.b16 %v5023
        %v5064 = vunpack.c.l.b16 %v5024
        %v5065 = vunpack.c.h.b16 %v5024
        %v5066 = vunpack.c.l.b16 %v5025
        %v5067 = vunpack.c.h.b16 %v5025
        %v5068 = vunpack.c.l.b16 %v5026
        %v5069 = vunpack.c.h.b16 %v5026
        %v5070 = vunpack.c.l.b16 %v5027
        %v5071 = vunpack.c.h.b16 %v5027
        %v5072 = vunpack.c.l.b16 %v5028
        %v5073 = vunpack.c.h.b16 %v5028
        %v5074 = vunpack.c.l.b16 %v5029
        %v5075 = vunpack.c.h.b16 %v5029
        %v5076 = vunpack.c.l.b16 %v5030
        %v5077 = vunpack.c.h.b16 %v5030
        %v5078 = vunpack.c.l.b16 %v5031
        %v5079 = vunpack.c.h.b16 %v5031
        %v5080 = vpack.c.b16 %v5050, %v5048
        %v5081 = vpack.c.b16 %v5051, %v5049
        %v5082 = vpack.c.b16 %v5054, %v5052
        %v5083 = vpack.c.b16 %v5055, %v5053
        %v5084 = vpack.c.b16 %v5058, %v5056
        %v5085 = vpack.c.b16 %v5059, %v5057
        %v5086 = vpack.c.b16 %v5062, %v5060
        %v5087 = vpack.c.b16 %v5063, %v5061
        %v5088 = vpack.c.b16 %v5066, %v5064
        %v5089 = vpack.c.b16 %v5067, %v5065
        %v5090 = vpack.c.b16 %v5070, %v5068
        %v5091 = vpack.c.b16 %v5071, %v5069
        %v5092 = vpack.c.b16 %v5074, %v5072
        %v5093 = vpack.c.b16 %v5075, %v5073
        %v5094 = vpack.c.b16 %v5078, %v5076
        %v5095 = vpack.c.b16 %v5079, %v5077
        %5112 = vmatpush.bf16.msra.mxu0 %v5094
        %5113 = vmatpush.bf16.msra.mxu0 %v5092
        %5114 = vmatpush.bf16.msra.mxu0 %v5090
        %5115 = vmatpush.bf16.msra.mxu0 %v5088
        %5116 = vmatpush.bf16.msra.mxu0 %v5086
        %5117 = vmatpush.bf16.msra.mxu0 %v5084
        %5118 = vmatpush.bf16.msra.mxu0 %v5082
        %5119 = vmatpush.bf16.msra.mxu0 %v5080
        %5120 = vmatmul.bf16.gmra.mxu0 %v5013
        %v5121 = vpop.f32.mrf.mxu0
        %v5122 = vadd.f32 0.0, %v5121
        %v5123 = vpop.f32.mrf.mxu0
        %v5124 = vadd.f32 0.0, %v5123
        %5125 = vmatmul.bf16.gmra.mxu0 %v5014
        %v5126 = vpop.f32.mrf.mxu0
        %v5127 = vadd.f32 0.0, %v5126
        %v5128 = vpop.f32.mrf.mxu0
        %5129 = vdwg.mxu0
        %5130 = vmatpush.bf16.msra.mxu0 %v5095
        %5131 = vmatpush.bf16.msra.mxu0 %v5093
        %5132 = vmatpush.bf16.msra.mxu0 %v5091
        %5133 = vmatpush.bf16.msra.mxu0 %v5089
        %5134 = vmatpush.bf16.msra.mxu0 %v5087
        %5135 = vmatpush.bf16.msra.mxu0 %v5085
        %5136 = vmatpush.bf16.msra.mxu0 %v5083
        %5137 = vmatpush.bf16.msra.mxu0 %v5081
        %5138 = vmatmul.bf16.gmra.mxu0 %v5013
        %v5139 = vpop.f32.mrf.mxu0
        %v5140 = vadd.f32 0.0, %v5139
        %v5141 = vpop.f32.mrf.mxu0
        %v5142 = vadd.f32 0.0, %v5141
        %5143 = vmatmul.bf16.gmra.mxu0 %v5014
        %v5144 = vpop.f32.mrf.mxu0
        %v5145 = vadd.f32 0.0, %v5144
        %v5146 = vpop.f32.mrf.mxu0
        %5147 = vdwg.mxu0
        %v5148 = vadd.f32 %v5004, %v5122
        %v5149 = vadd.f32 %v5005, %v5140
        %v5150 = vadd.f32 %v5006, %v5124
        %v5151 = vadd.f32 %v5007, %v5142
        %v5152 = vadd.f32 %v5008, %v5127
        %v5153 = vadd.f32 %v5009, %v5145
        %v5154 = vld [vmem:[#allocation3 + $0x7] sm:$0xff]
        %v5155 = vld [vmem:[#allocation3 + $0xf] sm:$0xff]
        %v5156 = vld [vmem:[#allocation3 + $0x17] sm:$0x3f]
        %v5157 = vpack.c.bf16 %v5155, %v5154
        %v5158 = vpack.c.bf16 %v5156, %v5156
        %s5159 = scalar_lea.vmem %s9, 512
        %v5160 = vld [vmem:[%s5159] sm:$0xff]
        %v5161 = vld [vmem:[%s5159 + $0x8] sm:$0xff]
        %v5162 = vld [vmem:[%s5159 + $0x10] sm:$0xff]
        %v5163 = vld [vmem:[%s5159 + $0x18] sm:$0xff]
        %v5164 = vld [vmem:[%s5159 + $0x20] sm:$0xff]
        %v5165 = vld [vmem:[%s5159 + $0x28] sm:$0xff]
        %v5166 = vld [vmem:[%s5159 + $0x30] sm:$0xff]
        %v5167 = vld [vmem:[%s5159 + $0x38] sm:$0xff]
        %v5168 = vld [vmem:[%s5159 + $0x40] sm:$0xff]
        %v5169 = vld [vmem:[%s5159 + $0x48] sm:$0xff]
        %v5170 = vld [vmem:[%s5159 + $0x50] sm:$0xff]
        %v5171 = vld [vmem:[%s5159 + $0x58] sm:$0xff]
        %v5172 = vld [vmem:[%s5159 + $0x60] sm:$0xff]
        %v5173 = vld [vmem:[%s5159 + $0x68] sm:$0xff]
        %v5174 = vld [vmem:[%s5159 + $0x70] sm:$0xff]
        %v5175 = vld [vmem:[%s5159 + $0x78] sm:$0xff]
        %v5192 = vunpack.c.l.b16 %v5160
        %v5193 = vunpack.c.h.b16 %v5160
        %v5194 = vunpack.c.l.b16 %v5161
        %v5195 = vunpack.c.h.b16 %v5161
        %v5196 = vunpack.c.l.b16 %v5162
        %v5197 = vunpack.c.h.b16 %v5162
        %v5198 = vunpack.c.l.b16 %v5163
        %v5199 = vunpack.c.h.b16 %v5163
        %v5200 = vunpack.c.l.b16 %v5164
        %v5201 = vunpack.c.h.b16 %v5164
        %v5202 = vunpack.c.l.b16 %v5165
        %v5203 = vunpack.c.h.b16 %v5165
        %v5204 = vunpack.c.l.b16 %v5166
        %v5205 = vunpack.c.h.b16 %v5166
        %v5206 = vunpack.c.l.b16 %v5167
        %v5207 = vunpack.c.h.b16 %v5167
        %v5208 = vunpack.c.l.b16 %v5168
        %v5209 = vunpack.c.h.b16 %v5168
        %v5210 = vunpack.c.l.b16 %v5169
        %v5211 = vunpack.c.h.b16 %v5169
        %v5212 = vunpack.c.l.b16 %v5170
        %v5213 = vunpack.c.h.b16 %v5170
        %v5214 = vunpack.c.l.b16 %v5171
        %v5215 = vunpack.c.h.b16 %v5171
        %v5216 = vunpack.c.l.b16 %v5172
        %v5217 = vunpack.c.h.b16 %v5172
        %v5218 = vunpack.c.l.b16 %v5173
        %v5219 = vunpack.c.h.b16 %v5173
        %v5220 = vunpack.c.l.b16 %v5174
        %v5221 = vunpack.c.h.b16 %v5174
        %v5222 = vunpack.c.l.b16 %v5175
        %v5223 = vunpack.c.h.b16 %v5175
        %v5224 = vpack.c.b16 %v5194, %v5192
        %v5225 = vpack.c.b16 %v5195, %v5193
        %v5226 = vpack.c.b16 %v5198, %v5196
        %v5227 = vpack.c.b16 %v5199, %v5197
        %v5228 = vpack.c.b16 %v5202, %v5200
        %v5229 = vpack.c.b16 %v5203, %v5201
        %v5230 = vpack.c.b16 %v5206, %v5204
        %v5231 = vpack.c.b16 %v5207, %v5205
        %v5232 = vpack.c.b16 %v5210, %v5208
        %v5233 = vpack.c.b16 %v5211, %v5209
        %v5234 = vpack.c.b16 %v5214, %v5212
        %v5235 = vpack.c.b16 %v5215, %v5213
        %v5236 = vpack.c.b16 %v5218, %v5216
        %v5237 = vpack.c.b16 %v5219, %v5217
        %v5238 = vpack.c.b16 %v5222, %v5220
        %v5239 = vpack.c.b16 %v5223, %v5221
        %5256 = vmatpush.bf16.msra.mxu0 %v5238
        %5257 = vmatpush.bf16.msra.mxu0 %v5236
        %5258 = vmatpush.bf16.msra.mxu0 %v5234
        %5259 = vmatpush.bf16.msra.mxu0 %v5232
        %5260 = vmatpush.bf16.msra.mxu0 %v5230
        %5261 = vmatpush.bf16.msra.mxu0 %v5228
        %5262 = vmatpush.bf16.msra.mxu0 %v5226
        %5263 = vmatpush.bf16.msra.mxu0 %v5224
        %5264 = vmatmul.bf16.gmra.mxu0 %v5157
        %v5265 = vpop.f32.mrf.mxu0
        %v5266 = vadd.f32 0.0, %v5265
        %v5267 = vpop.f32.mrf.mxu0
        %v5268 = vadd.f32 0.0, %v5267
        %5269 = vmatmul.bf16.gmra.mxu0 %v5158
        %v5270 = vpop.f32.mrf.mxu0
        %v5271 = vadd.f32 0.0, %v5270
        %v5272 = vpop.f32.mrf.mxu0
        %5273 = vdwg.mxu0
        %5274 = vmatpush.bf16.msra.mxu0 %v5239
        %5275 = vmatpush.bf16.msra.mxu0 %v5237
        %5276 = vmatpush.bf16.msra.mxu0 %v5235
        %5277 = vmatpush.bf16.msra.mxu0 %v5233
        %5278 = vmatpush.bf16.msra.mxu0 %v5231
        %5279 = vmatpush.bf16.msra.mxu0 %v5229
        %5280 = vmatpush.bf16.msra.mxu0 %v5227
        %5281 = vmatpush.bf16.msra.mxu0 %v5225
        %5282 = vmatmul.bf16.gmra.mxu0 %v5157
        %v5283 = vpop.f32.mrf.mxu0
        %v5284 = vadd.f32 0.0, %v5283
        %v5285 = vpop.f32.mrf.mxu0
        %v5286 = vadd.f32 0.0, %v5285
        %5287 = vmatmul.bf16.gmra.mxu0 %v5158
        %v5288 = vpop.f32.mrf.mxu0
        %v5289 = vadd.f32 0.0, %v5288
        %v5290 = vpop.f32.mrf.mxu0
        %5291 = vdwg.mxu0
        %v5292 = vadd.f32 %v5148, %v5266
        %v5293 = vadd.f32 %v5149, %v5284
        %v5294 = vadd.f32 %v5150, %v5268
        %v5295 = vadd.f32 %v5151, %v5286
        %v5296 = vadd.f32 %v5152, %v5271
        %v5297 = vadd.f32 %v5153, %v5289
        %v5298 = vld [vmem:[#allocation3 + $0x8] sm:$0xff]
        %v5299 = vld [vmem:[#allocation3 + $0x10] sm:$0xff]
        %v5300 = vld [vmem:[#allocation3 + $0x18] sm:$0x3f]
        %v5301 = vpack.c.bf16 %v5299, %v5298
        %v5302 = vpack.c.bf16 %v5300, %v5300
        %s5303 = scalar_lea.vmem %s9, 640
        %v5304 = vld [vmem:[%s5303] sm:$0xff]
        %v5305 = vld [vmem:[%s5303 + $0x8] sm:$0xff]
        %v5306 = vld [vmem:[%s5303 + $0x10] sm:$0xff]
        %v5307 = vld [vmem:[%s5303 + $0x18] sm:$0xff]
        %v5308 = vld [vmem:[%s5303 + $0x20] sm:$0xff]
        %v5309 = vld [vmem:[%s5303 + $0x28] sm:$0xff]
        %v5310 = vld [vmem:[%s5303 + $0x30] sm:$0xff]
        %v5311 = vld [vmem:[%s5303 + $0x38] sm:$0xff]
        %v5312 = vld [vmem:[%s5303 + $0x40] sm:$0xff]
        %v5313 = vld [vmem:[%s5303 + $0x48] sm:$0xff]
        %v5314 = vld [vmem:[%s5303 + $0x50] sm:$0xff]
        %v5315 = vld [vmem:[%s5303 + $0x58] sm:$0xff]
        %v5316 = vld [vmem:[%s5303 + $0x60] sm:$0xff]
        %v5317 = vld [vmem:[%s5303 + $0x68] sm:$0xff]
        %v5318 = vld [vmem:[%s5303 + $0x70] sm:$0xff]
        %v5319 = vld [vmem:[%s5303 + $0x78] sm:$0xff]
        %v5336 = vunpack.c.l.b16 %v5304
        %v5337 = vunpack.c.h.b16 %v5304
        %v5338 = vunpack.c.l.b16 %v5305
        %v5339 = vunpack.c.h.b16 %v5305
        %v5340 = vunpack.c.l.b16 %v5306
        %v5341 = vunpack.c.h.b16 %v5306
        %v5342 = vunpack.c.l.b16 %v5307
        %v5343 = vunpack.c.h.b16 %v5307
        %v5344 = vunpack.c.l.b16 %v5308
        %v5345 = vunpack.c.h.b16 %v5308
        %v5346 = vunpack.c.l.b16 %v5309
        %v5347 = vunpack.c.h.b16 %v5309
        %v5348 = vunpack.c.l.b16 %v5310
        %v5349 = vunpack.c.h.b16 %v5310
        %v5350 = vunpack.c.l.b16 %v5311
        %v5351 = vunpack.c.h.b16 %v5311
        %v5352 = vunpack.c.l.b16 %v5312
        %v5353 = vunpack.c.h.b16 %v5312
        %v5354 = vunpack.c.l.b16 %v5313
        %v5355 = vunpack.c.h.b16 %v5313
        %v5356 = vunpack.c.l.b16 %v5314
        %v5357 = vunpack.c.h.b16 %v5314
        %v5358 = vunpack.c.l.b16 %v5315
        %v5359 = vunpack.c.h.b16 %v5315
        %v5360 = vunpack.c.l.b16 %v5316
        %v5361 = vunpack.c.h.b16 %v5316
        %v5362 = vunpack.c.l.b16 %v5317
        %v5363 = vunpack.c.h.b16 %v5317
        %v5364 = vunpack.c.l.b16 %v5318
        %v5365 = vunpack.c.h.b16 %v5318
        %v5366 = vunpack.c.l.b16 %v5319
        %v5367 = vunpack.c.h.b16 %v5319
        %v5368 = vpack.c.b16 %v5338, %v5336
        %v5369 = vpack.c.b16 %v5339, %v5337
        %v5370 = vpack.c.b16 %v5342, %v5340
        %v5371 = vpack.c.b16 %v5343, %v5341
        %v5372 = vpack.c.b16 %v5346, %v5344
        %v5373 = vpack.c.b16 %v5347, %v5345
        %v5374 = vpack.c.b16 %v5350, %v5348
        %v5375 = vpack.c.b16 %v5351, %v5349
        %v5376 = vpack.c.b16 %v5354, %v5352
        %v5377 = vpack.c.b16 %v5355, %v5353
        %v5378 = vpack.c.b16 %v5358, %v5356
        %v5379 = vpack.c.b16 %v5359, %v5357
        %v5380 = vpack.c.b16 %v5362, %v5360
        %v5381 = vpack.c.b16 %v5363, %v5361
        %v5382 = vpack.c.b16 %v5366, %v5364
        %v5383 = vpack.c.b16 %v5367, %v5365
        %5400 = vmatpush.bf16.msra.mxu0 %v5382
        %5401 = vmatpush.bf16.msra.mxu0 %v5380
        %5402 = vmatpush.bf16.msra.mxu0 %v5378
        %5403 = vmatpush.bf16.msra.mxu0 %v5376
        %5404 = vmatpush.bf16.msra.mxu0 %v5374
        %5405 = vmatpush.bf16.msra.mxu0 %v5372
        %5406 = vmatpush.bf16.msra.mxu0 %v5370
        %5407 = vmatpush.bf16.msra.mxu0 %v5368
        %5408 = vmatmul.bf16.gmra.mxu0 %v5301
        %v5409 = vpop.f32.mrf.mxu0
        %v5410 = vadd.f32 0.0, %v5409
        %v5411 = vpop.f32.mrf.mxu0
        %v5412 = vadd.f32 0.0, %v5411
        %5413 = vmatmul.bf16.gmra.mxu0 %v5302
        %v5414 = vpop.f32.mrf.mxu0
        %v5415 = vadd.f32 0.0, %v5414
        %v5416 = vpop.f32.mrf.mxu0
        %5417 = vdwg.mxu0
        %5418 = vmatpush.bf16.msra.mxu0 %v5383
        %5419 = vmatpush.bf16.msra.mxu0 %v5381
        %5420 = vmatpush.bf16.msra.mxu0 %v5379
        %5421 = vmatpush.bf16.msra.mxu0 %v5377
        %5422 = vmatpush.bf16.msra.mxu0 %v5375
        %5423 = vmatpush.bf16.msra.mxu0 %v5373
        %5424 = vmatpush.bf16.msra.mxu0 %v5371
        %5425 = vmatpush.bf16.msra.mxu0 %v5369
        %5426 = vmatmul.bf16.gmra.mxu0 %v5301
        %v5427 = vpop.f32.mrf.mxu0
        %v5428 = vadd.f32 0.0, %v5427
        %v5429 = vpop.f32.mrf.mxu0
        %v5430 = vadd.f32 0.0, %v5429
        %5431 = vmatmul.bf16.gmra.mxu0 %v5302
        %v5432 = vpop.f32.mrf.mxu0
        %v5433 = vadd.f32 0.0, %v5432
        %v5434 = vpop.f32.mrf.mxu0
        %5435 = vdwg.mxu0
        %v5436 = vadd.f32 %v5292, %v5410
        %v5437 = vadd.f32 %v5293, %v5428
        %v5438 = vadd.f32 %v5294, %v5412
        %v5439 = vadd.f32 %v5295, %v5430
        %v5440 = vadd.f32 %v5296, %v5415
        %v5441 = vadd.f32 %v5297, %v5433
        %v5442 = vld [vmem:[#allocation3 + $0xc] sm:$0xff]
        %v5443 = vld [vmem:[#allocation3 + $0x14] sm:$0xff]
        %v5444 = vld [vmem:[#allocation3 + $0x1c] sm:$0x3f]
        %v5445 = vpack.c.bf16 %v5443, %v5442
        %v5446 = vpack.c.bf16 %v5444, %v5444
        %s5447 = scalar_lea.vmem %s9, 768
        %v5448 = vld [vmem:[%s5447] sm:$0xff]
        %v5449 = vld [vmem:[%s5447 + $0x8] sm:$0xff]
        %v5450 = vld [vmem:[%s5447 + $0x10] sm:$0xff]
        %v5451 = vld [vmem:[%s5447 + $0x18] sm:$0xff]
        %v5452 = vld [vmem:[%s5447 + $0x20] sm:$0xff]
        %v5453 = vld [vmem:[%s5447 + $0x28] sm:$0xff]
        %v5454 = vld [vmem:[%s5447 + $0x30] sm:$0xff]
        %v5455 = vld [vmem:[%s5447 + $0x38] sm:$0xff]
        %v5456 = vld [vmem:[%s5447 + $0x40] sm:$0xff]
        %v5457 = vld [vmem:[%s5447 + $0x48] sm:$0xff]
        %v5458 = vld [vmem:[%s5447 + $0x50] sm:$0xff]
        %v5459 = vld [vmem:[%s5447 + $0x58] sm:$0xff]
        %v5460 = vld [vmem:[%s5447 + $0x60] sm:$0xff]
        %v5461 = vld [vmem:[%s5447 + $0x68] sm:$0xff]
        %v5462 = vld [vmem:[%s5447 + $0x70] sm:$0xff]
        %v5463 = vld [vmem:[%s5447 + $0x78] sm:$0xff]
        %v5480 = vunpack.c.l.b16 %v5448
        %v5481 = vunpack.c.h.b16 %v5448
        %v5482 = vunpack.c.l.b16 %v5449
        %v5483 = vunpack.c.h.b16 %v5449
        %v5484 = vunpack.c.l.b16 %v5450
        %v5485 = vunpack.c.h.b16 %v5450
        %v5486 = vunpack.c.l.b16 %v5451
        %v5487 = vunpack.c.h.b16 %v5451
        %v5488 = vunpack.c.l.b16 %v5452
        %v5489 = vunpack.c.h.b16 %v5452
        %v5490 = vunpack.c.l.b16 %v5453
        %v5491 = vunpack.c.h.b16 %v5453
        %v5492 = vunpack.c.l.b16 %v5454
        %v5493 = vunpack.c.h.b16 %v5454
        %v5494 = vunpack.c.l.b16 %v5455
        %v5495 = vunpack.c.h.b16 %v5455
        %v5496 = vunpack.c.l.b16 %v5456
        %v5497 = vunpack.c.h.b16 %v5456
        %v5498 = vunpack.c.l.b16 %v5457
        %v5499 = vunpack.c.h.b16 %v5457
        %v5500 = vunpack.c.l.b16 %v5458
        %v5501 = vunpack.c.h.b16 %v5458
        %v5502 = vunpack.c.l.b16 %v5459
        %v5503 = vunpack.c.h.b16 %v5459
        %v5504 = vunpack.c.l.b16 %v5460
        %v5505 = vunpack.c.h.b16 %v5460
        %v5506 = vunpack.c.l.b16 %v5461
        %v5507 = vunpack.c.h.b16 %v5461
        %v5508 = vunpack.c.l.b16 %v5462
        %v5509 = vunpack.c.h.b16 %v5462
        %v5510 = vunpack.c.l.b16 %v5463
        %v5511 = vunpack.c.h.b16 %v5463
        %v5512 = vpack.c.b16 %v5482, %v5480
        %v5513 = vpack.c.b16 %v5483, %v5481
        %v5514 = vpack.c.b16 %v5486, %v5484
        %v5515 = vpack.c.b16 %v5487, %v5485
        %v5516 = vpack.c.b16 %v5490, %v5488
        %v5517 = vpack.c.b16 %v5491, %v5489
        %v5518 = vpack.c.b16 %v5494, %v5492
        %v5519 = vpack.c.b16 %v5495, %v5493
        %v5520 = vpack.c.b16 %v5498, %v5496
        %v5521 = vpack.c.b16 %v5499, %v5497
        %v5522 = vpack.c.b16 %v5502, %v5500
        %v5523 = vpack.c.b16 %v5503, %v5501
        %v5524 = vpack.c.b16 %v5506, %v5504
        %v5525 = vpack.c.b16 %v5507, %v5505
        %v5526 = vpack.c.b16 %v5510, %v5508
        %v5527 = vpack.c.b16 %v5511, %v5509
        %5544 = vmatpush.bf16.msra.mxu0 %v5526
        %5545 = vmatpush.bf16.msra.mxu0 %v5524
        %5546 = vmatpush.bf16.msra.mxu0 %v5522
        %5547 = vmatpush.bf16.msra.mxu0 %v5520
        %5548 = vmatpush.bf16.msra.mxu0 %v5518
        %5549 = vmatpush.bf16.msra.mxu0 %v5516
        %5550 = vmatpush.bf16.msra.mxu0 %v5514
        %5551 = vmatpush.bf16.msra.mxu0 %v5512
        %5552 = vmatmul.bf16.gmra.mxu0 %v5445
        %v5553 = vpop.f32.mrf.mxu0
        %v5554 = vadd.f32 0.0, %v5553
        %v5555 = vpop.f32.mrf.mxu0
        %v5556 = vadd.f32 0.0, %v5555
        %5557 = vmatmul.bf16.gmra.mxu0 %v5446
        %v5558 = vpop.f32.mrf.mxu0
        %v5559 = vadd.f32 0.0, %v5558
        %v5560 = vpop.f32.mrf.mxu0
        %5561 = vdwg.mxu0
        %5562 = vmatpush.bf16.msra.mxu0 %v5527
        %5563 = vmatpush.bf16.msra.mxu0 %v5525
        %5564 = vmatpush.bf16.msra.mxu0 %v5523
        %5565 = vmatpush.bf16.msra.mxu0 %v5521
        %5566 = vmatpush.bf16.msra.mxu0 %v5519
        %5567 = vmatpush.bf16.msra.mxu0 %v5517
        %5568 = vmatpush.bf16.msra.mxu0 %v5515
        %5569 = vmatpush.bf16.msra.mxu0 %v5513
        %5570 = vmatmul.bf16.gmra.mxu0 %v5445
        %v5571 = vpop.f32.mrf.mxu0
        %v5572 = vadd.f32 0.0, %v5571
        %v5573 = vpop.f32.mrf.mxu0
        %v5574 = vadd.f32 0.0, %v5573
        %5575 = vmatmul.bf16.gmra.mxu0 %v5446
        %v5576 = vpop.f32.mrf.mxu0
        %v5577 = vadd.f32 0.0, %v5576
        %v5578 = vpop.f32.mrf.mxu0
        %5579 = vdwg.mxu0
        %v5580 = vadd.f32 %v5436, %v5554
        %v5581 = vadd.f32 %v5437, %v5572
        %v5582 = vadd.f32 %v5438, %v5556
        %v5583 = vadd.f32 %v5439, %v5574
        %v5584 = vadd.f32 %v5440, %v5559
        %v5585 = vadd.f32 %v5441, %v5577
        %v5586 = vld [vmem:[#allocation3 + $0xd] sm:$0xff]
        %v5587 = vld [vmem:[#allocation3 + $0x15] sm:$0xff]
        %v5588 = vld [vmem:[#allocation3 + $0x1d] sm:$0x3f]
        %v5589 = vpack.c.bf16 %v5587, %v5586
        %v5590 = vpack.c.bf16 %v5588, %v5588
        %s5591 = scalar_lea.vmem %s9, 896
        %v5592 = vld [vmem:[%s5591] sm:$0xff]
        %v5593 = vld [vmem:[%s5591 + $0x8] sm:$0xff]
        %v5594 = vld [vmem:[%s5591 + $0x10] sm:$0xff]
        %v5595 = vld [vmem:[%s5591 + $0x18] sm:$0xff]
        %v5596 = vld [vmem:[%s5591 + $0x20] sm:$0xff]
        %v5597 = vld [vmem:[%s5591 + $0x28] sm:$0xff]
        %v5598 = vld [vmem:[%s5591 + $0x30] sm:$0xff]
        %v5599 = vld [vmem:[%s5591 + $0x38] sm:$0xff]
        %v5600 = vld [vmem:[%s5591 + $0x40] sm:$0xff]
        %v5601 = vld [vmem:[%s5591 + $0x48] sm:$0xff]
        %v5602 = vld [vmem:[%s5591 + $0x50] sm:$0xff]
        %v5603 = vld [vmem:[%s5591 + $0x58] sm:$0xff]
        %v5604 = vld [vmem:[%s5591 + $0x60] sm:$0xff]
        %v5605 = vld [vmem:[%s5591 + $0x68] sm:$0xff]
        %v5606 = vld [vmem:[%s5591 + $0x70] sm:$0xff]
        %v5607 = vld [vmem:[%s5591 + $0x78] sm:$0xff]
        %v5624 = vunpack.c.l.b16 %v5592
        %v5625 = vunpack.c.h.b16 %v5592
        %v5626 = vunpack.c.l.b16 %v5593
        %v5627 = vunpack.c.h.b16 %v5593
        %v5628 = vunpack.c.l.b16 %v5594
        %v5629 = vunpack.c.h.b16 %v5594
        %v5630 = vunpack.c.l.b16 %v5595
        %v5631 = vunpack.c.h.b16 %v5595
        %v5632 = vunpack.c.l.b16 %v5596
        %v5633 = vunpack.c.h.b16 %v5596
        %v5634 = vunpack.c.l.b16 %v5597
        %v5635 = vunpack.c.h.b16 %v5597
        %v5636 = vunpack.c.l.b16 %v5598
        %v5637 = vunpack.c.h.b16 %v5598
        %v5638 = vunpack.c.l.b16 %v5599
        %v5639 = vunpack.c.h.b16 %v5599
        %v5640 = vunpack.c.l.b16 %v5600
        %v5641 = vunpack.c.h.b16 %v5600
        %v5642 = vunpack.c.l.b16 %v5601
        %v5643 = vunpack.c.h.b16 %v5601
        %v5644 = vunpack.c.l.b16 %v5602
        %v5645 = vunpack.c.h.b16 %v5602
        %v5646 = vunpack.c.l.b16 %v5603
        %v5647 = vunpack.c.h.b16 %v5603
        %v5648 = vunpack.c.l.b16 %v5604
        %v5649 = vunpack.c.h.b16 %v5604
        %v5650 = vunpack.c.l.b16 %v5605
        %v5651 = vunpack.c.h.b16 %v5605
        %v5652 = vunpack.c.l.b16 %v5606
        %v5653 = vunpack.c.h.b16 %v5606
        %v5654 = vunpack.c.l.b16 %v5607
        %v5655 = vunpack.c.h.b16 %v5607
        %v5656 = vpack.c.b16 %v5626, %v5624
        %v5657 = vpack.c.b16 %v5627, %v5625
        %v5658 = vpack.c.b16 %v5630, %v5628
        %v5659 = vpack.c.b16 %v5631, %v5629
        %v5660 = vpack.c.b16 %v5634, %v5632
        %v5661 = vpack.c.b16 %v5635, %v5633
        %v5662 = vpack.c.b16 %v5638, %v5636
        %v5663 = vpack.c.b16 %v5639, %v5637
        %v5664 = vpack.c.b16 %v5642, %v5640
        %v5665 = vpack.c.b16 %v5643, %v5641
        %v5666 = vpack.c.b16 %v5646, %v5644
        %v5667 = vpack.c.b16 %v5647, %v5645
        %v5668 = vpack.c.b16 %v5650, %v5648
        %v5669 = vpack.c.b16 %v5651, %v5649
        %v5670 = vpack.c.b16 %v5654, %v5652
        %v5671 = vpack.c.b16 %v5655, %v5653
        %5688 = vmatpush.bf16.msra.mxu0 %v5670
        %5689 = vmatpush.bf16.msra.mxu0 %v5668
        %5690 = vmatpush.bf16.msra.mxu0 %v5666
        %5691 = vmatpush.bf16.msra.mxu0 %v5664
        %5692 = vmatpush.bf16.msra.mxu0 %v5662
        %5693 = vmatpush.bf16.msra.mxu0 %v5660
        %5694 = vmatpush.bf16.msra.mxu0 %v5658
        %5695 = vmatpush.bf16.msra.mxu0 %v5656
        %5696 = vmatmul.bf16.gmra.mxu0 %v5589
        %v5697 = vpop.f32.mrf.mxu0
        %v5698 = vadd.f32 0.0, %v5697
        %v5699 = vpop.f32.mrf.mxu0
        %v5700 = vadd.f32 0.0, %v5699
        %5701 = vmatmul.bf16.gmra.mxu0 %v5590
        %v5702 = vpop.f32.mrf.mxu0
        %v5703 = vadd.f32 0.0, %v5702
        %v5704 = vpop.f32.mrf.mxu0
        %5705 = vdwg.mxu0
        %5706 = vmatpush.bf16.msra.mxu0 %v5671
        %5707 = vmatpush.bf16.msra.mxu0 %v5669
        %5708 = vmatpush.bf16.msra.mxu0 %v5667
        %5709 = vmatpush.bf16.msra.mxu0 %v5665
        %5710 = vmatpush.bf16.msra.mxu0 %v5663
        %5711 = vmatpush.bf16.msra.mxu0 %v5661
        %5712 = vmatpush.bf16.msra.mxu0 %v5659
        %5713 = vmatpush.bf16.msra.mxu0 %v5657
        %5714 = vmatmul.bf16.gmra.mxu0 %v5589
        %v5715 = vpop.f32.mrf.mxu0
        %v5716 = vadd.f32 0.0, %v5715
        %v5717 = vpop.f32.mrf.mxu0
        %v5718 = vadd.f32 0.0, %v5717
        %5719 = vmatmul.bf16.gmra.mxu0 %v5590
        %v5720 = vpop.f32.mrf.mxu0
        %v5721 = vadd.f32 0.0, %v5720
        %v5722 = vpop.f32.mrf.mxu0
        %5723 = vdwg.mxu0
        %v5724 = vadd.f32 %v5580, %v5698
        %v5725 = vadd.f32 %v5581, %v5716
        %v5726 = vadd.f32 %v5582, %v5700
        %v5727 = vadd.f32 %v5583, %v5718
        %v5728 = vadd.f32 %v5584, %v5703
        %v5729 = vadd.f32 %v5585, %v5721
        %v5730 = vld [vmem:[#allocation3 + $0xe] sm:$0xff]
        %v5731 = vld [vmem:[#allocation3 + $0x16] sm:$0xff]
        %v5732 = vld [vmem:[#allocation3 + $0x1e] sm:$0x3f]
        %v5733 = vpack.c.bf16 %v5731, %v5730
        %v5734 = vpack.c.bf16 %v5732, %v5732
        %s5735 = scalar_lea.vmem %s9, 1024
        %v5736 = vld [vmem:[%s5735] sm:$0xff]
        %v5737 = vld [vmem:[%s5735 + $0x8] sm:$0xff]
        %v5738 = vld [vmem:[%s5735 + $0x10] sm:$0xff]
        %v5739 = vld [vmem:[%s5735 + $0x18] sm:$0xff]
        %v5740 = vld [vmem:[%s5735 + $0x20] sm:$0xff]
        %v5741 = vld [vmem:[%s5735 + $0x28] sm:$0xff]
        %v5742 = vld [vmem:[%s5735 + $0x30] sm:$0xff]
        %v5743 = vld [vmem:[%s5735 + $0x38] sm:$0xff]
        %v5744 = vld [vmem:[%s5735 + $0x40] sm:$0xff]
        %v5745 = vld [vmem:[%s5735 + $0x48] sm:$0xff]
        %v5746 = vld [vmem:[%s5735 + $0x50] sm:$0xff]
        %v5747 = vld [vmem:[%s5735 + $0x58] sm:$0xff]
        %v5748 = vld [vmem:[%s5735 + $0x60] sm:$0xff]
        %v5749 = vld [vmem:[%s5735 + $0x68] sm:$0xff]
        %v5750 = vld [vmem:[%s5735 + $0x70] sm:$0xff]
        %v5751 = vld [vmem:[%s5735 + $0x78] sm:$0xff]
        %v5768 = vunpack.c.l.b16 %v5736
        %v5769 = vunpack.c.h.b16 %v5736
        %v5770 = vunpack.c.l.b16 %v5737
        %v5771 = vunpack.c.h.b16 %v5737
        %v5772 = vunpack.c.l.b16 %v5738
        %v5773 = vunpack.c.h.b16 %v5738
        %v5774 = vunpack.c.l.b16 %v5739
        %v5775 = vunpack.c.h.b16 %v5739
        %v5776 = vunpack.c.l.b16 %v5740
        %v5777 = vunpack.c.h.b16 %v5740
        %v5778 = vunpack.c.l.b16 %v5741
        %v5779 = vunpack.c.h.b16 %v5741
        %v5780 = vunpack.c.l.b16 %v5742
        %v5781 = vunpack.c.h.b16 %v5742
        %v5782 = vunpack.c.l.b16 %v5743
        %v5783 = vunpack.c.h.b16 %v5743
        %v5784 = vunpack.c.l.b16 %v5744
        %v5785 = vunpack.c.h.b16 %v5744
        %v5786 = vunpack.c.l.b16 %v5745
        %v5787 = vunpack.c.h.b16 %v5745
        %v5788 = vunpack.c.l.b16 %v5746
        %v5789 = vunpack.c.h.b16 %v5746
        %v5790 = vunpack.c.l.b16 %v5747
        %v5791 = vunpack.c.h.b16 %v5747
        %v5792 = vunpack.c.l.b16 %v5748
        %v5793 = vunpack.c.h.b16 %v5748
        %v5794 = vunpack.c.l.b16 %v5749
        %v5795 = vunpack.c.h.b16 %v5749
        %v5796 = vunpack.c.l.b16 %v5750
        %v5797 = vunpack.c.h.b16 %v5750
        %v5798 = vunpack.c.l.b16 %v5751
        %v5799 = vunpack.c.h.b16 %v5751
        %v5800 = vpack.c.b16 %v5770, %v5768
        %v5801 = vpack.c.b16 %v5771, %v5769
        %v5802 = vpack.c.b16 %v5774, %v5772
        %v5803 = vpack.c.b16 %v5775, %v5773
        %v5804 = vpack.c.b16 %v5778, %v5776
        %v5805 = vpack.c.b16 %v5779, %v5777
        %v5806 = vpack.c.b16 %v5782, %v5780
        %v5807 = vpack.c.b16 %v5783, %v5781
        %v5808 = vpack.c.b16 %v5786, %v5784
        %v5809 = vpack.c.b16 %v5787, %v5785
        %v5810 = vpack.c.b16 %v5790, %v5788
        %v5811 = vpack.c.b16 %v5791, %v5789
        %v5812 = vpack.c.b16 %v5794, %v5792
        %v5813 = vpack.c.b16 %v5795, %v5793
        %v5814 = vpack.c.b16 %v5798, %v5796
        %v5815 = vpack.c.b16 %v5799, %v5797
        %5832 = vmatpush.bf16.msra.mxu0 %v5814
        %5833 = vmatpush.bf16.msra.mxu0 %v5812
        %5834 = vmatpush.bf16.msra.mxu0 %v5810
        %5835 = vmatpush.bf16.msra.mxu0 %v5808
        %5836 = vmatpush.bf16.msra.mxu0 %v5806
        %5837 = vmatpush.bf16.msra.mxu0 %v5804
        %5838 = vmatpush.bf16.msra.mxu0 %v5802
        %5839 = vmatpush.bf16.msra.mxu0 %v5800
        %5840 = vmatmul.bf16.gmra.mxu0 %v5733
        %v5841 = vpop.f32.mrf.mxu0
        %v5842 = vadd.f32 0.0, %v5841
        %v5843 = vpop.f32.mrf.mxu0
        %v5844 = vadd.f32 0.0, %v5843
        %5845 = vmatmul.bf16.gmra.mxu0 %v5734
        %v5846 = vpop.f32.mrf.mxu0
        %v5847 = vadd.f32 0.0, %v5846
        %v5848 = vpop.f32.mrf.mxu0
        %5849 = vdwg.mxu0
        %5850 = vmatpush.bf16.msra.mxu0 %v5815
        %5851 = vmatpush.bf16.msra.mxu0 %v5813
        %5852 = vmatpush.bf16.msra.mxu0 %v5811
        %5853 = vmatpush.bf16.msra.mxu0 %v5809
        %5854 = vmatpush.bf16.msra.mxu0 %v5807
        %5855 = vmatpush.bf16.msra.mxu0 %v5805
        %5856 = vmatpush.bf16.msra.mxu0 %v5803
        %5857 = vmatpush.bf16.msra.mxu0 %v5801
        %5858 = vmatmul.bf16.gmra.mxu0 %v5733
        %v5859 = vpop.f32.mrf.mxu0
        %v5860 = vadd.f32 0.0, %v5859
        %v5861 = vpop.f32.mrf.mxu0
        %v5862 = vadd.f32 0.0, %v5861
        %5863 = vmatmul.bf16.gmra.mxu0 %v5734
        %v5864 = vpop.f32.mrf.mxu0
        %v5865 = vadd.f32 0.0, %v5864
        %v5866 = vpop.f32.mrf.mxu0
        %5867 = vdwg.mxu0
        %v5868 = vadd.f32 %v5724, %v5842
        %v5869 = vadd.f32 %v5725, %v5860
        %v5870 = vadd.f32 %v5726, %v5844
        %v5871 = vadd.f32 %v5727, %v5862
        %v5872 = vadd.f32 %v5728, %v5847
        %v5873 = vadd.f32 %v5729, %v5865
        %v5874 = vld [vmem:[%s10] sm:$0x3]
        %v5876 = vperm.slane %v5874, 0
        %v5877 = vperm.slane %v5874, 1
        %v5880 = vmul.f32 %v5868, %v5876
        %v5881 = vmul.f32 %v5869, %v5877
        %v5882 = vmul.f32 %v5870, %v5876
        %v5883 = vmul.f32 %v5871, %v5877
        %v5884 = vmul.f32 %v5872, %v5876
        %v5885 = vmul.f32 %v5873, %v5877
        %v5886 = vld [vmem:[%s11] sm:$0x3]
        %v5888 = vperm.slane %v5886, 0
        %v5889 = vperm.slane %v5886, 1
        %v5892 = vadd.f32 %v5880, %v5888
        %v5893 = vadd.f32 %v5881, %v5889
        %v5894 = vadd.f32 %v5882, %v5888
        %v5895 = vadd.f32 %v5883, %v5889
        %v5896 = vadd.f32 %v5884, %v5888
        %v5897 = vadd.f32 %v5885, %v5889
        %v5898 = vmax.f32 %v5892, 0.0
        %v5899 = vmax.f32 %v5893, 0.0
        %v5900 = vmax.f32 %v5894, 0.0
        %v5901 = vmax.f32 %v5895, 0.0
        %v5902 = vmax.f32 %v5896, 0.0
        %v5903 = vmax.f32 %v5897, 0.0
        %5904 = vst [vmem:[#allocation7] sm:$0xff] %v5898
        %5905 = vst [vmem:[#allocation7 + $0x8] sm:$0xff] %v5899
        %5906 = vst [vmem:[#allocation7 + $0x10] sm:$0xff] %v5900
        %5907 = vst [vmem:[#allocation7 + $0x18] sm:$0xff] %v5901
        %5908 = vst [vmem:[#allocation7 + $0x20] sm:$0x3f] %v5902
        %5909 = vst [vmem:[#allocation7 + $0x28] sm:$0x3f] %v5903
        %v5910 = vld [vmem:[#allocation7] sm:$0xff]
        %v5911 = vld [vmem:[#allocation7 + $0x8] sm:$0xff]
        %v5912 = vld [vmem:[#allocation7 + $0x10] sm:$0x7f]
        %v5913 = vld [vmem:[#allocation7 + $0x18] sm:$0x7f]
        %v5914 = vld [vmem:[#allocation7] sm:$0xfe]
        %v5915 = vld [vmem:[#allocation7 + $0x8] sm:$0xfe]
        %v5916 = vld [vmem:[#allocation7 + $0x10] sm:$0xff]
        %v5917 = vld [vmem:[#allocation7 + $0x18] sm:$0xff]
        %vm5922 = vcmask 1046528
        %v5923 = vrot.slane %v5914, 1
        %v5924 = vrot.slane %v5916, 1
        %v5925 = vsel %vm5922, %v5923, %v5924
        %v5926 = vrot.slane %v5915, 1
        %v5927 = vrot.slane %v5917, 1
        %v5928 = vsel %vm5922, %v5926, %v5927
        %v5933 = vmax.f32 %v5910, %v5925
        %v5934 = vmax.f32 %v5911, %v5928
        %v5935 = vmax.f32 %v5912, %v5924
        %v5936 = vmax.f32 %v5913, %v5927
        %v5937 = vld [vmem:[#allocation7] sm:$0xc0]
        %v5938 = vld [vmem:[#allocation7 + $0x8] sm:$0xc0]
        %v5939 = vld [vmem:[#allocation7 + $0x20] sm:$0x1f]
        %v5940 = vld [vmem:[#allocation7 + $0x28] sm:$0x1f]
        %v5941 = vld [vmem:[#allocation7] sm:$0x80]
        %v5942 = vld [vmem:[#allocation7 + $0x8] sm:$0x80]
        %v5943 = vld [vmem:[#allocation7 + $0x20] sm:$0x3f]
        %v5944 = vld [vmem:[#allocation7 + $0x28] sm:$0x3f]
        %v5949 = vrot.slane %v5941, 1
        %v5950 = vsel %vm5922, %v5949, %v5924
        %v5951 = vrot.slane %v5942, 1
        %v5952 = vsel %vm5922, %v5951, %v5927
        %v5953 = vrot.slane %v5943, 1
        %v5954 = vsel %vm5922, %v5924, %v5953
        %v5955 = vrot.slane %v5944, 1
        %v5956 = vsel %vm5922, %v5927, %v5955
        %v5963 = vmax.f32 %v5937, %v5950
        %v5964 = vmax.f32 %v5938, %v5952
        %v5965 = vmax.f32 %v5916, %v5954
        %v5966 = vmax.f32 %v5917, %v5956
        %v5967 = vmax.f32 %v5939, %v5953
        %v5968 = vmax.f32 %v5940, %v5955
        %v5975 = vrot.slane %v5963, 6
        %v5976 = vrot.slane %v5965, 6
        %v5977 = vsel %vm770, %v5975, %v5976
        %v5978 = vrot.slane %v5964, 6
        %v5979 = vrot.slane %v5966, 6
        %v5980 = vsel %vm770, %v5978, %v5979
        %v5981 = vrot.slane %v5967, 6
        %v5982 = vsel %vm770, %v5976, %v5981
        %v5983 = vrot.slane %v5968, 6
        %v5984 = vsel %vm770, %v5979, %v5983
        %v5989 = vmax.f32 %v5933, %v5977
        %v5990 = vmax.f32 %v5934, %v5980
        %v5991 = vmax.f32 %v5935, %v5982
        %v5992 = vmax.f32 %v5936, %v5984
        %v5993 = vld [vmem:[%s12] sm:$0xf]
        %v5994 = vld [vmem:[%s12 + $0x4] sm:$0xf]
        %v5995 = vpack.c.bf16 %v5991, %v5989
        %v5996 = vpack.c.bf16 %v5992, %v5990
        %v5999 = vunpack.c.l.b16 %v5993
        %v6000 = vunpack.c.l.b16 %v5994
        %v6001 = vpack.c.b16 %v6000, %v5999
        %vm6002 = vcmask 121856
        %v6004 = vsel %vm6002, %v6001, 0
        %vm6006 = vcmask 1047552
        %v6007 = vsel %vm5922, 4294967295, 65535
        %v6008 = vsel %vm6006, %v6007, 0
        %v6010 = vand.u32 %v5995, %v6008
        %v6013 = vand.u32 %v5996, %v6008
        %6015 = vmatpush.bf16.msra.mxu0 0
        %6016 = vmatpush.bf16.msra.mxu0 0
        %6017 = vmatpush.bf16.msra.mxu0 0
        %6018 = vmatpush.bf16.msra.mxu0 0
        %6019 = vmatpush.bf16.msra.mxu0 0
        %6020 = vmatpush.bf16.msra.mxu0 0
        %6021 = vmatpush.bf16.msra.mxu0 0
        %6022 = vmatpush.bf16.msra.mxu0 %v6010
        %6023 = vmatmul.bf16.gmra.mxu0 %v6004
        %v6024 = vpop.f32.mrf.mxu0
        %v6025 = vadd.f32 0.0, %v6024
        %v6026 = vpop.f32.mrf.mxu0
        %v6027 = vadd.f32 0.0, %v6026
        %6028 = vdwg.mxu0
        %6029 = vmatpush.bf16.msra.mxu0 0
        %6030 = vmatpush.bf16.msra.mxu0 0
        %6031 = vmatpush.bf16.msra.mxu0 0
        %6032 = vmatpush.bf16.msra.mxu0 0
        %6033 = vmatpush.bf16.msra.mxu0 0
        %6034 = vmatpush.bf16.msra.mxu0 0
        %6035 = vmatpush.bf16.msra.mxu0 0
        %6036 = vmatpush.bf16.msra.mxu0 %v6013
        %6037 = vmatmul.bf16.gmra.mxu0 %v6004
        %v6038 = vpop.f32.mrf.mxu0
        %v6039 = vadd.f32 0.0, %v6038
        %v6040 = vpop.f32.mrf.mxu0
        %v6041 = vadd.f32 0.0, %v6040
        %6042 = vdwg.mxu0
        %6043 = vst [vmem:[#allocation4] sm:$0xff] %v6025
        %6044 = vst [vmem:[#allocation4 + $0x8] sm:$0xff] %v6039
        %6045 = vst [vmem:[#allocation4 + $0x10] sm:$0xff] %v6027
        %6046 = vst [vmem:[#allocation4 + $0x18] sm:$0xff] %v6041
        %v6047 = vld [vmem:[#allocation4] sm:$0x3f]
        %v6048 = vld [vmem:[#allocation4 + $0x8] sm:$0x3f]
        %v6049 = vpack.c.bf16 %v6047, %v6047
        %v6050 = vpack.c.bf16 %v6048, %v6048
        %v6051 = vld [vmem:[%s13] sm:$0xff]
        %v6052 = vld [vmem:[%s13 + $0x8] sm:$0xff]
        %v6053 = vld [vmem:[%s13 + $0x10] sm:$0xff]
        %v6054 = vld [vmem:[%s13 + $0x18] sm:$0xff]
        %v6055 = vld [vmem:[%s13 + $0x20] sm:$0xff]
        %v6056 = vld [vmem:[%s13 + $0x28] sm:$0xff]
        %v6057 = vld [vmem:[%s13 + $0x30] sm:$0xff]
        %v6058 = vld [vmem:[%s13 + $0x38] sm:$0xff]
        %v6059 = vld [vmem:[%s13 + $0x40] sm:$0xff]
        %v6060 = vld [vmem:[%s13 + $0x48] sm:$0xff]
        %v6061 = vld [vmem:[%s13 + $0x50] sm:$0xff]
        %v6062 = vld [vmem:[%s13 + $0x58] sm:$0xff]
        %v6063 = vld [vmem:[%s13 + $0x60] sm:$0xff]
        %v6064 = vld [vmem:[%s13 + $0x68] sm:$0xff]
        %v6065 = vld [vmem:[%s13 + $0x70] sm:$0xff]
        %v6066 = vld [vmem:[%s13 + $0x78] sm:$0xff]
        %v6067 = vld [vmem:[%s13 + $0x80] sm:$0xff]
        %v6068 = vld [vmem:[%s13 + $0x88] sm:$0xff]
        %v6069 = vld [vmem:[%s13 + $0x90] sm:$0xff]
        %v6070 = vld [vmem:[%s13 + $0x98] sm:$0xff]
        %v6071 = vld [vmem:[%s13 + $0xa0] sm:$0xff]
        %v6072 = vld [vmem:[%s13 + $0xa8] sm:$0xff]
        %v6073 = vld [vmem:[%s13 + $0xb0] sm:$0xff]
        %v6074 = vld [vmem:[%s13 + $0xb8] sm:$0xff]
        %v6075 = vld [vmem:[%s13 + $0xc0] sm:$0xff]
        %v6076 = vld [vmem:[%s13 + $0xc8] sm:$0xff]
        %v6077 = vld [vmem:[%s13 + $0xd0] sm:$0xff]
        %v6078 = vld [vmem:[%s13 + $0xd8] sm:$0xff]
        %v6079 = vld [vmem:[%s13 + $0xe0] sm:$0xff]
        %v6080 = vld [vmem:[%s13 + $0xe8] sm:$0xff]
        %v6081 = vld [vmem:[%s13 + $0xf0] sm:$0xff]
        %v6082 = vld [vmem:[%s13 + $0xf8] sm:$0xff]
        %v6083 = vld [vmem:[%s13 + $0x100] sm:$0xff]
        %v6084 = vld [vmem:[%s13 + $0x108] sm:$0xff]
        %v6085 = vld [vmem:[%s13 + $0x110] sm:$0xff]
        %v6086 = vld [vmem:[%s13 + $0x118] sm:$0xff]
        %v6087 = vld [vmem:[%s13 + $0x120] sm:$0xff]
        %v6088 = vld [vmem:[%s13 + $0x128] sm:$0xff]
        %v6089 = vld [vmem:[%s13 + $0x130] sm:$0xff]
        %v6090 = vld [vmem:[%s13 + $0x138] sm:$0xff]
        %v6091 = vld [vmem:[%s13 + $0x140] sm:$0xff]
        %v6092 = vld [vmem:[%s13 + $0x148] sm:$0xff]
        %v6093 = vld [vmem:[%s13 + $0x150] sm:$0xff]
        %v6094 = vld [vmem:[%s13 + $0x158] sm:$0xff]
        %v6095 = vld [vmem:[%s13 + $0x160] sm:$0xff]
        %v6096 = vld [vmem:[%s13 + $0x168] sm:$0xff]
        %v6097 = vld [vmem:[%s13 + $0x170] sm:$0xff]
        %v6098 = vld [vmem:[%s13 + $0x178] sm:$0xff]
        %v6099 = vld [vmem:[%s13 + $0x180] sm:$0xff]
        %v6100 = vld [vmem:[%s13 + $0x188] sm:$0xff]
        %v6101 = vld [vmem:[%s13 + $0x190] sm:$0xff]
        %v6102 = vld [vmem:[%s13 + $0x198] sm:$0xff]
        %v6103 = vld [vmem:[%s13 + $0x1a0] sm:$0xff]
        %v6104 = vld [vmem:[%s13 + $0x1a8] sm:$0xff]
        %v6105 = vld [vmem:[%s13 + $0x1b0] sm:$0xff]
        %v6106 = vld [vmem:[%s13 + $0x1b8] sm:$0xff]
        %v6107 = vld [vmem:[%s13 + $0x1c0] sm:$0xff]
        %v6108 = vld [vmem:[%s13 + $0x1c8] sm:$0xff]
        %v6109 = vld [vmem:[%s13 + $0x1d0] sm:$0xff]
        %v6110 = vld [vmem:[%s13 + $0x1d8] sm:$0xff]
        %v6111 = vld [vmem:[%s13 + $0x1e0] sm:$0xff]
        %v6112 = vld [vmem:[%s13 + $0x1e8] sm:$0xff]
        %v6113 = vld [vmem:[%s13 + $0x1f0] sm:$0xff]
        %v6114 = vld [vmem:[%s13 + $0x1f8] sm:$0xff]
        %v6115 = vld [vmem:[#allocation4] sm:$0x7e]
        %v6116 = vld [vmem:[#allocation4 + $0x8] sm:$0x7e]
        %v6117 = vpack.c.bf16 %v6115, %v6115
        %v6118 = vpack.c.bf16 %v6116, %v6116
        %s6119 = scalar_lea.vmem %s13, 512
        %v6120 = vld [vmem:[%s6119] sm:$0xff]
        %v6121 = vld [vmem:[%s6119 + $0x8] sm:$0xff]
        %v6122 = vld [vmem:[%s6119 + $0x10] sm:$0xff]
        %v6123 = vld [vmem:[%s6119 + $0x18] sm:$0xff]
        %v6124 = vld [vmem:[%s6119 + $0x20] sm:$0xff]
        %v6125 = vld [vmem:[%s6119 + $0x28] sm:$0xff]
        %v6126 = vld [vmem:[%s6119 + $0x30] sm:$0xff]
        %v6127 = vld [vmem:[%s6119 + $0x38] sm:$0xff]
        %v6128 = vld [vmem:[%s6119 + $0x40] sm:$0xff]
        %v6129 = vld [vmem:[%s6119 + $0x48] sm:$0xff]
        %v6130 = vld [vmem:[%s6119 + $0x50] sm:$0xff]
        %v6131 = vld [vmem:[%s6119 + $0x58] sm:$0xff]
        %v6132 = vld [vmem:[%s6119 + $0x60] sm:$0xff]
        %v6133 = vld [vmem:[%s6119 + $0x68] sm:$0xff]
        %v6134 = vld [vmem:[%s6119 + $0x70] sm:$0xff]
        %v6135 = vld [vmem:[%s6119 + $0x78] sm:$0xff]
        %v6136 = vld [vmem:[%s6119 + $0x80] sm:$0xff]
        %v6137 = vld [vmem:[%s6119 + $0x88] sm:$0xff]
        %v6138 = vld [vmem:[%s6119 + $0x90] sm:$0xff]
        %v6139 = vld [vmem:[%s6119 + $0x98] sm:$0xff]
        %v6140 = vld [vmem:[%s6119 + $0xa0] sm:$0xff]
        %v6141 = vld [vmem:[%s6119 + $0xa8] sm:$0xff]
        %v6142 = vld [vmem:[%s6119 + $0xb0] sm:$0xff]
        %v6143 = vld [vmem:[%s6119 + $0xb8] sm:$0xff]
        %v6144 = vld [vmem:[%s6119 + $0xc0] sm:$0xff]
        %v6145 = vld [vmem:[%s6119 + $0xc8] sm:$0xff]
        %v6146 = vld [vmem:[%s6119 + $0xd0] sm:$0xff]
        %v6147 = vld [vmem:[%s6119 + $0xd8] sm:$0xff]
        %v6148 = vld [vmem:[%s6119 + $0xe0] sm:$0xff]
        %v6149 = vld [vmem:[%s6119 + $0xe8] sm:$0xff]
        %v6150 = vld [vmem:[%s6119 + $0xf0] sm:$0xff]
        %v6151 = vld [vmem:[%s6119 + $0xf8] sm:$0xff]
        %v6152 = vld [vmem:[%s6119 + $0x100] sm:$0xff]
        %v6153 = vld [vmem:[%s6119 + $0x108] sm:$0xff]
        %v6154 = vld [vmem:[%s6119 + $0x110] sm:$0xff]
        %v6155 = vld [vmem:[%s6119 + $0x118] sm:$0xff]
        %v6156 = vld [vmem:[%s6119 + $0x120] sm:$0xff]
        %v6157 = vld [vmem:[%s6119 + $0x128] sm:$0xff]
        %v6158 = vld [vmem:[%s6119 + $0x130] sm:$0xff]
        %v6159 = vld [vmem:[%s6119 + $0x138] sm:$0xff]
        %v6160 = vld [vmem:[%s6119 + $0x140] sm:$0xff]
        %v6161 = vld [vmem:[%s6119 + $0x148] sm:$0xff]
        %v6162 = vld [vmem:[%s6119 + $0x150] sm:$0xff]
        %v6163 = vld [vmem:[%s6119 + $0x158] sm:$0xff]
        %v6164 = vld [vmem:[%s6119 + $0x160] sm:$0xff]
        %v6165 = vld [vmem:[%s6119 + $0x168] sm:$0xff]
        %v6166 = vld [vmem:[%s6119 + $0x170] sm:$0xff]
        %v6167 = vld [vmem:[%s6119 + $0x178] sm:$0xff]
        %v6168 = vld [vmem:[%s6119 + $0x180] sm:$0xff]
        %v6169 = vld [vmem:[%s6119 + $0x188] sm:$0xff]
        %v6170 = vld [vmem:[%s6119 + $0x190] sm:$0xff]
        %v6171 = vld [vmem:[%s6119 + $0x198] sm:$0xff]
        %v6172 = vld [vmem:[%s6119 + $0x1a0] sm:$0xff]
        %v6173 = vld [vmem:[%s6119 + $0x1a8] sm:$0xff]
        %v6174 = vld [vmem:[%s6119 + $0x1b0] sm:$0xff]
        %v6175 = vld [vmem:[%s6119 + $0x1b8] sm:$0xff]
        %v6176 = vld [vmem:[%s6119 + $0x1c0] sm:$0xff]
        %v6177 = vld [vmem:[%s6119 + $0x1c8] sm:$0xff]
        %v6178 = vld [vmem:[%s6119 + $0x1d0] sm:$0xff]
        %v6179 = vld [vmem:[%s6119 + $0x1d8] sm:$0xff]
        %v6180 = vld [vmem:[%s6119 + $0x1e0] sm:$0xff]
        %v6181 = vld [vmem:[%s6119 + $0x1e8] sm:$0xff]
        %v6182 = vld [vmem:[%s6119 + $0x1f0] sm:$0xff]
        %v6183 = vld [vmem:[%s6119 + $0x1f8] sm:$0xff]
        %v6185 = vshrl.u32 %v6117, 16
        %v6187 = vshll.u32 %v6117, 16
        %v6189 = vrot.slane %v6187, 1
        %v6190 = vor.u32 %v6185, %v6189
        %v6192 = vshrl.u32 %v6118, 16
        %v6194 = vshll.u32 %v6118, 16
        %v6196 = vrot.slane %v6194, 1
        %v6197 = vor.u32 %v6192, %v6196
        %v6264 = vunpack.c.l.b16 %v6120
        %v6265 = vunpack.c.h.b16 %v6120
        %v6266 = vunpack.c.l.b16 %v6121
        %v6267 = vunpack.c.h.b16 %v6121
        %v6268 = vunpack.c.l.b16 %v6122
        %v6269 = vunpack.c.h.b16 %v6122
        %v6270 = vunpack.c.l.b16 %v6123
        %v6271 = vunpack.c.h.b16 %v6123
        %v6272 = vunpack.c.l.b16 %v6124
        %v6273 = vunpack.c.h.b16 %v6124
        %v6274 = vunpack.c.l.b16 %v6125
        %v6275 = vunpack.c.h.b16 %v6125
        %v6276 = vunpack.c.l.b16 %v6126
        %v6277 = vunpack.c.h.b16 %v6126
        %v6278 = vunpack.c.l.b16 %v6127
        %v6279 = vunpack.c.h.b16 %v6127
        %v6280 = vunpack.c.l.b16 %v6128
        %v6281 = vunpack.c.h.b16 %v6128
        %v6282 = vunpack.c.l.b16 %v6129
        %v6283 = vunpack.c.h.b16 %v6129
        %v6284 = vunpack.c.l.b16 %v6130
        %v6285 = vunpack.c.h.b16 %v6130
        %v6286 = vunpack.c.l.b16 %v6131
        %v6287 = vunpack.c.h.b16 %v6131
        %v6288 = vunpack.c.l.b16 %v6132
        %v6289 = vunpack.c.h.b16 %v6132
        %v6290 = vunpack.c.l.b16 %v6133
        %v6291 = vunpack.c.h.b16 %v6133
        %v6292 = vunpack.c.l.b16 %v6134
        %v6293 = vunpack.c.h.b16 %v6134
        %v6294 = vunpack.c.l.b16 %v6135
        %v6295 = vunpack.c.h.b16 %v6135
        %v6296 = vunpack.c.l.b16 %v6136
        %v6297 = vunpack.c.h.b16 %v6136
        %v6298 = vunpack.c.l.b16 %v6137
        %v6299 = vunpack.c.h.b16 %v6137
        %v6300 = vunpack.c.l.b16 %v6138
        %v6301 = vunpack.c.h.b16 %v6138
        %v6302 = vunpack.c.l.b16 %v6139
        %v6303 = vunpack.c.h.b16 %v6139
        %v6304 = vunpack.c.l.b16 %v6140
        %v6305 = vunpack.c.h.b16 %v6140
        %v6306 = vunpack.c.l.b16 %v6141
        %v6307 = vunpack.c.h.b16 %v6141
        %v6308 = vunpack.c.l.b16 %v6142
        %v6309 = vunpack.c.h.b16 %v6142
        %v6310 = vunpack.c.l.b16 %v6143
        %v6311 = vunpack.c.h.b16 %v6143
        %v6312 = vunpack.c.l.b16 %v6144
        %v6313 = vunpack.c.h.b16 %v6144
        %v6314 = vunpack.c.l.b16 %v6145
        %v6315 = vunpack.c.h.b16 %v6145
        %v6316 = vunpack.c.l.b16 %v6146
        %v6317 = vunpack.c.h.b16 %v6146
        %v6318 = vunpack.c.l.b16 %v6147
        %v6319 = vunpack.c.h.b16 %v6147
        %v6320 = vunpack.c.l.b16 %v6148
        %v6321 = vunpack.c.h.b16 %v6148
        %v6322 = vunpack.c.l.b16 %v6149
        %v6323 = vunpack.c.h.b16 %v6149
        %v6324 = vunpack.c.l.b16 %v6150
        %v6325 = vunpack.c.h.b16 %v6150
        %v6326 = vunpack.c.l.b16 %v6151
        %v6327 = vunpack.c.h.b16 %v6151
        %v6328 = vunpack.c.l.b16 %v6152
        %v6329 = vunpack.c.h.b16 %v6152
        %v6330 = vunpack.c.l.b16 %v6153
        %v6331 = vunpack.c.h.b16 %v6153
        %v6332 = vunpack.c.l.b16 %v6154
        %v6333 = vunpack.c.h.b16 %v6154
        %v6334 = vunpack.c.l.b16 %v6155
        %v6335 = vunpack.c.h.b16 %v6155
        %v6336 = vunpack.c.l.b16 %v6156
        %v6337 = vunpack.c.h.b16 %v6156
        %v6338 = vunpack.c.l.b16 %v6157
        %v6339 = vunpack.c.h.b16 %v6157
        %v6340 = vunpack.c.l.b16 %v6158
        %v6341 = vunpack.c.h.b16 %v6158
        %v6342 = vunpack.c.l.b16 %v6159
        %v6343 = vunpack.c.h.b16 %v6159
        %v6344 = vunpack.c.l.b16 %v6160
        %v6345 = vunpack.c.h.b16 %v6160
        %v6346 = vunpack.c.l.b16 %v6161
        %v6347 = vunpack.c.h.b16 %v6161
        %v6348 = vunpack.c.l.b16 %v6162
        %v6349 = vunpack.c.h.b16 %v6162
        %v6350 = vunpack.c.l.b16 %v6163
        %v6351 = vunpack.c.h.b16 %v6163
        %v6352 = vunpack.c.l.b16 %v6164
        %v6353 = vunpack.c.h.b16 %v6164
        %v6354 = vunpack.c.l.b16 %v6165
        %v6355 = vunpack.c.h.b16 %v6165
        %v6356 = vunpack.c.l.b16 %v6166
        %v6357 = vunpack.c.h.b16 %v6166
        %v6358 = vunpack.c.l.b16 %v6167
        %v6359 = vunpack.c.h.b16 %v6167
        %v6360 = vunpack.c.l.b16 %v6168
        %v6361 = vunpack.c.h.b16 %v6168
        %v6362 = vunpack.c.l.b16 %v6169
        %v6363 = vunpack.c.h.b16 %v6169
        %v6364 = vunpack.c.l.b16 %v6170
        %v6365 = vunpack.c.h.b16 %v6170
        %v6366 = vunpack.c.l.b16 %v6171
        %v6367 = vunpack.c.h.b16 %v6171
        %v6368 = vunpack.c.l.b16 %v6172
        %v6369 = vunpack.c.h.b16 %v6172
        %v6370 = vunpack.c.l.b16 %v6173
        %v6371 = vunpack.c.h.b16 %v6173
        %v6372 = vunpack.c.l.b16 %v6174
        %v6373 = vunpack.c.h.b16 %v6174
        %v6374 = vunpack.c.l.b16 %v6175
        %v6375 = vunpack.c.h.b16 %v6175
        %v6376 = vunpack.c.l.b16 %v6176
        %v6377 = vunpack.c.h.b16 %v6176
        %v6378 = vunpack.c.l.b16 %v6177
        %v6379 = vunpack.c.h.b16 %v6177
        %v6380 = vunpack.c.l.b16 %v6178
        %v6381 = vunpack.c.h.b16 %v6178
        %v6382 = vunpack.c.l.b16 %v6179
        %v6383 = vunpack.c.h.b16 %v6179
        %v6384 = vunpack.c.l.b16 %v6180
        %v6385 = vunpack.c.h.b16 %v6180
        %v6386 = vunpack.c.l.b16 %v6181
        %v6387 = vunpack.c.h.b16 %v6181
        %v6388 = vunpack.c.l.b16 %v6182
        %v6389 = vunpack.c.h.b16 %v6182
        %v6390 = vunpack.c.l.b16 %v6183
        %v6391 = vunpack.c.h.b16 %v6183
        %v6392 = vpack.c.b16 %v6268, %v6264
        %v6393 = vpack.c.b16 %v6269, %v6265
        %v6394 = vpack.c.b16 %v6270, %v6266
        %v6395 = vpack.c.b16 %v6271, %v6267
        %v6396 = vpack.c.b16 %v6276, %v6272
        %v6397 = vpack.c.b16 %v6277, %v6273
        %v6398 = vpack.c.b16 %v6278, %v6274
        %v6399 = vpack.c.b16 %v6279, %v6275
        %v6400 = vpack.c.b16 %v6284, %v6280
        %v6401 = vpack.c.b16 %v6285, %v6281
        %v6402 = vpack.c.b16 %v6286, %v6282
        %v6403 = vpack.c.b16 %v6287, %v6283
        %v6404 = vpack.c.b16 %v6292, %v6288
        %v6405 = vpack.c.b16 %v6293, %v6289
        %v6406 = vpack.c.b16 %v6294, %v6290
        %v6407 = vpack.c.b16 %v6295, %v6291
        %v6408 = vpack.c.b16 %v6300, %v6296
        %v6409 = vpack.c.b16 %v6301, %v6297
        %v6410 = vpack.c.b16 %v6302, %v6298
        %v6411 = vpack.c.b16 %v6303, %v6299
        %v6412 = vpack.c.b16 %v6308, %v6304
        %v6413 = vpack.c.b16 %v6309, %v6305
        %v6414 = vpack.c.b16 %v6310, %v6306
        %v6415 = vpack.c.b16 %v6311, %v6307
        %v6416 = vpack.c.b16 %v6316, %v6312
        %v6417 = vpack.c.b16 %v6317, %v6313
        %v6418 = vpack.c.b16 %v6318, %v6314
        %v6419 = vpack.c.b16 %v6319, %v6315
        %v6420 = vpack.c.b16 %v6324, %v6320
        %v6421 = vpack.c.b16 %v6325, %v6321
        %v6422 = vpack.c.b16 %v6326, %v6322
        %v6423 = vpack.c.b16 %v6327, %v6323
        %v6424 = vpack.c.b16 %v6332, %v6328
        %v6425 = vpack.c.b16 %v6333, %v6329
        %v6426 = vpack.c.b16 %v6334, %v6330
        %v6427 = vpack.c.b16 %v6335, %v6331
        %v6428 = vpack.c.b16 %v6340, %v6336
        %v6429 = vpack.c.b16 %v6341, %v6337
        %v6430 = vpack.c.b16 %v6342, %v6338
        %v6431 = vpack.c.b16 %v6343, %v6339
        %v6432 = vpack.c.b16 %v6348, %v6344
        %v6433 = vpack.c.b16 %v6349, %v6345
        %v6434 = vpack.c.b16 %v6350, %v6346
        %v6435 = vpack.c.b16 %v6351, %v6347
        %v6436 = vpack.c.b16 %v6356, %v6352
        %v6437 = vpack.c.b16 %v6357, %v6353
        %v6438 = vpack.c.b16 %v6358, %v6354
        %v6439 = vpack.c.b16 %v6359, %v6355
        %v6440 = vpack.c.b16 %v6364, %v6360
        %v6441 = vpack.c.b16 %v6365, %v6361
        %v6442 = vpack.c.b16 %v6366, %v6362
        %v6443 = vpack.c.b16 %v6367, %v6363
        %v6444 = vpack.c.b16 %v6372, %v6368
        %v6445 = vpack.c.b16 %v6373, %v6369
        %v6446 = vpack.c.b16 %v6374, %v6370
        %v6447 = vpack.c.b16 %v6375, %v6371
        %v6448 = vpack.c.b16 %v6380, %v6376
        %v6449 = vpack.c.b16 %v6381, %v6377
        %v6450 = vpack.c.b16 %v6382, %v6378
        %v6451 = vpack.c.b16 %v6383, %v6379
        %v6452 = vpack.c.b16 %v6388, %v6384
        %v6453 = vpack.c.b16 %v6389, %v6385
        %v6454 = vpack.c.b16 %v6390, %v6386
        %v6455 = vpack.c.b16 %v6391, %v6387
        %6520 = vmatpush.bf16.msra.mxu0 %v6420
        %6521 = vmatpush.bf16.msra.mxu0 %v6416
        %6522 = vmatpush.bf16.msra.mxu0 %v6412
        %6523 = vmatpush.bf16.msra.mxu0 %v6408
        %6524 = vmatpush.bf16.msra.mxu0 %v6404
        %6525 = vmatpush.bf16.msra.mxu0 %v6400
        %6526 = vmatpush.bf16.msra.mxu0 %v6396
        %6527 = vmatpush.bf16.msra.mxu0 %v6392
        %6528 = vmatmul.bf16.gmra.mxu0 %v6190
        %v6529 = vpop.f32.mrf.mxu0
        %v6530 = vadd.f32 0.0, %v6529
        %v6531 = vpop.f32.mrf.mxu0
        %6532 = vdwg.mxu0
        %6533 = vmatpush.bf16.msra.mxu0 %v6452
        %6534 = vmatpush.bf16.msra.mxu0 %v6448
        %6535 = vmatpush.bf16.msra.mxu0 %v6444
        %6536 = vmatpush.bf16.msra.mxu0 %v6440
        %6537 = vmatpush.bf16.msra.mxu0 %v6436
        %6538 = vmatpush.bf16.msra.mxu0 %v6432
        %6539 = vmatpush.bf16.msra.mxu0 %v6428
        %6540 = vmatpush.bf16.msra.mxu0 %v6424
        %6541 = vmatmul.bf16.gmra.mxu0 %v6197
        %v6542 = vpop.f32.mrf.mxu0
        %v6543 = vadd.f32 %v6530, %v6542
        %v6544 = vpop.f32.mrf.mxu0
        %6545 = vdwg.mxu0
        %6546 = vmatpush.bf16.msra.mxu0 %v6421
        %6547 = vmatpush.bf16.msra.mxu0 %v6417
        %6548 = vmatpush.bf16.msra.mxu0 %v6413
        %6549 = vmatpush.bf16.msra.mxu0 %v6409
        %6550 = vmatpush.bf16.msra.mxu0 %v6405
        %6551 = vmatpush.bf16.msra.mxu0 %v6401
        %6552 = vmatpush.bf16.msra.mxu0 %v6397
        %6553 = vmatpush.bf16.msra.mxu0 %v6393
        %6554 = vmatmul.bf16.gmra.mxu0 %v6190
        %v6555 = vpop.f32.mrf.mxu0
        %v6556 = vadd.f32 0.0, %v6555
        %v6557 = vpop.f32.mrf.mxu0
        %6558 = vdwg.mxu0
        %6559 = vmatpush.bf16.msra.mxu0 %v6453
        %6560 = vmatpush.bf16.msra.mxu0 %v6449
        %6561 = vmatpush.bf16.msra.mxu0 %v6445
        %6562 = vmatpush.bf16.msra.mxu0 %v6441
        %6563 = vmatpush.bf16.msra.mxu0 %v6437
        %6564 = vmatpush.bf16.msra.mxu0 %v6433
        %6565 = vmatpush.bf16.msra.mxu0 %v6429
        %6566 = vmatpush.bf16.msra.mxu0 %v6425
        %6567 = vmatmul.bf16.gmra.mxu0 %v6197
        %v6568 = vpop.f32.mrf.mxu0
        %v6569 = vadd.f32 %v6556, %v6568
        %v6570 = vpop.f32.mrf.mxu0
        %6571 = vdwg.mxu0
        %6572 = vmatpush.bf16.msra.mxu0 %v6422
        %6573 = vmatpush.bf16.msra.mxu0 %v6418
        %6574 = vmatpush.bf16.msra.mxu0 %v6414
        %6575 = vmatpush.bf16.msra.mxu0 %v6410
        %6576 = vmatpush.bf16.msra.mxu0 %v6406
        %6577 = vmatpush.bf16.msra.mxu0 %v6402
        %6578 = vmatpush.bf16.msra.mxu0 %v6398
        %6579 = vmatpush.bf16.msra.mxu0 %v6394
        %6580 = vmatmul.bf16.gmra.mxu0 %v6190
        %v6581 = vpop.f32.mrf.mxu0
        %v6582 = vadd.f32 0.0, %v6581
        %v6583 = vpop.f32.mrf.mxu0
        %6584 = vdwg.mxu0
        %6585 = vmatpush.bf16.msra.mxu0 %v6454
        %6586 = vmatpush.bf16.msra.mxu0 %v6450
        %6587 = vmatpush.bf16.msra.mxu0 %v6446
        %6588 = vmatpush.bf16.msra.mxu0 %v6442
        %6589 = vmatpush.bf16.msra.mxu0 %v6438
        %6590 = vmatpush.bf16.msra.mxu0 %v6434
        %6591 = vmatpush.bf16.msra.mxu0 %v6430
        %6592 = vmatpush.bf16.msra.mxu0 %v6426
        %6593 = vmatmul.bf16.gmra.mxu0 %v6197
        %v6594 = vpop.f32.mrf.mxu0
        %v6595 = vadd.f32 %v6582, %v6594
        %v6596 = vpop.f32.mrf.mxu0
        %6597 = vdwg.mxu0
        %6598 = vmatpush.bf16.msra.mxu0 %v6423
        %6599 = vmatpush.bf16.msra.mxu0 %v6419
        %6600 = vmatpush.bf16.msra.mxu0 %v6415
        %6601 = vmatpush.bf16.msra.mxu0 %v6411
        %6602 = vmatpush.bf16.msra.mxu0 %v6407
        %6603 = vmatpush.bf16.msra.mxu0 %v6403
        %6604 = vmatpush.bf16.msra.mxu0 %v6399
        %6605 = vmatpush.bf16.msra.mxu0 %v6395
        %6606 = vmatmul.bf16.gmra.mxu0 %v6190
        %v6607 = vpop.f32.mrf.mxu0
        %v6608 = vadd.f32 0.0, %v6607
        %v6609 = vpop.f32.mrf.mxu0
        %6610 = vdwg.mxu0
        %6611 = vmatpush.bf16.msra.mxu0 %v6455
        %6612 = vmatpush.bf16.msra.mxu0 %v6451
        %6613 = vmatpush.bf16.msra.mxu0 %v6447
        %6614 = vmatpush.bf16.msra.mxu0 %v6443
        %6615 = vmatpush.bf16.msra.mxu0 %v6439
        %6616 = vmatpush.bf16.msra.mxu0 %v6435
        %6617 = vmatpush.bf16.msra.mxu0 %v6431
        %6618 = vmatpush.bf16.msra.mxu0 %v6427
        %6619 = vmatmul.bf16.gmra.mxu0 %v6197
        %v6620 = vpop.f32.mrf.mxu0
        %v6621 = vadd.f32 %v6608, %v6620
        %v6622 = vpop.f32.mrf.mxu0
        %6623 = vdwg.mxu0
        %v6688 = vunpack.c.l.b16 %v6051
        %v6689 = vunpack.c.h.b16 %v6051
        %v6690 = vunpack.c.l.b16 %v6052
        %v6691 = vunpack.c.h.b16 %v6052
        %v6692 = vunpack.c.l.b16 %v6053
        %v6693 = vunpack.c.h.b16 %v6053
        %v6694 = vunpack.c.l.b16 %v6054
        %v6695 = vunpack.c.h.b16 %v6054
        %v6696 = vunpack.c.l.b16 %v6055
        %v6697 = vunpack.c.h.b16 %v6055
        %v6698 = vunpack.c.l.b16 %v6056
        %v6699 = vunpack.c.h.b16 %v6056
        %v6700 = vunpack.c.l.b16 %v6057
        %v6701 = vunpack.c.h.b16 %v6057
        %v6702 = vunpack.c.l.b16 %v6058
        %v6703 = vunpack.c.h.b16 %v6058
        %v6704 = vunpack.c.l.b16 %v6059
        %v6705 = vunpack.c.h.b16 %v6059
        %v6706 = vunpack.c.l.b16 %v6060
        %v6707 = vunpack.c.h.b16 %v6060
        %v6708 = vunpack.c.l.b16 %v6061
        %v6709 = vunpack.c.h.b16 %v6061
        %v6710 = vunpack.c.l.b16 %v6062
        %v6711 = vunpack.c.h.b16 %v6062
        %v6712 = vunpack.c.l.b16 %v6063
        %v6713 = vunpack.c.h.b16 %v6063
        %v6714 = vunpack.c.l.b16 %v6064
        %v6715 = vunpack.c.h.b16 %v6064
        %v6716 = vunpack.c.l.b16 %v6065
        %v6717 = vunpack.c.h.b16 %v6065
        %v6718 = vunpack.c.l.b16 %v6066
        %v6719 = vunpack.c.h.b16 %v6066
        %v6720 = vunpack.c.l.b16 %v6067
        %v6721 = vunpack.c.h.b16 %v6067
        %v6722 = vunpack.c.l.b16 %v6068
        %v6723 = vunpack.c.h.b16 %v6068
        %v6724 = vunpack.c.l.b16 %v6069
        %v6725 = vunpack.c.h.b16 %v6069
        %v6726 = vunpack.c.l.b16 %v6070
        %v6727 = vunpack.c.h.b16 %v6070
        %v6728 = vunpack.c.l.b16 %v6071
        %v6729 = vunpack.c.h.b16 %v6071
        %v6730 = vunpack.c.l.b16 %v6072
        %v6731 = vunpack.c.h.b16 %v6072
        %v6732 = vunpack.c.l.b16 %v6073
        %v6733 = vunpack.c.h.b16 %v6073
        %v6734 = vunpack.c.l.b16 %v6074
        %v6735 = vunpack.c.h.b16 %v6074
        %v6736 = vunpack.c.l.b16 %v6075
        %v6737 = vunpack.c.h.b16 %v6075
        %v6738 = vunpack.c.l.b16 %v6076
        %v6739 = vunpack.c.h.b16 %v6076
        %v6740 = vunpack.c.l.b16 %v6077
        %v6741 = vunpack.c.h.b16 %v6077
        %v6742 = vunpack.c.l.b16 %v6078
        %v6743 = vunpack.c.h.b16 %v6078
        %v6744 = vunpack.c.l.b16 %v6079
        %v6745 = vunpack.c.h.b16 %v6079
        %v6746 = vunpack.c.l.b16 %v6080
        %v6747 = vunpack.c.h.b16 %v6080
        %v6748 = vunpack.c.l.b16 %v6081
        %v6749 = vunpack.c.h.b16 %v6081
        %v6750 = vunpack.c.l.b16 %v6082
        %v6751 = vunpack.c.h.b16 %v6082
        %v6752 = vunpack.c.l.b16 %v6083
        %v6753 = vunpack.c.h.b16 %v6083
        %v6754 = vunpack.c.l.b16 %v6084
        %v6755 = vunpack.c.h.b16 %v6084
        %v6756 = vunpack.c.l.b16 %v6085
        %v6757 = vunpack.c.h.b16 %v6085
        %v6758 = vunpack.c.l.b16 %v6086
        %v6759 = vunpack.c.h.b16 %v6086
        %v6760 = vunpack.c.l.b16 %v6087
        %v6761 = vunpack.c.h.b16 %v6087
        %v6762 = vunpack.c.l.b16 %v6088
        %v6763 = vunpack.c.h.b16 %v6088
        %v6764 = vunpack.c.l.b16 %v6089
        %v6765 = vunpack.c.h.b16 %v6089
        %v6766 = vunpack.c.l.b16 %v6090
        %v6767 = vunpack.c.h.b16 %v6090
        %v6768 = vunpack.c.l.b16 %v6091
        %v6769 = vunpack.c.h.b16 %v6091
        %v6770 = vunpack.c.l.b16 %v6092
        %v6771 = vunpack.c.h.b16 %v6092
        %v6772 = vunpack.c.l.b16 %v6093
        %v6773 = vunpack.c.h.b16 %v6093
        %v6774 = vunpack.c.l.b16 %v6094
        %v6775 = vunpack.c.h.b16 %v6094
        %v6776 = vunpack.c.l.b16 %v6095
        %v6777 = vunpack.c.h.b16 %v6095
        %v6778 = vunpack.c.l.b16 %v6096
        %v6779 = vunpack.c.h.b16 %v6096
        %v6780 = vunpack.c.l.b16 %v6097
        %v6781 = vunpack.c.h.b16 %v6097
        %v6782 = vunpack.c.l.b16 %v6098
        %v6783 = vunpack.c.h.b16 %v6098
        %v6784 = vunpack.c.l.b16 %v6099
        %v6785 = vunpack.c.h.b16 %v6099
        %v6786 = vunpack.c.l.b16 %v6100
        %v6787 = vunpack.c.h.b16 %v6100
        %v6788 = vunpack.c.l.b16 %v6101
        %v6789 = vunpack.c.h.b16 %v6101
        %v6790 = vunpack.c.l.b16 %v6102
        %v6791 = vunpack.c.h.b16 %v6102
        %v6792 = vunpack.c.l.b16 %v6103
        %v6793 = vunpack.c.h.b16 %v6103
        %v6794 = vunpack.c.l.b16 %v6104
        %v6795 = vunpack.c.h.b16 %v6104
        %v6796 = vunpack.c.l.b16 %v6105
        %v6797 = vunpack.c.h.b16 %v6105
        %v6798 = vunpack.c.l.b16 %v6106
        %v6799 = vunpack.c.h.b16 %v6106
        %v6800 = vunpack.c.l.b16 %v6107
        %v6801 = vunpack.c.h.b16 %v6107
        %v6802 = vunpack.c.l.b16 %v6108
        %v6803 = vunpack.c.h.b16 %v6108
        %v6804 = vunpack.c.l.b16 %v6109
        %v6805 = vunpack.c.h.b16 %v6109
        %v6806 = vunpack.c.l.b16 %v6110
        %v6807 = vunpack.c.h.b16 %v6110
        %v6808 = vunpack.c.l.b16 %v6111
        %v6809 = vunpack.c.h.b16 %v6111
        %v6810 = vunpack.c.l.b16 %v6112
        %v6811 = vunpack.c.h.b16 %v6112
        %v6812 = vunpack.c.l.b16 %v6113
        %v6813 = vunpack.c.h.b16 %v6113
        %v6814 = vunpack.c.l.b16 %v6114
        %v6815 = vunpack.c.h.b16 %v6114
        %v6816 = vpack.c.b16 %v6692, %v6688
        %v6817 = vpack.c.b16 %v6693, %v6689
        %v6818 = vpack.c.b16 %v6694, %v6690
        %v6819 = vpack.c.b16 %v6695, %v6691
        %v6820 = vpack.c.b16 %v6700, %v6696
        %v6821 = vpack.c.b16 %v6701, %v6697
        %v6822 = vpack.c.b16 %v6702, %v6698
        %v6823 = vpack.c.b16 %v6703, %v6699
        %v6824 = vpack.c.b16 %v6708, %v6704
        %v6825 = vpack.c.b16 %v6709, %v6705
        %v6826 = vpack.c.b16 %v6710, %v6706
        %v6827 = vpack.c.b16 %v6711, %v6707
        %v6828 = vpack.c.b16 %v6716, %v6712
        %v6829 = vpack.c.b16 %v6717, %v6713
        %v6830 = vpack.c.b16 %v6718, %v6714
        %v6831 = vpack.c.b16 %v6719, %v6715
        %v6832 = vpack.c.b16 %v6724, %v6720
        %v6833 = vpack.c.b16 %v6725, %v6721
        %v6834 = vpack.c.b16 %v6726, %v6722
        %v6835 = vpack.c.b16 %v6727, %v6723
        %v6836 = vpack.c.b16 %v6732, %v6728
        %v6837 = vpack.c.b16 %v6733, %v6729
        %v6838 = vpack.c.b16 %v6734, %v6730
        %v6839 = vpack.c.b16 %v6735, %v6731
        %v6840 = vpack.c.b16 %v6740, %v6736
        %v6841 = vpack.c.b16 %v6741, %v6737
        %v6842 = vpack.c.b16 %v6742, %v6738
        %v6843 = vpack.c.b16 %v6743, %v6739
        %v6844 = vpack.c.b16 %v6748, %v6744
        %v6845 = vpack.c.b16 %v6749, %v6745
        %v6846 = vpack.c.b16 %v6750, %v6746
        %v6847 = vpack.c.b16 %v6751, %v6747
        %v6848 = vpack.c.b16 %v6756, %v6752
        %v6849 = vpack.c.b16 %v6757, %v6753
        %v6850 = vpack.c.b16 %v6758, %v6754
        %v6851 = vpack.c.b16 %v6759, %v6755
        %v6852 = vpack.c.b16 %v6764, %v6760
        %v6853 = vpack.c.b16 %v6765, %v6761
        %v6854 = vpack.c.b16 %v6766, %v6762
        %v6855 = vpack.c.b16 %v6767, %v6763
        %v6856 = vpack.c.b16 %v6772, %v6768
        %v6857 = vpack.c.b16 %v6773, %v6769
        %v6858 = vpack.c.b16 %v6774, %v6770
        %v6859 = vpack.c.b16 %v6775, %v6771
        %v6860 = vpack.c.b16 %v6780, %v6776
        %v6861 = vpack.c.b16 %v6781, %v6777
        %v6862 = vpack.c.b16 %v6782, %v6778
        %v6863 = vpack.c.b16 %v6783, %v6779
        %v6864 = vpack.c.b16 %v6788, %v6784
        %v6865 = vpack.c.b16 %v6789, %v6785
        %v6866 = vpack.c.b16 %v6790, %v6786
        %v6867 = vpack.c.b16 %v6791, %v6787
        %v6868 = vpack.c.b16 %v6796, %v6792
        %v6869 = vpack.c.b16 %v6797, %v6793
        %v6870 = vpack.c.b16 %v6798, %v6794
        %v6871 = vpack.c.b16 %v6799, %v6795
        %v6872 = vpack.c.b16 %v6804, %v6800
        %v6873 = vpack.c.b16 %v6805, %v6801
        %v6874 = vpack.c.b16 %v6806, %v6802
        %v6875 = vpack.c.b16 %v6807, %v6803
        %v6876 = vpack.c.b16 %v6812, %v6808
        %v6877 = vpack.c.b16 %v6813, %v6809
        %v6878 = vpack.c.b16 %v6814, %v6810
        %v6879 = vpack.c.b16 %v6815, %v6811
        %6944 = vmatpush.bf16.msra.mxu0 %v6844
        %6945 = vmatpush.bf16.msra.mxu0 %v6840
        %6946 = vmatpush.bf16.msra.mxu0 %v6836
        %6947 = vmatpush.bf16.msra.mxu0 %v6832
        %6948 = vmatpush.bf16.msra.mxu0 %v6828
        %6949 = vmatpush.bf16.msra.mxu0 %v6824
        %6950 = vmatpush.bf16.msra.mxu0 %v6820
        %6951 = vmatpush.bf16.msra.mxu0 %v6816
        %6952 = vmatmul.bf16.gmra.mxu0 %v6049
        %v6953 = vpop.f32.mrf.mxu0
        %v6954 = vadd.f32 %v6543, %v6953
        %v6955 = vpop.f32.mrf.mxu0
        %6956 = vdwg.mxu0
        %6957 = vmatpush.bf16.msra.mxu0 %v6876
        %6958 = vmatpush.bf16.msra.mxu0 %v6872
        %6959 = vmatpush.bf16.msra.mxu0 %v6868
        %6960 = vmatpush.bf16.msra.mxu0 %v6864
        %6961 = vmatpush.bf16.msra.mxu0 %v6860
        %6962 = vmatpush.bf16.msra.mxu0 %v6856
        %6963 = vmatpush.bf16.msra.mxu0 %v6852
        %6964 = vmatpush.bf16.msra.mxu0 %v6848
        %6965 = vmatmul.bf16.gmra.mxu0 %v6050
        %v6966 = vpop.f32.mrf.mxu0
        %v6967 = vadd.f32 %v6954, %v6966
        %v6968 = vpop.f32.mrf.mxu0
        %6969 = vdwg.mxu0
        %6970 = vmatpush.bf16.msra.mxu0 %v6845
        %6971 = vmatpush.bf16.msra.mxu0 %v6841
        %6972 = vmatpush.bf16.msra.mxu0 %v6837
        %6973 = vmatpush.bf16.msra.mxu0 %v6833
        %6974 = vmatpush.bf16.msra.mxu0 %v6829
        %6975 = vmatpush.bf16.msra.mxu0 %v6825
        %6976 = vmatpush.bf16.msra.mxu0 %v6821
        %6977 = vmatpush.bf16.msra.mxu0 %v6817
        %6978 = vmatmul.bf16.gmra.mxu0 %v6049
        %v6979 = vpop.f32.mrf.mxu0
        %v6980 = vadd.f32 %v6569, %v6979
        %v6981 = vpop.f32.mrf.mxu0
        %6982 = vdwg.mxu0
        %6983 = vmatpush.bf16.msra.mxu0 %v6877
        %6984 = vmatpush.bf16.msra.mxu0 %v6873
        %6985 = vmatpush.bf16.msra.mxu0 %v6869
        %6986 = vmatpush.bf16.msra.mxu0 %v6865
        %6987 = vmatpush.bf16.msra.mxu0 %v6861
        %6988 = vmatpush.bf16.msra.mxu0 %v6857
        %6989 = vmatpush.bf16.msra.mxu0 %v6853
        %6990 = vmatpush.bf16.msra.mxu0 %v6849
        %6991 = vmatmul.bf16.gmra.mxu0 %v6050
        %v6992 = vpop.f32.mrf.mxu0
        %v6993 = vadd.f32 %v6980, %v6992
        %v6994 = vpop.f32.mrf.mxu0
        %6995 = vdwg.mxu0
        %6996 = vmatpush.bf16.msra.mxu0 %v6846
        %6997 = vmatpush.bf16.msra.mxu0 %v6842
        %6998 = vmatpush.bf16.msra.mxu0 %v6838
        %6999 = vmatpush.bf16.msra.mxu0 %v6834
        %7000 = vmatpush.bf16.msra.mxu0 %v6830
        %7001 = vmatpush.bf16.msra.mxu0 %v6826
        %7002 = vmatpush.bf16.msra.mxu0 %v6822
        %7003 = vmatpush.bf16.msra.mxu0 %v6818
        %7004 = vmatmul.bf16.gmra.mxu0 %v6049
        %v7005 = vpop.f32.mrf.mxu0
        %v7006 = vadd.f32 %v6595, %v7005
        %v7007 = vpop.f32.mrf.mxu0
        %7008 = vdwg.mxu0
        %7009 = vmatpush.bf16.msra.mxu0 %v6878
        %7010 = vmatpush.bf16.msra.mxu0 %v6874
        %7011 = vmatpush.bf16.msra.mxu0 %v6870
        %7012 = vmatpush.bf16.msra.mxu0 %v6866
        %7013 = vmatpush.bf16.msra.mxu0 %v6862
        %7014 = vmatpush.bf16.msra.mxu0 %v6858
        %7015 = vmatpush.bf16.msra.mxu0 %v6854
        %7016 = vmatpush.bf16.msra.mxu0 %v6850
        %7017 = vmatmul.bf16.gmra.mxu0 %v6050
        %v7018 = vpop.f32.mrf.mxu0
        %v7019 = vadd.f32 %v7006, %v7018
        %v7020 = vpop.f32.mrf.mxu0
        %7021 = vdwg.mxu0
        %7022 = vmatpush.bf16.msra.mxu0 %v6847
        %7023 = vmatpush.bf16.msra.mxu0 %v6843
        %7024 = vmatpush.bf16.msra.mxu0 %v6839
        %7025 = vmatpush.bf16.msra.mxu0 %v6835
        %7026 = vmatpush.bf16.msra.mxu0 %v6831
        %7027 = vmatpush.bf16.msra.mxu0 %v6827
        %7028 = vmatpush.bf16.msra.mxu0 %v6823
        %7029 = vmatpush.bf16.msra.mxu0 %v6819
        %7030 = vmatmul.bf16.gmra.mxu0 %v6049
        %v7031 = vpop.f32.mrf.mxu0
        %v7032 = vadd.f32 %v6621, %v7031
        %v7033 = vpop.f32.mrf.mxu0
        %7034 = vdwg.mxu0
        %7035 = vmatpush.bf16.msra.mxu0 %v6879
        %7036 = vmatpush.bf16.msra.mxu0 %v6875
        %7037 = vmatpush.bf16.msra.mxu0 %v6871
        %7038 = vmatpush.bf16.msra.mxu0 %v6867
        %7039 = vmatpush.bf16.msra.mxu0 %v6863
        %7040 = vmatpush.bf16.msra.mxu0 %v6859
        %7041 = vmatpush.bf16.msra.mxu0 %v6855
        %7042 = vmatpush.bf16.msra.mxu0 %v6851
        %7043 = vmatmul.bf16.gmra.mxu0 %v6050
        %v7044 = vpop.f32.mrf.mxu0
        %v7045 = vadd.f32 %v7032, %v7044
        %v7046 = vpop.f32.mrf.mxu0
        %7047 = vdwg.mxu0
        %v7048 = vld [vmem:[#allocation4] sm:$0xfc]
        %v7049 = vld [vmem:[#allocation4 + $0x8] sm:$0xfc]
        %v7050 = vpack.c.bf16 %v7048, %v7048
        %v7051 = vpack.c.bf16 %v7049, %v7049
        %s7052 = scalar_lea.vmem %s13, 1024
        %v7053 = vld [vmem:[%s7052] sm:$0xff]
        %v7054 = vld [vmem:[%s7052 + $0x8] sm:$0xff]
        %v7055 = vld [vmem:[%s7052 + $0x10] sm:$0xff]
        %v7056 = vld [vmem:[%s7052 + $0x18] sm:$0xff]
        %v7057 = vld [vmem:[%s7052 + $0x20] sm:$0xff]
        %v7058 = vld [vmem:[%s7052 + $0x28] sm:$0xff]
        %v7059 = vld [vmem:[%s7052 + $0x30] sm:$0xff]
        %v7060 = vld [vmem:[%s7052 + $0x38] sm:$0xff]
        %v7061 = vld [vmem:[%s7052 + $0x40] sm:$0xff]
        %v7062 = vld [vmem:[%s7052 + $0x48] sm:$0xff]
        %v7063 = vld [vmem:[%s7052 + $0x50] sm:$0xff]
        %v7064 = vld [vmem:[%s7052 + $0x58] sm:$0xff]
        %v7065 = vld [vmem:[%s7052 + $0x60] sm:$0xff]
        %v7066 = vld [vmem:[%s7052 + $0x68] sm:$0xff]
        %v7067 = vld [vmem:[%s7052 + $0x70] sm:$0xff]
        %v7068 = vld [vmem:[%s7052 + $0x78] sm:$0xff]
        %v7069 = vld [vmem:[%s7052 + $0x80] sm:$0xff]
        %v7070 = vld [vmem:[%s7052 + $0x88] sm:$0xff]
        %v7071 = vld [vmem:[%s7052 + $0x90] sm:$0xff]
        %v7072 = vld [vmem:[%s7052 + $0x98] sm:$0xff]
        %v7073 = vld [vmem:[%s7052 + $0xa0] sm:$0xff]
        %v7074 = vld [vmem:[%s7052 + $0xa8] sm:$0xff]
        %v7075 = vld [vmem:[%s7052 + $0xb0] sm:$0xff]
        %v7076 = vld [vmem:[%s7052 + $0xb8] sm:$0xff]
        %v7077 = vld [vmem:[%s7052 + $0xc0] sm:$0xff]
        %v7078 = vld [vmem:[%s7052 + $0xc8] sm:$0xff]
        %v7079 = vld [vmem:[%s7052 + $0xd0] sm:$0xff]
        %v7080 = vld [vmem:[%s7052 + $0xd8] sm:$0xff]
        %v7081 = vld [vmem:[%s7052 + $0xe0] sm:$0xff]
        %v7082 = vld [vmem:[%s7052 + $0xe8] sm:$0xff]
        %v7083 = vld [vmem:[%s7052 + $0xf0] sm:$0xff]
        %v7084 = vld [vmem:[%s7052 + $0xf8] sm:$0xff]
        %v7085 = vld [vmem:[%s7052 + $0x100] sm:$0xff]
        %v7086 = vld [vmem:[%s7052 + $0x108] sm:$0xff]
        %v7087 = vld [vmem:[%s7052 + $0x110] sm:$0xff]
        %v7088 = vld [vmem:[%s7052 + $0x118] sm:$0xff]
        %v7089 = vld [vmem:[%s7052 + $0x120] sm:$0xff]
        %v7090 = vld [vmem:[%s7052 + $0x128] sm:$0xff]
        %v7091 = vld [vmem:[%s7052 + $0x130] sm:$0xff]
        %v7092 = vld [vmem:[%s7052 + $0x138] sm:$0xff]
        %v7093 = vld [vmem:[%s7052 + $0x140] sm:$0xff]
        %v7094 = vld [vmem:[%s7052 + $0x148] sm:$0xff]
        %v7095 = vld [vmem:[%s7052 + $0x150] sm:$0xff]
        %v7096 = vld [vmem:[%s7052 + $0x158] sm:$0xff]
        %v7097 = vld [vmem:[%s7052 + $0x160] sm:$0xff]
        %v7098 = vld [vmem:[%s7052 + $0x168] sm:$0xff]
        %v7099 = vld [vmem:[%s7052 + $0x170] sm:$0xff]
        %v7100 = vld [vmem:[%s7052 + $0x178] sm:$0xff]
        %v7101 = vld [vmem:[%s7052 + $0x180] sm:$0xff]
        %v7102 = vld [vmem:[%s7052 + $0x188] sm:$0xff]
        %v7103 = vld [vmem:[%s7052 + $0x190] sm:$0xff]
        %v7104 = vld [vmem:[%s7052 + $0x198] sm:$0xff]
        %v7105 = vld [vmem:[%s7052 + $0x1a0] sm:$0xff]
        %v7106 = vld [vmem:[%s7052 + $0x1a8] sm:$0xff]
        %v7107 = vld [vmem:[%s7052 + $0x1b0] sm:$0xff]
        %v7108 = vld [vmem:[%s7052 + $0x1b8] sm:$0xff]
        %v7109 = vld [vmem:[%s7052 + $0x1c0] sm:$0xff]
        %v7110 = vld [vmem:[%s7052 + $0x1c8] sm:$0xff]
        %v7111 = vld [vmem:[%s7052 + $0x1d0] sm:$0xff]
        %v7112 = vld [vmem:[%s7052 + $0x1d8] sm:$0xff]
        %v7113 = vld [vmem:[%s7052 + $0x1e0] sm:$0xff]
        %v7114 = vld [vmem:[%s7052 + $0x1e8] sm:$0xff]
        %v7115 = vld [vmem:[%s7052 + $0x1f0] sm:$0xff]
        %v7116 = vld [vmem:[%s7052 + $0x1f8] sm:$0xff]
        %v7119 = vrot.slane %v7050, 1
        %v7120 = vrot.slane %v7051, 1
        %v7187 = vunpack.c.l.b16 %v7053
        %v7188 = vunpack.c.h.b16 %v7053
        %v7189 = vunpack.c.l.b16 %v7054
        %v7190 = vunpack.c.h.b16 %v7054
        %v7191 = vunpack.c.l.b16 %v7055
        %v7192 = vunpack.c.h.b16 %v7055
        %v7193 = vunpack.c.l.b16 %v7056
        %v7194 = vunpack.c.h.b16 %v7056
        %v7195 = vunpack.c.l.b16 %v7057
        %v7196 = vunpack.c.h.b16 %v7057
        %v7197 = vunpack.c.l.b16 %v7058
        %v7198 = vunpack.c.h.b16 %v7058
        %v7199 = vunpack.c.l.b16 %v7059
        %v7200 = vunpack.c.h.b16 %v7059
        %v7201 = vunpack.c.l.b16 %v7060
        %v7202 = vunpack.c.h.b16 %v7060
        %v7203 = vunpack.c.l.b16 %v7061
        %v7204 = vunpack.c.h.b16 %v7061
        %v7205 = vunpack.c.l.b16 %v7062
        %v7206 = vunpack.c.h.b16 %v7062
        %v7207 = vunpack.c.l.b16 %v7063
        %v7208 = vunpack.c.h.b16 %v7063
        %v7209 = vunpack.c.l.b16 %v7064
        %v7210 = vunpack.c.h.b16 %v7064
        %v7211 = vunpack.c.l.b16 %v7065
        %v7212 = vunpack.c.h.b16 %v7065
        %v7213 = vunpack.c.l.b16 %v7066
        %v7214 = vunpack.c.h.b16 %v7066
        %v7215 = vunpack.c.l.b16 %v7067
        %v7216 = vunpack.c.h.b16 %v7067
        %v7217 = vunpack.c.l.b16 %v7068
        %v7218 = vunpack.c.h.b16 %v7068
        %v7219 = vunpack.c.l.b16 %v7069
        %v7220 = vunpack.c.h.b16 %v7069
        %v7221 = vunpack.c.l.b16 %v7070
        %v7222 = vunpack.c.h.b16 %v7070
        %v7223 = vunpack.c.l.b16 %v7071
        %v7224 = vunpack.c.h.b16 %v7071
        %v7225 = vunpack.c.l.b16 %v7072
        %v7226 = vunpack.c.h.b16 %v7072
        %v7227 = vunpack.c.l.b16 %v7073
        %v7228 = vunpack.c.h.b16 %v7073
        %v7229 = vunpack.c.l.b16 %v7074
        %v7230 = vunpack.c.h.b16 %v7074
        %v7231 = vunpack.c.l.b16 %v7075
        %v7232 = vunpack.c.h.b16 %v7075
        %v7233 = vunpack.c.l.b16 %v7076
        %v7234 = vunpack.c.h.b16 %v7076
        %v7235 = vunpack.c.l.b16 %v7077
        %v7236 = vunpack.c.h.b16 %v7077
        %v7237 = vunpack.c.l.b16 %v7078
        %v7238 = vunpack.c.h.b16 %v7078
        %v7239 = vunpack.c.l.b16 %v7079
        %v7240 = vunpack.c.h.b16 %v7079
        %v7241 = vunpack.c.l.b16 %v7080
        %v7242 = vunpack.c.h.b16 %v7080
        %v7243 = vunpack.c.l.b16 %v7081
        %v7244 = vunpack.c.h.b16 %v7081
        %v7245 = vunpack.c.l.b16 %v7082
        %v7246 = vunpack.c.h.b16 %v7082
        %v7247 = vunpack.c.l.b16 %v7083
        %v7248 = vunpack.c.h.b16 %v7083
        %v7249 = vunpack.c.l.b16 %v7084
        %v7250 = vunpack.c.h.b16 %v7084
        %v7251 = vunpack.c.l.b16 %v7085
        %v7252 = vunpack.c.h.b16 %v7085
        %v7253 = vunpack.c.l.b16 %v7086
        %v7254 = vunpack.c.h.b16 %v7086
        %v7255 = vunpack.c.l.b16 %v7087
        %v7256 = vunpack.c.h.b16 %v7087
        %v7257 = vunpack.c.l.b16 %v7088
        %v7258 = vunpack.c.h.b16 %v7088
        %v7259 = vunpack.c.l.b16 %v7089
        %v7260 = vunpack.c.h.b16 %v7089
        %v7261 = vunpack.c.l.b16 %v7090
        %v7262 = vunpack.c.h.b16 %v7090
        %v7263 = vunpack.c.l.b16 %v7091
        %v7264 = vunpack.c.h.b16 %v7091
        %v7265 = vunpack.c.l.b16 %v7092
        %v7266 = vunpack.c.h.b16 %v7092
        %v7267 = vunpack.c.l.b16 %v7093
        %v7268 = vunpack.c.h.b16 %v7093
        %v7269 = vunpack.c.l.b16 %v7094
        %v7270 = vunpack.c.h.b16 %v7094
        %v7271 = vunpack.c.l.b16 %v7095
        %v7272 = vunpack.c.h.b16 %v7095
        %v7273 = vunpack.c.l.b16 %v7096
        %v7274 = vunpack.c.h.b16 %v7096
        %v7275 = vunpack.c.l.b16 %v7097
        %v7276 = vunpack.c.h.b16 %v7097
        %v7277 = vunpack.c.l.b16 %v7098
        %v7278 = vunpack.c.h.b16 %v7098
        %v7279 = vunpack.c.l.b16 %v7099
        %v7280 = vunpack.c.h.b16 %v7099
        %v7281 = vunpack.c.l.b16 %v7100
        %v7282 = vunpack.c.h.b16 %v7100
        %v7283 = vunpack.c.l.b16 %v7101
        %v7284 = vunpack.c.h.b16 %v7101
        %v7285 = vunpack.c.l.b16 %v7102
        %v7286 = vunpack.c.h.b16 %v7102
        %v7287 = vunpack.c.l.b16 %v7103
        %v7288 = vunpack.c.h.b16 %v7103
        %v7289 = vunpack.c.l.b16 %v7104
        %v7290 = vunpack.c.h.b16 %v7104
        %v7291 = vunpack.c.l.b16 %v7105
        %v7292 = vunpack.c.h.b16 %v7105
        %v7293 = vunpack.c.l.b16 %v7106
        %v7294 = vunpack.c.h.b16 %v7106
        %v7295 = vunpack.c.l.b16 %v7107
        %v7296 = vunpack.c.h.b16 %v7107
        %v7297 = vunpack.c.l.b16 %v7108
        %v7298 = vunpack.c.h.b16 %v7108
        %v7299 = vunpack.c.l.b16 %v7109
        %v7300 = vunpack.c.h.b16 %v7109
        %v7301 = vunpack.c.l.b16 %v7110
        %v7302 = vunpack.c.h.b16 %v7110
        %v7303 = vunpack.c.l.b16 %v7111
        %v7304 = vunpack.c.h.b16 %v7111
        %v7305 = vunpack.c.l.b16 %v7112
        %v7306 = vunpack.c.h.b16 %v7112
        %v7307 = vunpack.c.l.b16 %v7113
        %v7308 = vunpack.c.h.b16 %v7113
        %v7309 = vunpack.c.l.b16 %v7114
        %v7310 = vunpack.c.h.b16 %v7114
        %v7311 = vunpack.c.l.b16 %v7115
        %v7312 = vunpack.c.h.b16 %v7115
        %v7313 = vunpack.c.l.b16 %v7116
        %v7314 = vunpack.c.h.b16 %v7116
        %v7315 = vpack.c.b16 %v7191, %v7187
        %v7316 = vpack.c.b16 %v7192, %v7188
        %v7317 = vpack.c.b16 %v7193, %v7189
        %v7318 = vpack.c.b16 %v7194, %v7190
        %v7319 = vpack.c.b16 %v7199, %v7195
        %v7320 = vpack.c.b16 %v7200, %v7196
        %v7321 = vpack.c.b16 %v7201, %v7197
        %v7322 = vpack.c.b16 %v7202, %v7198
        %v7323 = vpack.c.b16 %v7207, %v7203
        %v7324 = vpack.c.b16 %v7208, %v7204
        %v7325 = vpack.c.b16 %v7209, %v7205
        %v7326 = vpack.c.b16 %v7210, %v7206
        %v7327 = vpack.c.b16 %v7215, %v7211
        %v7328 = vpack.c.b16 %v7216, %v7212
        %v7329 = vpack.c.b16 %v7217, %v7213
        %v7330 = vpack.c.b16 %v7218, %v7214
        %v7331 = vpack.c.b16 %v7223, %v7219
        %v7332 = vpack.c.b16 %v7224, %v7220
        %v7333 = vpack.c.b16 %v7225, %v7221
        %v7334 = vpack.c.b16 %v7226, %v7222
        %v7335 = vpack.c.b16 %v7231, %v7227
        %v7336 = vpack.c.b16 %v7232, %v7228
        %v7337 = vpack.c.b16 %v7233, %v7229
        %v7338 = vpack.c.b16 %v7234, %v7230
        %v7339 = vpack.c.b16 %v7239, %v7235
        %v7340 = vpack.c.b16 %v7240, %v7236
        %v7341 = vpack.c.b16 %v7241, %v7237
        %v7342 = vpack.c.b16 %v7242, %v7238
        %v7343 = vpack.c.b16 %v7247, %v7243
        %v7344 = vpack.c.b16 %v7248, %v7244
        %v7345 = vpack.c.b16 %v7249, %v7245
        %v7346 = vpack.c.b16 %v7250, %v7246
        %v7347 = vpack.c.b16 %v7255, %v7251
        %v7348 = vpack.c.b16 %v7256, %v7252
        %v7349 = vpack.c.b16 %v7257, %v7253
        %v7350 = vpack.c.b16 %v7258, %v7254
        %v7351 = vpack.c.b16 %v7263, %v7259
        %v7352 = vpack.c.b16 %v7264, %v7260
        %v7353 = vpack.c.b16 %v7265, %v7261
        %v7354 = vpack.c.b16 %v7266, %v7262
        %v7355 = vpack.c.b16 %v7271, %v7267
        %v7356 = vpack.c.b16 %v7272, %v7268
        %v7357 = vpack.c.b16 %v7273, %v7269
        %v7358 = vpack.c.b16 %v7274, %v7270
        %v7359 = vpack.c.b16 %v7279, %v7275
        %v7360 = vpack.c.b16 %v7280, %v7276
        %v7361 = vpack.c.b16 %v7281, %v7277
        %v7362 = vpack.c.b16 %v7282, %v7278
        %v7363 = vpack.c.b16 %v7287, %v7283
        %v7364 = vpack.c.b16 %v7288, %v7284
        %v7365 = vpack.c.b16 %v7289, %v7285
        %v7366 = vpack.c.b16 %v7290, %v7286
        %v7367 = vpack.c.b16 %v7295, %v7291
        %v7368 = vpack.c.b16 %v7296, %v7292
        %v7369 = vpack.c.b16 %v7297, %v7293
        %v7370 = vpack.c.b16 %v7298, %v7294
        %v7371 = vpack.c.b16 %v7303, %v7299
        %v7372 = vpack.c.b16 %v7304, %v7300
        %v7373 = vpack.c.b16 %v7305, %v7301
        %v7374 = vpack.c.b16 %v7306, %v7302
        %v7375 = vpack.c.b16 %v7311, %v7307
        %v7376 = vpack.c.b16 %v7312, %v7308
        %v7377 = vpack.c.b16 %v7313, %v7309
        %v7378 = vpack.c.b16 %v7314, %v7310
        %7443 = vmatpush.bf16.msra.mxu0 %v7343
        %7444 = vmatpush.bf16.msra.mxu0 %v7339
        %7445 = vmatpush.bf16.msra.mxu0 %v7335
        %7446 = vmatpush.bf16.msra.mxu0 %v7331
        %7447 = vmatpush.bf16.msra.mxu0 %v7327
        %7448 = vmatpush.bf16.msra.mxu0 %v7323
        %7449 = vmatpush.bf16.msra.mxu0 %v7319
        %7450 = vmatpush.bf16.msra.mxu0 %v7315
        %7451 = vmatmul.bf16.gmra.mxu0 %v7119
        %v7452 = vpop.f32.mrf.mxu0
        %v7453 = vadd.f32 0.0, %v7452
        %v7454 = vpop.f32.mrf.mxu0
        %7455 = vdwg.mxu0
        %7456 = vmatpush.bf16.msra.mxu0 %v7375
        %7457 = vmatpush.bf16.msra.mxu0 %v7371
        %7458 = vmatpush.bf16.msra.mxu0 %v7367
        %7459 = vmatpush.bf16.msra.mxu0 %v7363
        %7460 = vmatpush.bf16.msra.mxu0 %v7359
        %7461 = vmatpush.bf16.msra.mxu0 %v7355
        %7462 = vmatpush.bf16.msra.mxu0 %v7351
        %7463 = vmatpush.bf16.msra.mxu0 %v7347
        %7464 = vmatmul.bf16.gmra.mxu0 %v7120
        %v7465 = vpop.f32.mrf.mxu0
        %v7466 = vadd.f32 %v7453, %v7465
        %v7467 = vpop.f32.mrf.mxu0
        %7468 = vdwg.mxu0
        %7469 = vmatpush.bf16.msra.mxu0 %v7344
        %7470 = vmatpush.bf16.msra.mxu0 %v7340
        %7471 = vmatpush.bf16.msra.mxu0 %v7336
        %7472 = vmatpush.bf16.msra.mxu0 %v7332
        %7473 = vmatpush.bf16.msra.mxu0 %v7328
        %7474 = vmatpush.bf16.msra.mxu0 %v7324
        %7475 = vmatpush.bf16.msra.mxu0 %v7320
        %7476 = vmatpush.bf16.msra.mxu0 %v7316
        %7477 = vmatmul.bf16.gmra.mxu0 %v7119
        %v7478 = vpop.f32.mrf.mxu0
        %v7479 = vadd.f32 0.0, %v7478
        %v7480 = vpop.f32.mrf.mxu0
        %7481 = vdwg.mxu0
        %7482 = vmatpush.bf16.msra.mxu0 %v7376
        %7483 = vmatpush.bf16.msra.mxu0 %v7372
        %7484 = vmatpush.bf16.msra.mxu0 %v7368
        %7485 = vmatpush.bf16.msra.mxu0 %v7364
        %7486 = vmatpush.bf16.msra.mxu0 %v7360
        %7487 = vmatpush.bf16.msra.mxu0 %v7356
        %7488 = vmatpush.bf16.msra.mxu0 %v7352
        %7489 = vmatpush.bf16.msra.mxu0 %v7348
        %7490 = vmatmul.bf16.gmra.mxu0 %v7120
        %v7491 = vpop.f32.mrf.mxu0
        %v7492 = vadd.f32 %v7479, %v7491
        %v7493 = vpop.f32.mrf.mxu0
        %7494 = vdwg.mxu0
        %7495 = vmatpush.bf16.msra.mxu0 %v7345
        %7496 = vmatpush.bf16.msra.mxu0 %v7341
        %7497 = vmatpush.bf16.msra.mxu0 %v7337
        %7498 = vmatpush.bf16.msra.mxu0 %v7333
        %7499 = vmatpush.bf16.msra.mxu0 %v7329
        %7500 = vmatpush.bf16.msra.mxu0 %v7325
        %7501 = vmatpush.bf16.msra.mxu0 %v7321
        %7502 = vmatpush.bf16.msra.mxu0 %v7317
        %7503 = vmatmul.bf16.gmra.mxu0 %v7119
        %v7504 = vpop.f32.mrf.mxu0
        %v7505 = vadd.f32 0.0, %v7504
        %v7506 = vpop.f32.mrf.mxu0
        %7507 = vdwg.mxu0
        %7508 = vmatpush.bf16.msra.mxu0 %v7377
        %7509 = vmatpush.bf16.msra.mxu0 %v7373
        %7510 = vmatpush.bf16.msra.mxu0 %v7369
        %7511 = vmatpush.bf16.msra.mxu0 %v7365
        %7512 = vmatpush.bf16.msra.mxu0 %v7361
        %7513 = vmatpush.bf16.msra.mxu0 %v7357
        %7514 = vmatpush.bf16.msra.mxu0 %v7353
        %7515 = vmatpush.bf16.msra.mxu0 %v7349
        %7516 = vmatmul.bf16.gmra.mxu0 %v7120
        %v7517 = vpop.f32.mrf.mxu0
        %v7518 = vadd.f32 %v7505, %v7517
        %v7519 = vpop.f32.mrf.mxu0
        %7520 = vdwg.mxu0
        %7521 = vmatpush.bf16.msra.mxu0 %v7346
        %7522 = vmatpush.bf16.msra.mxu0 %v7342
        %7523 = vmatpush.bf16.msra.mxu0 %v7338
        %7524 = vmatpush.bf16.msra.mxu0 %v7334
        %7525 = vmatpush.bf16.msra.mxu0 %v7330
        %7526 = vmatpush.bf16.msra.mxu0 %v7326
        %7527 = vmatpush.bf16.msra.mxu0 %v7322
        %7528 = vmatpush.bf16.msra.mxu0 %v7318
        %7529 = vmatmul.bf16.gmra.mxu0 %v7119
        %v7530 = vpop.f32.mrf.mxu0
        %v7531 = vadd.f32 0.0, %v7530
        %v7532 = vpop.f32.mrf.mxu0
        %7533 = vdwg.mxu0
        %7534 = vmatpush.bf16.msra.mxu0 %v7378
        %7535 = vmatpush.bf16.msra.mxu0 %v7374
        %7536 = vmatpush.bf16.msra.mxu0 %v7370
        %7537 = vmatpush.bf16.msra.mxu0 %v7366
        %7538 = vmatpush.bf16.msra.mxu0 %v7362
        %7539 = vmatpush.bf16.msra.mxu0 %v7358
        %7540 = vmatpush.bf16.msra.mxu0 %v7354
        %7541 = vmatpush.bf16.msra.mxu0 %v7350
        %7542 = vmatmul.bf16.gmra.mxu0 %v7120
        %v7543 = vpop.f32.mrf.mxu0
        %v7544 = vadd.f32 %v7531, %v7543
        %v7545 = vpop.f32.mrf.mxu0
        %7546 = vdwg.mxu0
        %v7547 = vadd.f32 %v6967, %v7466
        %v7548 = vadd.f32 %v6993, %v7492
        %v7549 = vadd.f32 %v7019, %v7518
        %v7550 = vadd.f32 %v7045, %v7544
        %v7551 = vld [vmem:[#allocation4] sm:$0xf0]
        %v7552 = vld [vmem:[#allocation4 + $0x8] sm:$0xf0]
        %v7553 = vld [vmem:[#allocation4 + $0x10] sm:$0x3]
        %v7554 = vld [vmem:[#allocation4 + $0x18] sm:$0x3]
        %v7555 = vpack.c.bf16 %v7553, %v7551
        %v7556 = vpack.c.bf16 %v7554, %v7552
        %s7557 = scalar_lea.vmem %s13, 1536
        %v7558 = vld [vmem:[%s7557] sm:$0xff]
        %v7559 = vld [vmem:[%s7557 + $0x8] sm:$0xff]
        %v7560 = vld [vmem:[%s7557 + $0x10] sm:$0xff]
        %v7561 = vld [vmem:[%s7557 + $0x18] sm:$0xff]
        %v7562 = vld [vmem:[%s7557 + $0x20] sm:$0xff]
        %v7563 = vld [vmem:[%s7557 + $0x28] sm:$0xff]
        %v7564 = vld [vmem:[%s7557 + $0x30] sm:$0xff]
        %v7565 = vld [vmem:[%s7557 + $0x38] sm:$0xff]
        %v7566 = vld [vmem:[%s7557 + $0x40] sm:$0xff]
        %v7567 = vld [vmem:[%s7557 + $0x48] sm:$0xff]
        %v7568 = vld [vmem:[%s7557 + $0x50] sm:$0xff]
        %v7569 = vld [vmem:[%s7557 + $0x58] sm:$0xff]
        %v7570 = vld [vmem:[%s7557 + $0x60] sm:$0xff]
        %v7571 = vld [vmem:[%s7557 + $0x68] sm:$0xff]
        %v7572 = vld [vmem:[%s7557 + $0x70] sm:$0xff]
        %v7573 = vld [vmem:[%s7557 + $0x78] sm:$0xff]
        %v7574 = vld [vmem:[%s7557 + $0x80] sm:$0xff]
        %v7575 = vld [vmem:[%s7557 + $0x88] sm:$0xff]
        %v7576 = vld [vmem:[%s7557 + $0x90] sm:$0xff]
        %v7577 = vld [vmem:[%s7557 + $0x98] sm:$0xff]
        %v7578 = vld [vmem:[%s7557 + $0xa0] sm:$0xff]
        %v7579 = vld [vmem:[%s7557 + $0xa8] sm:$0xff]
        %v7580 = vld [vmem:[%s7557 + $0xb0] sm:$0xff]
        %v7581 = vld [vmem:[%s7557 + $0xb8] sm:$0xff]
        %v7582 = vld [vmem:[%s7557 + $0xc0] sm:$0xff]
        %v7583 = vld [vmem:[%s7557 + $0xc8] sm:$0xff]
        %v7584 = vld [vmem:[%s7557 + $0xd0] sm:$0xff]
        %v7585 = vld [vmem:[%s7557 + $0xd8] sm:$0xff]
        %v7586 = vld [vmem:[%s7557 + $0xe0] sm:$0xff]
        %v7587 = vld [vmem:[%s7557 + $0xe8] sm:$0xff]
        %v7588 = vld [vmem:[%s7557 + $0xf0] sm:$0xff]
        %v7589 = vld [vmem:[%s7557 + $0xf8] sm:$0xff]
        %v7590 = vld [vmem:[%s7557 + $0x100] sm:$0xff]
        %v7591 = vld [vmem:[%s7557 + $0x108] sm:$0xff]
        %v7592 = vld [vmem:[%s7557 + $0x110] sm:$0xff]
        %v7593 = vld [vmem:[%s7557 + $0x118] sm:$0xff]
        %v7594 = vld [vmem:[%s7557 + $0x120] sm:$0xff]
        %v7595 = vld [vmem:[%s7557 + $0x128] sm:$0xff]
        %v7596 = vld [vmem:[%s7557 + $0x130] sm:$0xff]
        %v7597 = vld [vmem:[%s7557 + $0x138] sm:$0xff]
        %v7598 = vld [vmem:[%s7557 + $0x140] sm:$0xff]
        %v7599 = vld [vmem:[%s7557 + $0x148] sm:$0xff]
        %v7600 = vld [vmem:[%s7557 + $0x150] sm:$0xff]
        %v7601 = vld [vmem:[%s7557 + $0x158] sm:$0xff]
        %v7602 = vld [vmem:[%s7557 + $0x160] sm:$0xff]
        %v7603 = vld [vmem:[%s7557 + $0x168] sm:$0xff]
        %v7604 = vld [vmem:[%s7557 + $0x170] sm:$0xff]
        %v7605 = vld [vmem:[%s7557 + $0x178] sm:$0xff]
        %v7606 = vld [vmem:[%s7557 + $0x180] sm:$0xff]
        %v7607 = vld [vmem:[%s7557 + $0x188] sm:$0xff]
        %v7608 = vld [vmem:[%s7557 + $0x190] sm:$0xff]
        %v7609 = vld [vmem:[%s7557 + $0x198] sm:$0xff]
        %v7610 = vld [vmem:[%s7557 + $0x1a0] sm:$0xff]
        %v7611 = vld [vmem:[%s7557 + $0x1a8] sm:$0xff]
        %v7612 = vld [vmem:[%s7557 + $0x1b0] sm:$0xff]
        %v7613 = vld [vmem:[%s7557 + $0x1b8] sm:$0xff]
        %v7614 = vld [vmem:[%s7557 + $0x1c0] sm:$0xff]
        %v7615 = vld [vmem:[%s7557 + $0x1c8] sm:$0xff]
        %v7616 = vld [vmem:[%s7557 + $0x1d0] sm:$0xff]
        %v7617 = vld [vmem:[%s7557 + $0x1d8] sm:$0xff]
        %v7618 = vld [vmem:[%s7557 + $0x1e0] sm:$0xff]
        %v7619 = vld [vmem:[%s7557 + $0x1e8] sm:$0xff]
        %v7620 = vld [vmem:[%s7557 + $0x1f0] sm:$0xff]
        %v7621 = vld [vmem:[%s7557 + $0x1f8] sm:$0xff]
        %v7624 = vrot.slane %v7555, 2
        %v7625 = vrot.slane %v7556, 2
        %v7692 = vunpack.c.l.b16 %v7558
        %v7693 = vunpack.c.h.b16 %v7558
        %v7694 = vunpack.c.l.b16 %v7559
        %v7695 = vunpack.c.h.b16 %v7559
        %v7696 = vunpack.c.l.b16 %v7560
        %v7697 = vunpack.c.h.b16 %v7560
        %v7698 = vunpack.c.l.b16 %v7561
        %v7699 = vunpack.c.h.b16 %v7561
        %v7700 = vunpack.c.l.b16 %v7562
        %v7701 = vunpack.c.h.b16 %v7562
        %v7702 = vunpack.c.l.b16 %v7563
        %v7703 = vunpack.c.h.b16 %v7563
        %v7704 = vunpack.c.l.b16 %v7564
        %v7705 = vunpack.c.h.b16 %v7564
        %v7706 = vunpack.c.l.b16 %v7565
        %v7707 = vunpack.c.h.b16 %v7565
        %v7708 = vunpack.c.l.b16 %v7566
        %v7709 = vunpack.c.h.b16 %v7566
        %v7710 = vunpack.c.l.b16 %v7567
        %v7711 = vunpack.c.h.b16 %v7567
        %v7712 = vunpack.c.l.b16 %v7568
        %v7713 = vunpack.c.h.b16 %v7568
        %v7714 = vunpack.c.l.b16 %v7569
        %v7715 = vunpack.c.h.b16 %v7569
        %v7716 = vunpack.c.l.b16 %v7570
        %v7717 = vunpack.c.h.b16 %v7570
        %v7718 = vunpack.c.l.b16 %v7571
        %v7719 = vunpack.c.h.b16 %v7571
        %v7720 = vunpack.c.l.b16 %v7572
        %v7721 = vunpack.c.h.b16 %v7572
        %v7722 = vunpack.c.l.b16 %v7573
        %v7723 = vunpack.c.h.b16 %v7573
        %v7724 = vunpack.c.l.b16 %v7574
        %v7725 = vunpack.c.h.b16 %v7574
        %v7726 = vunpack.c.l.b16 %v7575
        %v7727 = vunpack.c.h.b16 %v7575
        %v7728 = vunpack.c.l.b16 %v7576
        %v7729 = vunpack.c.h.b16 %v7576
        %v7730 = vunpack.c.l.b16 %v7577
        %v7731 = vunpack.c.h.b16 %v7577
        %v7732 = vunpack.c.l.b16 %v7578
        %v7733 = vunpack.c.h.b16 %v7578
        %v7734 = vunpack.c.l.b16 %v7579
        %v7735 = vunpack.c.h.b16 %v7579
        %v7736 = vunpack.c.l.b16 %v7580
        %v7737 = vunpack.c.h.b16 %v7580
        %v7738 = vunpack.c.l.b16 %v7581
        %v7739 = vunpack.c.h.b16 %v7581
        %v7740 = vunpack.c.l.b16 %v7582
        %v7741 = vunpack.c.h.b16 %v7582
        %v7742 = vunpack.c.l.b16 %v7583
        %v7743 = vunpack.c.h.b16 %v7583
        %v7744 = vunpack.c.l.b16 %v7584
        %v7745 = vunpack.c.h.b16 %v7584
        %v7746 = vunpack.c.l.b16 %v7585
        %v7747 = vunpack.c.h.b16 %v7585
        %v7748 = vunpack.c.l.b16 %v7586
        %v7749 = vunpack.c.h.b16 %v7586
        %v7750 = vunpack.c.l.b16 %v7587
        %v7751 = vunpack.c.h.b16 %v7587
        %v7752 = vunpack.c.l.b16 %v7588
        %v7753 = vunpack.c.h.b16 %v7588
        %v7754 = vunpack.c.l.b16 %v7589
        %v7755 = vunpack.c.h.b16 %v7589
        %v7756 = vunpack.c.l.b16 %v7590
        %v7757 = vunpack.c.h.b16 %v7590
        %v7758 = vunpack.c.l.b16 %v7591
        %v7759 = vunpack.c.h.b16 %v7591
        %v7760 = vunpack.c.l.b16 %v7592
        %v7761 = vunpack.c.h.b16 %v7592
        %v7762 = vunpack.c.l.b16 %v7593
        %v7763 = vunpack.c.h.b16 %v7593
        %v7764 = vunpack.c.l.b16 %v7594
        %v7765 = vunpack.c.h.b16 %v7594
        %v7766 = vunpack.c.l.b16 %v7595
        %v7767 = vunpack.c.h.b16 %v7595
        %v7768 = vunpack.c.l.b16 %v7596
        %v7769 = vunpack.c.h.b16 %v7596
        %v7770 = vunpack.c.l.b16 %v7597
        %v7771 = vunpack.c.h.b16 %v7597
        %v7772 = vunpack.c.l.b16 %v7598
        %v7773 = vunpack.c.h.b16 %v7598
        %v7774 = vunpack.c.l.b16 %v7599
        %v7775 = vunpack.c.h.b16 %v7599
        %v7776 = vunpack.c.l.b16 %v7600
        %v7777 = vunpack.c.h.b16 %v7600
        %v7778 = vunpack.c.l.b16 %v7601
        %v7779 = vunpack.c.h.b16 %v7601
        %v7780 = vunpack.c.l.b16 %v7602
        %v7781 = vunpack.c.h.b16 %v7602
        %v7782 = vunpack.c.l.b16 %v7603
        %v7783 = vunpack.c.h.b16 %v7603
        %v7784 = vunpack.c.l.b16 %v7604
        %v7785 = vunpack.c.h.b16 %v7604
        %v7786 = vunpack.c.l.b16 %v7605
        %v7787 = vunpack.c.h.b16 %v7605
        %v7788 = vunpack.c.l.b16 %v7606
        %v7789 = vunpack.c.h.b16 %v7606
        %v7790 = vunpack.c.l.b16 %v7607
        %v7791 = vunpack.c.h.b16 %v7607
        %v7792 = vunpack.c.l.b16 %v7608
        %v7793 = vunpack.c.h.b16 %v7608
        %v7794 = vunpack.c.l.b16 %v7609
        %v7795 = vunpack.c.h.b16 %v7609
        %v7796 = vunpack.c.l.b16 %v7610
        %v7797 = vunpack.c.h.b16 %v7610
        %v7798 = vunpack.c.l.b16 %v7611
        %v7799 = vunpack.c.h.b16 %v7611
        %v7800 = vunpack.c.l.b16 %v7612
        %v7801 = vunpack.c.h.b16 %v7612
        %v7802 = vunpack.c.l.b16 %v7613
        %v7803 = vunpack.c.h.b16 %v7613
        %v7804 = vunpack.c.l.b16 %v7614
        %v7805 = vunpack.c.h.b16 %v7614
        %v7806 = vunpack.c.l.b16 %v7615
        %v7807 = vunpack.c.h.b16 %v7615
        %v7808 = vunpack.c.l.b16 %v7616
        %v7809 = vunpack.c.h.b16 %v7616
        %v7810 = vunpack.c.l.b16 %v7617
        %v7811 = vunpack.c.h.b16 %v7617
        %v7812 = vunpack.c.l.b16 %v7618
        %v7813 = vunpack.c.h.b16 %v7618
        %v7814 = vunpack.c.l.b16 %v7619
        %v7815 = vunpack.c.h.b16 %v7619
        %v7816 = vunpack.c.l.b16 %v7620
        %v7817 = vunpack.c.h.b16 %v7620
        %v7818 = vunpack.c.l.b16 %v7621
        %v7819 = vunpack.c.h.b16 %v7621
        %v7820 = vpack.c.b16 %v7696, %v7692
        %v7821 = vpack.c.b16 %v7697, %v7693
        %v7822 = vpack.c.b16 %v7698, %v7694
        %v7823 = vpack.c.b16 %v7699, %v7695
        %v7824 = vpack.c.b16 %v7704, %v7700
        %v7825 = vpack.c.b16 %v7705, %v7701
        %v7826 = vpack.c.b16 %v7706, %v7702
        %v7827 = vpack.c.b16 %v7707, %v7703
        %v7828 = vpack.c.b16 %v7712, %v7708
        %v7829 = vpack.c.b16 %v7713, %v7709
        %v7830 = vpack.c.b16 %v7714, %v7710
        %v7831 = vpack.c.b16 %v7715, %v7711
        %v7832 = vpack.c.b16 %v7720, %v7716
        %v7833 = vpack.c.b16 %v7721, %v7717
        %v7834 = vpack.c.b16 %v7722, %v7718
        %v7835 = vpack.c.b16 %v7723, %v7719
        %v7836 = vpack.c.b16 %v7728, %v7724
        %v7837 = vpack.c.b16 %v7729, %v7725
        %v7838 = vpack.c.b16 %v7730, %v7726
        %v7839 = vpack.c.b16 %v7731, %v7727
        %v7840 = vpack.c.b16 %v7736, %v7732
        %v7841 = vpack.c.b16 %v7737, %v7733
        %v7842 = vpack.c.b16 %v7738, %v7734
        %v7843 = vpack.c.b16 %v7739, %v7735
        %v7844 = vpack.c.b16 %v7744, %v7740
        %v7845 = vpack.c.b16 %v7745, %v7741
        %v7846 = vpack.c.b16 %v7746, %v7742
        %v7847 = vpack.c.b16 %v7747, %v7743
        %v7848 = vpack.c.b16 %v7752, %v7748
        %v7849 = vpack.c.b16 %v7753, %v7749
        %v7850 = vpack.c.b16 %v7754, %v7750
        %v7851 = vpack.c.b16 %v7755, %v7751
        %v7852 = vpack.c.b16 %v7760, %v7756
        %v7853 = vpack.c.b16 %v7761, %v7757
        %v7854 = vpack.c.b16 %v7762, %v7758
        %v7855 = vpack.c.b16 %v7763, %v7759
        %v7856 = vpack.c.b16 %v7768, %v7764
        %v7857 = vpack.c.b16 %v7769, %v7765
        %v7858 = vpack.c.b16 %v7770, %v7766
        %v7859 = vpack.c.b16 %v7771, %v7767
        %v7860 = vpack.c.b16 %v7776, %v7772
        %v7861 = vpack.c.b16 %v7777, %v7773
        %v7862 = vpack.c.b16 %v7778, %v7774
        %v7863 = vpack.c.b16 %v7779, %v7775
        %v7864 = vpack.c.b16 %v7784, %v7780
        %v7865 = vpack.c.b16 %v7785, %v7781
        %v7866 = vpack.c.b16 %v7786, %v7782
        %v7867 = vpack.c.b16 %v7787, %v7783
        %v7868 = vpack.c.b16 %v7792, %v7788
        %v7869 = vpack.c.b16 %v7793, %v7789
        %v7870 = vpack.c.b16 %v7794, %v7790
        %v7871 = vpack.c.b16 %v7795, %v7791
        %v7872 = vpack.c.b16 %v7800, %v7796
        %v7873 = vpack.c.b16 %v7801, %v7797
        %v7874 = vpack.c.b16 %v7802, %v7798
        %v7875 = vpack.c.b16 %v7803, %v7799
        %v7876 = vpack.c.b16 %v7808, %v7804
        %v7877 = vpack.c.b16 %v7809, %v7805
        %v7878 = vpack.c.b16 %v7810, %v7806
        %v7879 = vpack.c.b16 %v7811, %v7807
        %v7880 = vpack.c.b16 %v7816, %v7812
        %v7881 = vpack.c.b16 %v7817, %v7813
        %v7882 = vpack.c.b16 %v7818, %v7814
        %v7883 = vpack.c.b16 %v7819, %v7815
        %7948 = vmatpush.bf16.msra.mxu0 %v7848
        %7949 = vmatpush.bf16.msra.mxu0 %v7844
        %7950 = vmatpush.bf16.msra.mxu0 %v7840
        %7951 = vmatpush.bf16.msra.mxu0 %v7836
        %7952 = vmatpush.bf16.msra.mxu0 %v7832
        %7953 = vmatpush.bf16.msra.mxu0 %v7828
        %7954 = vmatpush.bf16.msra.mxu0 %v7824
        %7955 = vmatpush.bf16.msra.mxu0 %v7820
        %7956 = vmatmul.bf16.gmra.mxu0 %v7624
        %v7957 = vpop.f32.mrf.mxu0
        %v7958 = vadd.f32 0.0, %v7957
        %v7959 = vpop.f32.mrf.mxu0
        %7960 = vdwg.mxu0
        %7961 = vmatpush.bf16.msra.mxu0 %v7880
        %7962 = vmatpush.bf16.msra.mxu0 %v7876
        %7963 = vmatpush.bf16.msra.mxu0 %v7872
        %7964 = vmatpush.bf16.msra.mxu0 %v7868
        %7965 = vmatpush.bf16.msra.mxu0 %v7864
        %7966 = vmatpush.bf16.msra.mxu0 %v7860
        %7967 = vmatpush.bf16.msra.mxu0 %v7856
        %7968 = vmatpush.bf16.msra.mxu0 %v7852
        %7969 = vmatmul.bf16.gmra.mxu0 %v7625
        %v7970 = vpop.f32.mrf.mxu0
        %v7971 = vadd.f32 %v7958, %v7970
        %v7972 = vpop.f32.mrf.mxu0
        %7973 = vdwg.mxu0
        %7974 = vmatpush.bf16.msra.mxu0 %v7849
        %7975 = vmatpush.bf16.msra.mxu0 %v7845
        %7976 = vmatpush.bf16.msra.mxu0 %v7841
        %7977 = vmatpush.bf16.msra.mxu0 %v7837
        %7978 = vmatpush.bf16.msra.mxu0 %v7833
        %7979 = vmatpush.bf16.msra.mxu0 %v7829
        %7980 = vmatpush.bf16.msra.mxu0 %v7825
        %7981 = vmatpush.bf16.msra.mxu0 %v7821
        %7982 = vmatmul.bf16.gmra.mxu0 %v7624
        %v7983 = vpop.f32.mrf.mxu0
        %v7984 = vadd.f32 0.0, %v7983
        %v7985 = vpop.f32.mrf.mxu0
        %7986 = vdwg.mxu0
        %7987 = vmatpush.bf16.msra.mxu0 %v7881
        %7988 = vmatpush.bf16.msra.mxu0 %v7877
        %7989 = vmatpush.bf16.msra.mxu0 %v7873
        %7990 = vmatpush.bf16.msra.mxu0 %v7869
        %7991 = vmatpush.bf16.msra.mxu0 %v7865
        %7992 = vmatpush.bf16.msra.mxu0 %v7861
        %7993 = vmatpush.bf16.msra.mxu0 %v7857
        %7994 = vmatpush.bf16.msra.mxu0 %v7853
        %7995 = vmatmul.bf16.gmra.mxu0 %v7625
        %v7996 = vpop.f32.mrf.mxu0
        %v7997 = vadd.f32 %v7984, %v7996
        %v7998 = vpop.f32.mrf.mxu0
        %7999 = vdwg.mxu0
        %8000 = vmatpush.bf16.msra.mxu0 %v7850
        %8001 = vmatpush.bf16.msra.mxu0 %v7846
        %8002 = vmatpush.bf16.msra.mxu0 %v7842
        %8003 = vmatpush.bf16.msra.mxu0 %v7838
        %8004 = vmatpush.bf16.msra.mxu0 %v7834
        %8005 = vmatpush.bf16.msra.mxu0 %v7830
        %8006 = vmatpush.bf16.msra.mxu0 %v7826
        %8007 = vmatpush.bf16.msra.mxu0 %v7822
        %8008 = vmatmul.bf16.gmra.mxu0 %v7624
        %v8009 = vpop.f32.mrf.mxu0
        %v8010 = vadd.f32 0.0, %v8009
        %v8011 = vpop.f32.mrf.mxu0
        %8012 = vdwg.mxu0
        %8013 = vmatpush.bf16.msra.mxu0 %v7882
        %8014 = vmatpush.bf16.msra.mxu0 %v7878
        %8015 = vmatpush.bf16.msra.mxu0 %v7874
        %8016 = vmatpush.bf16.msra.mxu0 %v7870
        %8017 = vmatpush.bf16.msra.mxu0 %v7866
        %8018 = vmatpush.bf16.msra.mxu0 %v7862
        %8019 = vmatpush.bf16.msra.mxu0 %v7858
        %8020 = vmatpush.bf16.msra.mxu0 %v7854
        %8021 = vmatmul.bf16.gmra.mxu0 %v7625
        %v8022 = vpop.f32.mrf.mxu0
        %v8023 = vadd.f32 %v8010, %v8022
        %v8024 = vpop.f32.mrf.mxu0
        %8025 = vdwg.mxu0
        %8026 = vmatpush.bf16.msra.mxu0 %v7851
        %8027 = vmatpush.bf16.msra.mxu0 %v7847
        %8028 = vmatpush.bf16.msra.mxu0 %v7843
        %8029 = vmatpush.bf16.msra.mxu0 %v7839
        %8030 = vmatpush.bf16.msra.mxu0 %v7835
        %8031 = vmatpush.bf16.msra.mxu0 %v7831
        %8032 = vmatpush.bf16.msra.mxu0 %v7827
        %8033 = vmatpush.bf16.msra.mxu0 %v7823
        %8034 = vmatmul.bf16.gmra.mxu0 %v7624
        %v8035 = vpop.f32.mrf.mxu0
        %v8036 = vadd.f32 0.0, %v8035
        %v8037 = vpop.f32.mrf.mxu0
        %8038 = vdwg.mxu0
        %8039 = vmatpush.bf16.msra.mxu0 %v7883
        %8040 = vmatpush.bf16.msra.mxu0 %v7879
        %8041 = vmatpush.bf16.msra.mxu0 %v7875
        %8042 = vmatpush.bf16.msra.mxu0 %v7871
        %8043 = vmatpush.bf16.msra.mxu0 %v7867
        %8044 = vmatpush.bf16.msra.mxu0 %v7863
        %8045 = vmatpush.bf16.msra.mxu0 %v7859
        %8046 = vmatpush.bf16.msra.mxu0 %v7855
        %8047 = vmatmul.bf16.gmra.mxu0 %v7625
        %v8048 = vpop.f32.mrf.mxu0
        %v8049 = vadd.f32 %v8036, %v8048
        %v8050 = vpop.f32.mrf.mxu0
        %8051 = vdwg.mxu0
        %v8052 = vadd.f32 %v7547, %v7971
        %v8053 = vadd.f32 %v7548, %v7997
        %v8054 = vadd.f32 %v7549, %v8023
        %v8055 = vadd.f32 %v7550, %v8049
        %v8056 = vld [vmem:[#allocation4] sm:$0xe0]
        %v8057 = vld [vmem:[#allocation4 + $0x8] sm:$0xe0]
        %v8058 = vld [vmem:[#allocation4 + $0x10] sm:$0x7]
        %v8059 = vld [vmem:[#allocation4 + $0x18] sm:$0x7]
        %v8060 = vpack.c.bf16 %v8058, %v8056
        %v8061 = vpack.c.bf16 %v8059, %v8057
        %s8062 = scalar_lea.vmem %s13, 2048
        %v8063 = vld [vmem:[%s8062] sm:$0xff]
        %v8064 = vld [vmem:[%s8062 + $0x8] sm:$0xff]
        %v8065 = vld [vmem:[%s8062 + $0x10] sm:$0xff]
        %v8066 = vld [vmem:[%s8062 + $0x18] sm:$0xff]
        %v8067 = vld [vmem:[%s8062 + $0x20] sm:$0xff]
        %v8068 = vld [vmem:[%s8062 + $0x28] sm:$0xff]
        %v8069 = vld [vmem:[%s8062 + $0x30] sm:$0xff]
        %v8070 = vld [vmem:[%s8062 + $0x38] sm:$0xff]
        %v8071 = vld [vmem:[%s8062 + $0x40] sm:$0xff]
        %v8072 = vld [vmem:[%s8062 + $0x48] sm:$0xff]
        %v8073 = vld [vmem:[%s8062 + $0x50] sm:$0xff]
        %v8074 = vld [vmem:[%s8062 + $0x58] sm:$0xff]
        %v8075 = vld [vmem:[%s8062 + $0x60] sm:$0xff]
        %v8076 = vld [vmem:[%s8062 + $0x68] sm:$0xff]
        %v8077 = vld [vmem:[%s8062 + $0x70] sm:$0xff]
        %v8078 = vld [vmem:[%s8062 + $0x78] sm:$0xff]
        %v8079 = vld [vmem:[%s8062 + $0x80] sm:$0xff]
        %v8080 = vld [vmem:[%s8062 + $0x88] sm:$0xff]
        %v8081 = vld [vmem:[%s8062 + $0x90] sm:$0xff]
        %v8082 = vld [vmem:[%s8062 + $0x98] sm:$0xff]
        %v8083 = vld [vmem:[%s8062 + $0xa0] sm:$0xff]
        %v8084 = vld [vmem:[%s8062 + $0xa8] sm:$0xff]
        %v8085 = vld [vmem:[%s8062 + $0xb0] sm:$0xff]
        %v8086 = vld [vmem:[%s8062 + $0xb8] sm:$0xff]
        %v8087 = vld [vmem:[%s8062 + $0xc0] sm:$0xff]
        %v8088 = vld [vmem:[%s8062 + $0xc8] sm:$0xff]
        %v8089 = vld [vmem:[%s8062 + $0xd0] sm:$0xff]
        %v8090 = vld [vmem:[%s8062 + $0xd8] sm:$0xff]
        %v8091 = vld [vmem:[%s8062 + $0xe0] sm:$0xff]
        %v8092 = vld [vmem:[%s8062 + $0xe8] sm:$0xff]
        %v8093 = vld [vmem:[%s8062 + $0xf0] sm:$0xff]
        %v8094 = vld [vmem:[%s8062 + $0xf8] sm:$0xff]
        %v8095 = vld [vmem:[%s8062 + $0x100] sm:$0xff]
        %v8096 = vld [vmem:[%s8062 + $0x108] sm:$0xff]
        %v8097 = vld [vmem:[%s8062 + $0x110] sm:$0xff]
        %v8098 = vld [vmem:[%s8062 + $0x118] sm:$0xff]
        %v8099 = vld [vmem:[%s8062 + $0x120] sm:$0xff]
        %v8100 = vld [vmem:[%s8062 + $0x128] sm:$0xff]
        %v8101 = vld [vmem:[%s8062 + $0x130] sm:$0xff]
        %v8102 = vld [vmem:[%s8062 + $0x138] sm:$0xff]
        %v8103 = vld [vmem:[%s8062 + $0x140] sm:$0xff]
        %v8104 = vld [vmem:[%s8062 + $0x148] sm:$0xff]
        %v8105 = vld [vmem:[%s8062 + $0x150] sm:$0xff]
        %v8106 = vld [vmem:[%s8062 + $0x158] sm:$0xff]
        %v8107 = vld [vmem:[%s8062 + $0x160] sm:$0xff]
        %v8108 = vld [vmem:[%s8062 + $0x168] sm:$0xff]
        %v8109 = vld [vmem:[%s8062 + $0x170] sm:$0xff]
        %v8110 = vld [vmem:[%s8062 + $0x178] sm:$0xff]
        %v8111 = vld [vmem:[%s8062 + $0x180] sm:$0xff]
        %v8112 = vld [vmem:[%s8062 + $0x188] sm:$0xff]
        %v8113 = vld [vmem:[%s8062 + $0x190] sm:$0xff]
        %v8114 = vld [vmem:[%s8062 + $0x198] sm:$0xff]
        %v8115 = vld [vmem:[%s8062 + $0x1a0] sm:$0xff]
        %v8116 = vld [vmem:[%s8062 + $0x1a8] sm:$0xff]
        %v8117 = vld [vmem:[%s8062 + $0x1b0] sm:$0xff]
        %v8118 = vld [vmem:[%s8062 + $0x1b8] sm:$0xff]
        %v8119 = vld [vmem:[%s8062 + $0x1c0] sm:$0xff]
        %v8120 = vld [vmem:[%s8062 + $0x1c8] sm:$0xff]
        %v8121 = vld [vmem:[%s8062 + $0x1d0] sm:$0xff]
        %v8122 = vld [vmem:[%s8062 + $0x1d8] sm:$0xff]
        %v8123 = vld [vmem:[%s8062 + $0x1e0] sm:$0xff]
        %v8124 = vld [vmem:[%s8062 + $0x1e8] sm:$0xff]
        %v8125 = vld [vmem:[%s8062 + $0x1f0] sm:$0xff]
        %v8126 = vld [vmem:[%s8062 + $0x1f8] sm:$0xff]
        %v8128 = vshrl.u32 %v8060, 16
        %v8130 = vrot.slane %v8128, 2
        %v8131 = vshll.u32 %v8060, 16
        %v8133 = vrot.slane %v8131, 3
        %v8134 = vor.u32 %v8130, %v8133
        %v8136 = vshrl.u32 %v8061, 16
        %v8138 = vrot.slane %v8136, 2
        %v8139 = vshll.u32 %v8061, 16
        %v8141 = vrot.slane %v8139, 3
        %v8142 = vor.u32 %v8138, %v8141
        %v8209 = vunpack.c.l.b16 %v8063
        %v8210 = vunpack.c.h.b16 %v8063
        %v8211 = vunpack.c.l.b16 %v8064
        %v8212 = vunpack.c.h.b16 %v8064
        %v8213 = vunpack.c.l.b16 %v8065
        %v8214 = vunpack.c.h.b16 %v8065
        %v8215 = vunpack.c.l.b16 %v8066
        %v8216 = vunpack.c.h.b16 %v8066
        %v8217 = vunpack.c.l.b16 %v8067
        %v8218 = vunpack.c.h.b16 %v8067
        %v8219 = vunpack.c.l.b16 %v8068
        %v8220 = vunpack.c.h.b16 %v8068
        %v8221 = vunpack.c.l.b16 %v8069
        %v8222 = vunpack.c.h.b16 %v8069
        %v8223 = vunpack.c.l.b16 %v8070
        %v8224 = vunpack.c.h.b16 %v8070
        %v8225 = vunpack.c.l.b16 %v8071
        %v8226 = vunpack.c.h.b16 %v8071
        %v8227 = vunpack.c.l.b16 %v8072
        %v8228 = vunpack.c.h.b16 %v8072
        %v8229 = vunpack.c.l.b16 %v8073
        %v8230 = vunpack.c.h.b16 %v8073
        %v8231 = vunpack.c.l.b16 %v8074
        %v8232 = vunpack.c.h.b16 %v8074
        %v8233 = vunpack.c.l.b16 %v8075
        %v8234 = vunpack.c.h.b16 %v8075
        %v8235 = vunpack.c.l.b16 %v8076
        %v8236 = vunpack.c.h.b16 %v8076
        %v8237 = vunpack.c.l.b16 %v8077
        %v8238 = vunpack.c.h.b16 %v8077
        %v8239 = vunpack.c.l.b16 %v8078
        %v8240 = vunpack.c.h.b16 %v8078
        %v8241 = vunpack.c.l.b16 %v8079
        %v8242 = vunpack.c.h.b16 %v8079
        %v8243 = vunpack.c.l.b16 %v8080
        %v8244 = vunpack.c.h.b16 %v8080
        %v8245 = vunpack.c.l.b16 %v8081
        %v8246 = vunpack.c.h.b16 %v8081
        %v8247 = vunpack.c.l.b16 %v8082
        %v8248 = vunpack.c.h.b16 %v8082
        %v8249 = vunpack.c.l.b16 %v8083
        %v8250 = vunpack.c.h.b16 %v8083
        %v8251 = vunpack.c.l.b16 %v8084
        %v8252 = vunpack.c.h.b16 %v8084
        %v8253 = vunpack.c.l.b16 %v8085
        %v8254 = vunpack.c.h.b16 %v8085
        %v8255 = vunpack.c.l.b16 %v8086
        %v8256 = vunpack.c.h.b16 %v8086
        %v8257 = vunpack.c.l.b16 %v8087
        %v8258 = vunpack.c.h.b16 %v8087
        %v8259 = vunpack.c.l.b16 %v8088
        %v8260 = vunpack.c.h.b16 %v8088
        %v8261 = vunpack.c.l.b16 %v8089
        %v8262 = vunpack.c.h.b16 %v8089
        %v8263 = vunpack.c.l.b16 %v8090
        %v8264 = vunpack.c.h.b16 %v8090
        %v8265 = vunpack.c.l.b16 %v8091
        %v8266 = vunpack.c.h.b16 %v8091
        %v8267 = vunpack.c.l.b16 %v8092
        %v8268 = vunpack.c.h.b16 %v8092
        %v8269 = vunpack.c.l.b16 %v8093
        %v8270 = vunpack.c.h.b16 %v8093
        %v8271 = vunpack.c.l.b16 %v8094
        %v8272 = vunpack.c.h.b16 %v8094
        %v8273 = vunpack.c.l.b16 %v8095
        %v8274 = vunpack.c.h.b16 %v8095
        %v8275 = vunpack.c.l.b16 %v8096
        %v8276 = vunpack.c.h.b16 %v8096
        %v8277 = vunpack.c.l.b16 %v8097
        %v8278 = vunpack.c.h.b16 %v8097
        %v8279 = vunpack.c.l.b16 %v8098
        %v8280 = vunpack.c.h.b16 %v8098
        %v8281 = vunpack.c.l.b16 %v8099
        %v8282 = vunpack.c.h.b16 %v8099
        %v8283 = vunpack.c.l.b16 %v8100
        %v8284 = vunpack.c.h.b16 %v8100
        %v8285 = vunpack.c.l.b16 %v8101
        %v8286 = vunpack.c.h.b16 %v8101
        %v8287 = vunpack.c.l.b16 %v8102
        %v8288 = vunpack.c.h.b16 %v8102
        %v8289 = vunpack.c.l.b16 %v8103
        %v8290 = vunpack.c.h.b16 %v8103
        %v8291 = vunpack.c.l.b16 %v8104
        %v8292 = vunpack.c.h.b16 %v8104
        %v8293 = vunpack.c.l.b16 %v8105
        %v8294 = vunpack.c.h.b16 %v8105
        %v8295 = vunpack.c.l.b16 %v8106
        %v8296 = vunpack.c.h.b16 %v8106
        %v8297 = vunpack.c.l.b16 %v8107
        %v8298 = vunpack.c.h.b16 %v8107
        %v8299 = vunpack.c.l.b16 %v8108
        %v8300 = vunpack.c.h.b16 %v8108
        %v8301 = vunpack.c.l.b16 %v8109
        %v8302 = vunpack.c.h.b16 %v8109
        %v8303 = vunpack.c.l.b16 %v8110
        %v8304 = vunpack.c.h.b16 %v8110
        %v8305 = vunpack.c.l.b16 %v8111
        %v8306 = vunpack.c.h.b16 %v8111
        %v8307 = vunpack.c.l.b16 %v8112
        %v8308 = vunpack.c.h.b16 %v8112
        %v8309 = vunpack.c.l.b16 %v8113
        %v8310 = vunpack.c.h.b16 %v8113
        %v8311 = vunpack.c.l.b16 %v8114
        %v8312 = vunpack.c.h.b16 %v8114
        %v8313 = vunpack.c.l.b16 %v8115
        %v8314 = vunpack.c.h.b16 %v8115
        %v8315 = vunpack.c.l.b16 %v8116
        %v8316 = vunpack.c.h.b16 %v8116
        %v8317 = vunpack.c.l.b16 %v8117
        %v8318 = vunpack.c.h.b16 %v8117
        %v8319 = vunpack.c.l.b16 %v8118
        %v8320 = vunpack.c.h.b16 %v8118
        %v8321 = vunpack.c.l.b16 %v8119
        %v8322 = vunpack.c.h.b16 %v8119
        %v8323 = vunpack.c.l.b16 %v8120
        %v8324 = vunpack.c.h.b16 %v8120
        %v8325 = vunpack.c.l.b16 %v8121
        %v8326 = vunpack.c.h.b16 %v8121
        %v8327 = vunpack.c.l.b16 %v8122
        %v8328 = vunpack.c.h.b16 %v8122
        %v8329 = vunpack.c.l.b16 %v8123
        %v8330 = vunpack.c.h.b16 %v8123
        %v8331 = vunpack.c.l.b16 %v8124
        %v8332 = vunpack.c.h.b16 %v8124
        %v8333 = vunpack.c.l.b16 %v8125
        %v8334 = vunpack.c.h.b16 %v8125
        %v8335 = vunpack.c.l.b16 %v8126
        %v8336 = vunpack.c.h.b16 %v8126
        %v8337 = vpack.c.b16 %v8213, %v8209
        %v8338 = vpack.c.b16 %v8214, %v8210
        %v8339 = vpack.c.b16 %v8215, %v8211
        %v8340 = vpack.c.b16 %v8216, %v8212
        %v8341 = vpack.c.b16 %v8221, %v8217
        %v8342 = vpack.c.b16 %v8222, %v8218
        %v8343 = vpack.c.b16 %v8223, %v8219
        %v8344 = vpack.c.b16 %v8224, %v8220
        %v8345 = vpack.c.b16 %v8229, %v8225
        %v8346 = vpack.c.b16 %v8230, %v8226
        %v8347 = vpack.c.b16 %v8231, %v8227
        %v8348 = vpack.c.b16 %v8232, %v8228
        %v8349 = vpack.c.b16 %v8237, %v8233
        %v8350 = vpack.c.b16 %v8238, %v8234
        %v8351 = vpack.c.b16 %v8239, %v8235
        %v8352 = vpack.c.b16 %v8240, %v8236
        %v8353 = vpack.c.b16 %v8245, %v8241
        %v8354 = vpack.c.b16 %v8246, %v8242
        %v8355 = vpack.c.b16 %v8247, %v8243
        %v8356 = vpack.c.b16 %v8248, %v8244
        %v8357 = vpack.c.b16 %v8253, %v8249
        %v8358 = vpack.c.b16 %v8254, %v8250
        %v8359 = vpack.c.b16 %v8255, %v8251
        %v8360 = vpack.c.b16 %v8256, %v8252
        %v8361 = vpack.c.b16 %v8261, %v8257
        %v8362 = vpack.c.b16 %v8262, %v8258
        %v8363 = vpack.c.b16 %v8263, %v8259
        %v8364 = vpack.c.b16 %v8264, %v8260
        %v8365 = vpack.c.b16 %v8269, %v8265
        %v8366 = vpack.c.b16 %v8270, %v8266
        %v8367 = vpack.c.b16 %v8271, %v8267
        %v8368 = vpack.c.b16 %v8272, %v8268
        %v8369 = vpack.c.b16 %v8277, %v8273
        %v8370 = vpack.c.b16 %v8278, %v8274
        %v8371 = vpack.c.b16 %v8279, %v8275
        %v8372 = vpack.c.b16 %v8280, %v8276
        %v8373 = vpack.c.b16 %v8285, %v8281
        %v8374 = vpack.c.b16 %v8286, %v8282
        %v8375 = vpack.c.b16 %v8287, %v8283
        %v8376 = vpack.c.b16 %v8288, %v8284
        %v8377 = vpack.c.b16 %v8293, %v8289
        %v8378 = vpack.c.b16 %v8294, %v8290
        %v8379 = vpack.c.b16 %v8295, %v8291
        %v8380 = vpack.c.b16 %v8296, %v8292
        %v8381 = vpack.c.b16 %v8301, %v8297
        %v8382 = vpack.c.b16 %v8302, %v8298
        %v8383 = vpack.c.b16 %v8303, %v8299
        %v8384 = vpack.c.b16 %v8304, %v8300
        %v8385 = vpack.c.b16 %v8309, %v8305
        %v8386 = vpack.c.b16 %v8310, %v8306
        %v8387 = vpack.c.b16 %v8311, %v8307
        %v8388 = vpack.c.b16 %v8312, %v8308
        %v8389 = vpack.c.b16 %v8317, %v8313
        %v8390 = vpack.c.b16 %v8318, %v8314
        %v8391 = vpack.c.b16 %v8319, %v8315
        %v8392 = vpack.c.b16 %v8320, %v8316
        %v8393 = vpack.c.b16 %v8325, %v8321
        %v8394 = vpack.c.b16 %v8326, %v8322
        %v8395 = vpack.c.b16 %v8327, %v8323
        %v8396 = vpack.c.b16 %v8328, %v8324
        %v8397 = vpack.c.b16 %v8333, %v8329
        %v8398 = vpack.c.b16 %v8334, %v8330
        %v8399 = vpack.c.b16 %v8335, %v8331
        %v8400 = vpack.c.b16 %v8336, %v8332
        %8465 = vmatpush.bf16.msra.mxu0 %v8365
        %8466 = vmatpush.bf16.msra.mxu0 %v8361
        %8467 = vmatpush.bf16.msra.mxu0 %v8357
        %8468 = vmatpush.bf16.msra.mxu0 %v8353
        %8469 = vmatpush.bf16.msra.mxu0 %v8349
        %8470 = vmatpush.bf16.msra.mxu0 %v8345
        %8471 = vmatpush.bf16.msra.mxu0 %v8341
        %8472 = vmatpush.bf16.msra.mxu0 %v8337
        %8473 = vmatmul.bf16.gmra.mxu0 %v8134
        %v8474 = vpop.f32.mrf.mxu0
        %v8475 = vadd.f32 0.0, %v8474
        %v8476 = vpop.f32.mrf.mxu0
        %8477 = vdwg.mxu0
        %8478 = vmatpush.bf16.msra.mxu0 %v8397
        %8479 = vmatpush.bf16.msra.mxu0 %v8393
        %8480 = vmatpush.bf16.msra.mxu0 %v8389
        %8481 = vmatpush.bf16.msra.mxu0 %v8385
        %8482 = vmatpush.bf16.msra.mxu0 %v8381
        %8483 = vmatpush.bf16.msra.mxu0 %v8377
        %8484 = vmatpush.bf16.msra.mxu0 %v8373
        %8485 = vmatpush.bf16.msra.mxu0 %v8369
        %8486 = vmatmul.bf16.gmra.mxu0 %v8142
        %v8487 = vpop.f32.mrf.mxu0
        %v8488 = vadd.f32 %v8475, %v8487
        %v8489 = vpop.f32.mrf.mxu0
        %8490 = vdwg.mxu0
        %8491 = vmatpush.bf16.msra.mxu0 %v8366
        %8492 = vmatpush.bf16.msra.mxu0 %v8362
        %8493 = vmatpush.bf16.msra.mxu0 %v8358
        %8494 = vmatpush.bf16.msra.mxu0 %v8354
        %8495 = vmatpush.bf16.msra.mxu0 %v8350
        %8496 = vmatpush.bf16.msra.mxu0 %v8346
        %8497 = vmatpush.bf16.msra.mxu0 %v8342
        %8498 = vmatpush.bf16.msra.mxu0 %v8338
        %8499 = vmatmul.bf16.gmra.mxu0 %v8134
        %v8500 = vpop.f32.mrf.mxu0
        %v8501 = vadd.f32 0.0, %v8500
        %v8502 = vpop.f32.mrf.mxu0
        %8503 = vdwg.mxu0
        %8504 = vmatpush.bf16.msra.mxu0 %v8398
        %8505 = vmatpush.bf16.msra.mxu0 %v8394
        %8506 = vmatpush.bf16.msra.mxu0 %v8390
        %8507 = vmatpush.bf16.msra.mxu0 %v8386
        %8508 = vmatpush.bf16.msra.mxu0 %v8382
        %8509 = vmatpush.bf16.msra.mxu0 %v8378
        %8510 = vmatpush.bf16.msra.mxu0 %v8374
        %8511 = vmatpush.bf16.msra.mxu0 %v8370
        %8512 = vmatmul.bf16.gmra.mxu0 %v8142
        %v8513 = vpop.f32.mrf.mxu0
        %v8514 = vadd.f32 %v8501, %v8513
        %v8515 = vpop.f32.mrf.mxu0
        %8516 = vdwg.mxu0
        %8517 = vmatpush.bf16.msra.mxu0 %v8367
        %8518 = vmatpush.bf16.msra.mxu0 %v8363
        %8519 = vmatpush.bf16.msra.mxu0 %v8359
        %8520 = vmatpush.bf16.msra.mxu0 %v8355
        %8521 = vmatpush.bf16.msra.mxu0 %v8351
        %8522 = vmatpush.bf16.msra.mxu0 %v8347
        %8523 = vmatpush.bf16.msra.mxu0 %v8343
        %8524 = vmatpush.bf16.msra.mxu0 %v8339
        %8525 = vmatmul.bf16.gmra.mxu0 %v8134
        %v8526 = vpop.f32.mrf.mxu0
        %v8527 = vadd.f32 0.0, %v8526
        %v8528 = vpop.f32.mrf.mxu0
        %8529 = vdwg.mxu0
        %8530 = vmatpush.bf16.msra.mxu0 %v8399
        %8531 = vmatpush.bf16.msra.mxu0 %v8395
        %8532 = vmatpush.bf16.msra.mxu0 %v8391
        %8533 = vmatpush.bf16.msra.mxu0 %v8387
        %8534 = vmatpush.bf16.msra.mxu0 %v8383
        %8535 = vmatpush.bf16.msra.mxu0 %v8379
        %8536 = vmatpush.bf16.msra.mxu0 %v8375
        %8537 = vmatpush.bf16.msra.mxu0 %v8371
        %8538 = vmatmul.bf16.gmra.mxu0 %v8142
        %v8539 = vpop.f32.mrf.mxu0
        %v8540 = vadd.f32 %v8527, %v8539
        %v8541 = vpop.f32.mrf.mxu0
        %8542 = vdwg.mxu0
        %8543 = vmatpush.bf16.msra.mxu0 %v8368
        %8544 = vmatpush.bf16.msra.mxu0 %v8364
        %8545 = vmatpush.bf16.msra.mxu0 %v8360
        %8546 = vmatpush.bf16.msra.mxu0 %v8356
        %8547 = vmatpush.bf16.msra.mxu0 %v8352
        %8548 = vmatpush.bf16.msra.mxu0 %v8348
        %8549 = vmatpush.bf16.msra.mxu0 %v8344
        %8550 = vmatpush.bf16.msra.mxu0 %v8340
        %8551 = vmatmul.bf16.gmra.mxu0 %v8134
        %v8552 = vpop.f32.mrf.mxu0
        %v8553 = vadd.f32 0.0, %v8552
        %v8554 = vpop.f32.mrf.mxu0
        %8555 = vdwg.mxu0
        %8556 = vmatpush.bf16.msra.mxu0 %v8400
        %8557 = vmatpush.bf16.msra.mxu0 %v8396
        %8558 = vmatpush.bf16.msra.mxu0 %v8392
        %8559 = vmatpush.bf16.msra.mxu0 %v8388
        %8560 = vmatpush.bf16.msra.mxu0 %v8384
        %8561 = vmatpush.bf16.msra.mxu0 %v8380
        %8562 = vmatpush.bf16.msra.mxu0 %v8376
        %8563 = vmatpush.bf16.msra.mxu0 %v8372
        %8564 = vmatmul.bf16.gmra.mxu0 %v8142
        %v8565 = vpop.f32.mrf.mxu0
        %v8566 = vadd.f32 %v8553, %v8565
        %v8567 = vpop.f32.mrf.mxu0
        %8568 = vdwg.mxu0
        %v8569 = vadd.f32 %v8052, %v8488
        %v8570 = vadd.f32 %v8053, %v8514
        %v8571 = vadd.f32 %v8054, %v8540
        %v8572 = vadd.f32 %v8055, %v8566
        %v8573 = vld [vmem:[#allocation4] sm:$0xc0]
        %v8574 = vld [vmem:[#allocation4 + $0x8] sm:$0xc0]
        %v8575 = vld [vmem:[#allocation4 + $0x10] sm:$0xf]
        %v8576 = vld [vmem:[#allocation4 + $0x18] sm:$0xf]
        %v8577 = vpack.c.bf16 %v8575, %v8573
        %v8578 = vpack.c.bf16 %v8576, %v8574
        %s8579 = scalar_lea.vmem %s13, 2560
        %v8580 = vld [vmem:[%s8579] sm:$0xff]
        %v8581 = vld [vmem:[%s8579 + $0x8] sm:$0xff]
        %v8582 = vld [vmem:[%s8579 + $0x10] sm:$0xff]
        %v8583 = vld [vmem:[%s8579 + $0x18] sm:$0xff]
        %v8584 = vld [vmem:[%s8579 + $0x20] sm:$0xff]
        %v8585 = vld [vmem:[%s8579 + $0x28] sm:$0xff]
        %v8586 = vld [vmem:[%s8579 + $0x30] sm:$0xff]
        %v8587 = vld [vmem:[%s8579 + $0x38] sm:$0xff]
        %v8588 = vld [vmem:[%s8579 + $0x40] sm:$0xff]
        %v8589 = vld [vmem:[%s8579 + $0x48] sm:$0xff]
        %v8590 = vld [vmem:[%s8579 + $0x50] sm:$0xff]
        %v8591 = vld [vmem:[%s8579 + $0x58] sm:$0xff]
        %v8592 = vld [vmem:[%s8579 + $0x60] sm:$0xff]
        %v8593 = vld [vmem:[%s8579 + $0x68] sm:$0xff]
        %v8594 = vld [vmem:[%s8579 + $0x70] sm:$0xff]
        %v8595 = vld [vmem:[%s8579 + $0x78] sm:$0xff]
        %v8596 = vld [vmem:[%s8579 + $0x80] sm:$0xff]
        %v8597 = vld [vmem:[%s8579 + $0x88] sm:$0xff]
        %v8598 = vld [vmem:[%s8579 + $0x90] sm:$0xff]
        %v8599 = vld [vmem:[%s8579 + $0x98] sm:$0xff]
        %v8600 = vld [vmem:[%s8579 + $0xa0] sm:$0xff]
        %v8601 = vld [vmem:[%s8579 + $0xa8] sm:$0xff]
        %v8602 = vld [vmem:[%s8579 + $0xb0] sm:$0xff]
        %v8603 = vld [vmem:[%s8579 + $0xb8] sm:$0xff]
        %v8604 = vld [vmem:[%s8579 + $0xc0] sm:$0xff]
        %v8605 = vld [vmem:[%s8579 + $0xc8] sm:$0xff]
        %v8606 = vld [vmem:[%s8579 + $0xd0] sm:$0xff]
        %v8607 = vld [vmem:[%s8579 + $0xd8] sm:$0xff]
        %v8608 = vld [vmem:[%s8579 + $0xe0] sm:$0xff]
        %v8609 = vld [vmem:[%s8579 + $0xe8] sm:$0xff]
        %v8610 = vld [vmem:[%s8579 + $0xf0] sm:$0xff]
        %v8611 = vld [vmem:[%s8579 + $0xf8] sm:$0xff]
        %v8612 = vld [vmem:[%s8579 + $0x100] sm:$0xff]
        %v8613 = vld [vmem:[%s8579 + $0x108] sm:$0xff]
        %v8614 = vld [vmem:[%s8579 + $0x110] sm:$0xff]
        %v8615 = vld [vmem:[%s8579 + $0x118] sm:$0xff]
        %v8616 = vld [vmem:[%s8579 + $0x120] sm:$0xff]
        %v8617 = vld [vmem:[%s8579 + $0x128] sm:$0xff]
        %v8618 = vld [vmem:[%s8579 + $0x130] sm:$0xff]
        %v8619 = vld [vmem:[%s8579 + $0x138] sm:$0xff]
        %v8620 = vld [vmem:[%s8579 + $0x140] sm:$0xff]
        %v8621 = vld [vmem:[%s8579 + $0x148] sm:$0xff]
        %v8622 = vld [vmem:[%s8579 + $0x150] sm:$0xff]
        %v8623 = vld [vmem:[%s8579 + $0x158] sm:$0xff]
        %v8624 = vld [vmem:[%s8579 + $0x160] sm:$0xff]
        %v8625 = vld [vmem:[%s8579 + $0x168] sm:$0xff]
        %v8626 = vld [vmem:[%s8579 + $0x170] sm:$0xff]
        %v8627 = vld [vmem:[%s8579 + $0x178] sm:$0xff]
        %v8628 = vld [vmem:[%s8579 + $0x180] sm:$0xff]
        %v8629 = vld [vmem:[%s8579 + $0x188] sm:$0xff]
        %v8630 = vld [vmem:[%s8579 + $0x190] sm:$0xff]
        %v8631 = vld [vmem:[%s8579 + $0x198] sm:$0xff]
        %v8632 = vld [vmem:[%s8579 + $0x1a0] sm:$0xff]
        %v8633 = vld [vmem:[%s8579 + $0x1a8] sm:$0xff]
        %v8634 = vld [vmem:[%s8579 + $0x1b0] sm:$0xff]
        %v8635 = vld [vmem:[%s8579 + $0x1b8] sm:$0xff]
        %v8636 = vld [vmem:[%s8579 + $0x1c0] sm:$0xff]
        %v8637 = vld [vmem:[%s8579 + $0x1c8] sm:$0xff]
        %v8638 = vld [vmem:[%s8579 + $0x1d0] sm:$0xff]
        %v8639 = vld [vmem:[%s8579 + $0x1d8] sm:$0xff]
        %v8640 = vld [vmem:[%s8579 + $0x1e0] sm:$0xff]
        %v8641 = vld [vmem:[%s8579 + $0x1e8] sm:$0xff]
        %v8642 = vld [vmem:[%s8579 + $0x1f0] sm:$0xff]
        %v8643 = vld [vmem:[%s8579 + $0x1f8] sm:$0xff]
        %v8646 = vrot.slane %v8577, 3
        %v8647 = vrot.slane %v8578, 3
        %v8714 = vunpack.c.l.b16 %v8580
        %v8715 = vunpack.c.h.b16 %v8580
        %v8716 = vunpack.c.l.b16 %v8581
        %v8717 = vunpack.c.h.b16 %v8581
        %v8718 = vunpack.c.l.b16 %v8582
        %v8719 = vunpack.c.h.b16 %v8582
        %v8720 = vunpack.c.l.b16 %v8583
        %v8721 = vunpack.c.h.b16 %v8583
        %v8722 = vunpack.c.l.b16 %v8584
        %v8723 = vunpack.c.h.b16 %v8584
        %v8724 = vunpack.c.l.b16 %v8585
        %v8725 = vunpack.c.h.b16 %v8585
        %v8726 = vunpack.c.l.b16 %v8586
        %v8727 = vunpack.c.h.b16 %v8586
        %v8728 = vunpack.c.l.b16 %v8587
        %v8729 = vunpack.c.h.b16 %v8587
        %v8730 = vunpack.c.l.b16 %v8588
        %v8731 = vunpack.c.h.b16 %v8588
        %v8732 = vunpack.c.l.b16 %v8589
        %v8733 = vunpack.c.h.b16 %v8589
        %v8734 = vunpack.c.l.b16 %v8590
        %v8735 = vunpack.c.h.b16 %v8590
        %v8736 = vunpack.c.l.b16 %v8591
        %v8737 = vunpack.c.h.b16 %v8591
        %v8738 = vunpack.c.l.b16 %v8592
        %v8739 = vunpack.c.h.b16 %v8592
        %v8740 = vunpack.c.l.b16 %v8593
        %v8741 = vunpack.c.h.b16 %v8593
        %v8742 = vunpack.c.l.b16 %v8594
        %v8743 = vunpack.c.h.b16 %v8594
        %v8744 = vunpack.c.l.b16 %v8595
        %v8745 = vunpack.c.h.b16 %v8595
        %v8746 = vunpack.c.l.b16 %v8596
        %v8747 = vunpack.c.h.b16 %v8596
        %v8748 = vunpack.c.l.b16 %v8597
        %v8749 = vunpack.c.h.b16 %v8597
        %v8750 = vunpack.c.l.b16 %v8598
        %v8751 = vunpack.c.h.b16 %v8598
        %v8752 = vunpack.c.l.b16 %v8599
        %v8753 = vunpack.c.h.b16 %v8599
        %v8754 = vunpack.c.l.b16 %v8600
        %v8755 = vunpack.c.h.b16 %v8600
        %v8756 = vunpack.c.l.b16 %v8601
        %v8757 = vunpack.c.h.b16 %v8601
        %v8758 = vunpack.c.l.b16 %v8602
        %v8759 = vunpack.c.h.b16 %v8602
        %v8760 = vunpack.c.l.b16 %v8603
        %v8761 = vunpack.c.h.b16 %v8603
        %v8762 = vunpack.c.l.b16 %v8604
        %v8763 = vunpack.c.h.b16 %v8604
        %v8764 = vunpack.c.l.b16 %v8605
        %v8765 = vunpack.c.h.b16 %v8605
        %v8766 = vunpack.c.l.b16 %v8606
        %v8767 = vunpack.c.h.b16 %v8606
        %v8768 = vunpack.c.l.b16 %v8607
        %v8769 = vunpack.c.h.b16 %v8607
        %v8770 = vunpack.c.l.b16 %v8608
        %v8771 = vunpack.c.h.b16 %v8608
        %v8772 = vunpack.c.l.b16 %v8609
        %v8773 = vunpack.c.h.b16 %v8609
        %v8774 = vunpack.c.l.b16 %v8610
        %v8775 = vunpack.c.h.b16 %v8610
        %v8776 = vunpack.c.l.b16 %v8611
        %v8777 = vunpack.c.h.b16 %v8611
        %v8778 = vunpack.c.l.b16 %v8612
        %v8779 = vunpack.c.h.b16 %v8612
        %v8780 = vunpack.c.l.b16 %v8613
        %v8781 = vunpack.c.h.b16 %v8613
        %v8782 = vunpack.c.l.b16 %v8614
        %v8783 = vunpack.c.h.b16 %v8614
        %v8784 = vunpack.c.l.b16 %v8615
        %v8785 = vunpack.c.h.b16 %v8615
        %v8786 = vunpack.c.l.b16 %v8616
        %v8787 = vunpack.c.h.b16 %v8616
        %v8788 = vunpack.c.l.b16 %v8617
        %v8789 = vunpack.c.h.b16 %v8617
        %v8790 = vunpack.c.l.b16 %v8618
        %v8791 = vunpack.c.h.b16 %v8618
        %v8792 = vunpack.c.l.b16 %v8619
        %v8793 = vunpack.c.h.b16 %v8619
        %v8794 = vunpack.c.l.b16 %v8620
        %v8795 = vunpack.c.h.b16 %v8620
        %v8796 = vunpack.c.l.b16 %v8621
        %v8797 = vunpack.c.h.b16 %v8621
        %v8798 = vunpack.c.l.b16 %v8622
        %v8799 = vunpack.c.h.b16 %v8622
        %v8800 = vunpack.c.l.b16 %v8623
        %v8801 = vunpack.c.h.b16 %v8623
        %v8802 = vunpack.c.l.b16 %v8624
        %v8803 = vunpack.c.h.b16 %v8624
        %v8804 = vunpack.c.l.b16 %v8625
        %v8805 = vunpack.c.h.b16 %v8625
        %v8806 = vunpack.c.l.b16 %v8626
        %v8807 = vunpack.c.h.b16 %v8626
        %v8808 = vunpack.c.l.b16 %v8627
        %v8809 = vunpack.c.h.b16 %v8627
        %v8810 = vunpack.c.l.b16 %v8628
        %v8811 = vunpack.c.h.b16 %v8628
        %v8812 = vunpack.c.l.b16 %v8629
        %v8813 = vunpack.c.h.b16 %v8629
        %v8814 = vunpack.c.l.b16 %v8630
        %v8815 = vunpack.c.h.b16 %v8630
        %v8816 = vunpack.c.l.b16 %v8631
        %v8817 = vunpack.c.h.b16 %v8631
        %v8818 = vunpack.c.l.b16 %v8632
        %v8819 = vunpack.c.h.b16 %v8632
        %v8820 = vunpack.c.l.b16 %v8633
        %v8821 = vunpack.c.h.b16 %v8633
        %v8822 = vunpack.c.l.b16 %v8634
        %v8823 = vunpack.c.h.b16 %v8634
        %v8824 = vunpack.c.l.b16 %v8635
        %v8825 = vunpack.c.h.b16 %v8635
        %v8826 = vunpack.c.l.b16 %v8636
        %v8827 = vunpack.c.h.b16 %v8636
        %v8828 = vunpack.c.l.b16 %v8637
        %v8829 = vunpack.c.h.b16 %v8637
        %v8830 = vunpack.c.l.b16 %v8638
        %v8831 = vunpack.c.h.b16 %v8638
        %v8832 = vunpack.c.l.b16 %v8639
        %v8833 = vunpack.c.h.b16 %v8639
        %v8834 = vunpack.c.l.b16 %v8640
        %v8835 = vunpack.c.h.b16 %v8640
        %v8836 = vunpack.c.l.b16 %v8641
        %v8837 = vunpack.c.h.b16 %v8641
        %v8838 = vunpack.c.l.b16 %v8642
        %v8839 = vunpack.c.h.b16 %v8642
        %v8840 = vunpack.c.l.b16 %v8643
        %v8841 = vunpack.c.h.b16 %v8643
        %v8842 = vpack.c.b16 %v8718, %v8714
        %v8843 = vpack.c.b16 %v8719, %v8715
        %v8844 = vpack.c.b16 %v8720, %v8716
        %v8845 = vpack.c.b16 %v8721, %v8717
        %v8846 = vpack.c.b16 %v8726, %v8722
        %v8847 = vpack.c.b16 %v8727, %v8723
        %v8848 = vpack.c.b16 %v8728, %v8724
        %v8849 = vpack.c.b16 %v8729, %v8725
        %v8850 = vpack.c.b16 %v8734, %v8730
        %v8851 = vpack.c.b16 %v8735, %v8731
        %v8852 = vpack.c.b16 %v8736, %v8732
        %v8853 = vpack.c.b16 %v8737, %v8733
        %v8854 = vpack.c.b16 %v8742, %v8738
        %v8855 = vpack.c.b16 %v8743, %v8739
        %v8856 = vpack.c.b16 %v8744, %v8740
        %v8857 = vpack.c.b16 %v8745, %v8741
        %v8858 = vpack.c.b16 %v8750, %v8746
        %v8859 = vpack.c.b16 %v8751, %v8747
        %v8860 = vpack.c.b16 %v8752, %v8748
        %v8861 = vpack.c.b16 %v8753, %v8749
        %v8862 = vpack.c.b16 %v8758, %v8754
        %v8863 = vpack.c.b16 %v8759, %v8755
        %v8864 = vpack.c.b16 %v8760, %v8756
        %v8865 = vpack.c.b16 %v8761, %v8757
        %v8866 = vpack.c.b16 %v8766, %v8762
        %v8867 = vpack.c.b16 %v8767, %v8763
        %v8868 = vpack.c.b16 %v8768, %v8764
        %v8869 = vpack.c.b16 %v8769, %v8765
        %v8870 = vpack.c.b16 %v8774, %v8770
        %v8871 = vpack.c.b16 %v8775, %v8771
        %v8872 = vpack.c.b16 %v8776, %v8772
        %v8873 = vpack.c.b16 %v8777, %v8773
        %v8874 = vpack.c.b16 %v8782, %v8778
        %v8875 = vpack.c.b16 %v8783, %v8779
        %v8876 = vpack.c.b16 %v8784, %v8780
        %v8877 = vpack.c.b16 %v8785, %v8781
        %v8878 = vpack.c.b16 %v8790, %v8786
        %v8879 = vpack.c.b16 %v8791, %v8787
        %v8880 = vpack.c.b16 %v8792, %v8788
        %v8881 = vpack.c.b16 %v8793, %v8789
        %v8882 = vpack.c.b16 %v8798, %v8794
        %v8883 = vpack.c.b16 %v8799, %v8795
        %v8884 = vpack.c.b16 %v8800, %v8796
        %v8885 = vpack.c.b16 %v8801, %v8797
        %v8886 = vpack.c.b16 %v8806, %v8802
        %v8887 = vpack.c.b16 %v8807, %v8803
        %v8888 = vpack.c.b16 %v8808, %v8804
        %v8889 = vpack.c.b16 %v8809, %v8805
        %v8890 = vpack.c.b16 %v8814, %v8810
        %v8891 = vpack.c.b16 %v8815, %v8811
        %v8892 = vpack.c.b16 %v8816, %v8812
        %v8893 = vpack.c.b16 %v8817, %v8813
        %v8894 = vpack.c.b16 %v8822, %v8818
        %v8895 = vpack.c.b16 %v8823, %v8819
        %v8896 = vpack.c.b16 %v8824, %v8820
        %v8897 = vpack.c.b16 %v8825, %v8821
        %v8898 = vpack.c.b16 %v8830, %v8826
        %v8899 = vpack.c.b16 %v8831, %v8827
        %v8900 = vpack.c.b16 %v8832, %v8828
        %v8901 = vpack.c.b16 %v8833, %v8829
        %v8902 = vpack.c.b16 %v8838, %v8834
        %v8903 = vpack.c.b16 %v8839, %v8835
        %v8904 = vpack.c.b16 %v8840, %v8836
        %v8905 = vpack.c.b16 %v8841, %v8837
        %8970 = vmatpush.bf16.msra.mxu0 %v8870
        %8971 = vmatpush.bf16.msra.mxu0 %v8866
        %8972 = vmatpush.bf16.msra.mxu0 %v8862
        %8973 = vmatpush.bf16.msra.mxu0 %v8858
        %8974 = vmatpush.bf16.msra.mxu0 %v8854
        %8975 = vmatpush.bf16.msra.mxu0 %v8850
        %8976 = vmatpush.bf16.msra.mxu0 %v8846
        %8977 = vmatpush.bf16.msra.mxu0 %v8842
        %8978 = vmatmul.bf16.gmra.mxu0 %v8646
        %v8979 = vpop.f32.mrf.mxu0
        %v8980 = vadd.f32 0.0, %v8979
        %v8981 = vpop.f32.mrf.mxu0
        %8982 = vdwg.mxu0
        %8983 = vmatpush.bf16.msra.mxu0 %v8902
        %8984 = vmatpush.bf16.msra.mxu0 %v8898
        %8985 = vmatpush.bf16.msra.mxu0 %v8894
        %8986 = vmatpush.bf16.msra.mxu0 %v8890
        %8987 = vmatpush.bf16.msra.mxu0 %v8886
        %8988 = vmatpush.bf16.msra.mxu0 %v8882
        %8989 = vmatpush.bf16.msra.mxu0 %v8878
        %8990 = vmatpush.bf16.msra.mxu0 %v8874
        %8991 = vmatmul.bf16.gmra.mxu0 %v8647
        %v8992 = vpop.f32.mrf.mxu0
        %v8993 = vadd.f32 %v8980, %v8992
        %v8994 = vpop.f32.mrf.mxu0
        %8995 = vdwg.mxu0
        %8996 = vmatpush.bf16.msra.mxu0 %v8871
        %8997 = vmatpush.bf16.msra.mxu0 %v8867
        %8998 = vmatpush.bf16.msra.mxu0 %v8863
        %8999 = vmatpush.bf16.msra.mxu0 %v8859
        %9000 = vmatpush.bf16.msra.mxu0 %v8855
        %9001 = vmatpush.bf16.msra.mxu0 %v8851
        %9002 = vmatpush.bf16.msra.mxu0 %v8847
        %9003 = vmatpush.bf16.msra.mxu0 %v8843
        %9004 = vmatmul.bf16.gmra.mxu0 %v8646
        %v9005 = vpop.f32.mrf.mxu0
        %v9006 = vadd.f32 0.0, %v9005
        %v9007 = vpop.f32.mrf.mxu0
        %9008 = vdwg.mxu0
        %9009 = vmatpush.bf16.msra.mxu0 %v8903
        %9010 = vmatpush.bf16.msra.mxu0 %v8899
        %9011 = vmatpush.bf16.msra.mxu0 %v8895
        %9012 = vmatpush.bf16.msra.mxu0 %v8891
        %9013 = vmatpush.bf16.msra.mxu0 %v8887
        %9014 = vmatpush.bf16.msra.mxu0 %v8883
        %9015 = vmatpush.bf16.msra.mxu0 %v8879
        %9016 = vmatpush.bf16.msra.mxu0 %v8875
        %9017 = vmatmul.bf16.gmra.mxu0 %v8647
        %v9018 = vpop.f32.mrf.mxu0
        %v9019 = vadd.f32 %v9006, %v9018
        %v9020 = vpop.f32.mrf.mxu0
        %9021 = vdwg.mxu0
        %9022 = vmatpush.bf16.msra.mxu0 %v8872
        %9023 = vmatpush.bf16.msra.mxu0 %v8868
        %9024 = vmatpush.bf16.msra.mxu0 %v8864
        %9025 = vmatpush.bf16.msra.mxu0 %v8860
        %9026 = vmatpush.bf16.msra.mxu0 %v8856
        %9027 = vmatpush.bf16.msra.mxu0 %v8852
        %9028 = vmatpush.bf16.msra.mxu0 %v8848
        %9029 = vmatpush.bf16.msra.mxu0 %v8844
        %9030 = vmatmul.bf16.gmra.mxu0 %v8646
        %v9031 = vpop.f32.mrf.mxu0
        %v9032 = vadd.f32 0.0, %v9031
        %v9033 = vpop.f32.mrf.mxu0
        %9034 = vdwg.mxu0
        %9035 = vmatpush.bf16.msra.mxu0 %v8904
        %9036 = vmatpush.bf16.msra.mxu0 %v8900
        %9037 = vmatpush.bf16.msra.mxu0 %v8896
        %9038 = vmatpush.bf16.msra.mxu0 %v8892
        %9039 = vmatpush.bf16.msra.mxu0 %v8888
        %9040 = vmatpush.bf16.msra.mxu0 %v8884
        %9041 = vmatpush.bf16.msra.mxu0 %v8880
        %9042 = vmatpush.bf16.msra.mxu0 %v8876
        %9043 = vmatmul.bf16.gmra.mxu0 %v8647
        %v9044 = vpop.f32.mrf.mxu0
        %v9045 = vadd.f32 %v9032, %v9044
        %v9046 = vpop.f32.mrf.mxu0
        %9047 = vdwg.mxu0
        %9048 = vmatpush.bf16.msra.mxu0 %v8873
        %9049 = vmatpush.bf16.msra.mxu0 %v8869
        %9050 = vmatpush.bf16.msra.mxu0 %v8865
        %9051 = vmatpush.bf16.msra.mxu0 %v8861
        %9052 = vmatpush.bf16.msra.mxu0 %v8857
        %9053 = vmatpush.bf16.msra.mxu0 %v8853
        %9054 = vmatpush.bf16.msra.mxu0 %v8849
        %9055 = vmatpush.bf16.msra.mxu0 %v8845
        %9056 = vmatmul.bf16.gmra.mxu0 %v8646
        %v9057 = vpop.f32.mrf.mxu0
        %v9058 = vadd.f32 0.0, %v9057
        %v9059 = vpop.f32.mrf.mxu0
        %9060 = vdwg.mxu0
        %9061 = vmatpush.bf16.msra.mxu0 %v8905
        %9062 = vmatpush.bf16.msra.mxu0 %v8901
        %9063 = vmatpush.bf16.msra.mxu0 %v8897
        %9064 = vmatpush.bf16.msra.mxu0 %v8893
        %9065 = vmatpush.bf16.msra.mxu0 %v8889
        %9066 = vmatpush.bf16.msra.mxu0 %v8885
        %9067 = vmatpush.bf16.msra.mxu0 %v8881
        %9068 = vmatpush.bf16.msra.mxu0 %v8877
        %9069 = vmatmul.bf16.gmra.mxu0 %v8647
        %v9070 = vpop.f32.mrf.mxu0
        %v9071 = vadd.f32 %v9058, %v9070
        %v9072 = vpop.f32.mrf.mxu0
        %9073 = vdwg.mxu0
        %v9074 = vadd.f32 %v8569, %v8993
        %v9075 = vadd.f32 %v8570, %v9019
        %v9076 = vadd.f32 %v8571, %v9045
        %v9077 = vadd.f32 %v8572, %v9071
        %v9078 = vld [vmem:[#allocation4 + $0x10] sm:$0x3f]
        %v9079 = vld [vmem:[#allocation4 + $0x18] sm:$0x3f]
        %v9080 = vpack.c.bf16 %v9078, %v9078
        %v9081 = vpack.c.bf16 %v9079, %v9079
        %s9082 = scalar_lea.vmem %s13, 3072
        %v9083 = vld [vmem:[%s9082] sm:$0xff]
        %v9084 = vld [vmem:[%s9082 + $0x8] sm:$0xff]
        %v9085 = vld [vmem:[%s9082 + $0x10] sm:$0xff]
        %v9086 = vld [vmem:[%s9082 + $0x18] sm:$0xff]
        %v9087 = vld [vmem:[%s9082 + $0x20] sm:$0xff]
        %v9088 = vld [vmem:[%s9082 + $0x28] sm:$0xff]
        %v9089 = vld [vmem:[%s9082 + $0x30] sm:$0xff]
        %v9090 = vld [vmem:[%s9082 + $0x38] sm:$0xff]
        %v9091 = vld [vmem:[%s9082 + $0x40] sm:$0xff]
        %v9092 = vld [vmem:[%s9082 + $0x48] sm:$0xff]
        %v9093 = vld [vmem:[%s9082 + $0x50] sm:$0xff]
        %v9094 = vld [vmem:[%s9082 + $0x58] sm:$0xff]
        %v9095 = vld [vmem:[%s9082 + $0x60] sm:$0xff]
        %v9096 = vld [vmem:[%s9082 + $0x68] sm:$0xff]
        %v9097 = vld [vmem:[%s9082 + $0x70] sm:$0xff]
        %v9098 = vld [vmem:[%s9082 + $0x78] sm:$0xff]
        %v9099 = vld [vmem:[%s9082 + $0x80] sm:$0xff]
        %v9100 = vld [vmem:[%s9082 + $0x88] sm:$0xff]
        %v9101 = vld [vmem:[%s9082 + $0x90] sm:$0xff]
        %v9102 = vld [vmem:[%s9082 + $0x98] sm:$0xff]
        %v9103 = vld [vmem:[%s9082 + $0xa0] sm:$0xff]
        %v9104 = vld [vmem:[%s9082 + $0xa8] sm:$0xff]
        %v9105 = vld [vmem:[%s9082 + $0xb0] sm:$0xff]
        %v9106 = vld [vmem:[%s9082 + $0xb8] sm:$0xff]
        %v9107 = vld [vmem:[%s9082 + $0xc0] sm:$0xff]
        %v9108 = vld [vmem:[%s9082 + $0xc8] sm:$0xff]
        %v9109 = vld [vmem:[%s9082 + $0xd0] sm:$0xff]
        %v9110 = vld [vmem:[%s9082 + $0xd8] sm:$0xff]
        %v9111 = vld [vmem:[%s9082 + $0xe0] sm:$0xff]
        %v9112 = vld [vmem:[%s9082 + $0xe8] sm:$0xff]
        %v9113 = vld [vmem:[%s9082 + $0xf0] sm:$0xff]
        %v9114 = vld [vmem:[%s9082 + $0xf8] sm:$0xff]
        %v9115 = vld [vmem:[%s9082 + $0x100] sm:$0xff]
        %v9116 = vld [vmem:[%s9082 + $0x108] sm:$0xff]
        %v9117 = vld [vmem:[%s9082 + $0x110] sm:$0xff]
        %v9118 = vld [vmem:[%s9082 + $0x118] sm:$0xff]
        %v9119 = vld [vmem:[%s9082 + $0x120] sm:$0xff]
        %v9120 = vld [vmem:[%s9082 + $0x128] sm:$0xff]
        %v9121 = vld [vmem:[%s9082 + $0x130] sm:$0xff]
        %v9122 = vld [vmem:[%s9082 + $0x138] sm:$0xff]
        %v9123 = vld [vmem:[%s9082 + $0x140] sm:$0xff]
        %v9124 = vld [vmem:[%s9082 + $0x148] sm:$0xff]
        %v9125 = vld [vmem:[%s9082 + $0x150] sm:$0xff]
        %v9126 = vld [vmem:[%s9082 + $0x158] sm:$0xff]
        %v9127 = vld [vmem:[%s9082 + $0x160] sm:$0xff]
        %v9128 = vld [vmem:[%s9082 + $0x168] sm:$0xff]
        %v9129 = vld [vmem:[%s9082 + $0x170] sm:$0xff]
        %v9130 = vld [vmem:[%s9082 + $0x178] sm:$0xff]
        %v9131 = vld [vmem:[%s9082 + $0x180] sm:$0xff]
        %v9132 = vld [vmem:[%s9082 + $0x188] sm:$0xff]
        %v9133 = vld [vmem:[%s9082 + $0x190] sm:$0xff]
        %v9134 = vld [vmem:[%s9082 + $0x198] sm:$0xff]
        %v9135 = vld [vmem:[%s9082 + $0x1a0] sm:$0xff]
        %v9136 = vld [vmem:[%s9082 + $0x1a8] sm:$0xff]
        %v9137 = vld [vmem:[%s9082 + $0x1b0] sm:$0xff]
        %v9138 = vld [vmem:[%s9082 + $0x1b8] sm:$0xff]
        %v9139 = vld [vmem:[%s9082 + $0x1c0] sm:$0xff]
        %v9140 = vld [vmem:[%s9082 + $0x1c8] sm:$0xff]
        %v9141 = vld [vmem:[%s9082 + $0x1d0] sm:$0xff]
        %v9142 = vld [vmem:[%s9082 + $0x1d8] sm:$0xff]
        %v9143 = vld [vmem:[%s9082 + $0x1e0] sm:$0xff]
        %v9144 = vld [vmem:[%s9082 + $0x1e8] sm:$0xff]
        %v9145 = vld [vmem:[%s9082 + $0x1f0] sm:$0xff]
        %v9146 = vld [vmem:[%s9082 + $0x1f8] sm:$0xff]
        %v9211 = vunpack.c.l.b16 %v9083
        %v9212 = vunpack.c.h.b16 %v9083
        %v9213 = vunpack.c.l.b16 %v9084
        %v9214 = vunpack.c.h.b16 %v9084
        %v9215 = vunpack.c.l.b16 %v9085
        %v9216 = vunpack.c.h.b16 %v9085
        %v9217 = vunpack.c.l.b16 %v9086
        %v9218 = vunpack.c.h.b16 %v9086
        %v9219 = vunpack.c.l.b16 %v9087
        %v9220 = vunpack.c.h.b16 %v9087
        %v9221 = vunpack.c.l.b16 %v9088
        %v9222 = vunpack.c.h.b16 %v9088
        %v9223 = vunpack.c.l.b16 %v9089
        %v9224 = vunpack.c.h.b16 %v9089
        %v9225 = vunpack.c.l.b16 %v9090
        %v9226 = vunpack.c.h.b16 %v9090
        %v9227 = vunpack.c.l.b16 %v9091
        %v9228 = vunpack.c.h.b16 %v9091
        %v9229 = vunpack.c.l.b16 %v9092
        %v9230 = vunpack.c.h.b16 %v9092
        %v9231 = vunpack.c.l.b16 %v9093
        %v9232 = vunpack.c.h.b16 %v9093
        %v9233 = vunpack.c.l.b16 %v9094
        %v9234 = vunpack.c.h.b16 %v9094
        %v9235 = vunpack.c.l.b16 %v9095
        %v9236 = vunpack.c.h.b16 %v9095
        %v9237 = vunpack.c.l.b16 %v9096
        %v9238 = vunpack.c.h.b16 %v9096
        %v9239 = vunpack.c.l.b16 %v9097
        %v9240 = vunpack.c.h.b16 %v9097
        %v9241 = vunpack.c.l.b16 %v9098
        %v9242 = vunpack.c.h.b16 %v9098
        %v9243 = vunpack.c.l.b16 %v9099
        %v9244 = vunpack.c.h.b16 %v9099
        %v9245 = vunpack.c.l.b16 %v9100
        %v9246 = vunpack.c.h.b16 %v9100
        %v9247 = vunpack.c.l.b16 %v9101
        %v9248 = vunpack.c.h.b16 %v9101
        %v9249 = vunpack.c.l.b16 %v9102
        %v9250 = vunpack.c.h.b16 %v9102
        %v9251 = vunpack.c.l.b16 %v9103
        %v9252 = vunpack.c.h.b16 %v9103
        %v9253 = vunpack.c.l.b16 %v9104
        %v9254 = vunpack.c.h.b16 %v9104
        %v9255 = vunpack.c.l.b16 %v9105
        %v9256 = vunpack.c.h.b16 %v9105
        %v9257 = vunpack.c.l.b16 %v9106
        %v9258 = vunpack.c.h.b16 %v9106
        %v9259 = vunpack.c.l.b16 %v9107
        %v9260 = vunpack.c.h.b16 %v9107
        %v9261 = vunpack.c.l.b16 %v9108
        %v9262 = vunpack.c.h.b16 %v9108
        %v9263 = vunpack.c.l.b16 %v9109
        %v9264 = vunpack.c.h.b16 %v9109
        %v9265 = vunpack.c.l.b16 %v9110
        %v9266 = vunpack.c.h.b16 %v9110
        %v9267 = vunpack.c.l.b16 %v9111
        %v9268 = vunpack.c.h.b16 %v9111
        %v9269 = vunpack.c.l.b16 %v9112
        %v9270 = vunpack.c.h.b16 %v9112
        %v9271 = vunpack.c.l.b16 %v9113
        %v9272 = vunpack.c.h.b16 %v9113
        %v9273 = vunpack.c.l.b16 %v9114
        %v9274 = vunpack.c.h.b16 %v9114
        %v9275 = vunpack.c.l.b16 %v9115
        %v9276 = vunpack.c.h.b16 %v9115
        %v9277 = vunpack.c.l.b16 %v9116
        %v9278 = vunpack.c.h.b16 %v9116
        %v9279 = vunpack.c.l.b16 %v9117
        %v9280 = vunpack.c.h.b16 %v9117
        %v9281 = vunpack.c.l.b16 %v9118
        %v9282 = vunpack.c.h.b16 %v9118
        %v9283 = vunpack.c.l.b16 %v9119
        %v9284 = vunpack.c.h.b16 %v9119
        %v9285 = vunpack.c.l.b16 %v9120
        %v9286 = vunpack.c.h.b16 %v9120
        %v9287 = vunpack.c.l.b16 %v9121
        %v9288 = vunpack.c.h.b16 %v9121
        %v9289 = vunpack.c.l.b16 %v9122
        %v9290 = vunpack.c.h.b16 %v9122
        %v9291 = vunpack.c.l.b16 %v9123
        %v9292 = vunpack.c.h.b16 %v9123
        %v9293 = vunpack.c.l.b16 %v9124
        %v9294 = vunpack.c.h.b16 %v9124
        %v9295 = vunpack.c.l.b16 %v9125
        %v9296 = vunpack.c.h.b16 %v9125
        %v9297 = vunpack.c.l.b16 %v9126
        %v9298 = vunpack.c.h.b16 %v9126
        %v9299 = vunpack.c.l.b16 %v9127
        %v9300 = vunpack.c.h.b16 %v9127
        %v9301 = vunpack.c.l.b16 %v9128
        %v9302 = vunpack.c.h.b16 %v9128
        %v9303 = vunpack.c.l.b16 %v9129
        %v9304 = vunpack.c.h.b16 %v9129
        %v9305 = vunpack.c.l.b16 %v9130
        %v9306 = vunpack.c.h.b16 %v9130
        %v9307 = vunpack.c.l.b16 %v9131
        %v9308 = vunpack.c.h.b16 %v9131
        %v9309 = vunpack.c.l.b16 %v9132
        %v9310 = vunpack.c.h.b16 %v9132
        %v9311 = vunpack.c.l.b16 %v9133
        %v9312 = vunpack.c.h.b16 %v9133
        %v9313 = vunpack.c.l.b16 %v9134
        %v9314 = vunpack.c.h.b16 %v9134
        %v9315 = vunpack.c.l.b16 %v9135
        %v9316 = vunpack.c.h.b16 %v9135
        %v9317 = vunpack.c.l.b16 %v9136
        %v9318 = vunpack.c.h.b16 %v9136
        %v9319 = vunpack.c.l.b16 %v9137
        %v9320 = vunpack.c.h.b16 %v9137
        %v9321 = vunpack.c.l.b16 %v9138
        %v9322 = vunpack.c.h.b16 %v9138
        %v9323 = vunpack.c.l.b16 %v9139
        %v9324 = vunpack.c.h.b16 %v9139
        %v9325 = vunpack.c.l.b16 %v9140
        %v9326 = vunpack.c.h.b16 %v9140
        %v9327 = vunpack.c.l.b16 %v9141
        %v9328 = vunpack.c.h.b16 %v9141
        %v9329 = vunpack.c.l.b16 %v9142
        %v9330 = vunpack.c.h.b16 %v9142
        %v9331 = vunpack.c.l.b16 %v9143
        %v9332 = vunpack.c.h.b16 %v9143
        %v9333 = vunpack.c.l.b16 %v9144
        %v9334 = vunpack.c.h.b16 %v9144
        %v9335 = vunpack.c.l.b16 %v9145
        %v9336 = vunpack.c.h.b16 %v9145
        %v9337 = vunpack.c.l.b16 %v9146
        %v9338 = vunpack.c.h.b16 %v9146
        %v9339 = vpack.c.b16 %v9215, %v9211
        %v9340 = vpack.c.b16 %v9216, %v9212
        %v9341 = vpack.c.b16 %v9217, %v9213
        %v9342 = vpack.c.b16 %v9218, %v9214
        %v9343 = vpack.c.b16 %v9223, %v9219
        %v9344 = vpack.c.b16 %v9224, %v9220
        %v9345 = vpack.c.b16 %v9225, %v9221
        %v9346 = vpack.c.b16 %v9226, %v9222
        %v9347 = vpack.c.b16 %v9231, %v9227
        %v9348 = vpack.c.b16 %v9232, %v9228
        %v9349 = vpack.c.b16 %v9233, %v9229
        %v9350 = vpack.c.b16 %v9234, %v9230
        %v9351 = vpack.c.b16 %v9239, %v9235
        %v9352 = vpack.c.b16 %v9240, %v9236
        %v9353 = vpack.c.b16 %v9241, %v9237
        %v9354 = vpack.c.b16 %v9242, %v9238
        %v9355 = vpack.c.b16 %v9247, %v9243
        %v9356 = vpack.c.b16 %v9248, %v9244
        %v9357 = vpack.c.b16 %v9249, %v9245
        %v9358 = vpack.c.b16 %v9250, %v9246
        %v9359 = vpack.c.b16 %v9255, %v9251
        %v9360 = vpack.c.b16 %v9256, %v9252
        %v9361 = vpack.c.b16 %v9257, %v9253
        %v9362 = vpack.c.b16 %v9258, %v9254
        %v9363 = vpack.c.b16 %v9263, %v9259
        %v9364 = vpack.c.b16 %v9264, %v9260
        %v9365 = vpack.c.b16 %v9265, %v9261
        %v9366 = vpack.c.b16 %v9266, %v9262
        %v9367 = vpack.c.b16 %v9271, %v9267
        %v9368 = vpack.c.b16 %v9272, %v9268
        %v9369 = vpack.c.b16 %v9273, %v9269
        %v9370 = vpack.c.b16 %v9274, %v9270
        %v9371 = vpack.c.b16 %v9279, %v9275
        %v9372 = vpack.c.b16 %v9280, %v9276
        %v9373 = vpack.c.b16 %v9281, %v9277
        %v9374 = vpack.c.b16 %v9282, %v9278
        %v9375 = vpack.c.b16 %v9287, %v9283
        %v9376 = vpack.c.b16 %v9288, %v9284
        %v9377 = vpack.c.b16 %v9289, %v9285
        %v9378 = vpack.c.b16 %v9290, %v9286
        %v9379 = vpack.c.b16 %v9295, %v9291
        %v9380 = vpack.c.b16 %v9296, %v9292
        %v9381 = vpack.c.b16 %v9297, %v9293
        %v9382 = vpack.c.b16 %v9298, %v9294
        %v9383 = vpack.c.b16 %v9303, %v9299
        %v9384 = vpack.c.b16 %v9304, %v9300
        %v9385 = vpack.c.b16 %v9305, %v9301
        %v9386 = vpack.c.b16 %v9306, %v9302
        %v9387 = vpack.c.b16 %v9311, %v9307
        %v9388 = vpack.c.b16 %v9312, %v9308
        %v9389 = vpack.c.b16 %v9313, %v9309
        %v9390 = vpack.c.b16 %v9314, %v9310
        %v9391 = vpack.c.b16 %v9319, %v9315
        %v9392 = vpack.c.b16 %v9320, %v9316
        %v9393 = vpack.c.b16 %v9321, %v9317
        %v9394 = vpack.c.b16 %v9322, %v9318
        %v9395 = vpack.c.b16 %v9327, %v9323
        %v9396 = vpack.c.b16 %v9328, %v9324
        %v9397 = vpack.c.b16 %v9329, %v9325
        %v9398 = vpack.c.b16 %v9330, %v9326
        %v9399 = vpack.c.b16 %v9335, %v9331
        %v9400 = vpack.c.b16 %v9336, %v9332
        %v9401 = vpack.c.b16 %v9337, %v9333
        %v9402 = vpack.c.b16 %v9338, %v9334
        %9467 = vmatpush.bf16.msra.mxu0 %v9367
        %9468 = vmatpush.bf16.msra.mxu0 %v9363
        %9469 = vmatpush.bf16.msra.mxu0 %v9359
        %9470 = vmatpush.bf16.msra.mxu0 %v9355
        %9471 = vmatpush.bf16.msra.mxu0 %v9351
        %9472 = vmatpush.bf16.msra.mxu0 %v9347
        %9473 = vmatpush.bf16.msra.mxu0 %v9343
        %9474 = vmatpush.bf16.msra.mxu0 %v9339
        %9475 = vmatmul.bf16.gmra.mxu0 %v9080
        %v9476 = vpop.f32.mrf.mxu0
        %v9477 = vadd.f32 0.0, %v9476
        %v9478 = vpop.f32.mrf.mxu0
        %9479 = vdwg.mxu0
        %9480 = vmatpush.bf16.msra.mxu0 %v9399
        %9481 = vmatpush.bf16.msra.mxu0 %v9395
        %9482 = vmatpush.bf16.msra.mxu0 %v9391
        %9483 = vmatpush.bf16.msra.mxu0 %v9387
        %9484 = vmatpush.bf16.msra.mxu0 %v9383
        %9485 = vmatpush.bf16.msra.mxu0 %v9379
        %9486 = vmatpush.bf16.msra.mxu0 %v9375
        %9487 = vmatpush.bf16.msra.mxu0 %v9371
        %9488 = vmatmul.bf16.gmra.mxu0 %v9081
        %v9489 = vpop.f32.mrf.mxu0
        %v9490 = vadd.f32 %v9477, %v9489
        %v9491 = vpop.f32.mrf.mxu0
        %9492 = vdwg.mxu0
        %9493 = vmatpush.bf16.msra.mxu0 %v9368
        %9494 = vmatpush.bf16.msra.mxu0 %v9364
        %9495 = vmatpush.bf16.msra.mxu0 %v9360
        %9496 = vmatpush.bf16.msra.mxu0 %v9356
        %9497 = vmatpush.bf16.msra.mxu0 %v9352
        %9498 = vmatpush.bf16.msra.mxu0 %v9348
        %9499 = vmatpush.bf16.msra.mxu0 %v9344
        %9500 = vmatpush.bf16.msra.mxu0 %v9340
        %9501 = vmatmul.bf16.gmra.mxu0 %v9080
        %v9502 = vpop.f32.mrf.mxu0
        %v9503 = vadd.f32 0.0, %v9502
        %v9504 = vpop.f32.mrf.mxu0
        %9505 = vdwg.mxu0
        %9506 = vmatpush.bf16.msra.mxu0 %v9400
        %9507 = vmatpush.bf16.msra.mxu0 %v9396
        %9508 = vmatpush.bf16.msra.mxu0 %v9392
        %9509 = vmatpush.bf16.msra.mxu0 %v9388
        %9510 = vmatpush.bf16.msra.mxu0 %v9384
        %9511 = vmatpush.bf16.msra.mxu0 %v9380
        %9512 = vmatpush.bf16.msra.mxu0 %v9376
        %9513 = vmatpush.bf16.msra.mxu0 %v9372
        %9514 = vmatmul.bf16.gmra.mxu0 %v9081
        %v9515 = vpop.f32.mrf.mxu0
        %v9516 = vadd.f32 %v9503, %v9515
        %v9517 = vpop.f32.mrf.mxu0
        %9518 = vdwg.mxu0
        %9519 = vmatpush.bf16.msra.mxu0 %v9369
        %9520 = vmatpush.bf16.msra.mxu0 %v9365
        %9521 = vmatpush.bf16.msra.mxu0 %v9361
        %9522 = vmatpush.bf16.msra.mxu0 %v9357
        %9523 = vmatpush.bf16.msra.mxu0 %v9353
        %9524 = vmatpush.bf16.msra.mxu0 %v9349
        %9525 = vmatpush.bf16.msra.mxu0 %v9345
        %9526 = vmatpush.bf16.msra.mxu0 %v9341
        %9527 = vmatmul.bf16.gmra.mxu0 %v9080
        %v9528 = vpop.f32.mrf.mxu0
        %v9529 = vadd.f32 0.0, %v9528
        %v9530 = vpop.f32.mrf.mxu0
        %9531 = vdwg.mxu0
        %9532 = vmatpush.bf16.msra.mxu0 %v9401
        %9533 = vmatpush.bf16.msra.mxu0 %v9397
        %9534 = vmatpush.bf16.msra.mxu0 %v9393
        %9535 = vmatpush.bf16.msra.mxu0 %v9389
        %9536 = vmatpush.bf16.msra.mxu0 %v9385
        %9537 = vmatpush.bf16.msra.mxu0 %v9381
        %9538 = vmatpush.bf16.msra.mxu0 %v9377
        %9539 = vmatpush.bf16.msra.mxu0 %v9373
        %9540 = vmatmul.bf16.gmra.mxu0 %v9081
        %v9541 = vpop.f32.mrf.mxu0
        %v9542 = vadd.f32 %v9529, %v9541
        %v9543 = vpop.f32.mrf.mxu0
        %9544 = vdwg.mxu0
        %9545 = vmatpush.bf16.msra.mxu0 %v9370
        %9546 = vmatpush.bf16.msra.mxu0 %v9366
        %9547 = vmatpush.bf16.msra.mxu0 %v9362
        %9548 = vmatpush.bf16.msra.mxu0 %v9358
        %9549 = vmatpush.bf16.msra.mxu0 %v9354
        %9550 = vmatpush.bf16.msra.mxu0 %v9350
        %9551 = vmatpush.bf16.msra.mxu0 %v9346
        %9552 = vmatpush.bf16.msra.mxu0 %v9342
        %9553 = vmatmul.bf16.gmra.mxu0 %v9080
        %v9554 = vpop.f32.mrf.mxu0
        %v9555 = vadd.f32 0.0, %v9554
        %v9556 = vpop.f32.mrf.mxu0
        %9557 = vdwg.mxu0
        %9558 = vmatpush.bf16.msra.mxu0 %v9402
        %9559 = vmatpush.bf16.msra.mxu0 %v9398
        %9560 = vmatpush.bf16.msra.mxu0 %v9394
        %9561 = vmatpush.bf16.msra.mxu0 %v9390
        %9562 = vmatpush.bf16.msra.mxu0 %v9386
        %9563 = vmatpush.bf16.msra.mxu0 %v9382
        %9564 = vmatpush.bf16.msra.mxu0 %v9378
        %9565 = vmatpush.bf16.msra.mxu0 %v9374
        %9566 = vmatmul.bf16.gmra.mxu0 %v9081
        %v9567 = vpop.f32.mrf.mxu0
        %v9568 = vadd.f32 %v9555, %v9567
        %v9569 = vpop.f32.mrf.mxu0
        %9570 = vdwg.mxu0
        %v9571 = vadd.f32 %v9074, %v9490
        %v9572 = vadd.f32 %v9075, %v9516
        %v9573 = vadd.f32 %v9076, %v9542
        %v9574 = vadd.f32 %v9077, %v9568
        %v9575 = vld [vmem:[#allocation4 + $0x10] sm:$0x7e]
        %v9576 = vld [vmem:[#allocation4 + $0x18] sm:$0x7e]
        %v9577 = vpack.c.bf16 %v9575, %v9575
        %v9578 = vpack.c.bf16 %v9576, %v9576
        %s9579 = scalar_lea.vmem %s13, 3584
        %v9580 = vld [vmem:[%s9579] sm:$0xff]
        %v9581 = vld [vmem:[%s9579 + $0x8] sm:$0xff]
        %v9582 = vld [vmem:[%s9579 + $0x10] sm:$0xff]
        %v9583 = vld [vmem:[%s9579 + $0x18] sm:$0xff]
        %v9584 = vld [vmem:[%s9579 + $0x20] sm:$0xff]
        %v9585 = vld [vmem:[%s9579 + $0x28] sm:$0xff]
        %v9586 = vld [vmem:[%s9579 + $0x30] sm:$0xff]
        %v9587 = vld [vmem:[%s9579 + $0x38] sm:$0xff]
        %v9588 = vld [vmem:[%s9579 + $0x40] sm:$0xff]
        %v9589 = vld [vmem:[%s9579 + $0x48] sm:$0xff]
        %v9590 = vld [vmem:[%s9579 + $0x50] sm:$0xff]
        %v9591 = vld [vmem:[%s9579 + $0x58] sm:$0xff]
        %v9592 = vld [vmem:[%s9579 + $0x60] sm:$0xff]
        %v9593 = vld [vmem:[%s9579 + $0x68] sm:$0xff]
        %v9594 = vld [vmem:[%s9579 + $0x70] sm:$0xff]
        %v9595 = vld [vmem:[%s9579 + $0x78] sm:$0xff]
        %v9596 = vld [vmem:[%s9579 + $0x80] sm:$0xff]
        %v9597 = vld [vmem:[%s9579 + $0x88] sm:$0xff]
        %v9598 = vld [vmem:[%s9579 + $0x90] sm:$0xff]
        %v9599 = vld [vmem:[%s9579 + $0x98] sm:$0xff]
        %v9600 = vld [vmem:[%s9579 + $0xa0] sm:$0xff]
        %v9601 = vld [vmem:[%s9579 + $0xa8] sm:$0xff]
        %v9602 = vld [vmem:[%s9579 + $0xb0] sm:$0xff]
        %v9603 = vld [vmem:[%s9579 + $0xb8] sm:$0xff]
        %v9604 = vld [vmem:[%s9579 + $0xc0] sm:$0xff]
        %v9605 = vld [vmem:[%s9579 + $0xc8] sm:$0xff]
        %v9606 = vld [vmem:[%s9579 + $0xd0] sm:$0xff]
        %v9607 = vld [vmem:[%s9579 + $0xd8] sm:$0xff]
        %v9608 = vld [vmem:[%s9579 + $0xe0] sm:$0xff]
        %v9609 = vld [vmem:[%s9579 + $0xe8] sm:$0xff]
        %v9610 = vld [vmem:[%s9579 + $0xf0] sm:$0xff]
        %v9611 = vld [vmem:[%s9579 + $0xf8] sm:$0xff]
        %v9612 = vld [vmem:[%s9579 + $0x100] sm:$0xff]
        %v9613 = vld [vmem:[%s9579 + $0x108] sm:$0xff]
        %v9614 = vld [vmem:[%s9579 + $0x110] sm:$0xff]
        %v9615 = vld [vmem:[%s9579 + $0x118] sm:$0xff]
        %v9616 = vld [vmem:[%s9579 + $0x120] sm:$0xff]
        %v9617 = vld [vmem:[%s9579 + $0x128] sm:$0xff]
        %v9618 = vld [vmem:[%s9579 + $0x130] sm:$0xff]
        %v9619 = vld [vmem:[%s9579 + $0x138] sm:$0xff]
        %v9620 = vld [vmem:[%s9579 + $0x140] sm:$0xff]
        %v9621 = vld [vmem:[%s9579 + $0x148] sm:$0xff]
        %v9622 = vld [vmem:[%s9579 + $0x150] sm:$0xff]
        %v9623 = vld [vmem:[%s9579 + $0x158] sm:$0xff]
        %v9624 = vld [vmem:[%s9579 + $0x160] sm:$0xff]
        %v9625 = vld [vmem:[%s9579 + $0x168] sm:$0xff]
        %v9626 = vld [vmem:[%s9579 + $0x170] sm:$0xff]
        %v9627 = vld [vmem:[%s9579 + $0x178] sm:$0xff]
        %v9628 = vld [vmem:[%s9579 + $0x180] sm:$0xff]
        %v9629 = vld [vmem:[%s9579 + $0x188] sm:$0xff]
        %v9630 = vld [vmem:[%s9579 + $0x190] sm:$0xff]
        %v9631 = vld [vmem:[%s9579 + $0x198] sm:$0xff]
        %v9632 = vld [vmem:[%s9579 + $0x1a0] sm:$0xff]
        %v9633 = vld [vmem:[%s9579 + $0x1a8] sm:$0xff]
        %v9634 = vld [vmem:[%s9579 + $0x1b0] sm:$0xff]
        %v9635 = vld [vmem:[%s9579 + $0x1b8] sm:$0xff]
        %v9636 = vld [vmem:[%s9579 + $0x1c0] sm:$0xff]
        %v9637 = vld [vmem:[%s9579 + $0x1c8] sm:$0xff]
        %v9638 = vld [vmem:[%s9579 + $0x1d0] sm:$0xff]
        %v9639 = vld [vmem:[%s9579 + $0x1d8] sm:$0xff]
        %v9640 = vld [vmem:[%s9579 + $0x1e0] sm:$0xff]
        %v9641 = vld [vmem:[%s9579 + $0x1e8] sm:$0xff]
        %v9642 = vld [vmem:[%s9579 + $0x1f0] sm:$0xff]
        %v9643 = vld [vmem:[%s9579 + $0x1f8] sm:$0xff]
        %v9645 = vshrl.u32 %v9577, 16
        %v9647 = vshll.u32 %v9577, 16
        %v9649 = vrot.slane %v9647, 1
        %v9650 = vor.u32 %v9645, %v9649
        %v9652 = vshrl.u32 %v9578, 16
        %v9654 = vshll.u32 %v9578, 16
        %v9656 = vrot.slane %v9654, 1
        %v9657 = vor.u32 %v9652, %v9656
        %v9724 = vunpack.c.l.b16 %v9580
        %v9725 = vunpack.c.h.b16 %v9580
        %v9726 = vunpack.c.l.b16 %v9581
        %v9727 = vunpack.c.h.b16 %v9581
        %v9728 = vunpack.c.l.b16 %v9582
        %v9729 = vunpack.c.h.b16 %v9582
        %v9730 = vunpack.c.l.b16 %v9583
        %v9731 = vunpack.c.h.b16 %v9583
        %v9732 = vunpack.c.l.b16 %v9584
        %v9733 = vunpack.c.h.b16 %v9584
        %v9734 = vunpack.c.l.b16 %v9585
        %v9735 = vunpack.c.h.b16 %v9585
        %v9736 = vunpack.c.l.b16 %v9586
        %v9737 = vunpack.c.h.b16 %v9586
        %v9738 = vunpack.c.l.b16 %v9587
        %v9739 = vunpack.c.h.b16 %v9587
        %v9740 = vunpack.c.l.b16 %v9588
        %v9741 = vunpack.c.h.b16 %v9588
        %v9742 = vunpack.c.l.b16 %v9589
        %v9743 = vunpack.c.h.b16 %v9589
        %v9744 = vunpack.c.l.b16 %v9590
        %v9745 = vunpack.c.h.b16 %v9590
        %v9746 = vunpack.c.l.b16 %v9591
        %v9747 = vunpack.c.h.b16 %v9591
        %v9748 = vunpack.c.l.b16 %v9592
        %v9749 = vunpack.c.h.b16 %v9592
        %v9750 = vunpack.c.l.b16 %v9593
        %v9751 = vunpack.c.h.b16 %v9593
        %v9752 = vunpack.c.l.b16 %v9594
        %v9753 = vunpack.c.h.b16 %v9594
        %v9754 = vunpack.c.l.b16 %v9595
        %v9755 = vunpack.c.h.b16 %v9595
        %v9756 = vunpack.c.l.b16 %v9596
        %v9757 = vunpack.c.h.b16 %v9596
        %v9758 = vunpack.c.l.b16 %v9597
        %v9759 = vunpack.c.h.b16 %v9597
        %v9760 = vunpack.c.l.b16 %v9598
        %v9761 = vunpack.c.h.b16 %v9598
        %v9762 = vunpack.c.l.b16 %v9599
        %v9763 = vunpack.c.h.b16 %v9599
        %v9764 = vunpack.c.l.b16 %v9600
        %v9765 = vunpack.c.h.b16 %v9600
        %v9766 = vunpack.c.l.b16 %v9601
        %v9767 = vunpack.c.h.b16 %v9601
        %v9768 = vunpack.c.l.b16 %v9602
        %v9769 = vunpack.c.h.b16 %v9602
        %v9770 = vunpack.c.l.b16 %v9603
        %v9771 = vunpack.c.h.b16 %v9603
        %v9772 = vunpack.c.l.b16 %v9604
        %v9773 = vunpack.c.h.b16 %v9604
        %v9774 = vunpack.c.l.b16 %v9605
        %v9775 = vunpack.c.h.b16 %v9605
        %v9776 = vunpack.c.l.b16 %v9606
        %v9777 = vunpack.c.h.b16 %v9606
        %v9778 = vunpack.c.l.b16 %v9607
        %v9779 = vunpack.c.h.b16 %v9607
        %v9780 = vunpack.c.l.b16 %v9608
        %v9781 = vunpack.c.h.b16 %v9608
        %v9782 = vunpack.c.l.b16 %v9609
        %v9783 = vunpack.c.h.b16 %v9609
        %v9784 = vunpack.c.l.b16 %v9610
        %v9785 = vunpack.c.h.b16 %v9610
        %v9786 = vunpack.c.l.b16 %v9611
        %v9787 = vunpack.c.h.b16 %v9611
        %v9788 = vunpack.c.l.b16 %v9612
        %v9789 = vunpack.c.h.b16 %v9612
        %v9790 = vunpack.c.l.b16 %v9613
        %v9791 = vunpack.c.h.b16 %v9613
        %v9792 = vunpack.c.l.b16 %v9614
        %v9793 = vunpack.c.h.b16 %v9614
        %v9794 = vunpack.c.l.b16 %v9615
        %v9795 = vunpack.c.h.b16 %v9615
        %v9796 = vunpack.c.l.b16 %v9616
        %v9797 = vunpack.c.h.b16 %v9616
        %v9798 = vunpack.c.l.b16 %v9617
        %v9799 = vunpack.c.h.b16 %v9617
        %v9800 = vunpack.c.l.b16 %v9618
        %v9801 = vunpack.c.h.b16 %v9618
        %v9802 = vunpack.c.l.b16 %v9619
        %v9803 = vunpack.c.h.b16 %v9619
        %v9804 = vunpack.c.l.b16 %v9620
        %v9805 = vunpack.c.h.b16 %v9620
        %v9806 = vunpack.c.l.b16 %v9621
        %v9807 = vunpack.c.h.b16 %v9621
        %v9808 = vunpack.c.l.b16 %v9622
        %v9809 = vunpack.c.h.b16 %v9622
        %v9810 = vunpack.c.l.b16 %v9623
        %v9811 = vunpack.c.h.b16 %v9623
        %v9812 = vunpack.c.l.b16 %v9624
        %v9813 = vunpack.c.h.b16 %v9624
        %v9814 = vunpack.c.l.b16 %v9625
        %v9815 = vunpack.c.h.b16 %v9625
        %v9816 = vunpack.c.l.b16 %v9626
        %v9817 = vunpack.c.h.b16 %v9626
        %v9818 = vunpack.c.l.b16 %v9627
        %v9819 = vunpack.c.h.b16 %v9627
        %v9820 = vunpack.c.l.b16 %v9628
        %v9821 = vunpack.c.h.b16 %v9628
        %v9822 = vunpack.c.l.b16 %v9629
        %v9823 = vunpack.c.h.b16 %v9629
        %v9824 = vunpack.c.l.b16 %v9630
        %v9825 = vunpack.c.h.b16 %v9630
        %v9826 = vunpack.c.l.b16 %v9631
        %v9827 = vunpack.c.h.b16 %v9631
        %v9828 = vunpack.c.l.b16 %v9632
        %v9829 = vunpack.c.h.b16 %v9632
        %v9830 = vunpack.c.l.b16 %v9633
        %v9831 = vunpack.c.h.b16 %v9633
        %v9832 = vunpack.c.l.b16 %v9634
        %v9833 = vunpack.c.h.b16 %v9634
        %v9834 = vunpack.c.l.b16 %v9635
        %v9835 = vunpack.c.h.b16 %v9635
        %v9836 = vunpack.c.l.b16 %v9636
        %v9837 = vunpack.c.h.b16 %v9636
        %v9838 = vunpack.c.l.b16 %v9637
        %v9839 = vunpack.c.h.b16 %v9637
        %v9840 = vunpack.c.l.b16 %v9638
        %v9841 = vunpack.c.h.b16 %v9638
        %v9842 = vunpack.c.l.b16 %v9639
        %v9843 = vunpack.c.h.b16 %v9639
        %v9844 = vunpack.c.l.b16 %v9640
        %v9845 = vunpack.c.h.b16 %v9640
        %v9846 = vunpack.c.l.b16 %v9641
        %v9847 = vunpack.c.h.b16 %v9641
        %v9848 = vunpack.c.l.b16 %v9642
        %v9849 = vunpack.c.h.b16 %v9642
        %v9850 = vunpack.c.l.b16 %v9643
        %v9851 = vunpack.c.h.b16 %v9643
        %v9852 = vpack.c.b16 %v9728, %v9724
        %v9853 = vpack.c.b16 %v9729, %v9725
        %v9854 = vpack.c.b16 %v9730, %v9726
        %v9855 = vpack.c.b16 %v9731, %v9727
        %v9856 = vpack.c.b16 %v9736, %v9732
        %v9857 = vpack.c.b16 %v9737, %v9733
        %v9858 = vpack.c.b16 %v9738, %v9734
        %v9859 = vpack.c.b16 %v9739, %v9735
        %v9860 = vpack.c.b16 %v9744, %v9740
        %v9861 = vpack.c.b16 %v9745, %v9741
        %v9862 = vpack.c.b16 %v9746, %v9742
        %v9863 = vpack.c.b16 %v9747, %v9743
        %v9864 = vpack.c.b16 %v9752, %v9748
        %v9865 = vpack.c.b16 %v9753, %v9749
        %v9866 = vpack.c.b16 %v9754, %v9750
        %v9867 = vpack.c.b16 %v9755, %v9751
        %v9868 = vpack.c.b16 %v9760, %v9756
        %v9869 = vpack.c.b16 %v9761, %v9757
        %v9870 = vpack.c.b16 %v9762, %v9758
        %v9871 = vpack.c.b16 %v9763, %v9759
        %v9872 = vpack.c.b16 %v9768, %v9764
        %v9873 = vpack.c.b16 %v9769, %v9765
        %v9874 = vpack.c.b16 %v9770, %v9766
        %v9875 = vpack.c.b16 %v9771, %v9767
        %v9876 = vpack.c.b16 %v9776, %v9772
        %v9877 = vpack.c.b16 %v9777, %v9773
        %v9878 = vpack.c.b16 %v9778, %v9774
        %v9879 = vpack.c.b16 %v9779, %v9775
        %v9880 = vpack.c.b16 %v9784, %v9780
        %v9881 = vpack.c.b16 %v9785, %v9781
        %v9882 = vpack.c.b16 %v9786, %v9782
        %v9883 = vpack.c.b16 %v9787, %v9783
        %v9884 = vpack.c.b16 %v9792, %v9788
        %v9885 = vpack.c.b16 %v9793, %v9789
        %v9886 = vpack.c.b16 %v9794, %v9790
        %v9887 = vpack.c.b16 %v9795, %v9791
        %v9888 = vpack.c.b16 %v9800, %v9796
        %v9889 = vpack.c.b16 %v9801, %v9797
        %v9890 = vpack.c.b16 %v9802, %v9798
        %v9891 = vpack.c.b16 %v9803, %v9799
        %v9892 = vpack.c.b16 %v9808, %v9804
        %v9893 = vpack.c.b16 %v9809, %v9805
        %v9894 = vpack.c.b16 %v9810, %v9806
        %v9895 = vpack.c.b16 %v9811, %v9807
        %v9896 = vpack.c.b16 %v9816, %v9812
        %v9897 = vpack.c.b16 %v9817, %v9813
        %v9898 = vpack.c.b16 %v9818, %v9814
        %v9899 = vpack.c.b16 %v9819, %v9815
        %v9900 = vpack.c.b16 %v9824, %v9820
        %v9901 = vpack.c.b16 %v9825, %v9821
        %v9902 = vpack.c.b16 %v9826, %v9822
        %v9903 = vpack.c.b16 %v9827, %v9823
        %v9904 = vpack.c.b16 %v9832, %v9828
        %v9905 = vpack.c.b16 %v9833, %v9829
        %v9906 = vpack.c.b16 %v9834, %v9830
        %v9907 = vpack.c.b16 %v9835, %v9831
        %v9908 = vpack.c.b16 %v9840, %v9836
        %v9909 = vpack.c.b16 %v9841, %v9837
        %v9910 = vpack.c.b16 %v9842, %v9838
        %v9911 = vpack.c.b16 %v9843, %v9839
        %v9912 = vpack.c.b16 %v9848, %v9844
        %v9913 = vpack.c.b16 %v9849, %v9845
        %v9914 = vpack.c.b16 %v9850, %v9846
        %v9915 = vpack.c.b16 %v9851, %v9847
        %9980 = vmatpush.bf16.msra.mxu0 %v9880
        %9981 = vmatpush.bf16.msra.mxu0 %v9876
        %9982 = vmatpush.bf16.msra.mxu0 %v9872
        %9983 = vmatpush.bf16.msra.mxu0 %v9868
        %9984 = vmatpush.bf16.msra.mxu0 %v9864
        %9985 = vmatpush.bf16.msra.mxu0 %v9860
        %9986 = vmatpush.bf16.msra.mxu0 %v9856
        %9987 = vmatpush.bf16.msra.mxu0 %v9852
        %9988 = vmatmul.bf16.gmra.mxu0 %v9650
        %v9989 = vpop.f32.mrf.mxu0
        %v9990 = vadd.f32 0.0, %v9989
        %v9991 = vpop.f32.mrf.mxu0
        %9992 = vdwg.mxu0
        %9993 = vmatpush.bf16.msra.mxu0 %v9912
        %9994 = vmatpush.bf16.msra.mxu0 %v9908
        %9995 = vmatpush.bf16.msra.mxu0 %v9904
        %9996 = vmatpush.bf16.msra.mxu0 %v9900
        %9997 = vmatpush.bf16.msra.mxu0 %v9896
        %9998 = vmatpush.bf16.msra.mxu0 %v9892
        %9999 = vmatpush.bf16.msra.mxu0 %v9888
        %10000 = vmatpush.bf16.msra.mxu0 %v9884
        %10001 = vmatmul.bf16.gmra.mxu0 %v9657
        %v10002 = vpop.f32.mrf.mxu0
        %v10003 = vadd.f32 %v9990, %v10002
        %v10004 = vpop.f32.mrf.mxu0
        %10005 = vdwg.mxu0
        %10006 = vmatpush.bf16.msra.mxu0 %v9881
        %10007 = vmatpush.bf16.msra.mxu0 %v9877
        %10008 = vmatpush.bf16.msra.mxu0 %v9873
        %10009 = vmatpush.bf16.msra.mxu0 %v9869
        %10010 = vmatpush.bf16.msra.mxu0 %v9865
        %10011 = vmatpush.bf16.msra.mxu0 %v9861
        %10012 = vmatpush.bf16.msra.mxu0 %v9857
        %10013 = vmatpush.bf16.msra.mxu0 %v9853
        %10014 = vmatmul.bf16.gmra.mxu0 %v9650
        %v10015 = vpop.f32.mrf.mxu0
        %v10016 = vadd.f32 0.0, %v10015
        %v10017 = vpop.f32.mrf.mxu0
        %10018 = vdwg.mxu0
        %10019 = vmatpush.bf16.msra.mxu0 %v9913
        %10020 = vmatpush.bf16.msra.mxu0 %v9909
        %10021 = vmatpush.bf16.msra.mxu0 %v9905
        %10022 = vmatpush.bf16.msra.mxu0 %v9901
        %10023 = vmatpush.bf16.msra.mxu0 %v9897
        %10024 = vmatpush.bf16.msra.mxu0 %v9893
        %10025 = vmatpush.bf16.msra.mxu0 %v9889
        %10026 = vmatpush.bf16.msra.mxu0 %v9885
        %10027 = vmatmul.bf16.gmra.mxu0 %v9657
        %v10028 = vpop.f32.mrf.mxu0
        %v10029 = vadd.f32 %v10016, %v10028
        %v10030 = vpop.f32.mrf.mxu0
        %10031 = vdwg.mxu0
        %10032 = vmatpush.bf16.msra.mxu0 %v9882
        %10033 = vmatpush.bf16.msra.mxu0 %v9878
        %10034 = vmatpush.bf16.msra.mxu0 %v9874
        %10035 = vmatpush.bf16.msra.mxu0 %v9870
        %10036 = vmatpush.bf16.msra.mxu0 %v9866
        %10037 = vmatpush.bf16.msra.mxu0 %v9862
        %10038 = vmatpush.bf16.msra.mxu0 %v9858
        %10039 = vmatpush.bf16.msra.mxu0 %v9854
        %10040 = vmatmul.bf16.gmra.mxu0 %v9650
        %v10041 = vpop.f32.mrf.mxu0
        %v10042 = vadd.f32 0.0, %v10041
        %v10043 = vpop.f32.mrf.mxu0
        %10044 = vdwg.mxu0
        %10045 = vmatpush.bf16.msra.mxu0 %v9914
        %10046 = vmatpush.bf16.msra.mxu0 %v9910
        %10047 = vmatpush.bf16.msra.mxu0 %v9906
        %10048 = vmatpush.bf16.msra.mxu0 %v9902
        %10049 = vmatpush.bf16.msra.mxu0 %v9898
        %10050 = vmatpush.bf16.msra.mxu0 %v9894
        %10051 = vmatpush.bf16.msra.mxu0 %v9890
        %10052 = vmatpush.bf16.msra.mxu0 %v9886
        %10053 = vmatmul.bf16.gmra.mxu0 %v9657
        %v10054 = vpop.f32.mrf.mxu0
        %v10055 = vadd.f32 %v10042, %v10054
        %v10056 = vpop.f32.mrf.mxu0
        %10057 = vdwg.mxu0
        %10058 = vmatpush.bf16.msra.mxu0 %v9883
        %10059 = vmatpush.bf16.msra.mxu0 %v9879
        %10060 = vmatpush.bf16.msra.mxu0 %v9875
        %10061 = vmatpush.bf16.msra.mxu0 %v9871
        %10062 = vmatpush.bf16.msra.mxu0 %v9867
        %10063 = vmatpush.bf16.msra.mxu0 %v9863
        %10064 = vmatpush.bf16.msra.mxu0 %v9859
        %10065 = vmatpush.bf16.msra.mxu0 %v9855
        %10066 = vmatmul.bf16.gmra.mxu0 %v9650
        %v10067 = vpop.f32.mrf.mxu0
        %v10068 = vadd.f32 0.0, %v10067
        %v10069 = vpop.f32.mrf.mxu0
        %10070 = vdwg.mxu0
        %10071 = vmatpush.bf16.msra.mxu0 %v9915
        %10072 = vmatpush.bf16.msra.mxu0 %v9911
        %10073 = vmatpush.bf16.msra.mxu0 %v9907
        %10074 = vmatpush.bf16.msra.mxu0 %v9903
        %10075 = vmatpush.bf16.msra.mxu0 %v9899
        %10076 = vmatpush.bf16.msra.mxu0 %v9895
        %10077 = vmatpush.bf16.msra.mxu0 %v9891
        %10078 = vmatpush.bf16.msra.mxu0 %v9887
        %10079 = vmatmul.bf16.gmra.mxu0 %v9657
        %v10080 = vpop.f32.mrf.mxu0
        %v10081 = vadd.f32 %v10068, %v10080
        %v10082 = vpop.f32.mrf.mxu0
        %10083 = vdwg.mxu0
        %v10084 = vadd.f32 %v9571, %v10003
        %v10085 = vadd.f32 %v9572, %v10029
        %v10086 = vadd.f32 %v9573, %v10055
        %v10087 = vadd.f32 %v9574, %v10081
        %v10088 = vld [vmem:[#allocation4 + $0x10] sm:$0xfc]
        %v10089 = vld [vmem:[#allocation4 + $0x18] sm:$0xfc]
        %v10090 = vpack.c.bf16 %v10088, %v10088
        %v10091 = vpack.c.bf16 %v10089, %v10089
        %s10092 = scalar_lea.vmem %s13, 4096
        %v10093 = vld [vmem:[%s10092] sm:$0xff]
        %v10094 = vld [vmem:[%s10092 + $0x8] sm:$0xff]
        %v10095 = vld [vmem:[%s10092 + $0x10] sm:$0xff]
        %v10096 = vld [vmem:[%s10092 + $0x18] sm:$0xff]
        %v10097 = vld [vmem:[%s10092 + $0x20] sm:$0xff]
        %v10098 = vld [vmem:[%s10092 + $0x28] sm:$0xff]
        %v10099 = vld [vmem:[%s10092 + $0x30] sm:$0xff]
        %v10100 = vld [vmem:[%s10092 + $0x38] sm:$0xff]
        %v10101 = vld [vmem:[%s10092 + $0x40] sm:$0xff]
        %v10102 = vld [vmem:[%s10092 + $0x48] sm:$0xff]
        %v10103 = vld [vmem:[%s10092 + $0x50] sm:$0xff]
        %v10104 = vld [vmem:[%s10092 + $0x58] sm:$0xff]
        %v10105 = vld [vmem:[%s10092 + $0x60] sm:$0xff]
        %v10106 = vld [vmem:[%s10092 + $0x68] sm:$0xff]
        %v10107 = vld [vmem:[%s10092 + $0x70] sm:$0xff]
        %v10108 = vld [vmem:[%s10092 + $0x78] sm:$0xff]
        %v10109 = vld [vmem:[%s10092 + $0x80] sm:$0xff]
        %v10110 = vld [vmem:[%s10092 + $0x88] sm:$0xff]
        %v10111 = vld [vmem:[%s10092 + $0x90] sm:$0xff]
        %v10112 = vld [vmem:[%s10092 + $0x98] sm:$0xff]
        %v10113 = vld [vmem:[%s10092 + $0xa0] sm:$0xff]
        %v10114 = vld [vmem:[%s10092 + $0xa8] sm:$0xff]
        %v10115 = vld [vmem:[%s10092 + $0xb0] sm:$0xff]
        %v10116 = vld [vmem:[%s10092 + $0xb8] sm:$0xff]
        %v10117 = vld [vmem:[%s10092 + $0xc0] sm:$0xff]
        %v10118 = vld [vmem:[%s10092 + $0xc8] sm:$0xff]
        %v10119 = vld [vmem:[%s10092 + $0xd0] sm:$0xff]
        %v10120 = vld [vmem:[%s10092 + $0xd8] sm:$0xff]
        %v10121 = vld [vmem:[%s10092 + $0xe0] sm:$0xff]
        %v10122 = vld [vmem:[%s10092 + $0xe8] sm:$0xff]
        %v10123 = vld [vmem:[%s10092 + $0xf0] sm:$0xff]
        %v10124 = vld [vmem:[%s10092 + $0xf8] sm:$0xff]
        %v10125 = vld [vmem:[%s10092 + $0x100] sm:$0xff]
        %v10126 = vld [vmem:[%s10092 + $0x108] sm:$0xff]
        %v10127 = vld [vmem:[%s10092 + $0x110] sm:$0xff]
        %v10128 = vld [vmem:[%s10092 + $0x118] sm:$0xff]
        %v10129 = vld [vmem:[%s10092 + $0x120] sm:$0xff]
        %v10130 = vld [vmem:[%s10092 + $0x128] sm:$0xff]
        %v10131 = vld [vmem:[%s10092 + $0x130] sm:$0xff]
        %v10132 = vld [vmem:[%s10092 + $0x138] sm:$0xff]
        %v10133 = vld [vmem:[%s10092 + $0x140] sm:$0xff]
        %v10134 = vld [vmem:[%s10092 + $0x148] sm:$0xff]
        %v10135 = vld [vmem:[%s10092 + $0x150] sm:$0xff]
        %v10136 = vld [vmem:[%s10092 + $0x158] sm:$0xff]
        %v10137 = vld [vmem:[%s10092 + $0x160] sm:$0xff]
        %v10138 = vld [vmem:[%s10092 + $0x168] sm:$0xff]
        %v10139 = vld [vmem:[%s10092 + $0x170] sm:$0xff]
        %v10140 = vld [vmem:[%s10092 + $0x178] sm:$0xff]
        %v10141 = vld [vmem:[%s10092 + $0x180] sm:$0xff]
        %v10142 = vld [vmem:[%s10092 + $0x188] sm:$0xff]
        %v10143 = vld [vmem:[%s10092 + $0x190] sm:$0xff]
        %v10144 = vld [vmem:[%s10092 + $0x198] sm:$0xff]
        %v10145 = vld [vmem:[%s10092 + $0x1a0] sm:$0xff]
        %v10146 = vld [vmem:[%s10092 + $0x1a8] sm:$0xff]
        %v10147 = vld [vmem:[%s10092 + $0x1b0] sm:$0xff]
        %v10148 = vld [vmem:[%s10092 + $0x1b8] sm:$0xff]
        %v10149 = vld [vmem:[%s10092 + $0x1c0] sm:$0xff]
        %v10150 = vld [vmem:[%s10092 + $0x1c8] sm:$0xff]
        %v10151 = vld [vmem:[%s10092 + $0x1d0] sm:$0xff]
        %v10152 = vld [vmem:[%s10092 + $0x1d8] sm:$0xff]
        %v10153 = vld [vmem:[%s10092 + $0x1e0] sm:$0xff]
        %v10154 = vld [vmem:[%s10092 + $0x1e8] sm:$0xff]
        %v10155 = vld [vmem:[%s10092 + $0x1f0] sm:$0xff]
        %v10156 = vld [vmem:[%s10092 + $0x1f8] sm:$0xff]
        %v10159 = vrot.slane %v10090, 1
        %v10160 = vrot.slane %v10091, 1
        %v10227 = vunpack.c.l.b16 %v10093
        %v10228 = vunpack.c.h.b16 %v10093
        %v10229 = vunpack.c.l.b16 %v10094
        %v10230 = vunpack.c.h.b16 %v10094
        %v10231 = vunpack.c.l.b16 %v10095
        %v10232 = vunpack.c.h.b16 %v10095
        %v10233 = vunpack.c.l.b16 %v10096
        %v10234 = vunpack.c.h.b16 %v10096
        %v10235 = vunpack.c.l.b16 %v10097
        %v10236 = vunpack.c.h.b16 %v10097
        %v10237 = vunpack.c.l.b16 %v10098
        %v10238 = vunpack.c.h.b16 %v10098
        %v10239 = vunpack.c.l.b16 %v10099
        %v10240 = vunpack.c.h.b16 %v10099
        %v10241 = vunpack.c.l.b16 %v10100
        %v10242 = vunpack.c.h.b16 %v10100
        %v10243 = vunpack.c.l.b16 %v10101
        %v10244 = vunpack.c.h.b16 %v10101
        %v10245 = vunpack.c.l.b16 %v10102
        %v10246 = vunpack.c.h.b16 %v10102
        %v10247 = vunpack.c.l.b16 %v10103
        %v10248 = vunpack.c.h.b16 %v10103
        %v10249 = vunpack.c.l.b16 %v10104
        %v10250 = vunpack.c.h.b16 %v10104
        %v10251 = vunpack.c.l.b16 %v10105
        %v10252 = vunpack.c.h.b16 %v10105
        %v10253 = vunpack.c.l.b16 %v10106
        %v10254 = vunpack.c.h.b16 %v10106
        %v10255 = vunpack.c.l.b16 %v10107
        %v10256 = vunpack.c.h.b16 %v10107
        %v10257 = vunpack.c.l.b16 %v10108
        %v10258 = vunpack.c.h.b16 %v10108
        %v10259 = vunpack.c.l.b16 %v10109
        %v10260 = vunpack.c.h.b16 %v10109
        %v10261 = vunpack.c.l.b16 %v10110
        %v10262 = vunpack.c.h.b16 %v10110
        %v10263 = vunpack.c.l.b16 %v10111
        %v10264 = vunpack.c.h.b16 %v10111
        %v10265 = vunpack.c.l.b16 %v10112
        %v10266 = vunpack.c.h.b16 %v10112
        %v10267 = vunpack.c.l.b16 %v10113
        %v10268 = vunpack.c.h.b16 %v10113
        %v10269 = vunpack.c.l.b16 %v10114
        %v10270 = vunpack.c.h.b16 %v10114
        %v10271 = vunpack.c.l.b16 %v10115
        %v10272 = vunpack.c.h.b16 %v10115
        %v10273 = vunpack.c.l.b16 %v10116
        %v10274 = vunpack.c.h.b16 %v10116
        %v10275 = vunpack.c.l.b16 %v10117
        %v10276 = vunpack.c.h.b16 %v10117
        %v10277 = vunpack.c.l.b16 %v10118
        %v10278 = vunpack.c.h.b16 %v10118
        %v10279 = vunpack.c.l.b16 %v10119
        %v10280 = vunpack.c.h.b16 %v10119
        %v10281 = vunpack.c.l.b16 %v10120
        %v10282 = vunpack.c.h.b16 %v10120
        %v10283 = vunpack.c.l.b16 %v10121
        %v10284 = vunpack.c.h.b16 %v10121
        %v10285 = vunpack.c.l.b16 %v10122
        %v10286 = vunpack.c.h.b16 %v10122
        %v10287 = vunpack.c.l.b16 %v10123
        %v10288 = vunpack.c.h.b16 %v10123
        %v10289 = vunpack.c.l.b16 %v10124
        %v10290 = vunpack.c.h.b16 %v10124
        %v10291 = vunpack.c.l.b16 %v10125
        %v10292 = vunpack.c.h.b16 %v10125
        %v10293 = vunpack.c.l.b16 %v10126
        %v10294 = vunpack.c.h.b16 %v10126
        %v10295 = vunpack.c.l.b16 %v10127
        %v10296 = vunpack.c.h.b16 %v10127
        %v10297 = vunpack.c.l.b16 %v10128
        %v10298 = vunpack.c.h.b16 %v10128
        %v10299 = vunpack.c.l.b16 %v10129
        %v10300 = vunpack.c.h.b16 %v10129
        %v10301 = vunpack.c.l.b16 %v10130
        %v10302 = vunpack.c.h.b16 %v10130
        %v10303 = vunpack.c.l.b16 %v10131
        %v10304 = vunpack.c.h.b16 %v10131
        %v10305 = vunpack.c.l.b16 %v10132
        %v10306 = vunpack.c.h.b16 %v10132
        %v10307 = vunpack.c.l.b16 %v10133
        %v10308 = vunpack.c.h.b16 %v10133
        %v10309 = vunpack.c.l.b16 %v10134
        %v10310 = vunpack.c.h.b16 %v10134
        %v10311 = vunpack.c.l.b16 %v10135
        %v10312 = vunpack.c.h.b16 %v10135
        %v10313 = vunpack.c.l.b16 %v10136
        %v10314 = vunpack.c.h.b16 %v10136
        %v10315 = vunpack.c.l.b16 %v10137
        %v10316 = vunpack.c.h.b16 %v10137
        %v10317 = vunpack.c.l.b16 %v10138
        %v10318 = vunpack.c.h.b16 %v10138
        %v10319 = vunpack.c.l.b16 %v10139
        %v10320 = vunpack.c.h.b16 %v10139
        %v10321 = vunpack.c.l.b16 %v10140
        %v10322 = vunpack.c.h.b16 %v10140
        %v10323 = vunpack.c.l.b16 %v10141
        %v10324 = vunpack.c.h.b16 %v10141
        %v10325 = vunpack.c.l.b16 %v10142
        %v10326 = vunpack.c.h.b16 %v10142
        %v10327 = vunpack.c.l.b16 %v10143
        %v10328 = vunpack.c.h.b16 %v10143
        %v10329 = vunpack.c.l.b16 %v10144
        %v10330 = vunpack.c.h.b16 %v10144
        %v10331 = vunpack.c.l.b16 %v10145
        %v10332 = vunpack.c.h.b16 %v10145
        %v10333 = vunpack.c.l.b16 %v10146
        %v10334 = vunpack.c.h.b16 %v10146
        %v10335 = vunpack.c.l.b16 %v10147
        %v10336 = vunpack.c.h.b16 %v10147
        %v10337 = vunpack.c.l.b16 %v10148
        %v10338 = vunpack.c.h.b16 %v10148
        %v10339 = vunpack.c.l.b16 %v10149
        %v10340 = vunpack.c.h.b16 %v10149
        %v10341 = vunpack.c.l.b16 %v10150
        %v10342 = vunpack.c.h.b16 %v10150
        %v10343 = vunpack.c.l.b16 %v10151
        %v10344 = vunpack.c.h.b16 %v10151
        %v10345 = vunpack.c.l.b16 %v10152
        %v10346 = vunpack.c.h.b16 %v10152
        %v10347 = vunpack.c.l.b16 %v10153
        %v10348 = vunpack.c.h.b16 %v10153
        %v10349 = vunpack.c.l.b16 %v10154
        %v10350 = vunpack.c.h.b16 %v10154
        %v10351 = vunpack.c.l.b16 %v10155
        %v10352 = vunpack.c.h.b16 %v10155
        %v10353 = vunpack.c.l.b16 %v10156
        %v10354 = vunpack.c.h.b16 %v10156
        %v10355 = vpack.c.b16 %v10231, %v10227
        %v10356 = vpack.c.b16 %v10232, %v10228
        %v10357 = vpack.c.b16 %v10233, %v10229
        %v10358 = vpack.c.b16 %v10234, %v10230
        %v10359 = vpack.c.b16 %v10239, %v10235
        %v10360 = vpack.c.b16 %v10240, %v10236
        %v10361 = vpack.c.b16 %v10241, %v10237
        %v10362 = vpack.c.b16 %v10242, %v10238
        %v10363 = vpack.c.b16 %v10247, %v10243
        %v10364 = vpack.c.b16 %v10248, %v10244
        %v10365 = vpack.c.b16 %v10249, %v10245
        %v10366 = vpack.c.b16 %v10250, %v10246
        %v10367 = vpack.c.b16 %v10255, %v10251
        %v10368 = vpack.c.b16 %v10256, %v10252
        %v10369 = vpack.c.b16 %v10257, %v10253
        %v10370 = vpack.c.b16 %v10258, %v10254
        %v10371 = vpack.c.b16 %v10263, %v10259
        %v10372 = vpack.c.b16 %v10264, %v10260
        %v10373 = vpack.c.b16 %v10265, %v10261
        %v10374 = vpack.c.b16 %v10266, %v10262
        %v10375 = vpack.c.b16 %v10271, %v10267
        %v10376 = vpack.c.b16 %v10272, %v10268
        %v10377 = vpack.c.b16 %v10273, %v10269
        %v10378 = vpack.c.b16 %v10274, %v10270
        %v10379 = vpack.c.b16 %v10279, %v10275
        %v10380 = vpack.c.b16 %v10280, %v10276
        %v10381 = vpack.c.b16 %v10281, %v10277
        %v10382 = vpack.c.b16 %v10282, %v10278
        %v10383 = vpack.c.b16 %v10287, %v10283
        %v10384 = vpack.c.b16 %v10288, %v10284
        %v10385 = vpack.c.b16 %v10289, %v10285
        %v10386 = vpack.c.b16 %v10290, %v10286
        %v10387 = vpack.c.b16 %v10295, %v10291
        %v10388 = vpack.c.b16 %v10296, %v10292
        %v10389 = vpack.c.b16 %v10297, %v10293
        %v10390 = vpack.c.b16 %v10298, %v10294
        %v10391 = vpack.c.b16 %v10303, %v10299
        %v10392 = vpack.c.b16 %v10304, %v10300
        %v10393 = vpack.c.b16 %v10305, %v10301
        %v10394 = vpack.c.b16 %v10306, %v10302
        %v10395 = vpack.c.b16 %v10311, %v10307
        %v10396 = vpack.c.b16 %v10312, %v10308
        %v10397 = vpack.c.b16 %v10313, %v10309
        %v10398 = vpack.c.b16 %v10314, %v10310
        %v10399 = vpack.c.b16 %v10319, %v10315
        %v10400 = vpack.c.b16 %v10320, %v10316
        %v10401 = vpack.c.b16 %v10321, %v10317
        %v10402 = vpack.c.b16 %v10322, %v10318
        %v10403 = vpack.c.b16 %v10327, %v10323
        %v10404 = vpack.c.b16 %v10328, %v10324
        %v10405 = vpack.c.b16 %v10329, %v10325
        %v10406 = vpack.c.b16 %v10330, %v10326
        %v10407 = vpack.c.b16 %v10335, %v10331
        %v10408 = vpack.c.b16 %v10336, %v10332
        %v10409 = vpack.c.b16 %v10337, %v10333
        %v10410 = vpack.c.b16 %v10338, %v10334
        %v10411 = vpack.c.b16 %v10343, %v10339
        %v10412 = vpack.c.b16 %v10344, %v10340
        %v10413 = vpack.c.b16 %v10345, %v10341
        %v10414 = vpack.c.b16 %v10346, %v10342
        %v10415 = vpack.c.b16 %v10351, %v10347
        %v10416 = vpack.c.b16 %v10352, %v10348
        %v10417 = vpack.c.b16 %v10353, %v10349
        %v10418 = vpack.c.b16 %v10354, %v10350
        %10483 = vmatpush.bf16.msra.mxu0 %v10383
        %10484 = vmatpush.bf16.msra.mxu0 %v10379
        %10485 = vmatpush.bf16.msra.mxu0 %v10375
        %10486 = vmatpush.bf16.msra.mxu0 %v10371
        %10487 = vmatpush.bf16.msra.mxu0 %v10367
        %10488 = vmatpush.bf16.msra.mxu0 %v10363
        %10489 = vmatpush.bf16.msra.mxu0 %v10359
        %10490 = vmatpush.bf16.msra.mxu0 %v10355
        %10491 = vmatmul.bf16.gmra.mxu0 %v10159
        %v10492 = vpop.f32.mrf.mxu0
        %v10493 = vadd.f32 0.0, %v10492
        %v10494 = vpop.f32.mrf.mxu0
        %10495 = vdwg.mxu0
        %10496 = vmatpush.bf16.msra.mxu0 %v10415
        %10497 = vmatpush.bf16.msra.mxu0 %v10411
        %10498 = vmatpush.bf16.msra.mxu0 %v10407
        %10499 = vmatpush.bf16.msra.mxu0 %v10403
        %10500 = vmatpush.bf16.msra.mxu0 %v10399
        %10501 = vmatpush.bf16.msra.mxu0 %v10395
        %10502 = vmatpush.bf16.msra.mxu0 %v10391
        %10503 = vmatpush.bf16.msra.mxu0 %v10387
        %10504 = vmatmul.bf16.gmra.mxu0 %v10160
        %v10505 = vpop.f32.mrf.mxu0
        %v10506 = vadd.f32 %v10493, %v10505
        %v10507 = vpop.f32.mrf.mxu0
        %10508 = vdwg.mxu0
        %10509 = vmatpush.bf16.msra.mxu0 %v10384
        %10510 = vmatpush.bf16.msra.mxu0 %v10380
        %10511 = vmatpush.bf16.msra.mxu0 %v10376
        %10512 = vmatpush.bf16.msra.mxu0 %v10372
        %10513 = vmatpush.bf16.msra.mxu0 %v10368
        %10514 = vmatpush.bf16.msra.mxu0 %v10364
        %10515 = vmatpush.bf16.msra.mxu0 %v10360
        %10516 = vmatpush.bf16.msra.mxu0 %v10356
        %10517 = vmatmul.bf16.gmra.mxu0 %v10159
        %v10518 = vpop.f32.mrf.mxu0
        %v10519 = vadd.f32 0.0, %v10518
        %v10520 = vpop.f32.mrf.mxu0
        %10521 = vdwg.mxu0
        %10522 = vmatpush.bf16.msra.mxu0 %v10416
        %10523 = vmatpush.bf16.msra.mxu0 %v10412
        %10524 = vmatpush.bf16.msra.mxu0 %v10408
        %10525 = vmatpush.bf16.msra.mxu0 %v10404
        %10526 = vmatpush.bf16.msra.mxu0 %v10400
        %10527 = vmatpush.bf16.msra.mxu0 %v10396
        %10528 = vmatpush.bf16.msra.mxu0 %v10392
        %10529 = vmatpush.bf16.msra.mxu0 %v10388
        %10530 = vmatmul.bf16.gmra.mxu0 %v10160
        %v10531 = vpop.f32.mrf.mxu0
        %v10532 = vadd.f32 %v10519, %v10531
        %v10533 = vpop.f32.mrf.mxu0
        %10534 = vdwg.mxu0
        %10535 = vmatpush.bf16.msra.mxu0 %v10385
        %10536 = vmatpush.bf16.msra.mxu0 %v10381
        %10537 = vmatpush.bf16.msra.mxu0 %v10377
        %10538 = vmatpush.bf16.msra.mxu0 %v10373
        %10539 = vmatpush.bf16.msra.mxu0 %v10369
        %10540 = vmatpush.bf16.msra.mxu0 %v10365
        %10541 = vmatpush.bf16.msra.mxu0 %v10361
        %10542 = vmatpush.bf16.msra.mxu0 %v10357
        %10543 = vmatmul.bf16.gmra.mxu0 %v10159
        %v10544 = vpop.f32.mrf.mxu0
        %v10545 = vadd.f32 0.0, %v10544
        %v10546 = vpop.f32.mrf.mxu0
        %10547 = vdwg.mxu0
        %10548 = vmatpush.bf16.msra.mxu0 %v10417
        %10549 = vmatpush.bf16.msra.mxu0 %v10413
        %10550 = vmatpush.bf16.msra.mxu0 %v10409
        %10551 = vmatpush.bf16.msra.mxu0 %v10405
        %10552 = vmatpush.bf16.msra.mxu0 %v10401
        %10553 = vmatpush.bf16.msra.mxu0 %v10397
        %10554 = vmatpush.bf16.msra.mxu0 %v10393
        %10555 = vmatpush.bf16.msra.mxu0 %v10389
        %10556 = vmatmul.bf16.gmra.mxu0 %v10160
        %v10557 = vpop.f32.mrf.mxu0
        %v10558 = vadd.f32 %v10545, %v10557
        %v10559 = vpop.f32.mrf.mxu0
        %10560 = vdwg.mxu0
        %10561 = vmatpush.bf16.msra.mxu0 %v10386
        %10562 = vmatpush.bf16.msra.mxu0 %v10382
        %10563 = vmatpush.bf16.msra.mxu0 %v10378
        %10564 = vmatpush.bf16.msra.mxu0 %v10374
        %10565 = vmatpush.bf16.msra.mxu0 %v10370
        %10566 = vmatpush.bf16.msra.mxu0 %v10366
        %10567 = vmatpush.bf16.msra.mxu0 %v10362
        %10568 = vmatpush.bf16.msra.mxu0 %v10358
        %10569 = vmatmul.bf16.gmra.mxu0 %v10159
        %v10570 = vpop.f32.mrf.mxu0
        %v10571 = vadd.f32 0.0, %v10570
        %v10572 = vpop.f32.mrf.mxu0
        %10573 = vdwg.mxu0
        %10574 = vmatpush.bf16.msra.mxu0 %v10418
        %10575 = vmatpush.bf16.msra.mxu0 %v10414
        %10576 = vmatpush.bf16.msra.mxu0 %v10410
        %10577 = vmatpush.bf16.msra.mxu0 %v10406
        %10578 = vmatpush.bf16.msra.mxu0 %v10402
        %10579 = vmatpush.bf16.msra.mxu0 %v10398
        %10580 = vmatpush.bf16.msra.mxu0 %v10394
        %10581 = vmatpush.bf16.msra.mxu0 %v10390
        %10582 = vmatmul.bf16.gmra.mxu0 %v10160
        %v10583 = vpop.f32.mrf.mxu0
        %v10584 = vadd.f32 %v10571, %v10583
        %v10585 = vpop.f32.mrf.mxu0
        %10586 = vdwg.mxu0
        %v10587 = vadd.f32 %v10084, %v10506
        %v10588 = vadd.f32 %v10085, %v10532
        %v10589 = vadd.f32 %v10086, %v10558
        %v10590 = vadd.f32 %v10087, %v10584
        %v10591 = vld [vmem:[%s14] sm:$0xf]
        %v10593 = vperm.slane %v10591, 0
        %v10594 = vperm.slane %v10591, 1
        %v10595 = vperm.slane %v10591, 2
        %v10596 = vperm.slane %v10591, 3
        %v10601 = vmul.f32 %v10587, %v10593
        %v10602 = vmul.f32 %v10588, %v10594
        %v10603 = vmul.f32 %v10589, %v10595
        %v10604 = vmul.f32 %v10590, %v10596
        %v10605 = vld [vmem:[%s15] sm:$0xf]
        %v10607 = vperm.slane %v10605, 0
        %v10608 = vperm.slane %v10605, 1
        %v10609 = vperm.slane %v10605, 2
        %v10610 = vperm.slane %v10605, 3
        %v10615 = vadd.f32 %v10601, %v10607
        %v10616 = vadd.f32 %v10602, %v10608
        %v10617 = vadd.f32 %v10603, %v10609
        %v10618 = vadd.f32 %v10604, %v10610
        %v10619 = vmax.f32 %v10615, 0.0
        %v10620 = vmax.f32 %v10616, 0.0
        %v10621 = vmax.f32 %v10617, 0.0
        %v10622 = vmax.f32 %v10618, 0.0
        %10623 = vst [vmem:[#allocation8] sm:$0x3f] %v10619
        %10624 = vst [vmem:[#allocation8 + $0x8] sm:$0x3f] %v10620
        %10625 = vst [vmem:[#allocation8 + $0x10] sm:$0x3f] %v10621
        %10626 = vst [vmem:[#allocation8 + $0x18] sm:$0x3f] %v10622
        %v10627 = vld [vmem:[#allocation8] ss:$8 sm:$0xf]
        %s10628 = scalar_lea.vmem [#allocation8], 1
        %v10629 = vld [vmem:[%s10628] ss:$8 sm:$0xf]
        %v10630 = vmax.f32 %v10627, %v10629
        %s10631 = scalar_lea.vmem [#allocation8], 4
        %v10632 = vld [vmem:[%s10631] ss:$8 sm:$0xf]
        %s10633 = scalar_lea.vmem [#allocation8], 5
        %v10634 = vld [vmem:[%s10633] ss:$8 sm:$0xf]
        %v10635 = vmax.f32 %v10632, %v10634
        %v10636 = vmax.f32 %v10630, %v10635
        %v10638 = vperm.slane %v10636, 0
        %v10639 = vperm.slane %v10636, 1
        %v10640 = vperm.slane %v10636, 2
        %v10641 = vperm.slane %v10636, 3
        %v10646 = vpack.c.bf16 %v10638, %v10638
        %v10647 = vpack.c.bf16 %v10639, %v10639
        %v10648 = vpack.c.bf16 %v10640, %v10640
        %v10649 = vpack.c.bf16 %v10641, %v10641
        %v10650 = vld [vmem:[%s17] sm:$0xf]
        %v10651 = vld [vmem:[%s17 + $0x4] sm:$0xf]
        %v10652 = vld [vmem:[%s17 + $0x8] sm:$0xf]
        %v10653 = vld [vmem:[%s17 + $0xc] sm:$0xf]
        %v10654 = vld [vmem:[%s17 + $0x10] sm:$0xf]
        %v10655 = vld [vmem:[%s17 + $0x14] sm:$0xf]
        %v10656 = vld [vmem:[%s17 + $0x18] sm:$0xf]
        %v10657 = vld [vmem:[%s17 + $0x1c] sm:$0xf]
        %v10658 = vld [vmem:[%s17 + $0x20] sm:$0xf]
        %v10659 = vld [vmem:[%s17 + $0x24] sm:$0xf]
        %v10660 = vld [vmem:[%s17 + $0x28] sm:$0xf]
        %v10661 = vld [vmem:[%s17 + $0x2c] sm:$0xf]
        %v10662 = vld [vmem:[%s17 + $0x30] sm:$0xf]
        %v10663 = vld [vmem:[%s17 + $0x34] sm:$0xf]
        %v10664 = vld [vmem:[%s17 + $0x38] sm:$0xf]
        %v10665 = vld [vmem:[%s17 + $0x3c] sm:$0xf]
        %v10666 = vld [vmem:[%s17 + $0x40] sm:$0xf]
        %v10667 = vld [vmem:[%s17 + $0x44] sm:$0xf]
        %v10668 = vld [vmem:[%s17 + $0x48] sm:$0xf]
        %v10669 = vld [vmem:[%s17 + $0x4c] sm:$0xf]
        %v10670 = vld [vmem:[%s17 + $0x50] sm:$0xf]
        %v10671 = vld [vmem:[%s17 + $0x54] sm:$0xf]
        %v10672 = vld [vmem:[%s17 + $0x58] sm:$0xf]
        %v10673 = vld [vmem:[%s17 + $0x5c] sm:$0xf]
        %v10674 = vld [vmem:[%s17 + $0x60] sm:$0xf]
        %v10675 = vld [vmem:[%s17 + $0x64] sm:$0xf]
        %v10676 = vld [vmem:[%s17 + $0x68] sm:$0xf]
        %v10677 = vld [vmem:[%s17 + $0x6c] sm:$0xf]
        %v10678 = vld [vmem:[%s17 + $0x70] sm:$0xf]
        %v10679 = vld [vmem:[%s17 + $0x74] sm:$0xf]
        %v10680 = vld [vmem:[%s17 + $0x78] sm:$0xf]
        %v10681 = vld [vmem:[%s17 + $0x7c] sm:$0xf]
        %v10682 = vld [vmem:[%s17 + $0x80] sm:$0xf]
        %v10683 = vld [vmem:[%s17 + $0x84] sm:$0xf]
        %v10684 = vld [vmem:[%s17 + $0x88] sm:$0xf]
        %v10685 = vld [vmem:[%s17 + $0x8c] sm:$0xf]
        %v10686 = vld [vmem:[%s17 + $0x90] sm:$0xf]
        %v10687 = vld [vmem:[%s17 + $0x94] sm:$0xf]
        %v10688 = vld [vmem:[%s17 + $0x98] sm:$0xf]
        %v10689 = vld [vmem:[%s17 + $0x9c] sm:$0xf]
        %v10690 = vld [vmem:[%s17 + $0xa0] sm:$0xf]
        %v10691 = vld [vmem:[%s17 + $0xa4] sm:$0xf]
        %v10692 = vld [vmem:[%s17 + $0xa8] sm:$0xf]
        %v10693 = vld [vmem:[%s17 + $0xac] sm:$0xf]
        %v10694 = vld [vmem:[%s17 + $0xb0] sm:$0xf]
        %v10695 = vld [vmem:[%s17 + $0xb4] sm:$0xf]
        %v10696 = vld [vmem:[%s17 + $0xb8] sm:$0xf]
        %v10697 = vld [vmem:[%s17 + $0xbc] sm:$0xf]
        %v10698 = vld [vmem:[%s17 + $0xc0] sm:$0xf]
        %v10699 = vld [vmem:[%s17 + $0xc4] sm:$0xf]
        %v10700 = vld [vmem:[%s17 + $0xc8] sm:$0xf]
        %v10701 = vld [vmem:[%s17 + $0xcc] sm:$0xf]
        %v10702 = vld [vmem:[%s17 + $0xd0] sm:$0xf]
        %v10703 = vld [vmem:[%s17 + $0xd4] sm:$0xf]
        %v10704 = vld [vmem:[%s17 + $0xd8] sm:$0xf]
        %v10705 = vld [vmem:[%s17 + $0xdc] sm:$0xf]
        %v10706 = vld [vmem:[%s17 + $0xe0] sm:$0xf]
        %v10707 = vld [vmem:[%s17 + $0xe4] sm:$0xf]
        %v10708 = vld [vmem:[%s17 + $0xe8] sm:$0xf]
        %v10709 = vld [vmem:[%s17 + $0xec] sm:$0xf]
        %v10710 = vld [vmem:[%s17 + $0xf0] sm:$0xf]
        %v10711 = vld [vmem:[%s17 + $0xf4] sm:$0xf]
        %v10712 = vld [vmem:[%s17 + $0xf8] sm:$0xf]
        %v10713 = vld [vmem:[%s17 + $0xfc] sm:$0xf]
        %v10714 = vld [vmem:[%s18] sm:$0x1]
        %v10779 = vunpack.c.l.b16 %v10650
        %v10780 = vunpack.c.l.b16 %v10651
        %v10781 = vunpack.c.l.b16 %v10652
        %v10782 = vunpack.c.l.b16 %v10653
        %v10783 = vunpack.c.l.b16 %v10654
        %v10784 = vunpack.c.l.b16 %v10655
        %v10785 = vunpack.c.l.b16 %v10656
        %v10786 = vunpack.c.l.b16 %v10657
        %v10787 = vunpack.c.l.b16 %v10658
        %v10788 = vunpack.c.l.b16 %v10659
        %v10789 = vunpack.c.l.b16 %v10660
        %v10790 = vunpack.c.l.b16 %v10661
        %v10791 = vunpack.c.l.b16 %v10662
        %v10792 = vunpack.c.l.b16 %v10663
        %v10793 = vunpack.c.l.b16 %v10664
        %v10794 = vunpack.c.l.b16 %v10665
        %v10795 = vunpack.c.l.b16 %v10666
        %v10796 = vunpack.c.l.b16 %v10667
        %v10797 = vunpack.c.l.b16 %v10668
        %v10798 = vunpack.c.l.b16 %v10669
        %v10799 = vunpack.c.l.b16 %v10670
        %v10800 = vunpack.c.l.b16 %v10671
        %v10801 = vunpack.c.l.b16 %v10672
        %v10802 = vunpack.c.l.b16 %v10673
        %v10803 = vunpack.c.l.b16 %v10674
        %v10804 = vunpack.c.l.b16 %v10675
        %v10805 = vunpack.c.l.b16 %v10676
        %v10806 = vunpack.c.l.b16 %v10677
        %v10807 = vunpack.c.l.b16 %v10678
        %v10808 = vunpack.c.l.b16 %v10679
        %v10809 = vunpack.c.l.b16 %v10680
        %v10810 = vunpack.c.l.b16 %v10681
        %v10811 = vunpack.c.l.b16 %v10682
        %v10812 = vunpack.c.l.b16 %v10683
        %v10813 = vunpack.c.l.b16 %v10684
        %v10814 = vunpack.c.l.b16 %v10685
        %v10815 = vunpack.c.l.b16 %v10686
        %v10816 = vunpack.c.l.b16 %v10687
        %v10817 = vunpack.c.l.b16 %v10688
        %v10818 = vunpack.c.l.b16 %v10689
        %v10819 = vunpack.c.l.b16 %v10690
        %v10820 = vunpack.c.l.b16 %v10691
        %v10821 = vunpack.c.l.b16 %v10692
        %v10822 = vunpack.c.l.b16 %v10693
        %v10823 = vunpack.c.l.b16 %v10694
        %v10824 = vunpack.c.l.b16 %v10695
        %v10825 = vunpack.c.l.b16 %v10696
        %v10826 = vunpack.c.l.b16 %v10697
        %v10827 = vunpack.c.l.b16 %v10698
        %v10828 = vunpack.c.l.b16 %v10699
        %v10829 = vunpack.c.l.b16 %v10700
        %v10830 = vunpack.c.l.b16 %v10701
        %v10831 = vunpack.c.l.b16 %v10702
        %v10832 = vunpack.c.l.b16 %v10703
        %v10833 = vunpack.c.l.b16 %v10704
        %v10834 = vunpack.c.l.b16 %v10705
        %v10835 = vunpack.c.l.b16 %v10706
        %v10836 = vunpack.c.l.b16 %v10707
        %v10837 = vunpack.c.l.b16 %v10708
        %v10838 = vunpack.c.l.b16 %v10709
        %v10839 = vunpack.c.l.b16 %v10710
        %v10840 = vunpack.c.l.b16 %v10711
        %v10841 = vunpack.c.l.b16 %v10712
        %v10842 = vunpack.c.l.b16 %v10713
        %v10843 = vpack.c.b16 %v10780, %v10779
        %v10844 = vpack.c.b16 %v10782, %v10781
        %v10845 = vpack.c.b16 %v10784, %v10783
        %v10846 = vpack.c.b16 %v10786, %v10785
        %v10847 = vpack.c.b16 %v10788, %v10787
        %v10848 = vpack.c.b16 %v10790, %v10789
        %v10849 = vpack.c.b16 %v10792, %v10791
        %v10850 = vpack.c.b16 %v10794, %v10793
        %v10851 = vpack.c.b16 %v10796, %v10795
        %v10852 = vpack.c.b16 %v10798, %v10797
        %v10853 = vpack.c.b16 %v10800, %v10799
        %v10854 = vpack.c.b16 %v10802, %v10801
        %v10855 = vpack.c.b16 %v10804, %v10803
        %v10856 = vpack.c.b16 %v10806, %v10805
        %v10857 = vpack.c.b16 %v10808, %v10807
        %v10858 = vpack.c.b16 %v10810, %v10809
        %v10859 = vpack.c.b16 %v10812, %v10811
        %v10860 = vpack.c.b16 %v10814, %v10813
        %v10861 = vpack.c.b16 %v10816, %v10815
        %v10862 = vpack.c.b16 %v10818, %v10817
        %v10863 = vpack.c.b16 %v10820, %v10819
        %v10864 = vpack.c.b16 %v10822, %v10821
        %v10865 = vpack.c.b16 %v10824, %v10823
        %v10866 = vpack.c.b16 %v10826, %v10825
        %v10867 = vpack.c.b16 %v10828, %v10827
        %v10868 = vpack.c.b16 %v10830, %v10829
        %v10869 = vpack.c.b16 %v10832, %v10831
        %v10870 = vpack.c.b16 %v10834, %v10833
        %v10871 = vpack.c.b16 %v10836, %v10835
        %v10872 = vpack.c.b16 %v10838, %v10837
        %v10873 = vpack.c.b16 %v10840, %v10839
        %v10874 = vpack.c.b16 %v10842, %v10841
        %10907 = vmatpush.bf16.msra.mxu0 %v10850
        %10908 = vmatpush.bf16.msra.mxu0 %v10849
        %10909 = vmatpush.bf16.msra.mxu0 %v10848
        %10910 = vmatpush.bf16.msra.mxu0 %v10847
        %10911 = vmatpush.bf16.msra.mxu0 %v10846
        %10912 = vmatpush.bf16.msra.mxu0 %v10845
        %10913 = vmatpush.bf16.msra.mxu0 %v10844
        %10914 = vmatpush.bf16.msra.mxu0 %v10843
        %10915 = vmatmul.bf16.gmra.mxu0 %v10646
        %v10916 = vpop.f32.mrf.mxu0
        %v10917 = vadd.f32 %v10714, %v10916
        %v10918 = vpop.f32.mrf.mxu0
        %10919 = vdwg.mxu0
        %10920 = vmatpush.bf16.msra.mxu0 %v10858
        %10921 = vmatpush.bf16.msra.mxu0 %v10857
        %10922 = vmatpush.bf16.msra.mxu0 %v10856
        %10923 = vmatpush.bf16.msra.mxu0 %v10855
        %10924 = vmatpush.bf16.msra.mxu0 %v10854
        %10925 = vmatpush.bf16.msra.mxu0 %v10853
        %10926 = vmatpush.bf16.msra.mxu0 %v10852
        %10927 = vmatpush.bf16.msra.mxu0 %v10851
        %10928 = vmatmul.bf16.gmra.mxu0 %v10647
        %v10929 = vpop.f32.mrf.mxu0
        %v10930 = vadd.f32 %v10917, %v10929
        %v10931 = vpop.f32.mrf.mxu0
        %10932 = vdwg.mxu0
        %10933 = vmatpush.bf16.msra.mxu0 %v10866
        %10934 = vmatpush.bf16.msra.mxu0 %v10865
        %10935 = vmatpush.bf16.msra.mxu0 %v10864
        %10936 = vmatpush.bf16.msra.mxu0 %v10863
        %10937 = vmatpush.bf16.msra.mxu0 %v10862
        %10938 = vmatpush.bf16.msra.mxu0 %v10861
        %10939 = vmatpush.bf16.msra.mxu0 %v10860
        %10940 = vmatpush.bf16.msra.mxu0 %v10859
        %10941 = vmatmul.bf16.gmra.mxu0 %v10648
        %v10942 = vpop.f32.mrf.mxu0
        %v10943 = vadd.f32 %v10930, %v10942
        %v10944 = vpop.f32.mrf.mxu0
        %10945 = vdwg.mxu0
        %10946 = vmatpush.bf16.msra.mxu0 %v10874
        %10947 = vmatpush.bf16.msra.mxu0 %v10873
        %10948 = vmatpush.bf16.msra.mxu0 %v10872
        %10949 = vmatpush.bf16.msra.mxu0 %v10871
        %10950 = vmatpush.bf16.msra.mxu0 %v10870
        %10951 = vmatpush.bf16.msra.mxu0 %v10869
        %10952 = vmatpush.bf16.msra.mxu0 %v10868
        %10953 = vmatpush.bf16.msra.mxu0 %v10867
        %10954 = vmatmul.bf16.gmra.mxu0 %v10649
        %v10955 = vpop.f32.mrf.mxu0
        %v10956 = vadd.f32 %v10943, %v10955
        %v10957 = vpop.f32.mrf.mxu0
        %10958 = vdwg.mxu0
        %10959 = vst [vmem:[%s596] sm:$0x1] %v10956
        %s10960 = sand.u32 %s447, 1
        %s10961 = scalar_lea.sflag [#allocation11], %s10960
        %s10962 = sand.u32 %s447, 1
        %s10963 = scalar_lea.vmem [#allocation10], %s10962
        // Predicated region
        $region97: #{classifier_forward.1} parent=95 // pred_check
          %p10964 = pneg %p457
        $region98: #{classifier_forward.1} parent=95 // pred_check_branch
          %10966 = sbr.rel (%p10964) target = $region100
        $region99: #{classifier_forward.1} parent=95 // pred_region
          %10968 = vsyncadd %s10961, 0
          %s10969 = scalar_lea.hbm %s19, %s35
          %s10971 = sshll.u32 %s10963, 4
          %s10972 = int_to_ptr.vmem [resolvable:$true] %s10971
          %s10973 = sshll.u32 %s10969, 4
          %s10974 = int_to_ptr.hbm [resolvable:$true] %s10973
          %10976 = dma.vmem_to_hbm [thread:$0]  %s10972, 16, %s10974, %s10961
        $region100: #{classifier_forward.1} parent=95 // pred_fallthru
          _
      $region96: #{classifier_forward.1} parent=5 // pred_fallthru
        _
      %p10977 = scmp.le.s32.totalorder 2, %s30
      // Predicated region
      $region101: #{classifier_forward.1} parent=5 // pred_check
        %p10978 = pneg %p10977
      $region102: #{classifier_forward.1} parent=5 // pred_check_branch
        %10980 = sbr.rel (%p10978) target = $region104
      $region103: #{classifier_forward.1} parent=5 // pred_region
        %s10981 = ssub.s32 %s30, 2
        // Predicated region
        $region105: #{classifier_forward.1} parent=103 // pred_check
          %p10982 = pneg %p463
        $region106: #{classifier_forward.1} parent=103 // pred_check_branch
          %10984 = sbr.rel (%p10982) target = $region108
        $region107: #{classifier_forward.1} parent=103 // pred_region
          %s10985 = sand.u32 %s448, 1
          %s10986 = scalar_lea.sflag [#allocation11], %s10985
          %s10987 = sand.u32 %s448, 1
          %s10988 = scalar_lea.vmem [#allocation10], %s10987
          %10990 = dma.done %s10986, 16
        $region108: #{classifier_forward.1} parent=103 // pred_fallthru
          _
      $region104: #{classifier_forward.1} parent=5 // pred_fallthru
        _
    $region6: #{classifier_forward.1} parent=1 // loop_footer
      %s34 = sadd.s32 1, %s30
    $region7: #{classifier_forward.1} parent=1 // loop_footer_branch
      %29 = sbr.rel target = $region3
    $region8: #{classifier_forward.1} parent=1 // loop_exit
      _
    %10991 = vsyncpa [#allocation11], 1
    %s10992 = scalar_lea.sflag [#allocation11], 1
    %10993 = vsyncpa %s10992, 1

</llo_original>
